<compile_context>
chip_gen: v6e
topology: v6e:2x2x1
jax: 0.10.0
libtpu: 0.0.40
codegen_flags: <defaults>
</compile_context>

<pallas_src>
import jax
import jax.numpy as jnp
from jax.experimental import pallas as pl
from jax.experimental.pallas import tpu as pltpu

# Set to jnp.bfloat16 on v5e/v6e/v7x to feed the MXU bf16 operands (2x MXU
# throughput and half the HBM traffic of the 9x im2col patch tensor, with f32
# accumulation).  Default is float32 to preserve exact parity with the f32
# PyTorch reference semantics.
MXU_DTYPE = jnp.float32

_VMEM_LIMIT = 32 * 1024 * 1024          # explicit scoped-VMEM limit (safe on v5e/v6e/v7x)
_PATCH_VMEM_BUDGET = 8 * 1024 * 1024    # budget for the double-buffered patch tile


# ---------------------------------------------------------------------------
# Kernel 1: backbone (Conv2d(C,F,3,pad=1) + ReLU + global avg pool), fused with
# the LSTM input projection.  Output: per-frame gate pre-activations (N, 4H).
# ---------------------------------------------------------------------------
def _backbone_proj_kernel(p_ref, cw_ref, cb_ref, wih_ref, lb_ref, o_ref):
    # p_ref:  (TN, HW, K) im2col patches     cw_ref: (K, F)   cb_ref: (1, F)
    # wih_ref:(F, 4H)  lb_ref: (1, 4H)       o_ref:  (TN, 4H)
    tn, hw, k = p_ref.shape
    p = p_ref[...].reshape(tn * hw, k)                       # leading-dim merge (cheap)
    y = jnp.dot(p, cw_ref[...], preferred_element_type=jnp.float32) + cb_ref[...]
    y = jnp.maximum(y, 0.0)                                  # ReLU
    feats = jnp.mean(y.reshape(tn, hw, -1), axis=1)          # global avg pool -> (TN, F)
    # Fused LSTM input projection: x @ W_ih^T + (b_ih + b_hh); lane-dense (4H=128).
    o_ref[...] = (jnp.dot(feats.astype(wih_ref.dtype), wih_ref[...],
                          preferred_element_type=jnp.float32)
                  + lb_ref[...])


def _pick_frame_tile(n, hw, k, itemsize, budget=_PATCH_VMEM_BUDGET):
    # Output block is (TN, 4H): its second-to-last dim must equal N or be a
    # multiple of 8, and TN must divide N.  Pick the largest tile whose
    # double-buffered input fits the VMEM budget (v7x has only 64 MiB VMEM).
    cands = {n}
    for d in range(8, n, 8):
        if n % d == 0:
            cands.add(d)
    for tn in sorted(cands, reverse=True):
        if 2 * tn * hw * k * itemsize <= budget:
            return tn
    return min(cands)


def backbone_proj_forward(frames, conv_w, conv_b, w_ih, b_ih, b_hh):
    # frames: (N, C, H, W); conv_w: (F, C, 3, 3); conv_b: (F,); w_ih: (4H, F)
    N, C, H, W = frames.shape
    F = conv_w.shape[0]
    G = w_ih.shape[0]                                        # 4 * rnn_size
    K = C * 9
    HW = H * W

    # im2col with padding=1 (XLA glue).  For very large H, W this should be
    # rebuilt in-kernel from shifted views to avoid the 9x HBM blowup.
    xp = jnp.pad(frames, ((0, 0), (0, 0), (1, 1), (1, 1)))
    cols = [xp[:, :, kh:kh + H, kw:kw + W] for kh in range(3) for kw in range(3)]
    patches = jnp.stack(cols, axis=2)                        # (N, C, 9, H, W)
    patches = patches.transpose(0, 3, 4, 1, 2).reshape(N, HW, K).astype(MXU_DTYPE)

    cw = conv_w.reshape(F, K).T.astype(MXU_DTYPE)            # (K, F)
    cb = conv_b.reshape(1, F)
    wih_t = w_ih.T.astype(MXU_DTYPE)                         # (F, 4H), gate order i,f,g,o
    lb = (b_ih + b_hh).reshape(1, G)

    TN = _pick_frame_tile(N, HW, K, jnp.dtype(MXU_DTYPE).itemsize)
    return pl.pallas_call(
        _backbone_proj_kernel,
        out_shape=jax.ShapeDtypeStruct((N, G), jnp.float32),
        grid_spec=pltpu.PrefetchScalarGridSpec(
            num_scalar_prefetch=0,
            grid=(N // TN,),
            in_specs=[
                pl.BlockSpec((TN, HW, K), lambda n: (n, 0, 0)),
                pl.BlockSpec((K, F), lambda n: (0, 0)),
                pl.BlockSpec((1, F), lambda n: (0, 0)),
                pl.BlockSpec((F, G), lambda n: (0, 0)),
                pl.BlockSpec((1, G), lambda n: (0, 0)),
            ],
            out_specs=pl.BlockSpec((TN, G), lambda n: (n, 0)),
        ),
        compiler_params=pltpu.CompilerParams(
            dimension_semantics=("parallel",),               # frame tiles shard across TCs
            vmem_limit_bytes=_VMEM_LIMIT),
    )(patches, cw, cb, wih_t, lb)


# ---------------------------------------------------------------------------
# Kernel 2: single-invocation LSTM recurrence (PyTorch gate order i, f, g, o)
# with the readout Linear fused at the end.
# ---------------------------------------------------------------------------
def _lstm_readout_kernel(xg_ref, whh_ref, row_ref, rob_ref, o_ref, hs_scr):
    # xg_ref: (TB, T, 4, H) precomputed x @ W_ih^T + (b_ih+b_hh), per-gate.
    # whh_ref:(4, H, H) per-gate W_hh^T   row_ref: (H, R)   rob_ref: (1, R)
    # o_ref:  (TB, T, R)                  hs_scr:  (TB, T, H) VMEM scratch
    tb, T, _, Hh = xg_ref.shape
    xg = xg_ref[...]                                         # loop-invariant, tiny
    whh = whh_ref[...]
    w_i, w_f, w_g, w_o = whh[0], whh[1], whh[2], whh[3]      # resident per-gate weights

    h = jnp.zeros((tb, Hh), jnp.float32)
    c = jnp.zeros((tb, Hh), jnp.float32)

    # T is a static, small compile-time constant: the loop is fully unrolled at
    # trace time (same code lax.fori_loop(..., unroll=True) would emit); every
    # index below is static, h/c never leave vregs/VMEM, and there is no
    # per-timestep grid/pipeline overhead.  For long T, switch to a fori_loop
    # over a time-major VMEM scratch with pl.ds indexing.
    for t in range(T):
        gi = jax.nn.sigmoid(xg[:, t, 0, :]
                            + jnp.dot(h, w_i, preferred_element_type=jnp.float32))
        gf = jax.nn.sigmoid(xg[:, t, 1, :]
                            + jnp.dot(h, w_f, preferred_element_type=jnp.float32))
        gg = jnp.tanh(xg[:, t, 2, :]
                      + jnp.dot(h, w_g, preferred_element_type=jnp.float32))
        go = jax.nn.sigmoid(xg[:, t, 3, :]
                            + jnp.dot(h, w_o, preferred_element_type=jnp.float32))
        c = gf * c + gi * gg
        h = go * jnp.tanh(c)
        hs_scr[:, t, :] = h                                  # static-index store

    # Fused readout: one (TB*T, H) @ (H, R) matmul, written batch-major.
    hs = hs_scr[...].reshape(tb * T, Hh)
    out = jnp.dot(hs, row_ref[...], preferred_element_type=jnp.float32) + rob_ref[...]
    o_ref[...] = out.reshape(tb, T, -1)


def _pick_batch_tile(b, max_tile=8):
    for tbc in range(min(b, max_tile), 0, -1):
        if b % tbc == 0:
            return tbc
    return b


def lstm_readout_forward(xg4, w_hh, ro_w, ro_b):
    # xg4: (B, T, 4, H) gate pre-activations; w_hh: (4H, H); ro_w: (R, H); ro_b: (R,)
    B, T, four, Hdim = xg4.shape
    assert four == 4
    R = ro_w.shape[0]
    # Per-gate W_hh^T so every in-loop dot is lane-aligned (no gate lane slicing).
    whh4 = w_hh.reshape(4, Hdim, Hdim).transpose(0, 2, 1)    # (4, H, H)
    row_t = ro_w.T                                           # (H, R)
    rob = ro_b.reshape(1, R)

    TB = _pick_batch_tile(B)
    return pl.pallas_call(
        _lstm_readout_kernel,
        out_shape=jax.ShapeDtypeStruct((B, T, R), jnp.float32),
        grid_spec=pltpu.PrefetchScalarGridSpec(
            num_scalar_prefetch=0,
            grid=(B // TB,),
            in_specs=[
                pl.BlockSpec((TB, T, 4, Hdim), lambda b: (b, 0, 0, 0)),
                pl.BlockSpec((4, Hdim, Hdim), lambda b: (0, 0, 0)),
                pl.BlockSpec((Hdim, R), lambda b: (0, 0)),
                pl.BlockSpec((1, R), lambda b: (0, 0)),
            ],
            out_specs=pl.BlockSpec((TB, T, R), lambda b: (b, 0, 0)),
            scratch_shapes=[pltpu.VMEM((TB, T, Hdim), jnp.float32)],
        ),
        compiler_params=pltpu.CompilerParams(
            dimension_semantics=("parallel",),               # batch tiles independent (v7x 2 TCs)
            vmem_limit_bytes=_VMEM_LIMIT),
    )(xg4, whh4, row_t, rob)


# ---------------------------------------------------------------------------
# Full CNN_RNN forward
# ---------------------------------------------------------------------------
@jax.jit
def cnn_rnn_forward(x, params):
    B, T, C, H, W = x.shape
    frames = x.reshape(B * T, C, H, W)                       # view(B*T, C, H, W)
    rnn_size = params["w_hh"].shape[1]
    # backbone + fused x @ W_ih^T -> (B*T, 4H); reshape to (B, T, 4, H) is a
    # contiguous view (no HBM relayout) since 4H lanes are [i | f | g | o].
    xg = backbone_proj_forward(frames, params["conv_w"], params["conv_b"],
                               params["w_ih"], params["b_ih"], params["b_hh"])
    xg4 = xg.reshape(B, T, 4, rnn_size)
    return lstm_readout_forward(xg4, params["w_hh"], params["ro_w"], params["ro_b"])


def init_params(key, c_in, feat, rnn_size, readout_size):
    ks = jax.random.split(key, 7)
    scale = 0.1
    return {
        "conv_w": scale * jax.random.normal(ks[0], (feat, c_in, 3, 3), jnp.float32),
        "conv_b": scale * jax.random.normal(ks[1], (feat,), jnp.float32),
        "w_ih": scale * jax.random.normal(ks[2], (4 * rnn_size, feat), jnp.float32),
        "w_hh": scale * jax.random.normal(ks[3], (4 * rnn_size, rnn_size), jnp.float32),
        "b_ih": scale * jax.random.normal(ks[4], (4 * rnn_size,), jnp.float32),
        "b_hh": scale * jax.random.normal(ks[5], (4 * rnn_size,), jnp.float32),
        "ro_w": scale * jax.random.normal(ks[6], (readout_size, rnn_size), jnp.float32),
        "ro_b": jnp.zeros((readout_size,), jnp.float32),
    }


if __name__ == "__main__":
    B, T, C, H, W = 2, 8, 4, 16, 16
    FEAT, RNN_SIZE, READOUT = 32, 32, 7

    key = jax.random.PRNGKey(0)
    kx, kp = jax.random.split(key)
    x = jax.random.normal(kx, (B, T, C, H, W), jnp.float32)
    params = init_params(kp, C, FEAT, RNN_SIZE, READOUT)

    out = cnn_rnn_forward(x, params)
    out = jax.block_until_ready(out)
    assert out.shape == (B, T, READOUT), out.shape
    print("KERNEL_OK")
</pallas_src>

<mosaic_0001>
module attributes {stable_mosaic.version = 11 : i64} {
  func.func @_backbone_proj_kernel(%arg0: i32, %arg1: memref<16x256x36xf32, #tpu.memory_space<vmem>>, %arg2: memref<36x32xf32, #tpu.memory_space<vmem>>, %arg3: memref<1x32xf32, #tpu.memory_space<vmem>>, %arg4: memref<32x128xf32, #tpu.memory_space<vmem>>, %arg5: memref<1x128xf32, #tpu.memory_space<vmem>>, %arg6: memref<16x128xf32, #tpu.memory_space<vmem>>) attributes {dimension_semantics = [#tpu.dimension_semantics<parallel>], iteration_bounds = array<i64: 1>, scalar_prefetch = 0 : i64, scratch_operands = 0 : i64, tpu.core_type = #tpu.core_type<tc>, window_params = [{transform_indices = @transform_0, window_bounds = array<i64: 16, 256, 36>}, {pipeline_mode = #tpu.pipeline_mode<synchronous>, transform_indices = @transform_1, window_bounds = array<i64: 36, 32>}, {pipeline_mode = #tpu.pipeline_mode<synchronous>, transform_indices = @transform_2, window_bounds = array<i64: 1, 32>}, {pipeline_mode = #tpu.pipeline_mode<synchronous>, transform_indices = @transform_3, window_bounds = array<i64: 32, 128>}, {pipeline_mode = #tpu.pipeline_mode<synchronous>, transform_indices = @transform_4, window_bounds = array<i64: 1, 128>}, {transform_indices = @transform_5, window_bounds = array<i64: 16, 128>}]} {
    %c0 = arith.constant 0 : index
    %c0_0 = arith.constant 0 : index
    %c0_1 = arith.constant 0 : index
    %0 = vector.load %arg1[%c0, %c0_0, %c0_1] : memref<16x256x36xf32, #tpu.memory_space<vmem>>, vector<16x256x36xf32>
    %1 = vector.shape_cast %0 : vector<16x256x36xf32> to vector<4096x36xf32>
    %c0_2 = arith.constant 0 : index
    %c0_3 = arith.constant 0 : index
    %2 = vector.load %arg2[%c0_2, %c0_3] : memref<36x32xf32, #tpu.memory_space<vmem>>, vector<36x32xf32>
    %cst = arith.constant dense<0.000000e+00> : vector<4096x32xf32>
    %3 = tpu.matmul %1, %2, %cst {dimension_numbers = #tpu.dot_dimension_numbers<[1], [0], [0], [1], [0, 0, 1, 1], [], []>} : vector<4096x36xf32>, vector<36x32xf32>, vector<4096x32xf32> -> vector<4096x32xf32>
    %c0_4 = arith.constant 0 : index
    %c0_5 = arith.constant 0 : index
    %4 = vector.load %arg3[%c0_4, %c0_5] : memref<1x32xf32, #tpu.memory_space<vmem>>, vector<1x32xf32>
    %5 = vector.broadcast %4 : vector<1x32xf32> to vector<4096x32xf32>
    %6 = arith.addf %3, %5 : vector<4096x32xf32>
    %cst_6 = arith.constant 0.000000e+00 : f32
    %7 = vector.broadcast %cst_6 : f32 to vector<4096x32xf32>
    %8 = arith.maximumf %6, %7 : vector<4096x32xf32>
    %9 = vector.shape_cast %8 : vector<4096x32xf32> to vector<16x256x32xf32>
    %cst_7 = arith.constant dense<0.000000e+00> : vector<16x32xf32>
    %10 = vector.multi_reduction <add>, %9, %cst_7 [1] : vector<16x256x32xf32> to vector<16x32xf32>
    %cst_8 = arith.constant 2.560000e+02 : f32
    %11 = vector.broadcast %cst_8 : f32 to vector<16x32xf32>
    %12 = arith.divf %10, %11 : vector<16x32xf32>
    %c0_9 = arith.constant 0 : index
    %c0_10 = arith.constant 0 : index
    %13 = vector.load %arg4[%c0_9, %c0_10] : memref<32x128xf32, #tpu.memory_space<vmem>>, vector<32x128xf32>
    %cst_11 = arith.constant dense<0.000000e+00> : vector<16x128xf32>
    %14 = tpu.matmul %12, %13, %cst_11 {dimension_numbers = #tpu.dot_dimension_numbers<[1], [0], [0], [1], [0, 0, 1, 1], [], []>} : vector<16x32xf32>, vector<32x128xf32>, vector<16x128xf32> -> vector<16x128xf32>
    %c0_12 = arith.constant 0 : index
    %c0_13 = arith.constant 0 : index
    %15 = vector.load %arg5[%c0_12, %c0_13] : memref<1x128xf32, #tpu.memory_space<vmem>>, vector<1x128xf32>
    %16 = vector.broadcast %15 : vector<1x128xf32> to vector<16x128xf32>
    %17 = arith.addf %14, %16 : vector<16x128xf32>
    %c0_14 = arith.constant 0 : index
    %c0_15 = arith.constant 0 : index
    %18 = vector.load %arg6[%c0_14, %c0_15] : memref<16x128xf32, #tpu.memory_space<vmem>>, vector<16x128xf32>
    tpu.vector_store %arg6[%c0_14, %c0_15], %17 {strides = array<i32>} : memref<16x128xf32, #tpu.memory_space<vmem>>, vector<16x128xf32>,
    return
  }
  func.func @transform_0(%arg0: i32) -> (i32, i32, i32) {
    %c0_i32 = arith.constant 0 : i32
    %c0_i32_0 = arith.constant 0 : i32
    %c0_i32_1 = arith.constant 0 : i32
    return %arg0, %c0_i32, %c0_i32_0 : i32, i32, i32
  }
  func.func @transform_1(%arg0: i32) -> (i32, i32) {
    %c0_i32 = arith.constant 0 : i32
    %c0_i32_0 = arith.constant 0 : i32
    %c0_i32_1 = arith.constant 0 : i32
    return %c0_i32, %c0_i32_0 : i32, i32
  }
  func.func @transform_2(%arg0: i32) -> (i32, i32) {
    %c0_i32 = arith.constant 0 : i32
    %c0_i32_0 = arith.constant 0 : i32
    %c0_i32_1 = arith.constant 0 : i32
    return %c0_i32, %c0_i32_0 : i32, i32
  }
  func.func @transform_3(%arg0: i32) -> (i32, i32) {
    %c0_i32 = arith.constant 0 : i32
    %c0_i32_0 = arith.constant 0 : i32
    %c0_i32_1 = arith.constant 0 : i32
    return %c0_i32, %c0_i32_0 : i32, i32
  }
  func.func @transform_4(%arg0: i32) -> (i32, i32) {
    %c0_i32 = arith.constant 0 : i32
    %c0_i32_0 = arith.constant 0 : i32
    %c0_i32_1 = arith.constant 0 : i32
    return %c0_i32, %c0_i32_0 : i32, i32
  }
  func.func @transform_5(%arg0: i32) -> (i32, i32) {
    %c0_i32 = arith.constant 0 : i32
    %c0_i32_0 = arith.constant 0 : i32
    return %arg0, %c0_i32 : i32, i32
  }
}

module attributes {stable_mosaic.version = 11 : i64} {
  func.func @_lstm_readout_kernel(%arg0: i32, %arg1: memref<2x8x4x32xf32, #tpu.memory_space<vmem>>, %arg2: memref<4x32x32xf32, #tpu.memory_space<vmem>>, %arg3: memref<32x7xf32, #tpu.memory_space<vmem>>, %arg4: memref<1x7xf32, #tpu.memory_space<vmem>>, %arg5: memref<2x8x7xf32, #tpu.memory_space<vmem>>, %arg6: memref<2x8x32xf32, #tpu.memory_space<vmem>>) attributes {dimension_semantics = [#tpu.dimension_semantics<parallel>], iteration_bounds = array<i64: 1>, scalar_prefetch = 0 : i64, scratch_operands = 1 : i64, tpu.core_type = #tpu.core_type<tc>, window_params = [{transform_indices = @transform_0, window_bounds = array<i64: 2, 8, 4, 32>}, {pipeline_mode = #tpu.pipeline_mode<synchronous>, transform_indices = @transform_1, window_bounds = array<i64: 4, 32, 32>}, {pipeline_mode = #tpu.pipeline_mode<synchronous>, transform_indices = @transform_2, window_bounds = array<i64: 32, 7>}, {pipeline_mode = #tpu.pipeline_mode<synchronous>, transform_indices = @transform_3, window_bounds = array<i64: 1, 7>}, {transform_indices = @transform_4, window_bounds = array<i64: 2, 8, 7>}]} {
    %c0 = arith.constant 0 : index
    %c0_0 = arith.constant 0 : index
    %c0_1 = arith.constant 0 : index
    %c0_2 = arith.constant 0 : index
    %0 = vector.load %arg1[%c0, %c0_0, %c0_1, %c0_2] : memref<2x8x4x32xf32, #tpu.memory_space<vmem>>, vector<2x8x4x32xf32>
    %c0_3 = arith.constant 0 : index
    %c0_4 = arith.constant 0 : index
    %c0_5 = arith.constant 0 : index
    %1 = vector.load %arg2[%c0_3, %c0_4, %c0_5] : memref<4x32x32xf32, #tpu.memory_space<vmem>>, vector<4x32x32xf32>
    %2 = vector.extract_strided_slice %1 {offsets = [0, 0, 0], sizes = [1, 32, 32], strides = [1, 1, 1]} : vector<4x32x32xf32> to vector<1x32x32xf32>
    %3 = vector.shape_cast %2 : vector<1x32x32xf32> to vector<32x32xf32>
    %4 = vector.extract_strided_slice %1 {offsets = [1, 0, 0], sizes = [1, 32, 32], strides = [1, 1, 1]} : vector<4x32x32xf32> to vector<1x32x32xf32>
    %5 = vector.shape_cast %4 : vector<1x32x32xf32> to vector<32x32xf32>
    %6 = vector.extract_strided_slice %1 {offsets = [2, 0, 0], sizes = [1, 32, 32], strides = [1, 1, 1]} : vector<4x32x32xf32> to vector<1x32x32xf32>
    %7 = vector.shape_cast %6 : vector<1x32x32xf32> to vector<32x32xf32>
    %8 = vector.extract_strided_slice %1 {offsets = [3, 0, 0], sizes = [1, 32, 32], strides = [1, 1, 1]} : vector<4x32x32xf32> to vector<1x32x32xf32>
    %9 = vector.shape_cast %8 : vector<1x32x32xf32> to vector<32x32xf32>
    %cst = arith.constant 0.000000e+00 : f32
    %10 = vector.broadcast %cst : f32 to vector<2x32xf32>
    %cst_6 = arith.constant 0.000000e+00 : f32
    %11 = vector.broadcast %cst_6 : f32 to vector<2x32xf32>
    %12 = vector.extract_strided_slice %0 {offsets = [0, 0, 0, 0], sizes = [2, 1, 1, 32], strides = [1, 1, 1, 1]} : vector<2x8x4x32xf32> to vector<2x1x1x32xf32>
    %13 = vector.shape_cast %12 : vector<2x1x1x32xf32> to vector<2x32xf32>
    %cst_7 = arith.constant dense<0.000000e+00> : vector<2x32xf32>
    %14 = tpu.matmul %10, %3, %cst_7 {dimension_numbers = #tpu.dot_dimension_numbers<[1], [0], [0], [1], [0, 0, 1, 1], [], []>} : vector<2x32xf32>, vector<32x32xf32>, vector<2x32xf32> -> vector<2x32xf32>
    %15 = arith.addf %13, %14 : vector<2x32xf32>
    %16 = arith.negf %15 : vector<2x32xf32>
    %17 = math.exp %16 : vector<2x32xf32>
    %cst_8 = arith.constant 1.000000e+00 : f32
    %18 = vector.broadcast %cst_8 : f32 to vector<2x32xf32>
    %19 = arith.addf %18, %17 : vector<2x32xf32>
    %20 = arith.divf %18, %19 : vector<2x32xf32>
    %21 = vector.extract_strided_slice %0 {offsets = [0, 0, 1, 0], sizes = [2, 1, 1, 32], strides = [1, 1, 1, 1]} : vector<2x8x4x32xf32> to vector<2x1x1x32xf32>
    %22 = vector.shape_cast %21 : vector<2x1x1x32xf32> to vector<2x32xf32>
    %cst_9 = arith.constant dense<0.000000e+00> : vector<2x32xf32>
    %23 = tpu.matmul %10, %5, %cst_9 {dimension_numbers = #tpu.dot_dimension_numbers<[1], [0], [0], [1], [0, 0, 1, 1], [], []>} : vector<2x32xf32>, vector<32x32xf32>, vector<2x32xf32> -> vector<2x32xf32>
    %24 = arith.addf %22, %23 : vector<2x32xf32>
    %25 = arith.negf %24 : vector<2x32xf32>
    %26 = math.exp %25 : vector<2x32xf32>
    %cst_10 = arith.constant 1.000000e+00 : f32
    %27 = vector.broadcast %cst_10 : f32 to vector<2x32xf32>
    %28 = arith.addf %27, %26 : vector<2x32xf32>
    %29 = arith.divf %27, %28 : vector<2x32xf32>
    %30 = vector.extract_strided_slice %0 {offsets = [0, 0, 2, 0], sizes = [2, 1, 1, 32], strides = [1, 1, 1, 1]} : vector<2x8x4x32xf32> to vector<2x1x1x32xf32>
    %31 = vector.shape_cast %30 : vector<2x1x1x32xf32> to vector<2x32xf32>
    %cst_11 = arith.constant dense<0.000000e+00> : vector<2x32xf32>
    %32 = tpu.matmul %10, %7, %cst_11 {dimension_numbers = #tpu.dot_dimension_numbers<[1], [0], [0], [1], [0, 0, 1, 1], [], []>} : vector<2x32xf32>, vector<32x32xf32>, vector<2x32xf32> -> vector<2x32xf32>
    %33 = arith.addf %31, %32 : vector<2x32xf32>
    %34 = math.tanh %33 : vector<2x32xf32>
    %35 = vector.extract_strided_slice %0 {offsets = [0, 0, 3, 0], sizes = [2, 1, 1, 32], strides = [1, 1, 1, 1]} : vector<2x8x4x32xf32> to vector<2x1x1x32xf32>
    %36 = vector.shape_cast %35 : vector<2x1x1x32xf32> to vector<2x32xf32>
    %cst_12 = arith.constant dense<0.000000e+00> : vector<2x32xf32>
    %37 = tpu.matmul %10, %9, %cst_12 {dimension_numbers = #tpu.dot_dimension_numbers<[1], [0], [0], [1], [0, 0, 1, 1], [], []>} : vector<2x32xf32>, vector<32x32xf32>, vector<2x32xf32> -> vector<2x32xf32>
    %38 = arith.addf %36, %37 : vector<2x32xf32>
    %39 = arith.negf %38 : vector<2x32xf32>
    %40 = math.exp %39 : vector<2x32xf32>
    %cst_13 = arith.constant 1.000000e+00 : f32
    %41 = vector.broadcast %cst_13 : f32 to vector<2x32xf32>
    %42 = arith.addf %41, %40 : vector<2x32xf32>
    %43 = arith.divf %41, %42 : vector<2x32xf32>
    %44 = arith.mulf %29, %11 : vector<2x32xf32>
    %45 = arith.mulf %20, %34 : vector<2x32xf32>
    %46 = arith.addf %44, %45 : vector<2x32xf32>
    %47 = math.tanh %46 : vector<2x32xf32>
    %48 = arith.mulf %43, %47 : vector<2x32xf32>
    %c0_14 = arith.constant 0 : index
    %c0_15 = arith.constant 0 : index
    %c0_16 = arith.constant 0 : index
    %49 = vector.load %arg6[%c0_14, %c0_15, %c0_16] : memref<2x8x32xf32, #tpu.memory_space<vmem>>, vector<2x1x32xf32>
    %50 = vector.shape_cast %49 : vector<2x1x32xf32> to vector<2x32xf32>
    %51 = vector.shape_cast %48 : vector<2x32xf32> to vector<2x1x32xf32>
    tpu.vector_store %arg6[%c0_14, %c0_15, %c0_16], %51 {strides = array<i32>} : memref<2x8x32xf32, #tpu.memory_space<vmem>>, vector<2x1x32xf32>,
    %52 = vector.extract_strided_slice %0 {offsets = [0, 1, 0, 0], sizes = [2, 1, 1, 32], strides = [1, 1, 1, 1]} : vector<2x8x4x32xf32> to vector<2x1x1x32xf32>
    %53 = vector.shape_cast %52 : vector<2x1x1x32xf32> to vector<2x32xf32>
    %cst_17 = arith.constant dense<0.000000e+00> : vector<2x32xf32>
    %54 = tpu.matmul %48, %3, %cst_17 {dimension_numbers = #tpu.dot_dimension_numbers<[1], [0], [0], [1], [0, 0, 1, 1], [], []>} : vector<2x32xf32>, vector<32x32xf32>, vector<2x32xf32> -> vector<2x32xf32>
    %55 = arith.addf %53, %54 : vector<2x32xf32>
    %56 = arith.negf %55 : vector<2x32xf32>
    %57 = math.exp %56 : vector<2x32xf32>
    %cst_18 = arith.constant 1.000000e+00 : f32
    %58 = vector.broadcast %cst_18 : f32 to vector<2x32xf32>
    %59 = arith.addf %58, %57 : vector<2x32xf32>
    %60 = arith.divf %58, %59 : vector<2x32xf32>
    %61 = vector.extract_strided_slice %0 {offsets = [0, 1, 1, 0], sizes = [2, 1, 1, 32], strides = [1, 1, 1, 1]} : vector<2x8x4x32xf32> to vector<2x1x1x32xf32>
    %62 = vector.shape_cast %61 : vector<2x1x1x32xf32> to vector<2x32xf32>
    %cst_19 = arith.constant dense<0.000000e+00> : vector<2x32xf32>
    %63 = tpu.matmul %48, %5, %cst_19 {dimension_numbers = #tpu.dot_dimension_numbers<[1], [0], [0], [1], [0, 0, 1, 1], [], []>} : vector<2x32xf32>, vector<32x32xf32>, vector<2x32xf32> -> vector<2x32xf32>
    %64 = arith.addf %62, %63 : vector<2x32xf32>
    %65 = arith.negf %64 : vector<2x32xf32>
    %66 = math.exp %65 : vector<2x32xf32>
    %cst_20 = arith.constant 1.000000e+00 : f32
    %67 = vector.broadcast %cst_20 : f32 to vector<2x32xf32>
    %68 = arith.addf %67, %66 : vector<2x32xf32>
    %69 = arith.divf %67, %68 : vector<2x32xf32>
    %70 = vector.extract_strided_slice %0 {offsets = [0, 1, 2, 0], sizes = [2, 1, 1, 32], strides = [1, 1, 1, 1]} : vector<2x8x4x32xf32> to vector<2x1x1x32xf32>
    %71 = vector.shape_cast %70 : vector<2x1x1x32xf32> to vector<2x32xf32>
    %cst_21 = arith.constant dense<0.000000e+00> : vector<2x32xf32>
    %72 = tpu.matmul %48, %7, %cst_21 {dimension_numbers = #tpu.dot_dimension_numbers<[1], [0], [0], [1], [0, 0, 1, 1], [], []>} : vector<2x32xf32>, vector<32x32xf32>, vector<2x32xf32> -> vector<2x32xf32>
    %73 = arith.addf %71, %72 : vector<2x32xf32>
    %74 = math.tanh %73 : vector<2x32xf32>
    %75 = vector.extract_strided_slice %0 {offsets = [0, 1, 3, 0], sizes = [2, 1, 1, 32], strides = [1, 1, 1, 1]} : vector<2x8x4x32xf32> to vector<2x1x1x32xf32>
    %76 = vector.shape_cast %75 : vector<2x1x1x32xf32> to vector<2x32xf32>
    %cst_22 = arith.constant dense<0.000000e+00> : vector<2x32xf32>
    %77 = tpu.matmul %48, %9, %cst_22 {dimension_numbers = #tpu.dot_dimension_numbers<[1], [0], [0], [1], [0, 0, 1, 1], [], []>} : vector<2x32xf32>, vector<32x32xf32>, vector<2x32xf32> -> vector<2x32xf32>
    %78 = arith.addf %76, %77 : vector<2x32xf32>
    %79 = arith.negf %78 : vector<2x32xf32>
    %80 = math.exp %79 : vector<2x32xf32>
    %cst_23 = arith.constant 1.000000e+00 : f32
    %81 = vector.broadcast %cst_23 : f32 to vector<2x32xf32>
    %82 = arith.addf %81, %80 : vector<2x32xf32>
    %83 = arith.divf %81, %82 : vector<2x32xf32>
    %84 = arith.mulf %69, %46 : vector<2x32xf32>
    %85 = arith.mulf %60, %74 : vector<2x32xf32>
    %86 = arith.addf %84, %85 : vector<2x32xf32>
    %87 = math.tanh %86 : vector<2x32xf32>
    %88 = arith.mulf %83, %87 : vector<2x32xf32>
    %c0_24 = arith.constant 0 : index
    %c1 = arith.constant 1 : index
    %c0_25 = arith.constant 0 : index
    %89 = vector.load %arg6[%c0_24, %c1, %c0_25] : memref<2x8x32xf32, #tpu.memory_space<vmem>>, vector<2x1x32xf32>
    %90 = vector.shape_cast %89 : vector<2x1x32xf32> to vector<2x32xf32>
    %91 = vector.shape_cast %88 : vector<2x32xf32> to vector<2x1x32xf32>
    tpu.vector_store %arg6[%c0_24, %c1, %c0_25], %91 {strides = array<i32>} : memref<2x8x32xf32, #tpu.memory_space<vmem>>, vector<2x1x32xf32>,
    %92 = vector.extract_strided_slice %0 {offsets = [0, 2, 0, 0], sizes = [2, 1, 1, 32], strides = [1, 1, 1, 1]} : vector<2x8x4x32xf32> to vector<2x1x1x32xf32>
    %93 = vector.shape_cast %92 : vector<2x1x1x32xf32> to vector<2x32xf32>
    %cst_26 = arith.constant dense<0.000000e+00> : vector<2x32xf32>
    %94 = tpu.matmul %88, %3, %cst_26 {dimension_numbers = #tpu.dot_dimension_numbers<[1], [0], [0], [1], [0, 0, 1, 1], [], []>} : vector<2x32xf32>, vector<32x32xf32>, vector<2x32xf32> -> vector<2x32xf32>
    %95 = arith.addf %93, %94 : vector<2x32xf32>
    %96 = arith.negf %95 : vector<2x32xf32>
    %97 = math.exp %96 : vector<2x32xf32>
    %cst_27 = arith.constant 1.000000e+00 : f32
    %98 = vector.broadcast %cst_27 : f32 to vector<2x32xf32>
    %99 = arith.addf %98, %97 : vector<2x32xf32>
    %100 = arith.divf %98, %99 : vector<2x32xf32>
    %101 = vector.extract_strided_slice %0 {offsets = [0, 2, 1, 0], sizes = [2, 1, 1, 32], strides = [1, 1, 1, 1]} : vector<2x8x4x32xf32> to vector<2x1x1x32xf32>
    %102 = vector.shape_cast %101 : vector<2x1x1x32xf32> to vector<2x32xf32>
    %cst_28 = arith.constant dense<0.000000e+00> : vector<2x32xf32>
    %103 = tpu.matmul %88, %5, %cst_28 {dimension_numbers = #tpu.dot_dimension_numbers<[1], [0], [0], [1], [0, 0, 1, 1], [], []>} : vector<2x32xf32>, vector<32x32xf32>, vector<2x32xf32> -> vector<2x32xf32>
    %104 = arith.addf %102, %103 : vector<2x32xf32>
    %105 = arith.negf %104 : vector<2x32xf32>
    %106 = math.exp %105 : vector<2x32xf32>
    %cst_29 = arith.constant 1.000000e+00 : f32
    %107 = vector.broadcast %cst_29 : f32 to vector<2x32xf32>
    %108 = arith.addf %107, %106 : vector<2x32xf32>
    %109 = arith.divf %107, %108 : vector<2x32xf32>
    %110 = vector.extract_strided_slice %0 {offsets = [0, 2, 2, 0], sizes = [2, 1, 1, 32], strides = [1, 1, 1, 1]} : vector<2x8x4x32xf32> to vector<2x1x1x32xf32>
    %111 = vector.shape_cast %110 : vector<2x1x1x32xf32> to vector<2x32xf32>
    %cst_30 = arith.constant dense<0.000000e+00> : vector<2x32xf32>
    %112 = tpu.matmul %88, %7, %cst_30 {dimension_numbers = #tpu.dot_dimension_numbers<[1], [0], [0], [1], [0, 0, 1, 1], [], []>} : vector<2x32xf32>, vector<32x32xf32>, vector<2x32xf32> -> vector<2x32xf32>
    %113 = arith.addf %111, %112 : vector<2x32xf32>
    %114 = math.tanh %113 : vector<2x32xf32>
    %115 = vector.extract_strided_slice %0 {offsets = [0, 2, 3, 0], sizes = [2, 1, 1, 32], strides = [1, 1, 1, 1]} : vector<2x8x4x32xf32> to vector<2x1x1x32xf32>
    %116 = vector.shape_cast %115 : vector<2x1x1x32xf32> to vector<2x32xf32>
    %cst_31 = arith.constant dense<0.000000e+00> : vector<2x32xf32>
    %117 = tpu.matmul %88, %9, %cst_31 {dimension_numbers = #tpu.dot_dimension_numbers<[1], [0], [0], [1], [0, 0, 1, 1], [], []>} : vector<2x32xf32>, vector<32x32xf32>, vector<2x32xf32> -> vector<2x32xf32>
    %118 = arith.addf %116, %117 : vector<2x32xf32>
    %119 = arith.negf %118 : vector<2x32xf32>
    %120 = math.exp %119 : vector<2x32xf32>
    %cst_32 = arith.constant 1.000000e+00 : f32
    %121 = vector.broadcast %cst_32 : f32 to vector<2x32xf32>
    %122 = arith.addf %121, %120 : vector<2x32xf32>
    %123 = arith.divf %121, %122 : vector<2x32xf32>
    %124 = arith.mulf %109, %86 : vector<2x32xf32>
    %125 = arith.mulf %100, %114 : vector<2x32xf32>
    %126 = arith.addf %124, %125 : vector<2x32xf32>
    %127 = math.tanh %126 : vector<2x32xf32>
    %128 = arith.mulf %123, %127 : vector<2x32xf32>
    %c0_33 = arith.constant 0 : index
    %c2 = arith.constant 2 : index
    %c0_34 = arith.constant 0 : index
    %129 = vector.load %arg6[%c0_33, %c2, %c0_34] : memref<2x8x32xf32, #tpu.memory_space<vmem>>, vector<2x1x32xf32>
    %130 = vector.shape_cast %129 : vector<2x1x32xf32> to vector<2x32xf32>
    %131 = vector.shape_cast %128 : vector<2x32xf32> to vector<2x1x32xf32>
    tpu.vector_store %arg6[%c0_33, %c2, %c0_34], %131 {strides = array<i32>} : memref<2x8x32xf32, #tpu.memory_space<vmem>>, vector<2x1x32xf32>,
    %132 = vector.extract_strided_slice %0 {offsets = [0, 3, 0, 0], sizes = [2, 1, 1, 32], strides = [1, 1, 1, 1]} : vector<2x8x4x32xf32> to vector<2x1x1x32xf32>
    %133 = vector.shape_cast %132 : vector<2x1x1x32xf32> to vector<2x32xf32>
    %cst_35 = arith.constant dense<0.000000e+00> : vector<2x32xf32>
    %134 = tpu.matmul %128, %3, %cst_35 {dimension_numbers = #tpu.dot_dimension_numbers<[1], [0], [0], [1], [0, 0, 1, 1], [], []>} : vector<2x32xf32>, vector<32x32xf32>, vector<2x32xf32> -> vector<2x32xf32>
    %135 = arith.addf %133, %134 : vector<2x32xf32>
    %136 = arith.negf %135 : vector<2x32xf32>
    %137 = math.exp %136 : vector<2x32xf32>
    %cst_36 = arith.constant 1.000000e+00 : f32
    %138 = vector.broadcast %cst_36 : f32 to vector<2x32xf32>
    %139 = arith.addf %138, %137 : vector<2x32xf32>
    %140 = arith.divf %138, %139 : vector<2x32xf32>
    %141 = vector.extract_strided_slice %0 {offsets = [0, 3, 1, 0], sizes = [2, 1, 1, 32], strides = [1, 1, 1, 1]} : vector<2x8x4x32xf32> to vector<2x1x1x32xf32>
    %142 = vector.shape_cast %141 : vector<2x1x1x32xf32> to vector<2x32xf32>
    %cst_37 = arith.constant dense<0.000000e+00> : vector<2x32xf32>
    %143 = tpu.matmul %128, %5, %cst_37 {dimension_numbers = #tpu.dot_dimension_numbers<[1], [0], [0], [1], [0, 0, 1, 1], [], []>} : vector<2x32xf32>, vector<32x32xf32>, vector<2x32xf32> -> vector<2x32xf32>
    %144 = arith.addf %142, %143 : vector<2x32xf32>
    %145 = arith.negf %144 : vector<2x32xf32>
    %146 = math.exp %145 : vector<2x32xf32>
    %cst_38 = arith.constant 1.000000e+00 : f32
    %147 = vector.broadcast %cst_38 : f32 to vector<2x32xf32>
    %148 = arith.addf %147, %146 : vector<2x32xf32>
    %149 = arith.divf %147, %148 : vector<2x32xf32>
    %150 = vector.extract_strided_slice %0 {offsets = [0, 3, 2, 0], sizes = [2, 1, 1, 32], strides = [1, 1, 1, 1]} : vector<2x8x4x32xf32> to vector<2x1x1x32xf32>
    %151 = vector.shape_cast %150 : vector<2x1x1x32xf32> to vector<2x32xf32>
    %cst_39 = arith.constant dense<0.000000e+00> : vector<2x32xf32>
    %152 = tpu.matmul %128, %7, %cst_39 {dimension_numbers = #tpu.dot_dimension_numbers<[1], [0], [0], [1], [0, 0, 1, 1], [], []>} : vector<2x32xf32>, vector<32x32xf32>, vector<2x32xf32> -> vector<2x32xf32>
    %153 = arith.addf %151, %152 : vector<2x32xf32>
    %154 = math.tanh %153 : vector<2x32xf32>
    %155 = vector.extract_strided_slice %0 {offsets = [0, 3, 3, 0], sizes = [2, 1, 1, 32], strides = [1, 1, 1, 1]} : vector<2x8x4x32xf32> to vector<2x1x1x32xf32>
    %156 = vector.shape_cast %155 : vector<2x1x1x32xf32> to vector<2x32xf32>
    %cst_40 = arith.constant dense<0.000000e+00> : vector<2x32xf32>
    %157 = tpu.matmul %128, %9, %cst_40 {dimension_numbers = #tpu.dot_dimension_numbers<[1], [0], [0], [1], [0, 0, 1, 1], [], []>} : vector<2x32xf32>, vector<32x32xf32>, vector<2x32xf32> -> vector<2x32xf32>
    %158 = arith.addf %156, %157 : vector<2x32xf32>
    %159 = arith.negf %158 : vector<2x32xf32>
    %160 = math.exp %159 : vector<2x32xf32>
    %cst_41 = arith.constant 1.000000e+00 : f32
    %161 = vector.broadcast %cst_41 : f32 to vector<2x32xf32>
    %162 = arith.addf %161, %160 : vector<2x32xf32>
    %163 = arith.divf %161, %162 : vector<2x32xf32>
    %164 = arith.mulf %149, %126 : vector<2x32xf32>
    %165 = arith.mulf %140, %154 : vector<2x32xf32>
    %166 = arith.addf %164, %165 : vector<2x32xf32>
    %167 = math.tanh %166 : vector<2x32xf32>
    %168 = arith.mulf %163, %167 : vector<2x32xf32>
    %c0_42 = arith.constant 0 : index
    %c3 = arith.constant 3 : index
    %c0_43 = arith.constant 0 : index
    %169 = vector.load %arg6[%c0_42, %c3, %c0_43] : memref<2x8x32xf32, #tpu.memory_space<vmem>>, vector<2x1x32xf32>
    %170 = vector.shape_cast %169 : vector<2x1x32xf32> to vector<2x32xf32>
    %171 = vector.shape_cast %168 : vector<2x32xf32> to vector<2x1x32xf32>
    tpu.vector_store %arg6[%c0_42, %c3, %c0_43], %171 {strides = array<i32>} : memref<2x8x32xf32, #tpu.memory_space<vmem>>, vector<2x1x32xf32>,
    %172 = vector.extract_strided_slice %0 {offsets = [0, 4, 0, 0], sizes = [2, 1, 1, 32], strides = [1, 1, 1, 1]} : vector<2x8x4x32xf32> to vector<2x1x1x32xf32>
    %173 = vector.shape_cast %172 : vector<2x1x1x32xf32> to vector<2x32xf32>
    %cst_44 = arith.constant dense<0.000000e+00> : vector<2x32xf32>
    %174 = tpu.matmul %168, %3, %cst_44 {dimension_numbers = #tpu.dot_dimension_numbers<[1], [0], [0], [1], [0, 0, 1, 1], [], []>} : vector<2x32xf32>, vector<32x32xf32>, vector<2x32xf32> -> vector<2x32xf32>
    %175 = arith.addf %173, %174 : vector<2x32xf32>
    %176 = arith.negf %175 : vector<2x32xf32>
    %177 = math.exp %176 : vector<2x32xf32>
    %cst_45 = arith.constant 1.000000e+00 : f32
    %178 = vector.broadcast %cst_45 : f32 to vector<2x32xf32>
    %179 = arith.addf %178, %177 : vector<2x32xf32>
    %180 = arith.divf %178, %179 : vector<2x32xf32>
    %181 = vector.extract_strided_slice %0 {offsets = [0, 4, 1, 0], sizes = [2, 1, 1, 32], strides = [1, 1, 1, 1]} : vector<2x8x4x32xf32> to vector<2x1x1x32xf32>
    %182 = vector.shape_cast %181 : vector<2x1x1x32xf32> to vector<2x32xf32>
    %cst_46 = arith.constant dense<0.000000e+00> : vector<2x32xf32>
    %183 = tpu.matmul %168, %5, %cst_46 {dimension_numbers = #tpu.dot_dimension_numbers<[1], [0], [0], [1], [0, 0, 1, 1], [], []>} : vector<2x32xf32>, vector<32x32xf32>, vector<2x32xf32> -> vector<2x32xf32>
    %184 = arith.addf %182, %183 : vector<2x32xf32>
    %185 = arith.negf %184 : vector<2x32xf32>
    %186 = math.exp %185 : vector<2x32xf32>
    %cst_47 = arith.constant 1.000000e+00 : f32
    %187 = vector.broadcast %cst_47 : f32 to vector<2x32xf32>
    %188 = arith.addf %187, %186 : vector<2x32xf32>
    %189 = arith.divf %187, %188 : vector<2x32xf32>
    %190 = vector.extract_strided_slice %0 {offsets = [0, 4, 2, 0], sizes = [2, 1, 1, 32], strides = [1, 1, 1, 1]} : vector<2x8x4x32xf32> to vector<2x1x1x32xf32>
    %191 = vector.shape_cast %190 : vector<2x1x1x32xf32> to vector<2x32xf32>
    %cst_48 = arith.constant dense<0.000000e+00> : vector<2x32xf32>
    %192 = tpu.matmul %168, %7, %cst_48 {dimension_numbers = #tpu.dot_dimension_numbers<[1], [0], [0], [1], [0, 0, 1, 1], [], []>} : vector<2x32xf32>, vector<32x32xf32>, vector<2x32xf32> -> vector<2x32xf32>
    %193 = arith.addf %191, %192 : vector<2x32xf32>
    %194 = math.tanh %193 : vector<2x32xf32>
    %195 = vector.extract_strided_slice %0 {offsets = [0, 4, 3, 0], sizes = [2, 1, 1, 32], strides = [1, 1, 1, 1]} : vector<2x8x4x32xf32> to vector<2x1x1x32xf32>
    %196 = vector.shape_cast %195 : vector<2x1x1x32xf32> to vector<2x32xf32>
    %cst_49 = arith.constant dense<0.000000e+00> : vector<2x32xf32>
    %197 = tpu.matmul %168, %9, %cst_49 {dimension_numbers = #tpu.dot_dimension_numbers<[1], [0], [0], [1], [0, 0, 1, 1], [], []>} : vector<2x32xf32>, vector<32x32xf32>, vector<2x32xf32> -> vector<2x32xf32>
    %198 = arith.addf %196, %197 : vector<2x32xf32>
    %199 = arith.negf %198 : vector<2x32xf32>
    %200 = math.exp %199 : vector<2x32xf32>
    %cst_50 = arith.constant 1.000000e+00 : f32
    %201 = vector.broadcast %cst_50 : f32 to vector<2x32xf32>
    %202 = arith.addf %201, %200 : vector<2x32xf32>
    %203 = arith.divf %201, %202 : vector<2x32xf32>
    %204 = arith.mulf %189, %166 : vector<2x32xf32>
    %205 = arith.mulf %180, %194 : vector<2x32xf32>
    %206 = arith.addf %204, %205 : vector<2x32xf32>
    %207 = math.tanh %206 : vector<2x32xf32>
    %208 = arith.mulf %203, %207 : vector<2x32xf32>
    %c0_51 = arith.constant 0 : index
    %c4 = arith.constant 4 : index
    %c0_52 = arith.constant 0 : index
    %209 = vector.load %arg6[%c0_51, %c4, %c0_52] : memref<2x8x32xf32, #tpu.memory_space<vmem>>, vector<2x1x32xf32>
    %210 = vector.shape_cast %209 : vector<2x1x32xf32> to vector<2x32xf32>
    %211 = vector.shape_cast %208 : vector<2x32xf32> to vector<2x1x32xf32>
    tpu.vector_store %arg6[%c0_51, %c4, %c0_52], %211 {strides = array<i32>} : memref<2x8x32xf32, #tpu.memory_space<vmem>>, vector<2x1x32xf32>,
    %212 = vector.extract_strided_slice %0 {offsets = [0, 5, 0, 0], sizes = [2, 1, 1, 32], strides = [1, 1, 1, 1]} : vector<2x8x4x32xf32> to vector<2x1x1x32xf32>
    %213 = vector.shape_cast %212 : vector<2x1x1x32xf32> to vector<2x32xf32>
    %cst_53 = arith.constant dense<0.000000e+00> : vector<2x32xf32>
    %214 = tpu.matmul %208, %3, %cst_53 {dimension_numbers = #tpu.dot_dimension_numbers<[1], [0], [0], [1], [0, 0, 1, 1], [], []>} : vector<2x32xf32>, vector<32x32xf32>, vector<2x32xf32> -> vector<2x32xf32>
    %215 = arith.addf %213, %214 : vector<2x32xf32>
    %216 = arith.negf %215 : vector<2x32xf32>
    %217 = math.exp %216 : vector<2x32xf32>
    %cst_54 = arith.constant 1.000000e+00 : f32
    %218 = vector.broadcast %cst_54 : f32 to vector<2x32xf32>
    %219 = arith.addf %218, %217 : vector<2x32xf32>
    %220 = arith.divf %218, %219 : vector<2x32xf32>
    %221 = vector.extract_strided_slice %0 {offsets = [0, 5, 1, 0], sizes = [2, 1, 1, 32], strides = [1, 1, 1, 1]} : vector<2x8x4x32xf32> to vector<2x1x1x32xf32>
    %222 = vector.shape_cast %221 : vector<2x1x1x32xf32> to vector<2x32xf32>
    %cst_55 = arith.constant dense<0.000000e+00> : vector<2x32xf32>
    %223 = tpu.matmul %208, %5, %cst_55 {dimension_numbers = #tpu.dot_dimension_numbers<[1], [0], [0], [1], [0, 0, 1, 1], [], []>} : vector<2x32xf32>, vector<32x32xf32>, vector<2x32xf32> -> vector<2x32xf32>
    %224 = arith.addf %222, %223 : vector<2x32xf32>
    %225 = arith.negf %224 : vector<2x32xf32>
    %226 = math.exp %225 : vector<2x32xf32>
    %cst_56 = arith.constant 1.000000e+00 : f32
    %227 = vector.broadcast %cst_56 : f32 to vector<2x32xf32>
    %228 = arith.addf %227, %226 : vector<2x32xf32>
    %229 = arith.divf %227, %228 : vector<2x32xf32>
    %230 = vector.extract_strided_slice %0 {offsets = [0, 5, 2, 0], sizes = [2, 1, 1, 32], strides = [1, 1, 1, 1]} : vector<2x8x4x32xf32> to vector<2x1x1x32xf32>
    %231 = vector.shape_cast %230 : vector<2x1x1x32xf32> to vector<2x32xf32>
    %cst_57 = arith.constant dense<0.000000e+00> : vector<2x32xf32>
    %232 = tpu.matmul %208, %7, %cst_57 {dimension_numbers = #tpu.dot_dimension_numbers<[1], [0], [0], [1], [0, 0, 1, 1], [], []>} : vector<2x32xf32>, vector<32x32xf32>, vector<2x32xf32> -> vector<2x32xf32>
    %233 = arith.addf %231, %232 : vector<2x32xf32>
    %234 = math.tanh %233 : vector<2x32xf32>
    %235 = vector.extract_strided_slice %0 {offsets = [0, 5, 3, 0], sizes = [2, 1, 1, 32], strides = [1, 1, 1, 1]} : vector<2x8x4x32xf32> to vector<2x1x1x32xf32>
    %236 = vector.shape_cast %235 : vector<2x1x1x32xf32> to vector<2x32xf32>
    %cst_58 = arith.constant dense<0.000000e+00> : vector<2x32xf32>
    %237 = tpu.matmul %208, %9, %cst_58 {dimension_numbers = #tpu.dot_dimension_numbers<[1], [0], [0], [1], [0, 0, 1, 1], [], []>} : vector<2x32xf32>, vector<32x32xf32>, vector<2x32xf32> -> vector<2x32xf32>
    %238 = arith.addf %236, %237 : vector<2x32xf32>
    %239 = arith.negf %238 : vector<2x32xf32>
    %240 = math.exp %239 : vector<2x32xf32>
    %cst_59 = arith.constant 1.000000e+00 : f32
    %241 = vector.broadcast %cst_59 : f32 to vector<2x32xf32>
    %242 = arith.addf %241, %240 : vector<2x32xf32>
    %243 = arith.divf %241, %242 : vector<2x32xf32>
    %244 = arith.mulf %229, %206 : vector<2x32xf32>
    %245 = arith.mulf %220, %234 : vector<2x32xf32>
    %246 = arith.addf %244, %245 : vector<2x32xf32>
    %247 = math.tanh %246 : vector<2x32xf32>
    %248 = arith.mulf %243, %247 : vector<2x32xf32>
    %c0_60 = arith.constant 0 : index
    %c5 = arith.constant 5 : index
    %c0_61 = arith.constant 0 : index
    %249 = vector.load %arg6[%c0_60, %c5, %c0_61] : memref<2x8x32xf32, #tpu.memory_space<vmem>>, vector<2x1x32xf32>
    %250 = vector.shape_cast %249 : vector<2x1x32xf32> to vector<2x32xf32>
    %251 = vector.shape_cast %248 : vector<2x32xf32> to vector<2x1x32xf32>
    tpu.vector_store %arg6[%c0_60, %c5, %c0_61], %251 {strides = array<i32>} : memref<2x8x32xf32, #tpu.memory_space<vmem>>, vector<2x1x32xf32>,
    %252 = vector.extract_strided_slice %0 {offsets = [0, 6, 0, 0], sizes = [2, 1, 1, 32], strides = [1, 1, 1, 1]} : vector<2x8x4x32xf32> to vector<2x1x1x32xf32>
    %253 = vector.shape_cast %252 : vector<2x1x1x32xf32> to vector<2x32xf32>
    %cst_62 = arith.constant dense<0.000000e+00> : vector<2x32xf32>
    %254 = tpu.matmul %248, %3, %cst_62 {dimension_numbers = #tpu.dot_dimension_numbers<[1], [0], [0], [1], [0, 0, 1, 1], [], []>} : vector<2x32xf32>, vector<32x32xf32>, vector<2x32xf32> -> vector<2x32xf32>
    %255 = arith.addf %253, %254 : vector<2x32xf32>
    %256 = arith.negf %255 : vector<2x32xf32>
    %257 = math.exp %256 : vector<2x32xf32>
    %cst_63 = arith.constant 1.000000e+00 : f32
    %258 = vector.broadcast %cst_63 : f32 to vector<2x32xf32>
    %259 = arith.addf %258, %257 : vector<2x32xf32>
    %260 = arith.divf %258, %259 : vector<2x32xf32>
    %261 = vector.extract_strided_slice %0 {offsets = [0, 6, 1, 0], sizes = [2, 1, 1, 32], strides = [1, 1, 1, 1]} : vector<2x8x4x32xf32> to vector<2x1x1x32xf32>
    %262 = vector.shape_cast %261 : vector<2x1x1x32xf32> to vector<2x32xf32>
    %cst_64 = arith.constant dense<0.000000e+00> : vector<2x32xf32>
    %263 = tpu.matmul %248, %5, %cst_64 {dimension_numbers = #tpu.dot_dimension_numbers<[1], [0], [0], [1], [0, 0, 1, 1], [], []>} : vector<2x32xf32>, vector<32x32xf32>, vector<2x32xf32> -> vector<2x32xf32>
    %264 = arith.addf %262, %263 : vector<2x32xf32>
    %265 = arith.negf %264 : vector<2x32xf32>
    %266 = math.exp %265 : vector<2x32xf32>
    %cst_65 = arith.constant 1.000000e+00 : f32
    %267 = vector.broadcast %cst_65 : f32 to vector<2x32xf32>
    %268 = arith.addf %267, %266 : vector<2x32xf32>
    %269 = arith.divf %267, %268 : vector<2x32xf32>
    %270 = vector.extract_strided_slice %0 {offsets = [0, 6, 2, 0], sizes = [2, 1, 1, 32], strides = [1, 1, 1, 1]} : vector<2x8x4x32xf32> to vector<2x1x1x32xf32>
    %271 = vector.shape_cast %270 : vector<2x1x1x32xf32> to vector<2x32xf32>
    %cst_66 = arith.constant dense<0.000000e+00> : vector<2x32xf32>
    %272 = tpu.matmul %248, %7, %cst_66 {dimension_numbers = #tpu.dot_dimension_numbers<[1], [0], [0], [1], [0, 0, 1, 1], [], []>} : vector<2x32xf32>, vector<32x32xf32>, vector<2x32xf32> -> vector<2x32xf32>
    %273 = arith.addf %271, %272 : vector<2x32xf32>
    %274 = math.tanh %273 : vector<2x32xf32>
    %275 = vector.extract_strided_slice %0 {offsets = [0, 6, 3, 0], sizes = [2, 1, 1, 32], strides = [1, 1, 1, 1]} : vector<2x8x4x32xf32> to vector<2x1x1x32xf32>
    %276 = vector.shape_cast %275 : vector<2x1x1x32xf32> to vector<2x32xf32>
    %cst_67 = arith.constant dense<0.000000e+00> : vector<2x32xf32>
    %277 = tpu.matmul %248, %9, %cst_67 {dimension_numbers = #tpu.dot_dimension_numbers<[1], [0], [0], [1], [0, 0, 1, 1], [], []>} : vector<2x32xf32>, vector<32x32xf32>, vector<2x32xf32> -> vector<2x32xf32>
    %278 = arith.addf %276, %277 : vector<2x32xf32>
    %279 = arith.negf %278 : vector<2x32xf32>
    %280 = math.exp %279 : vector<2x32xf32>
    %cst_68 = arith.constant 1.000000e+00 : f32
    %281 = vector.broadcast %cst_68 : f32 to vector<2x32xf32>
    %282 = arith.addf %281, %280 : vector<2x32xf32>
    %283 = arith.divf %281, %282 : vector<2x32xf32>
    %284 = arith.mulf %269, %246 : vector<2x32xf32>
    %285 = arith.mulf %260, %274 : vector<2x32xf32>
    %286 = arith.addf %284, %285 : vector<2x32xf32>
    %287 = math.tanh %286 : vector<2x32xf32>
    %288 = arith.mulf %283, %287 : vector<2x32xf32>
    %c0_69 = arith.constant 0 : index
    %c6 = arith.constant 6 : index
    %c0_70 = arith.constant 0 : index
    %289 = vector.load %arg6[%c0_69, %c6, %c0_70] : memref<2x8x32xf32, #tpu.memory_space<vmem>>, vector<2x1x32xf32>
    %290 = vector.shape_cast %289 : vector<2x1x32xf32> to vector<2x32xf32>
    %291 = vector.shape_cast %288 : vector<2x32xf32> to vector<2x1x32xf32>
    tpu.vector_store %arg6[%c0_69, %c6, %c0_70], %291 {strides = array<i32>} : memref<2x8x32xf32, #tpu.memory_space<vmem>>, vector<2x1x32xf32>,
    %292 = vector.extract_strided_slice %0 {offsets = [0, 7, 0, 0], sizes = [2, 1, 1, 32], strides = [1, 1, 1, 1]} : vector<2x8x4x32xf32> to vector<2x1x1x32xf32>
    %293 = vector.shape_cast %292 : vector<2x1x1x32xf32> to vector<2x32xf32>
    %cst_71 = arith.constant dense<0.000000e+00> : vector<2x32xf32>
    %294 = tpu.matmul %288, %3, %cst_71 {dimension_numbers = #tpu.dot_dimension_numbers<[1], [0], [0], [1], [0, 0, 1, 1], [], []>} : vector<2x32xf32>, vector<32x32xf32>, vector<2x32xf32> -> vector<2x32xf32>
    %295 = arith.addf %293, %294 : vector<2x32xf32>
    %296 = arith.negf %295 : vector<2x32xf32>
    %297 = math.exp %296 : vector<2x32xf32>
    %cst_72 = arith.constant 1.000000e+00 : f32
    %298 = vector.broadcast %cst_72 : f32 to vector<2x32xf32>
    %299 = arith.addf %298, %297 : vector<2x32xf32>
    %300 = arith.divf %298, %299 : vector<2x32xf32>
    %301 = vector.extract_strided_slice %0 {offsets = [0, 7, 1, 0], sizes = [2, 1, 1, 32], strides = [1, 1, 1, 1]} : vector<2x8x4x32xf32> to vector<2x1x1x32xf32>
    %302 = vector.shape_cast %301 : vector<2x1x1x32xf32> to vector<2x32xf32>
    %cst_73 = arith.constant dense<0.000000e+00> : vector<2x32xf32>
    %303 = tpu.matmul %288, %5, %cst_73 {dimension_numbers = #tpu.dot_dimension_numbers<[1], [0], [0], [1], [0, 0, 1, 1], [], []>} : vector<2x32xf32>, vector<32x32xf32>, vector<2x32xf32> -> vector<2x32xf32>
    %304 = arith.addf %302, %303 : vector<2x32xf32>
    %305 = arith.negf %304 : vector<2x32xf32>
    %306 = math.exp %305 : vector<2x32xf32>
    %cst_74 = arith.constant 1.000000e+00 : f32
    %307 = vector.broadcast %cst_74 : f32 to vector<2x32xf32>
    %308 = arith.addf %307, %306 : vector<2x32xf32>
    %309 = arith.divf %307, %308 : vector<2x32xf32>
    %310 = vector.extract_strided_slice %0 {offsets = [0, 7, 2, 0], sizes = [2, 1, 1, 32], strides = [1, 1, 1, 1]} : vector<2x8x4x32xf32> to vector<2x1x1x32xf32>
    %311 = vector.shape_cast %310 : vector<2x1x1x32xf32> to vector<2x32xf32>
    %cst_75 = arith.constant dense<0.000000e+00> : vector<2x32xf32>
    %312 = tpu.matmul %288, %7, %cst_75 {dimension_numbers = #tpu.dot_dimension_numbers<[1], [0], [0], [1], [0, 0, 1, 1], [], []>} : vector<2x32xf32>, vector<32x32xf32>, vector<2x32xf32> -> vector<2x32xf32>
    %313 = arith.addf %311, %312 : vector<2x32xf32>
    %314 = math.tanh %313 : vector<2x32xf32>
    %315 = vector.extract_strided_slice %0 {offsets = [0, 7, 3, 0], sizes = [2, 1, 1, 32], strides = [1, 1, 1, 1]} : vector<2x8x4x32xf32> to vector<2x1x1x32xf32>
    %316 = vector.shape_cast %315 : vector<2x1x1x32xf32> to vector<2x32xf32>
    %cst_76 = arith.constant dense<0.000000e+00> : vector<2x32xf32>
    %317 = tpu.matmul %288, %9, %cst_76 {dimension_numbers = #tpu.dot_dimension_numbers<[1], [0], [0], [1], [0, 0, 1, 1], [], []>} : vector<2x32xf32>, vector<32x32xf32>, vector<2x32xf32> -> vector<2x32xf32>
    %318 = arith.addf %316, %317 : vector<2x32xf32>
    %319 = arith.negf %318 : vector<2x32xf32>
    %320 = math.exp %319 : vector<2x32xf32>
    %cst_77 = arith.constant 1.000000e+00 : f32
    %321 = vector.broadcast %cst_77 : f32 to vector<2x32xf32>
    %322 = arith.addf %321, %320 : vector<2x32xf32>
    %323 = arith.divf %321, %322 : vector<2x32xf32>
    %324 = arith.mulf %309, %286 : vector<2x32xf32>
    %325 = arith.mulf %300, %314 : vector<2x32xf32>
    %326 = arith.addf %324, %325 : vector<2x32xf32>
    %327 = math.tanh %326 : vector<2x32xf32>
    %328 = arith.mulf %323, %327 : vector<2x32xf32>
    %c0_78 = arith.constant 0 : index
    %c7 = arith.constant 7 : index
    %c0_79 = arith.constant 0 : index
    %329 = vector.load %arg6[%c0_78, %c7, %c0_79] : memref<2x8x32xf32, #tpu.memory_space<vmem>>, vector<2x1x32xf32>
    %330 = vector.shape_cast %329 : vector<2x1x32xf32> to vector<2x32xf32>
    %331 = vector.shape_cast %328 : vector<2x32xf32> to vector<2x1x32xf32>
    tpu.vector_store %arg6[%c0_78, %c7, %c0_79], %331 {strides = array<i32>} : memref<2x8x32xf32, #tpu.memory_space<vmem>>, vector<2x1x32xf32>,
    %c0_80 = arith.constant 0 : index
    %c0_81 = arith.constant 0 : index
    %c0_82 = arith.constant 0 : index
    %332 = vector.load %arg6[%c0_80, %c0_81, %c0_82] : memref<2x8x32xf32, #tpu.memory_space<vmem>>, vector<2x8x32xf32>
    %333 = vector.shape_cast %332 : vector<2x8x32xf32> to vector<16x32xf32>
    %c0_83 = arith.constant 0 : index
    %c0_84 = arith.constant 0 : index
    %334 = vector.load %arg3[%c0_83, %c0_84] : memref<32x7xf32, #tpu.memory_space<vmem>>, vector<32x7xf32>
    %cst_85 = arith.constant dense<0.000000e+00> : vector<16x7xf32>
    %335 = tpu.matmul %333, %334, %cst_85 {dimension_numbers = #tpu.dot_dimension_numbers<[1], [0], [0], [1], [0, 0, 1, 1], [], []>} : vector<16x32xf32>, vector<32x7xf32>, vector<16x7xf32> -> vector<16x7xf32>
    %c0_86 = arith.constant 0 : index
    %c0_87 = arith.constant 0 : index
    %336 = vector.load %arg4[%c0_86, %c0_87] : memref<1x7xf32, #tpu.memory_space<vmem>>, vector<1x7xf32>
    %337 = vector.broadcast %336 : vector<1x7xf32> to vector<16x7xf32>
    %338 = arith.addf %335, %337 : vector<16x7xf32>
    %339 = vector.shape_cast %338 : vector<16x7xf32> to vector<2x8x7xf32>
    %c0_88 = arith.constant 0 : index
    %c0_89 = arith.constant 0 : index
    %c0_90 = arith.constant 0 : index
    %340 = vector.load %arg5[%c0_88, %c0_89, %c0_90] : memref<2x8x7xf32, #tpu.memory_space<vmem>>, vector<2x8x7xf32>
    tpu.vector_store %arg5[%c0_88, %c0_89, %c0_90], %339 {strides = array<i32>} : memref<2x8x7xf32, #tpu.memory_space<vmem>>, vector<2x8x7xf32>,
    return
  }
  func.func @transform_0(%arg0: i32) -> (i32, i32, i32, i32) {
    %c0_i32 = arith.constant 0 : i32
    %c0_i32_0 = arith.constant 0 : i32
    %c0_i32_1 = arith.constant 0 : i32
    %c0_i32_2 = arith.constant 0 : i32
    return %arg0, %c0_i32, %c0_i32_0, %c0_i32_1 : i32, i32, i32, i32
  }
  func.func @transform_1(%arg0: i32) -> (i32, i32, i32) {
    %c0_i32 = arith.constant 0 : i32
    %c0_i32_0 = arith.constant 0 : i32
    %c0_i32_1 = arith.constant 0 : i32
    %c0_i32_2 = arith.constant 0 : i32
    return %c0_i32, %c0_i32_0, %c0_i32_1 : i32, i32, i32
  }
  func.func @transform_2(%arg0: i32) -> (i32, i32) {
    %c0_i32 = arith.constant 0 : i32
    %c0_i32_0 = arith.constant 0 : i32
    %c0_i32_1 = arith.constant 0 : i32
    return %c0_i32, %c0_i32_0 : i32, i32
  }
  func.func @transform_3(%arg0: i32) -> (i32, i32) {
    %c0_i32 = arith.constant 0 : i32
    %c0_i32_0 = arith.constant 0 : i32
    %c0_i32_1 = arith.constant 0 : i32
    return %c0_i32, %c0_i32_0 : i32, i32
  }
  func.func @transform_4(%arg0: i32) -> (i32, i32, i32) {
    %c0_i32 = arith.constant 0 : i32
    %c0_i32_0 = arith.constant 0 : i32
    %c0_i32_1 = arith.constant 0 : i32
    return %arg0, %c0_i32, %c0_i32_0 : i32, i32, i32
  }
}

</mosaic_0001>

<llo_original>
// kernel: cnn_rnn_forward.3
$region0: #{cnn_rnn_forward.3}
  #allocation0 [shape = 'u32[]', space=smem, size = 0x4, offset = 0x4, fixed_abs, tag = 'smem constant byte address 0x4 - core index']
  #allocation1 [shape = 'u32[144,128]{1,0:T(1,128)}', space=vmem, size = 0x12000, scoped, tag = 'internal scratch']
  #allocation2 [shape = 'f32[2,8,32]{2,1,0:T(8,128)}', space=vmem, size = 0x2000, scoped, tag = 'scratch operand']
  %s0 = inlined_call_operand.vmem [shape: f32[2,8,4,32], index: 0, kind: input, shape index: {}]
  %s1 = inlined_call_operand.vmem [shape: f32[4,32,32], index: 1, kind: input, shape index: {}]
  %s2 = inlined_call_operand.vmem [shape: f32[32,7], index: 2, kind: input, shape index: {}]
  %s3 = inlined_call_operand.vmem [shape: f32[1,7], index: 3, kind: input, shape index: {}]
  %s4 = inlined_call_operand.vmem [shape: f32[2,8,7], index: 4, kind: output, shape index: {}]
  %s5 = sld [smem:[#allocation0]]
  $region26: #{cnn_rnn_forward.3} parent=0
    _
  %s7 = ssub.s32 1, %s5
  %s8 = scalar_select 0, %s7, %s5
  // Predicated region
  $region2: #{cnn_rnn_forward.3} parent=0 // pred_check
    _
  $region3: #{cnn_rnn_forward.3} parent=0 // pred_check_branch
    %10 = sbr.rel (0) target = $region5
  $region4: #{cnn_rnn_forward.3} parent=0 // pred_region
    _
  $region5: #{cnn_rnn_forward.3} parent=0 // pred_fallthru
    _
  // Predicated region
  $region6: #{cnn_rnn_forward.3} parent=0 // pred_check
    _
  $region7: #{cnn_rnn_forward.3} parent=0 // pred_check_branch
    %12 = sbr.rel (0) target = $region9
  $region8: #{cnn_rnn_forward.3} parent=0 // pred_region
    _
  $region9: #{cnn_rnn_forward.3} parent=0 // pred_fallthru
    _
  // Predicated region
  $region10: #{cnn_rnn_forward.3} parent=0 // pred_check
    _
  $region11: #{cnn_rnn_forward.3} parent=0 // pred_check_branch
    %14 = sbr.rel (0) target = $region13
  $region12: #{cnn_rnn_forward.3} parent=0 // pred_region
    _
  $region13: #{cnn_rnn_forward.3} parent=0 // pred_fallthru
    _
  // Predicated region
  $region14: #{cnn_rnn_forward.3} parent=0 // pred_check
    _
  $region15: #{cnn_rnn_forward.3} parent=0 // pred_check_branch
    %16 = sbr.rel (0) target = $region17
  $region16: #{cnn_rnn_forward.3} parent=0 // pred_region
    _
  $region17: #{cnn_rnn_forward.3} parent=0 // pred_fallthru
    _
  %v17 = vld [vmem:[%s0] sm:$0xf]
  %v18 = vld [vmem:[%s0 + $0x4] sm:$0xf]
  %v19 = vld [vmem:[%s0 + $0x8] sm:$0xf]
  %v20 = vld [vmem:[%s0 + $0xc] sm:$0xf]
  %v21 = vld [vmem:[%s0 + $0x10] sm:$0xf]
  %v22 = vld [vmem:[%s0 + $0x14] sm:$0xf]
  %v23 = vld [vmem:[%s0 + $0x18] sm:$0xf]
  %v24 = vld [vmem:[%s0 + $0x1c] sm:$0xf]
  %v25 = vld [vmem:[%s0 + $0x20] sm:$0xf]
  %v26 = vld [vmem:[%s0 + $0x24] sm:$0xf]
  %v27 = vld [vmem:[%s0 + $0x28] sm:$0xf]
  %v28 = vld [vmem:[%s0 + $0x2c] sm:$0xf]
  %v29 = vld [vmem:[%s0 + $0x30] sm:$0xf]
  %v30 = vld [vmem:[%s0 + $0x34] sm:$0xf]
  %v31 = vld [vmem:[%s0 + $0x38] sm:$0xf]
  %v32 = vld [vmem:[%s0 + $0x3c] sm:$0xf]
  %v33 = vld [vmem:[%s1] sm:$0xff]
  %v34 = vld [vmem:[%s1 + $0x8] sm:$0xff]
  %v35 = vld [vmem:[%s1 + $0x10] sm:$0xff]
  %v36 = vld [vmem:[%s1 + $0x18] sm:$0xff]
  %v37 = vld [vmem:[%s1 + $0x20] sm:$0xff]
  %v38 = vld [vmem:[%s1 + $0x28] sm:$0xff]
  %v39 = vld [vmem:[%s1 + $0x30] sm:$0xff]
  %v40 = vld [vmem:[%s1 + $0x38] sm:$0xff]
  %v41 = vld [vmem:[%s1 + $0x40] sm:$0xff]
  %v42 = vld [vmem:[%s1 + $0x48] sm:$0xff]
  %v43 = vld [vmem:[%s1 + $0x50] sm:$0xff]
  %v44 = vld [vmem:[%s1 + $0x58] sm:$0xff]
  %v45 = vld [vmem:[%s1 + $0x60] sm:$0xff]
  %v46 = vld [vmem:[%s1 + $0x68] sm:$0xff]
  %v47 = vld [vmem:[%s1 + $0x70] sm:$0xff]
  %v48 = vld [vmem:[%s1 + $0x78] sm:$0xff]
  %vm49 = vcmask 261120
  %v51 = vsel %vm49, 0.0, 0
  %53 = vmatprep.subr.mxu0 0.0
  %54 = vmatpush1.msra.mxu0 0.0
  %55 = vmatprep.subr.mxu0 0.0
  %56 = vmatpush1.msra.mxu0 0.0
  %57 = vmatprep.subr.mxu0 0.0
  %58 = vmatpush1.msra.mxu0 0.0
  %59 = vmatprep.subr.mxu0 0.0
  %60 = vmatpush1.msra.mxu0 0.0
  %61 = vmatprep.subr.mxu0 0.0
  %62 = vmatpush1.msra.mxu0 0.0
  %63 = vmatprep.subr.mxu0 0.0
  %64 = vmatpush1.msra.mxu0 0.0
  %65 = vmatprep.subr.mxu0 0.0
  %66 = vmatpush1.msra.mxu0 0.0
  %67 = vmatprep.subr.mxu0 0.0
  %68 = vmatpush1.msra.mxu0 0.0
  %69 = vmatprep.subr.mxu0 0.0
  %70 = vmatpush1.msra.mxu0 0.0
  %71 = vmatprep.subr.mxu0 0.0
  %72 = vmatpush1.msra.mxu0 0.0
  %73 = vmatprep.subr.mxu0 0.0
  %74 = vmatpush1.msra.mxu0 0.0
  %75 = vmatprep.subr.mxu0 0.0
  %76 = vmatpush1.msra.mxu0 0.0
  %77 = vmatprep.subr.mxu0 0.0
  %78 = vmatpush1.msra.mxu0 %v36
  %79 = vmatprep.subr.mxu0 0.0
  %80 = vmatpush1.msra.mxu0 %v35
  %81 = vmatprep.subr.mxu0 0.0
  %82 = vmatpush1.msra.mxu0 %v34
  %83 = vmatprep.subr.mxu0 0.0
  %84 = vmatpush1.msra.mxu0 %v33
  %85 = vmatprep.subr.mxu0 0.0
  %86 = vmatpush2.msra.mxu0 0.0
  %87 = vmatprep.subr.mxu0 0.0
  %88 = vmatpush2.msra.mxu0 0.0
  %89 = vmatprep.subr.mxu0 0.0
  %90 = vmatpush2.msra.mxu0 0.0
  %91 = vmatprep.subr.mxu0 0.0
  %92 = vmatpush2.msra.mxu0 0.0
  %93 = vmatprep.subr.mxu0 0.0
  %94 = vmatpush2.msra.mxu0 0.0
  %95 = vmatprep.subr.mxu0 0.0
  %96 = vmatpush2.msra.mxu0 0.0
  %97 = vmatprep.subr.mxu0 0.0
  %98 = vmatpush2.msra.mxu0 0.0
  %99 = vmatprep.subr.mxu0 0.0
  %100 = vmatpush2.msra.mxu0 0.0
  %101 = vmatprep.subr.mxu0 0.0
  %102 = vmatpush2.msra.mxu0 0.0
  %103 = vmatprep.subr.mxu0 0.0
  %104 = vmatpush2.msra.mxu0 0.0
  %105 = vmatprep.subr.mxu0 0.0
  %106 = vmatpush2.msra.mxu0 0.0
  %107 = vmatprep.subr.mxu0 0.0
  %108 = vmatpush2.msra.mxu0 0.0
  %109 = vmatprep.subr.mxu0 0.0
  %110 = vmatpush2.msra.mxu0 0.0
  %111 = vmatprep.subr.mxu0 0.0
  %112 = vmatpush2.msra.mxu0 0.0
  %113 = vmatprep.subr.mxu0 0.0
  %114 = vmatpush2.msra.mxu0 0.0
  %115 = vmatprep.subr.mxu0 0.0
  %116 = vmatpush2.msra.mxu0 0.0
  %117 = vmatprep.mubr.f32.mxu0 0.0
  %118 = vmatmul.mubr.f32.gmra.mxu0 %v51
  %v119 = vpop.f32.mrf.mxu0
  %v120 = vadd.f32 0.0, %v119
  %v121 = vpop.f32.mrf.mxu0
  %122 = vdwg.mxu0
  %v124 = vrot.slane %v120, 1
  %v127 = vadd.f32 %v17, %v120
  %v128 = vadd.f32 %v25, %v124
  %v129 = vxor.u32 %v127, 2147483648
  %v130 = vxor.u32 %v128, 2147483648
  %v131 = vmul.f32 %v129, 1.442695
  %v132 = vpow.pop %v131
  %v133 = vmul.f32 %v130, 1.442695
  %v134 = vpow.pop %v133
  %v135 = vadd.f32 %v132, 1.0
  %v136 = vadd.f32 %v134, 1.0
  %v137 = vrcp.pop %v135
  %v138 = vmul.f32 1.0, %v137
  %v139 = vrcp.pop %v136
  %v140 = vmul.f32 1.0, %v139
  %141 = vmatprep.subr.mxu0 0.0
  %142 = vmatpush1.msra.mxu0 0.0
  %143 = vmatprep.subr.mxu0 0.0
  %144 = vmatpush1.msra.mxu0 0.0
  %145 = vmatprep.subr.mxu0 0.0
  %146 = vmatpush1.msra.mxu0 0.0
  %147 = vmatprep.subr.mxu0 0.0
  %148 = vmatpush1.msra.mxu0 0.0
  %149 = vmatprep.subr.mxu0 0.0
  %150 = vmatpush1.msra.mxu0 0.0
  %151 = vmatprep.subr.mxu0 0.0
  %152 = vmatpush1.msra.mxu0 0.0
  %153 = vmatprep.subr.mxu0 0.0
  %154 = vmatpush1.msra.mxu0 0.0
  %155 = vmatprep.subr.mxu0 0.0
  %156 = vmatpush1.msra.mxu0 0.0
  %157 = vmatprep.subr.mxu0 0.0
  %158 = vmatpush1.msra.mxu0 0.0
  %159 = vmatprep.subr.mxu0 0.0
  %160 = vmatpush1.msra.mxu0 0.0
  %161 = vmatprep.subr.mxu0 0.0
  %162 = vmatpush1.msra.mxu0 0.0
  %163 = vmatprep.subr.mxu0 0.0
  %164 = vmatpush1.msra.mxu0 0.0
  %165 = vmatprep.subr.mxu0 0.0
  %166 = vmatpush1.msra.mxu0 %v40
  %167 = vmatprep.subr.mxu0 0.0
  %168 = vmatpush1.msra.mxu0 %v39
  %169 = vmatprep.subr.mxu0 0.0
  %170 = vmatpush1.msra.mxu0 %v38
  %171 = vmatprep.subr.mxu0 0.0
  %172 = vmatpush1.msra.mxu0 %v37
  %173 = vmatprep.subr.mxu0 0.0
  %174 = vmatpush2.msra.mxu0 0.0
  %175 = vmatprep.subr.mxu0 0.0
  %176 = vmatpush2.msra.mxu0 0.0
  %177 = vmatprep.subr.mxu0 0.0
  %178 = vmatpush2.msra.mxu0 0.0
  %179 = vmatprep.subr.mxu0 0.0
  %180 = vmatpush2.msra.mxu0 0.0
  %181 = vmatprep.subr.mxu0 0.0
  %182 = vmatpush2.msra.mxu0 0.0
  %183 = vmatprep.subr.mxu0 0.0
  %184 = vmatpush2.msra.mxu0 0.0
  %185 = vmatprep.subr.mxu0 0.0
  %186 = vmatpush2.msra.mxu0 0.0
  %187 = vmatprep.subr.mxu0 0.0
  %188 = vmatpush2.msra.mxu0 0.0
  %189 = vmatprep.subr.mxu0 0.0
  %190 = vmatpush2.msra.mxu0 0.0
  %191 = vmatprep.subr.mxu0 0.0
  %192 = vmatpush2.msra.mxu0 0.0
  %193 = vmatprep.subr.mxu0 0.0
  %194 = vmatpush2.msra.mxu0 0.0
  %195 = vmatprep.subr.mxu0 0.0
  %196 = vmatpush2.msra.mxu0 0.0
  %197 = vmatprep.subr.mxu0 0.0
  %198 = vmatpush2.msra.mxu0 0.0
  %199 = vmatprep.subr.mxu0 0.0
  %200 = vmatpush2.msra.mxu0 0.0
  %201 = vmatprep.subr.mxu0 0.0
  %202 = vmatpush2.msra.mxu0 0.0
  %203 = vmatprep.subr.mxu0 0.0
  %204 = vmatpush2.msra.mxu0 0.0
  %205 = vmatprep.mubr.f32.mxu0 0.0
  %206 = vmatmul.mubr.f32.gmra.mxu0 %v51
  %v207 = vpop.f32.mrf.mxu0
  %v208 = vadd.f32 0.0, %v207
  %v209 = vpop.f32.mrf.mxu0
  %210 = vdwg.mxu0
  %v212 = vrot.slane %v208, 7
  %v215 = vadd.f32 %v17, %v212
  %v216 = vadd.f32 %v25, %v208
  %v217 = vxor.u32 %v215, 2147483648
  %v218 = vxor.u32 %v216, 2147483648
  %v219 = vmul.f32 %v217, 1.442695
  %v220 = vpow.pop %v219
  %v221 = vmul.f32 %v218, 1.442695
  %v222 = vpow.pop %v221
  %v223 = vadd.f32 %v220, 1.0
  %v224 = vadd.f32 %v222, 1.0
  %v225 = vrcp.pop %v223
  %v226 = vmul.f32 1.0, %v225
  %v227 = vrcp.pop %v224
  %v228 = vmul.f32 1.0, %v227
  %229 = vmatprep.subr.mxu0 0.0
  %230 = vmatpush1.msra.mxu0 0.0
  %231 = vmatprep.subr.mxu0 0.0
  %232 = vmatpush1.msra.mxu0 0.0
  %233 = vmatprep.subr.mxu0 0.0
  %234 = vmatpush1.msra.mxu0 0.0
  %235 = vmatprep.subr.mxu0 0.0
  %236 = vmatpush1.msra.mxu0 0.0
  %237 = vmatprep.subr.mxu0 0.0
  %238 = vmatpush1.msra.mxu0 0.0
  %239 = vmatprep.subr.mxu0 0.0
  %240 = vmatpush1.msra.mxu0 0.0
  %241 = vmatprep.subr.mxu0 0.0
  %242 = vmatpush1.msra.mxu0 0.0
  %243 = vmatprep.subr.mxu0 0.0
  %244 = vmatpush1.msra.mxu0 0.0
  %245 = vmatprep.subr.mxu0 0.0
  %246 = vmatpush1.msra.mxu0 0.0
  %247 = vmatprep.subr.mxu0 0.0
  %248 = vmatpush1.msra.mxu0 0.0
  %249 = vmatprep.subr.mxu0 0.0
  %250 = vmatpush1.msra.mxu0 0.0
  %251 = vmatprep.subr.mxu0 0.0
  %252 = vmatpush1.msra.mxu0 0.0
  %253 = vmatprep.subr.mxu0 0.0
  %254 = vmatpush1.msra.mxu0 %v44
  %255 = vmatprep.subr.mxu0 0.0
  %256 = vmatpush1.msra.mxu0 %v43
  %257 = vmatprep.subr.mxu0 0.0
  %258 = vmatpush1.msra.mxu0 %v42
  %259 = vmatprep.subr.mxu0 0.0
  %260 = vmatpush1.msra.mxu0 %v41
  %261 = vmatprep.subr.mxu0 0.0
  %262 = vmatpush2.msra.mxu0 0.0
  %263 = vmatprep.subr.mxu0 0.0
  %264 = vmatpush2.msra.mxu0 0.0
  %265 = vmatprep.subr.mxu0 0.0
  %266 = vmatpush2.msra.mxu0 0.0
  %267 = vmatprep.subr.mxu0 0.0
  %268 = vmatpush2.msra.mxu0 0.0
  %269 = vmatprep.subr.mxu0 0.0
  %270 = vmatpush2.msra.mxu0 0.0
  %271 = vmatprep.subr.mxu0 0.0
  %272 = vmatpush2.msra.mxu0 0.0
  %273 = vmatprep.subr.mxu0 0.0
  %274 = vmatpush2.msra.mxu0 0.0
  %275 = vmatprep.subr.mxu0 0.0
  %276 = vmatpush2.msra.mxu0 0.0
  %277 = vmatprep.subr.mxu0 0.0
  %278 = vmatpush2.msra.mxu0 0.0
  %279 = vmatprep.subr.mxu0 0.0
  %280 = vmatpush2.msra.mxu0 0.0
  %281 = vmatprep.subr.mxu0 0.0
  %282 = vmatpush2.msra.mxu0 0.0
  %283 = vmatprep.subr.mxu0 0.0
  %284 = vmatpush2.msra.mxu0 0.0
  %285 = vmatprep.subr.mxu0 0.0
  %286 = vmatpush2.msra.mxu0 0.0
  %287 = vmatprep.subr.mxu0 0.0
  %288 = vmatpush2.msra.mxu0 0.0
  %289 = vmatprep.subr.mxu0 0.0
  %290 = vmatpush2.msra.mxu0 0.0
  %291 = vmatprep.subr.mxu0 0.0
  %292 = vmatpush2.msra.mxu0 0.0
  %293 = vmatprep.mubr.f32.mxu0 0.0
  %294 = vmatmul.mubr.f32.gmra.mxu0 %v51
  %v295 = vpop.f32.mrf.mxu0
  %v296 = vadd.f32 0.0, %v295
  %v297 = vpop.f32.mrf.mxu0
  %298 = vdwg.mxu0
  %v300 = vrot.slane %v296, 6
  %v301 = vrot.slane %v296, 7
  %v304 = vadd.f32 %v17, %v300
  %v305 = vadd.f32 %v25, %v301
  %v306 = vtanh.pop %v304
  %v307 = vtanh.pop %v305
  %308 = vmatprep.subr.mxu0 0.0
  %309 = vmatpush1.msra.mxu0 0.0
  %310 = vmatprep.subr.mxu0 0.0
  %311 = vmatpush1.msra.mxu0 0.0
  %312 = vmatprep.subr.mxu0 0.0
  %313 = vmatpush1.msra.mxu0 0.0
  %314 = vmatprep.subr.mxu0 0.0
  %315 = vmatpush1.msra.mxu0 0.0
  %316 = vmatprep.subr.mxu0 0.0
  %317 = vmatpush1.msra.mxu0 0.0
  %318 = vmatprep.subr.mxu0 0.0
  %319 = vmatpush1.msra.mxu0 0.0
  %320 = vmatprep.subr.mxu0 0.0
  %321 = vmatpush1.msra.mxu0 0.0
  %322 = vmatprep.subr.mxu0 0.0
  %323 = vmatpush1.msra.mxu0 0.0
  %324 = vmatprep.subr.mxu0 0.0
  %325 = vmatpush1.msra.mxu0 0.0
  %326 = vmatprep.subr.mxu0 0.0
  %327 = vmatpush1.msra.mxu0 0.0
  %328 = vmatprep.subr.mxu0 0.0
  %329 = vmatpush1.msra.mxu0 0.0
  %330 = vmatprep.subr.mxu0 0.0
  %331 = vmatpush1.msra.mxu0 0.0
  %332 = vmatprep.subr.mxu0 0.0
  %333 = vmatpush1.msra.mxu0 %v48
  %334 = vmatprep.subr.mxu0 0.0
  %335 = vmatpush1.msra.mxu0 %v47
  %336 = vmatprep.subr.mxu0 0.0
  %337 = vmatpush1.msra.mxu0 %v46
  %338 = vmatprep.subr.mxu0 0.0
  %339 = vmatpush1.msra.mxu0 %v45
  %340 = vmatprep.subr.mxu0 0.0
  %341 = vmatpush2.msra.mxu0 0.0
  %342 = vmatprep.subr.mxu0 0.0
  %343 = vmatpush2.msra.mxu0 0.0
  %344 = vmatprep.subr.mxu0 0.0
  %345 = vmatpush2.msra.mxu0 0.0
  %346 = vmatprep.subr.mxu0 0.0
  %347 = vmatpush2.msra.mxu0 0.0
  %348 = vmatprep.subr.mxu0 0.0
  %349 = vmatpush2.msra.mxu0 0.0
  %350 = vmatprep.subr.mxu0 0.0
  %351 = vmatpush2.msra.mxu0 0.0
  %352 = vmatprep.subr.mxu0 0.0
  %353 = vmatpush2.msra.mxu0 0.0
  %354 = vmatprep.subr.mxu0 0.0
  %355 = vmatpush2.msra.mxu0 0.0
  %356 = vmatprep.subr.mxu0 0.0
  %357 = vmatpush2.msra.mxu0 0.0
  %358 = vmatprep.subr.mxu0 0.0
  %359 = vmatpush2.msra.mxu0 0.0
  %360 = vmatprep.subr.mxu0 0.0
  %361 = vmatpush2.msra.mxu0 0.0
  %362 = vmatprep.subr.mxu0 0.0
  %363 = vmatpush2.msra.mxu0 0.0
  %364 = vmatprep.subr.mxu0 0.0
  %365 = vmatpush2.msra.mxu0 0.0
  %366 = vmatprep.subr.mxu0 0.0
  %367 = vmatpush2.msra.mxu0 0.0
  %368 = vmatprep.subr.mxu0 0.0
  %369 = vmatpush2.msra.mxu0 0.0
  %370 = vmatprep.subr.mxu0 0.0
  %371 = vmatpush2.msra.mxu0 0.0
  %372 = vmatprep.mubr.f32.mxu0 0.0
  %373 = vmatmul.mubr.f32.gmra.mxu0 %v51
  %v374 = vpop.f32.mrf.mxu0
  %v375 = vadd.f32 0.0, %v374
  %v376 = vpop.f32.mrf.mxu0
  %377 = vdwg.mxu0
  %v379 = vrot.slane %v375, 5
  %v380 = vrot.slane %v375, 6
  %v383 = vadd.f32 %v17, %v379
  %v384 = vadd.f32 %v25, %v380
  %v385 = vxor.u32 %v383, 2147483648
  %v386 = vxor.u32 %v384, 2147483648
  %v387 = vmul.f32 %v385, 1.442695
  %v388 = vpow.pop %v387
  %v389 = vmul.f32 %v386, 1.442695
  %v390 = vpow.pop %v389
  %v391 = vadd.f32 %v388, 1.0
  %v392 = vadd.f32 %v390, 1.0
  %v393 = vrcp.pop %v391
  %v394 = vmul.f32 1.0, %v393
  %v395 = vrcp.pop %v392
  %v396 = vmul.f32 1.0, %v395
  %v397 = vmul.f32 %v226, 0.0
  %v398 = vmul.f32 %v228, 0.0
  %v401 = vrot.slane %v306, 2
  %v402 = vrot.slane %v307, 2
  %v405 = vmul.f32 %v138, %v401
  %v406 = vmul.f32 %v140, %v402
  %v409 = vrot.slane %v405, 7
  %v410 = vrot.slane %v406, 7
  %v413 = vadd.f32 %v397, %v409
  %v414 = vadd.f32 %v398, %v410
  %v415 = vtanh.pop %v413
  %v416 = vtanh.pop %v414
  %v419 = vrot.slane %v415, 6
  %v420 = vrot.slane %v416, 6
  %v423 = vmul.f32 %v394, %v419
  %v424 = vmul.f32 %v396, %v420
  %vm425 = vcmask 257027
  %426 = vst.msk [vmem:[#allocation2 - $0x3] sm:$0x8] %vm425, %v423
  %427 = vst.msk [vmem:[#allocation2 + $0x5] sm:$0x8] %vm425, %v424
  %v430 = vrot.slane %v423, 3
  %v431 = vrot.slane %v424, 2
  %vm432 = vcmask 1041409
  %v433 = vsel %vm432, %v431, %v430
  %v434 = vsel %vm49, %v433, 0
  %436 = vmatprep.subr.mxu0 0.0
  %437 = vmatpush1.msra.mxu0 0.0
  %438 = vmatprep.subr.mxu0 0.0
  %439 = vmatpush1.msra.mxu0 0.0
  %440 = vmatprep.subr.mxu0 0.0
  %441 = vmatpush1.msra.mxu0 0.0
  %442 = vmatprep.subr.mxu0 0.0
  %443 = vmatpush1.msra.mxu0 0.0
  %444 = vmatprep.subr.mxu0 0.0
  %445 = vmatpush1.msra.mxu0 0.0
  %446 = vmatprep.subr.mxu0 0.0
  %447 = vmatpush1.msra.mxu0 0.0
  %448 = vmatprep.subr.mxu0 0.0
  %449 = vmatpush1.msra.mxu0 0.0
  %450 = vmatprep.subr.mxu0 0.0
  %451 = vmatpush1.msra.mxu0 0.0
  %452 = vmatprep.subr.mxu0 0.0
  %453 = vmatpush1.msra.mxu0 0.0
  %454 = vmatprep.subr.mxu0 0.0
  %455 = vmatpush1.msra.mxu0 0.0
  %456 = vmatprep.subr.mxu0 0.0
  %457 = vmatpush1.msra.mxu0 0.0
  %458 = vmatprep.subr.mxu0 0.0
  %459 = vmatpush1.msra.mxu0 0.0
  %460 = vmatprep.subr.mxu0 0.0
  %461 = vmatpush1.msra.mxu0 %v36
  %462 = vmatprep.subr.mxu0 0.0
  %463 = vmatpush1.msra.mxu0 %v35
  %464 = vmatprep.subr.mxu0 0.0
  %465 = vmatpush1.msra.mxu0 %v34
  %466 = vmatprep.subr.mxu0 0.0
  %467 = vmatpush1.msra.mxu0 %v33
  %468 = vmatprep.subr.mxu0 0.0
  %469 = vmatpush2.msra.mxu0 0.0
  %470 = vmatprep.subr.mxu0 0.0
  %471 = vmatpush2.msra.mxu0 0.0
  %472 = vmatprep.subr.mxu0 0.0
  %473 = vmatpush2.msra.mxu0 0.0
  %474 = vmatprep.subr.mxu0 0.0
  %475 = vmatpush2.msra.mxu0 0.0
  %476 = vmatprep.subr.mxu0 0.0
  %477 = vmatpush2.msra.mxu0 0.0
  %478 = vmatprep.subr.mxu0 0.0
  %479 = vmatpush2.msra.mxu0 0.0
  %480 = vmatprep.subr.mxu0 0.0
  %481 = vmatpush2.msra.mxu0 0.0
  %482 = vmatprep.subr.mxu0 0.0
  %483 = vmatpush2.msra.mxu0 0.0
  %484 = vmatprep.subr.mxu0 0.0
  %485 = vmatpush2.msra.mxu0 0.0
  %486 = vmatprep.subr.mxu0 0.0
  %487 = vmatpush2.msra.mxu0 0.0
  %488 = vmatprep.subr.mxu0 0.0
  %489 = vmatpush2.msra.mxu0 0.0
  %490 = vmatprep.subr.mxu0 0.0
  %491 = vmatpush2.msra.mxu0 0.0
  %492 = vmatprep.subr.mxu0 0.0
  %493 = vmatpush2.msra.mxu0 0.0
  %494 = vmatprep.subr.mxu0 0.0
  %495 = vmatpush2.msra.mxu0 0.0
  %496 = vmatprep.subr.mxu0 0.0
  %497 = vmatpush2.msra.mxu0 0.0
  %498 = vmatprep.subr.mxu0 0.0
  %499 = vmatpush2.msra.mxu0 0.0
  %500 = vmatprep.mubr.f32.mxu0 0.0
  %501 = vmatmul.mubr.f32.gmra.mxu0 %v434
  %v502 = vpop.f32.mrf.mxu0
  %v503 = vadd.f32 0.0, %v502
  %v504 = vpop.f32.mrf.mxu0
  %505 = vdwg.mxu0
  %v507 = vrot.slane %v503, 1
  %v510 = vadd.f32 %v18, %v503
  %v511 = vadd.f32 %v26, %v507
  %v512 = vxor.u32 %v510, 2147483648
  %v513 = vxor.u32 %v511, 2147483648
  %v514 = vmul.f32 %v512, 1.442695
  %v515 = vpow.pop %v514
  %v516 = vmul.f32 %v513, 1.442695
  %v517 = vpow.pop %v516
  %v518 = vadd.f32 %v515, 1.0
  %v519 = vadd.f32 %v517, 1.0
  %v520 = vrcp.pop %v518
  %v521 = vmul.f32 1.0, %v520
  %v522 = vrcp.pop %v519
  %v523 = vmul.f32 1.0, %v522
  %524 = vmatprep.subr.mxu0 0.0
  %525 = vmatpush1.msra.mxu0 0.0
  %526 = vmatprep.subr.mxu0 0.0
  %527 = vmatpush1.msra.mxu0 0.0
  %528 = vmatprep.subr.mxu0 0.0
  %529 = vmatpush1.msra.mxu0 0.0
  %530 = vmatprep.subr.mxu0 0.0
  %531 = vmatpush1.msra.mxu0 0.0
  %532 = vmatprep.subr.mxu0 0.0
  %533 = vmatpush1.msra.mxu0 0.0
  %534 = vmatprep.subr.mxu0 0.0
  %535 = vmatpush1.msra.mxu0 0.0
  %536 = vmatprep.subr.mxu0 0.0
  %537 = vmatpush1.msra.mxu0 0.0
  %538 = vmatprep.subr.mxu0 0.0
  %539 = vmatpush1.msra.mxu0 0.0
  %540 = vmatprep.subr.mxu0 0.0
  %541 = vmatpush1.msra.mxu0 0.0
  %542 = vmatprep.subr.mxu0 0.0
  %543 = vmatpush1.msra.mxu0 0.0
  %544 = vmatprep.subr.mxu0 0.0
  %545 = vmatpush1.msra.mxu0 0.0
  %546 = vmatprep.subr.mxu0 0.0
  %547 = vmatpush1.msra.mxu0 0.0
  %548 = vmatprep.subr.mxu0 0.0
  %549 = vmatpush1.msra.mxu0 %v40
  %550 = vmatprep.subr.mxu0 0.0
  %551 = vmatpush1.msra.mxu0 %v39
  %552 = vmatprep.subr.mxu0 0.0
  %553 = vmatpush1.msra.mxu0 %v38
  %554 = vmatprep.subr.mxu0 0.0
  %555 = vmatpush1.msra.mxu0 %v37
  %556 = vmatprep.subr.mxu0 0.0
  %557 = vmatpush2.msra.mxu0 0.0
  %558 = vmatprep.subr.mxu0 0.0
  %559 = vmatpush2.msra.mxu0 0.0
  %560 = vmatprep.subr.mxu0 0.0
  %561 = vmatpush2.msra.mxu0 0.0
  %562 = vmatprep.subr.mxu0 0.0
  %563 = vmatpush2.msra.mxu0 0.0
  %564 = vmatprep.subr.mxu0 0.0
  %565 = vmatpush2.msra.mxu0 0.0
  %566 = vmatprep.subr.mxu0 0.0
  %567 = vmatpush2.msra.mxu0 0.0
  %568 = vmatprep.subr.mxu0 0.0
  %569 = vmatpush2.msra.mxu0 0.0
  %570 = vmatprep.subr.mxu0 0.0
  %571 = vmatpush2.msra.mxu0 0.0
  %572 = vmatprep.subr.mxu0 0.0
  %573 = vmatpush2.msra.mxu0 0.0
  %574 = vmatprep.subr.mxu0 0.0
  %575 = vmatpush2.msra.mxu0 0.0
  %576 = vmatprep.subr.mxu0 0.0
  %577 = vmatpush2.msra.mxu0 0.0
  %578 = vmatprep.subr.mxu0 0.0
  %579 = vmatpush2.msra.mxu0 0.0
  %580 = vmatprep.subr.mxu0 0.0
  %581 = vmatpush2.msra.mxu0 0.0
  %582 = vmatprep.subr.mxu0 0.0
  %583 = vmatpush2.msra.mxu0 0.0
  %584 = vmatprep.subr.mxu0 0.0
  %585 = vmatpush2.msra.mxu0 0.0
  %586 = vmatprep.subr.mxu0 0.0
  %587 = vmatpush2.msra.mxu0 0.0
  %588 = vmatprep.mubr.f32.mxu0 0.0
  %589 = vmatmul.mubr.f32.gmra.mxu0 %v434
  %v590 = vpop.f32.mrf.mxu0
  %v591 = vadd.f32 0.0, %v590
  %v592 = vpop.f32.mrf.mxu0
  %593 = vdwg.mxu0
  %v595 = vrot.slane %v591, 7
  %v598 = vadd.f32 %v18, %v595
  %v599 = vadd.f32 %v26, %v591
  %v600 = vxor.u32 %v598, 2147483648
  %v601 = vxor.u32 %v599, 2147483648
  %v602 = vmul.f32 %v600, 1.442695
  %v603 = vpow.pop %v602
  %v604 = vmul.f32 %v601, 1.442695
  %v605 = vpow.pop %v604
  %v606 = vadd.f32 %v603, 1.0
  %v607 = vadd.f32 %v605, 1.0
  %v608 = vrcp.pop %v606
  %v609 = vmul.f32 1.0, %v608
  %v610 = vrcp.pop %v607
  %v611 = vmul.f32 1.0, %v610
  %612 = vmatprep.subr.mxu0 0.0
  %613 = vmatpush1.msra.mxu0 0.0
  %614 = vmatprep.subr.mxu0 0.0
  %615 = vmatpush1.msra.mxu0 0.0
  %616 = vmatprep.subr.mxu0 0.0
  %617 = vmatpush1.msra.mxu0 0.0
  %618 = vmatprep.subr.mxu0 0.0
  %619 = vmatpush1.msra.mxu0 0.0
  %620 = vmatprep.subr.mxu0 0.0
  %621 = vmatpush1.msra.mxu0 0.0
  %622 = vmatprep.subr.mxu0 0.0
  %623 = vmatpush1.msra.mxu0 0.0
  %624 = vmatprep.subr.mxu0 0.0
  %625 = vmatpush1.msra.mxu0 0.0
  %626 = vmatprep.subr.mxu0 0.0
  %627 = vmatpush1.msra.mxu0 0.0
  %628 = vmatprep.subr.mxu0 0.0
  %629 = vmatpush1.msra.mxu0 0.0
  %630 = vmatprep.subr.mxu0 0.0
  %631 = vmatpush1.msra.mxu0 0.0
  %632 = vmatprep.subr.mxu0 0.0
  %633 = vmatpush1.msra.mxu0 0.0
  %634 = vmatprep.subr.mxu0 0.0
  %635 = vmatpush1.msra.mxu0 0.0
  %636 = vmatprep.subr.mxu0 0.0
  %637 = vmatpush1.msra.mxu0 %v44
  %638 = vmatprep.subr.mxu0 0.0
  %639 = vmatpush1.msra.mxu0 %v43
  %640 = vmatprep.subr.mxu0 0.0
  %641 = vmatpush1.msra.mxu0 %v42
  %642 = vmatprep.subr.mxu0 0.0
  %643 = vmatpush1.msra.mxu0 %v41
  %644 = vmatprep.subr.mxu0 0.0
  %645 = vmatpush2.msra.mxu0 0.0
  %646 = vmatprep.subr.mxu0 0.0
  %647 = vmatpush2.msra.mxu0 0.0
  %648 = vmatprep.subr.mxu0 0.0
  %649 = vmatpush2.msra.mxu0 0.0
  %650 = vmatprep.subr.mxu0 0.0
  %651 = vmatpush2.msra.mxu0 0.0
  %652 = vmatprep.subr.mxu0 0.0
  %653 = vmatpush2.msra.mxu0 0.0
  %654 = vmatprep.subr.mxu0 0.0
  %655 = vmatpush2.msra.mxu0 0.0
  %656 = vmatprep.subr.mxu0 0.0
  %657 = vmatpush2.msra.mxu0 0.0
  %658 = vmatprep.subr.mxu0 0.0
  %659 = vmatpush2.msra.mxu0 0.0
  %660 = vmatprep.subr.mxu0 0.0
  %661 = vmatpush2.msra.mxu0 0.0
  %662 = vmatprep.subr.mxu0 0.0
  %663 = vmatpush2.msra.mxu0 0.0
  %664 = vmatprep.subr.mxu0 0.0
  %665 = vmatpush2.msra.mxu0 0.0
  %666 = vmatprep.subr.mxu0 0.0
  %667 = vmatpush2.msra.mxu0 0.0
  %668 = vmatprep.subr.mxu0 0.0
  %669 = vmatpush2.msra.mxu0 0.0
  %670 = vmatprep.subr.mxu0 0.0
  %671 = vmatpush2.msra.mxu0 0.0
  %672 = vmatprep.subr.mxu0 0.0
  %673 = vmatpush2.msra.mxu0 0.0
  %674 = vmatprep.subr.mxu0 0.0
  %675 = vmatpush2.msra.mxu0 0.0
  %676 = vmatprep.mubr.f32.mxu0 0.0
  %677 = vmatmul.mubr.f32.gmra.mxu0 %v434
  %v678 = vpop.f32.mrf.mxu0
  %v679 = vadd.f32 0.0, %v678
  %v680 = vpop.f32.mrf.mxu0
  %681 = vdwg.mxu0
  %v683 = vrot.slane %v679, 6
  %v684 = vrot.slane %v679, 7
  %v687 = vadd.f32 %v18, %v683
  %v688 = vadd.f32 %v26, %v684
  %v689 = vtanh.pop %v687
  %v690 = vtanh.pop %v688
  %691 = vmatprep.subr.mxu0 0.0
  %692 = vmatpush1.msra.mxu0 0.0
  %693 = vmatprep.subr.mxu0 0.0
  %694 = vmatpush1.msra.mxu0 0.0
  %695 = vmatprep.subr.mxu0 0.0
  %696 = vmatpush1.msra.mxu0 0.0
  %697 = vmatprep.subr.mxu0 0.0
  %698 = vmatpush1.msra.mxu0 0.0
  %699 = vmatprep.subr.mxu0 0.0
  %700 = vmatpush1.msra.mxu0 0.0
  %701 = vmatprep.subr.mxu0 0.0
  %702 = vmatpush1.msra.mxu0 0.0
  %703 = vmatprep.subr.mxu0 0.0
  %704 = vmatpush1.msra.mxu0 0.0
  %705 = vmatprep.subr.mxu0 0.0
  %706 = vmatpush1.msra.mxu0 0.0
  %707 = vmatprep.subr.mxu0 0.0
  %708 = vmatpush1.msra.mxu0 0.0
  %709 = vmatprep.subr.mxu0 0.0
  %710 = vmatpush1.msra.mxu0 0.0
  %711 = vmatprep.subr.mxu0 0.0
  %712 = vmatpush1.msra.mxu0 0.0
  %713 = vmatprep.subr.mxu0 0.0
  %714 = vmatpush1.msra.mxu0 0.0
  %715 = vmatprep.subr.mxu0 0.0
  %716 = vmatpush1.msra.mxu0 %v48
  %717 = vmatprep.subr.mxu0 0.0
  %718 = vmatpush1.msra.mxu0 %v47
  %719 = vmatprep.subr.mxu0 0.0
  %720 = vmatpush1.msra.mxu0 %v46
  %721 = vmatprep.subr.mxu0 0.0
  %722 = vmatpush1.msra.mxu0 %v45
  %723 = vmatprep.subr.mxu0 0.0
  %724 = vmatpush2.msra.mxu0 0.0
  %725 = vmatprep.subr.mxu0 0.0
  %726 = vmatpush2.msra.mxu0 0.0
  %727 = vmatprep.subr.mxu0 0.0
  %728 = vmatpush2.msra.mxu0 0.0
  %729 = vmatprep.subr.mxu0 0.0
  %730 = vmatpush2.msra.mxu0 0.0
  %731 = vmatprep.subr.mxu0 0.0
  %732 = vmatpush2.msra.mxu0 0.0
  %733 = vmatprep.subr.mxu0 0.0
  %734 = vmatpush2.msra.mxu0 0.0
  %735 = vmatprep.subr.mxu0 0.0
  %736 = vmatpush2.msra.mxu0 0.0
  %737 = vmatprep.subr.mxu0 0.0
  %738 = vmatpush2.msra.mxu0 0.0
  %739 = vmatprep.subr.mxu0 0.0
  %740 = vmatpush2.msra.mxu0 0.0
  %741 = vmatprep.subr.mxu0 0.0
  %742 = vmatpush2.msra.mxu0 0.0
  %743 = vmatprep.subr.mxu0 0.0
  %744 = vmatpush2.msra.mxu0 0.0
  %745 = vmatprep.subr.mxu0 0.0
  %746 = vmatpush2.msra.mxu0 0.0
  %747 = vmatprep.subr.mxu0 0.0
  %748 = vmatpush2.msra.mxu0 0.0
  %749 = vmatprep.subr.mxu0 0.0
  %750 = vmatpush2.msra.mxu0 0.0
  %751 = vmatprep.subr.mxu0 0.0
  %752 = vmatpush2.msra.mxu0 0.0
  %753 = vmatprep.subr.mxu0 0.0
  %754 = vmatpush2.msra.mxu0 0.0
  %755 = vmatprep.mubr.f32.mxu0 0.0
  %756 = vmatmul.mubr.f32.gmra.mxu0 %v434
  %v757 = vpop.f32.mrf.mxu0
  %v758 = vadd.f32 0.0, %v757
  %v759 = vpop.f32.mrf.mxu0
  %760 = vdwg.mxu0
  %v762 = vrot.slane %v758, 5
  %v763 = vrot.slane %v758, 6
  %v766 = vadd.f32 %v18, %v762
  %v767 = vadd.f32 %v26, %v763
  %v768 = vxor.u32 %v766, 2147483648
  %v769 = vxor.u32 %v767, 2147483648
  %v770 = vmul.f32 %v768, 1.442695
  %v771 = vpow.pop %v770
  %v772 = vmul.f32 %v769, 1.442695
  %v773 = vpow.pop %v772
  %v774 = vadd.f32 %v771, 1.0
  %v775 = vadd.f32 %v773, 1.0
  %v776 = vrcp.pop %v774
  %v777 = vmul.f32 1.0, %v776
  %v778 = vrcp.pop %v775
  %v779 = vmul.f32 1.0, %v778
  %v780 = vmul.f32 %v609, %v413
  %v781 = vmul.f32 %v611, %v414
  %v784 = vrot.slane %v689, 2
  %v785 = vrot.slane %v690, 2
  %v788 = vmul.f32 %v521, %v784
  %v789 = vmul.f32 %v523, %v785
  %v792 = vrot.slane %v788, 7
  %v793 = vrot.slane %v789, 7
  %v796 = vadd.f32 %v780, %v792
  %v797 = vadd.f32 %v781, %v793
  %v798 = vtanh.pop %v796
  %v799 = vtanh.pop %v797
  %v802 = vrot.slane %v798, 6
  %v803 = vrot.slane %v799, 6
  %v806 = vmul.f32 %v777, %v802
  %v807 = vmul.f32 %v779, %v803
  %808 = vst.msk [vmem:[#allocation2 - $0x2] sm:$0x8] %vm425, %v806
  %809 = vst.msk [vmem:[#allocation2 + $0x6] sm:$0x8] %vm425, %v807
  %v812 = vrot.slane %v806, 3
  %v813 = vrot.slane %v807, 2
  %v814 = vsel %vm432, %v813, %v812
  %v815 = vsel %vm49, %v814, 0
  %817 = vmatprep.subr.mxu0 0.0
  %818 = vmatpush1.msra.mxu0 0.0
  %819 = vmatprep.subr.mxu0 0.0
  %820 = vmatpush1.msra.mxu0 0.0
  %821 = vmatprep.subr.mxu0 0.0
  %822 = vmatpush1.msra.mxu0 0.0
  %823 = vmatprep.subr.mxu0 0.0
  %824 = vmatpush1.msra.mxu0 0.0
  %825 = vmatprep.subr.mxu0 0.0
  %826 = vmatpush1.msra.mxu0 0.0
  %827 = vmatprep.subr.mxu0 0.0
  %828 = vmatpush1.msra.mxu0 0.0
  %829 = vmatprep.subr.mxu0 0.0
  %830 = vmatpush1.msra.mxu0 0.0
  %831 = vmatprep.subr.mxu0 0.0
  %832 = vmatpush1.msra.mxu0 0.0
  %833 = vmatprep.subr.mxu0 0.0
  %834 = vmatpush1.msra.mxu0 0.0
  %835 = vmatprep.subr.mxu0 0.0
  %836 = vmatpush1.msra.mxu0 0.0
  %837 = vmatprep.subr.mxu0 0.0
  %838 = vmatpush1.msra.mxu0 0.0
  %839 = vmatprep.subr.mxu0 0.0
  %840 = vmatpush1.msra.mxu0 0.0
  %841 = vmatprep.subr.mxu0 0.0
  %842 = vmatpush1.msra.mxu0 %v36
  %843 = vmatprep.subr.mxu0 0.0
  %844 = vmatpush1.msra.mxu0 %v35
  %845 = vmatprep.subr.mxu0 0.0
  %846 = vmatpush1.msra.mxu0 %v34
  %847 = vmatprep.subr.mxu0 0.0
  %848 = vmatpush1.msra.mxu0 %v33
  %849 = vmatprep.subr.mxu0 0.0
  %850 = vmatpush2.msra.mxu0 0.0
  %851 = vmatprep.subr.mxu0 0.0
  %852 = vmatpush2.msra.mxu0 0.0
  %853 = vmatprep.subr.mxu0 0.0
  %854 = vmatpush2.msra.mxu0 0.0
  %855 = vmatprep.subr.mxu0 0.0
  %856 = vmatpush2.msra.mxu0 0.0
  %857 = vmatprep.subr.mxu0 0.0
  %858 = vmatpush2.msra.mxu0 0.0
  %859 = vmatprep.subr.mxu0 0.0
  %860 = vmatpush2.msra.mxu0 0.0
  %861 = vmatprep.subr.mxu0 0.0
  %862 = vmatpush2.msra.mxu0 0.0
  %863 = vmatprep.subr.mxu0 0.0
  %864 = vmatpush2.msra.mxu0 0.0
  %865 = vmatprep.subr.mxu0 0.0
  %866 = vmatpush2.msra.mxu0 0.0
  %867 = vmatprep.subr.mxu0 0.0
  %868 = vmatpush2.msra.mxu0 0.0
  %869 = vmatprep.subr.mxu0 0.0
  %870 = vmatpush2.msra.mxu0 0.0
  %871 = vmatprep.subr.mxu0 0.0
  %872 = vmatpush2.msra.mxu0 0.0
  %873 = vmatprep.subr.mxu0 0.0
  %874 = vmatpush2.msra.mxu0 0.0
  %875 = vmatprep.subr.mxu0 0.0
  %876 = vmatpush2.msra.mxu0 0.0
  %877 = vmatprep.subr.mxu0 0.0
  %878 = vmatpush2.msra.mxu0 0.0
  %879 = vmatprep.subr.mxu0 0.0
  %880 = vmatpush2.msra.mxu0 0.0
  %881 = vmatprep.mubr.f32.mxu0 0.0
  %882 = vmatmul.mubr.f32.gmra.mxu0 %v815
  %v883 = vpop.f32.mrf.mxu0
  %v884 = vadd.f32 0.0, %v883
  %v885 = vpop.f32.mrf.mxu0
  %886 = vdwg.mxu0
  %v888 = vrot.slane %v884, 1
  %v891 = vadd.f32 %v19, %v884
  %v892 = vadd.f32 %v27, %v888
  %v893 = vxor.u32 %v891, 2147483648
  %v894 = vxor.u32 %v892, 2147483648
  %v895 = vmul.f32 %v893, 1.442695
  %v896 = vpow.pop %v895
  %v897 = vmul.f32 %v894, 1.442695
  %v898 = vpow.pop %v897
  %v899 = vadd.f32 %v896, 1.0
  %v900 = vadd.f32 %v898, 1.0
  %v901 = vrcp.pop %v899
  %v902 = vmul.f32 1.0, %v901
  %v903 = vrcp.pop %v900
  %v904 = vmul.f32 1.0, %v903
  %905 = vmatprep.subr.mxu0 0.0
  %906 = vmatpush1.msra.mxu0 0.0
  %907 = vmatprep.subr.mxu0 0.0
  %908 = vmatpush1.msra.mxu0 0.0
  %909 = vmatprep.subr.mxu0 0.0
  %910 = vmatpush1.msra.mxu0 0.0
  %911 = vmatprep.subr.mxu0 0.0
  %912 = vmatpush1.msra.mxu0 0.0
  %913 = vmatprep.subr.mxu0 0.0
  %914 = vmatpush1.msra.mxu0 0.0
  %915 = vmatprep.subr.mxu0 0.0
  %916 = vmatpush1.msra.mxu0 0.0
  %917 = vmatprep.subr.mxu0 0.0
  %918 = vmatpush1.msra.mxu0 0.0
  %919 = vmatprep.subr.mxu0 0.0
  %920 = vmatpush1.msra.mxu0 0.0
  %921 = vmatprep.subr.mxu0 0.0
  %922 = vmatpush1.msra.mxu0 0.0
  %923 = vmatprep.subr.mxu0 0.0
  %924 = vmatpush1.msra.mxu0 0.0
  %925 = vmatprep.subr.mxu0 0.0
  %926 = vmatpush1.msra.mxu0 0.0
  %927 = vmatprep.subr.mxu0 0.0
  %928 = vmatpush1.msra.mxu0 0.0
  %929 = vmatprep.subr.mxu0 0.0
  %930 = vmatpush1.msra.mxu0 %v40
  %931 = vmatprep.subr.mxu0 0.0
  %932 = vmatpush1.msra.mxu0 %v39
  %933 = vmatprep.subr.mxu0 0.0
  %934 = vmatpush1.msra.mxu0 %v38
  %935 = vmatprep.subr.mxu0 0.0
  %936 = vmatpush1.msra.mxu0 %v37
  %937 = vmatprep.subr.mxu0 0.0
  %938 = vmatpush2.msra.mxu0 0.0
  %939 = vmatprep.subr.mxu0 0.0
  %940 = vmatpush2.msra.mxu0 0.0
  %941 = vmatprep.subr.mxu0 0.0
  %942 = vmatpush2.msra.mxu0 0.0
  %943 = vmatprep.subr.mxu0 0.0
  %944 = vmatpush2.msra.mxu0 0.0
  %945 = vmatprep.subr.mxu0 0.0
  %946 = vmatpush2.msra.mxu0 0.0
  %947 = vmatprep.subr.mxu0 0.0
  %948 = vmatpush2.msra.mxu0 0.0
  %949 = vmatprep.subr.mxu0 0.0
  %950 = vmatpush2.msra.mxu0 0.0
  %951 = vmatprep.subr.mxu0 0.0
  %952 = vmatpush2.msra.mxu0 0.0
  %953 = vmatprep.subr.mxu0 0.0
  %954 = vmatpush2.msra.mxu0 0.0
  %955 = vmatprep.subr.mxu0 0.0
  %956 = vmatpush2.msra.mxu0 0.0
  %957 = vmatprep.subr.mxu0 0.0
  %958 = vmatpush2.msra.mxu0 0.0
  %959 = vmatprep.subr.mxu0 0.0
  %960 = vmatpush2.msra.mxu0 0.0
  %961 = vmatprep.subr.mxu0 0.0
  %962 = vmatpush2.msra.mxu0 0.0
  %963 = vmatprep.subr.mxu0 0.0
  %964 = vmatpush2.msra.mxu0 0.0
  %965 = vmatprep.subr.mxu0 0.0
  %966 = vmatpush2.msra.mxu0 0.0
  %967 = vmatprep.subr.mxu0 0.0
  %968 = vmatpush2.msra.mxu0 0.0
  %969 = vmatprep.mubr.f32.mxu0 0.0
  %970 = vmatmul.mubr.f32.gmra.mxu0 %v815
  %v971 = vpop.f32.mrf.mxu0
  %v972 = vadd.f32 0.0, %v971
  %v973 = vpop.f32.mrf.mxu0
  %974 = vdwg.mxu0
  %v976 = vrot.slane %v972, 7
  %v979 = vadd.f32 %v19, %v976
  %v980 = vadd.f32 %v27, %v972
  %v981 = vxor.u32 %v979, 2147483648
  %v982 = vxor.u32 %v980, 2147483648
  %v983 = vmul.f32 %v981, 1.442695
  %v984 = vpow.pop %v983
  %v985 = vmul.f32 %v982, 1.442695
  %v986 = vpow.pop %v985
  %v987 = vadd.f32 %v984, 1.0
  %v988 = vadd.f32 %v986, 1.0
  %v989 = vrcp.pop %v987
  %v990 = vmul.f32 1.0, %v989
  %v991 = vrcp.pop %v988
  %v992 = vmul.f32 1.0, %v991
  %993 = vmatprep.subr.mxu0 0.0
  %994 = vmatpush1.msra.mxu0 0.0
  %995 = vmatprep.subr.mxu0 0.0
  %996 = vmatpush1.msra.mxu0 0.0
  %997 = vmatprep.subr.mxu0 0.0
  %998 = vmatpush1.msra.mxu0 0.0
  %999 = vmatprep.subr.mxu0 0.0
  %1000 = vmatpush1.msra.mxu0 0.0
  %1001 = vmatprep.subr.mxu0 0.0
  %1002 = vmatpush1.msra.mxu0 0.0
  %1003 = vmatprep.subr.mxu0 0.0
  %1004 = vmatpush1.msra.mxu0 0.0
  %1005 = vmatprep.subr.mxu0 0.0
  %1006 = vmatpush1.msra.mxu0 0.0
  %1007 = vmatprep.subr.mxu0 0.0
  %1008 = vmatpush1.msra.mxu0 0.0
  %1009 = vmatprep.subr.mxu0 0.0
  %1010 = vmatpush1.msra.mxu0 0.0
  %1011 = vmatprep.subr.mxu0 0.0
  %1012 = vmatpush1.msra.mxu0 0.0
  %1013 = vmatprep.subr.mxu0 0.0
  %1014 = vmatpush1.msra.mxu0 0.0
  %1015 = vmatprep.subr.mxu0 0.0
  %1016 = vmatpush1.msra.mxu0 0.0
  %1017 = vmatprep.subr.mxu0 0.0
  %1018 = vmatpush1.msra.mxu0 %v44
  %1019 = vmatprep.subr.mxu0 0.0
  %1020 = vmatpush1.msra.mxu0 %v43
  %1021 = vmatprep.subr.mxu0 0.0
  %1022 = vmatpush1.msra.mxu0 %v42
  %1023 = vmatprep.subr.mxu0 0.0
  %1024 = vmatpush1.msra.mxu0 %v41
  %1025 = vmatprep.subr.mxu0 0.0
  %1026 = vmatpush2.msra.mxu0 0.0
  %1027 = vmatprep.subr.mxu0 0.0
  %1028 = vmatpush2.msra.mxu0 0.0
  %1029 = vmatprep.subr.mxu0 0.0
  %1030 = vmatpush2.msra.mxu0 0.0
  %1031 = vmatprep.subr.mxu0 0.0
  %1032 = vmatpush2.msra.mxu0 0.0
  %1033 = vmatprep.subr.mxu0 0.0
  %1034 = vmatpush2.msra.mxu0 0.0
  %1035 = vmatprep.subr.mxu0 0.0
  %1036 = vmatpush2.msra.mxu0 0.0
  %1037 = vmatprep.subr.mxu0 0.0
  %1038 = vmatpush2.msra.mxu0 0.0
  %1039 = vmatprep.subr.mxu0 0.0
  %1040 = vmatpush2.msra.mxu0 0.0
  %1041 = vmatprep.subr.mxu0 0.0
  %1042 = vmatpush2.msra.mxu0 0.0
  %1043 = vmatprep.subr.mxu0 0.0
  %1044 = vmatpush2.msra.mxu0 0.0
  %1045 = vmatprep.subr.mxu0 0.0
  %1046 = vmatpush2.msra.mxu0 0.0
  %1047 = vmatprep.subr.mxu0 0.0
  %1048 = vmatpush2.msra.mxu0 0.0
  %1049 = vmatprep.subr.mxu0 0.0
  %1050 = vmatpush2.msra.mxu0 0.0
  %1051 = vmatprep.subr.mxu0 0.0
  %1052 = vmatpush2.msra.mxu0 0.0
  %1053 = vmatprep.subr.mxu0 0.0
  %1054 = vmatpush2.msra.mxu0 0.0
  %1055 = vmatprep.subr.mxu0 0.0
  %1056 = vmatpush2.msra.mxu0 0.0
  %1057 = vmatprep.mubr.f32.mxu0 0.0
  %1058 = vmatmul.mubr.f32.gmra.mxu0 %v815
  %v1059 = vpop.f32.mrf.mxu0
  %v1060 = vadd.f32 0.0, %v1059
  %v1061 = vpop.f32.mrf.mxu0
  %1062 = vdwg.mxu0
  %v1064 = vrot.slane %v1060, 6
  %v1065 = vrot.slane %v1060, 7
  %v1068 = vadd.f32 %v19, %v1064
  %v1069 = vadd.f32 %v27, %v1065
  %v1070 = vtanh.pop %v1068
  %v1071 = vtanh.pop %v1069
  %1072 = vmatprep.subr.mxu0 0.0
  %1073 = vmatpush1.msra.mxu0 0.0
  %1074 = vmatprep.subr.mxu0 0.0
  %1075 = vmatpush1.msra.mxu0 0.0
  %1076 = vmatprep.subr.mxu0 0.0
  %1077 = vmatpush1.msra.mxu0 0.0
  %1078 = vmatprep.subr.mxu0 0.0
  %1079 = vmatpush1.msra.mxu0 0.0
  %1080 = vmatprep.subr.mxu0 0.0
  %1081 = vmatpush1.msra.mxu0 0.0
  %1082 = vmatprep.subr.mxu0 0.0
  %1083 = vmatpush1.msra.mxu0 0.0
  %1084 = vmatprep.subr.mxu0 0.0
  %1085 = vmatpush1.msra.mxu0 0.0
  %1086 = vmatprep.subr.mxu0 0.0
  %1087 = vmatpush1.msra.mxu0 0.0
  %1088 = vmatprep.subr.mxu0 0.0
  %1089 = vmatpush1.msra.mxu0 0.0
  %1090 = vmatprep.subr.mxu0 0.0
  %1091 = vmatpush1.msra.mxu0 0.0
  %1092 = vmatprep.subr.mxu0 0.0
  %1093 = vmatpush1.msra.mxu0 0.0
  %1094 = vmatprep.subr.mxu0 0.0
  %1095 = vmatpush1.msra.mxu0 0.0
  %1096 = vmatprep.subr.mxu0 0.0
  %1097 = vmatpush1.msra.mxu0 %v48
  %1098 = vmatprep.subr.mxu0 0.0
  %1099 = vmatpush1.msra.mxu0 %v47
  %1100 = vmatprep.subr.mxu0 0.0
  %1101 = vmatpush1.msra.mxu0 %v46
  %1102 = vmatprep.subr.mxu0 0.0
  %1103 = vmatpush1.msra.mxu0 %v45
  %1104 = vmatprep.subr.mxu0 0.0
  %1105 = vmatpush2.msra.mxu0 0.0
  %1106 = vmatprep.subr.mxu0 0.0
  %1107 = vmatpush2.msra.mxu0 0.0
  %1108 = vmatprep.subr.mxu0 0.0
  %1109 = vmatpush2.msra.mxu0 0.0
  %1110 = vmatprep.subr.mxu0 0.0
  %1111 = vmatpush2.msra.mxu0 0.0
  %1112 = vmatprep.subr.mxu0 0.0
  %1113 = vmatpush2.msra.mxu0 0.0
  %1114 = vmatprep.subr.mxu0 0.0
  %1115 = vmatpush2.msra.mxu0 0.0
  %1116 = vmatprep.subr.mxu0 0.0
  %1117 = vmatpush2.msra.mxu0 0.0
  %1118 = vmatprep.subr.mxu0 0.0
  %1119 = vmatpush2.msra.mxu0 0.0
  %1120 = vmatprep.subr.mxu0 0.0
  %1121 = vmatpush2.msra.mxu0 0.0
  %1122 = vmatprep.subr.mxu0 0.0
  %1123 = vmatpush2.msra.mxu0 0.0
  %1124 = vmatprep.subr.mxu0 0.0
  %1125 = vmatpush2.msra.mxu0 0.0
  %1126 = vmatprep.subr.mxu0 0.0
  %1127 = vmatpush2.msra.mxu0 0.0
  %1128 = vmatprep.subr.mxu0 0.0
  %1129 = vmatpush2.msra.mxu0 0.0
  %1130 = vmatprep.subr.mxu0 0.0
  %1131 = vmatpush2.msra.mxu0 0.0
  %1132 = vmatprep.subr.mxu0 0.0
  %1133 = vmatpush2.msra.mxu0 0.0
  %1134 = vmatprep.subr.mxu0 0.0
  %1135 = vmatpush2.msra.mxu0 0.0
  %1136 = vmatprep.mubr.f32.mxu0 0.0
  %1137 = vmatmul.mubr.f32.gmra.mxu0 %v815
  %v1138 = vpop.f32.mrf.mxu0
  %v1139 = vadd.f32 0.0, %v1138
  %v1140 = vpop.f32.mrf.mxu0
  %1141 = vdwg.mxu0
  %v1143 = vrot.slane %v1139, 5
  %v1144 = vrot.slane %v1139, 6
  %v1147 = vadd.f32 %v19, %v1143
  %v1148 = vadd.f32 %v27, %v1144
  %v1149 = vxor.u32 %v1147, 2147483648
  %v1150 = vxor.u32 %v1148, 2147483648
  %v1151 = vmul.f32 %v1149, 1.442695
  %v1152 = vpow.pop %v1151
  %v1153 = vmul.f32 %v1150, 1.442695
  %v1154 = vpow.pop %v1153
  %v1155 = vadd.f32 %v1152, 1.0
  %v1156 = vadd.f32 %v1154, 1.0
  %v1157 = vrcp.pop %v1155
  %v1158 = vmul.f32 1.0, %v1157
  %v1159 = vrcp.pop %v1156
  %v1160 = vmul.f32 1.0, %v1159
  %v1161 = vmul.f32 %v990, %v796
  %v1162 = vmul.f32 %v992, %v797
  %v1165 = vrot.slane %v1070, 2
  %v1166 = vrot.slane %v1071, 2
  %v1169 = vmul.f32 %v902, %v1165
  %v1170 = vmul.f32 %v904, %v1166
  %v1173 = vrot.slane %v1169, 7
  %v1174 = vrot.slane %v1170, 7
  %v1177 = vadd.f32 %v1161, %v1173
  %v1178 = vadd.f32 %v1162, %v1174
  %v1179 = vtanh.pop %v1177
  %v1180 = vtanh.pop %v1178
  %v1183 = vrot.slane %v1179, 6
  %v1184 = vrot.slane %v1180, 6
  %v1187 = vmul.f32 %v1158, %v1183
  %v1188 = vmul.f32 %v1160, %v1184
  %1189 = vst.msk [vmem:[#allocation2 - $0x1] sm:$0x8] %vm425, %v1187
  %1190 = vst.msk [vmem:[#allocation2 + $0x7] sm:$0x8] %vm425, %v1188
  %v1193 = vrot.slane %v1187, 3
  %v1194 = vrot.slane %v1188, 2
  %v1195 = vsel %vm432, %v1194, %v1193
  %v1196 = vsel %vm49, %v1195, 0
  %1198 = vmatprep.subr.mxu0 0.0
  %1199 = vmatpush1.msra.mxu0 0.0
  %1200 = vmatprep.subr.mxu0 0.0
  %1201 = vmatpush1.msra.mxu0 0.0
  %1202 = vmatprep.subr.mxu0 0.0
  %1203 = vmatpush1.msra.mxu0 0.0
  %1204 = vmatprep.subr.mxu0 0.0
  %1205 = vmatpush1.msra.mxu0 0.0
  %1206 = vmatprep.subr.mxu0 0.0
  %1207 = vmatpush1.msra.mxu0 0.0
  %1208 = vmatprep.subr.mxu0 0.0
  %1209 = vmatpush1.msra.mxu0 0.0
  %1210 = vmatprep.subr.mxu0 0.0
  %1211 = vmatpush1.msra.mxu0 0.0
  %1212 = vmatprep.subr.mxu0 0.0
  %1213 = vmatpush1.msra.mxu0 0.0
  %1214 = vmatprep.subr.mxu0 0.0
  %1215 = vmatpush1.msra.mxu0 0.0
  %1216 = vmatprep.subr.mxu0 0.0
  %1217 = vmatpush1.msra.mxu0 0.0
  %1218 = vmatprep.subr.mxu0 0.0
  %1219 = vmatpush1.msra.mxu0 0.0
  %1220 = vmatprep.subr.mxu0 0.0
  %1221 = vmatpush1.msra.mxu0 0.0
  %1222 = vmatprep.subr.mxu0 0.0
  %1223 = vmatpush1.msra.mxu0 %v36
  %1224 = vmatprep.subr.mxu0 0.0
  %1225 = vmatpush1.msra.mxu0 %v35
  %1226 = vmatprep.subr.mxu0 0.0
  %1227 = vmatpush1.msra.mxu0 %v34
  %1228 = vmatprep.subr.mxu0 0.0
  %1229 = vmatpush1.msra.mxu0 %v33
  %1230 = vmatprep.subr.mxu0 0.0
  %1231 = vmatpush2.msra.mxu0 0.0
  %1232 = vmatprep.subr.mxu0 0.0
  %1233 = vmatpush2.msra.mxu0 0.0
  %1234 = vmatprep.subr.mxu0 0.0
  %1235 = vmatpush2.msra.mxu0 0.0
  %1236 = vmatprep.subr.mxu0 0.0
  %1237 = vmatpush2.msra.mxu0 0.0
  %1238 = vmatprep.subr.mxu0 0.0
  %1239 = vmatpush2.msra.mxu0 0.0
  %1240 = vmatprep.subr.mxu0 0.0
  %1241 = vmatpush2.msra.mxu0 0.0
  %1242 = vmatprep.subr.mxu0 0.0
  %1243 = vmatpush2.msra.mxu0 0.0
  %1244 = vmatprep.subr.mxu0 0.0
  %1245 = vmatpush2.msra.mxu0 0.0
  %1246 = vmatprep.subr.mxu0 0.0
  %1247 = vmatpush2.msra.mxu0 0.0
  %1248 = vmatprep.subr.mxu0 0.0
  %1249 = vmatpush2.msra.mxu0 0.0
  %1250 = vmatprep.subr.mxu0 0.0
  %1251 = vmatpush2.msra.mxu0 0.0
  %1252 = vmatprep.subr.mxu0 0.0
  %1253 = vmatpush2.msra.mxu0 0.0
  %1254 = vmatprep.subr.mxu0 0.0
  %1255 = vmatpush2.msra.mxu0 0.0
  %1256 = vmatprep.subr.mxu0 0.0
  %1257 = vmatpush2.msra.mxu0 0.0
  %1258 = vmatprep.subr.mxu0 0.0
  %1259 = vmatpush2.msra.mxu0 0.0
  %1260 = vmatprep.subr.mxu0 0.0
  %1261 = vmatpush2.msra.mxu0 0.0
  %1262 = vmatprep.mubr.f32.mxu0 0.0
  %1263 = vmatmul.mubr.f32.gmra.mxu0 %v1196
  %v1264 = vpop.f32.mrf.mxu0
  %v1265 = vadd.f32 0.0, %v1264
  %v1266 = vpop.f32.mrf.mxu0
  %1267 = vdwg.mxu0
  %v1269 = vrot.slane %v1265, 1
  %v1272 = vadd.f32 %v20, %v1265
  %v1273 = vadd.f32 %v28, %v1269
  %v1274 = vxor.u32 %v1272, 2147483648
  %v1275 = vxor.u32 %v1273, 2147483648
  %v1276 = vmul.f32 %v1274, 1.442695
  %v1277 = vpow.pop %v1276
  %v1278 = vmul.f32 %v1275, 1.442695
  %v1279 = vpow.pop %v1278
  %v1280 = vadd.f32 %v1277, 1.0
  %v1281 = vadd.f32 %v1279, 1.0
  %v1282 = vrcp.pop %v1280
  %v1283 = vmul.f32 1.0, %v1282
  %v1284 = vrcp.pop %v1281
  %v1285 = vmul.f32 1.0, %v1284
  %1286 = vmatprep.subr.mxu0 0.0
  %1287 = vmatpush1.msra.mxu0 0.0
  %1288 = vmatprep.subr.mxu0 0.0
  %1289 = vmatpush1.msra.mxu0 0.0
  %1290 = vmatprep.subr.mxu0 0.0
  %1291 = vmatpush1.msra.mxu0 0.0
  %1292 = vmatprep.subr.mxu0 0.0
  %1293 = vmatpush1.msra.mxu0 0.0
  %1294 = vmatprep.subr.mxu0 0.0
  %1295 = vmatpush1.msra.mxu0 0.0
  %1296 = vmatprep.subr.mxu0 0.0
  %1297 = vmatpush1.msra.mxu0 0.0
  %1298 = vmatprep.subr.mxu0 0.0
  %1299 = vmatpush1.msra.mxu0 0.0
  %1300 = vmatprep.subr.mxu0 0.0
  %1301 = vmatpush1.msra.mxu0 0.0
  %1302 = vmatprep.subr.mxu0 0.0
  %1303 = vmatpush1.msra.mxu0 0.0
  %1304 = vmatprep.subr.mxu0 0.0
  %1305 = vmatpush1.msra.mxu0 0.0
  %1306 = vmatprep.subr.mxu0 0.0
  %1307 = vmatpush1.msra.mxu0 0.0
  %1308 = vmatprep.subr.mxu0 0.0
  %1309 = vmatpush1.msra.mxu0 0.0
  %1310 = vmatprep.subr.mxu0 0.0
  %1311 = vmatpush1.msra.mxu0 %v40
  %1312 = vmatprep.subr.mxu0 0.0
  %1313 = vmatpush1.msra.mxu0 %v39
  %1314 = vmatprep.subr.mxu0 0.0
  %1315 = vmatpush1.msra.mxu0 %v38
  %1316 = vmatprep.subr.mxu0 0.0
  %1317 = vmatpush1.msra.mxu0 %v37
  %1318 = vmatprep.subr.mxu0 0.0
  %1319 = vmatpush2.msra.mxu0 0.0
  %1320 = vmatprep.subr.mxu0 0.0
  %1321 = vmatpush2.msra.mxu0 0.0
  %1322 = vmatprep.subr.mxu0 0.0
  %1323 = vmatpush2.msra.mxu0 0.0
  %1324 = vmatprep.subr.mxu0 0.0
  %1325 = vmatpush2.msra.mxu0 0.0
  %1326 = vmatprep.subr.mxu0 0.0
  %1327 = vmatpush2.msra.mxu0 0.0
  %1328 = vmatprep.subr.mxu0 0.0
  %1329 = vmatpush2.msra.mxu0 0.0
  %1330 = vmatprep.subr.mxu0 0.0
  %1331 = vmatpush2.msra.mxu0 0.0
  %1332 = vmatprep.subr.mxu0 0.0
  %1333 = vmatpush2.msra.mxu0 0.0
  %1334 = vmatprep.subr.mxu0 0.0
  %1335 = vmatpush2.msra.mxu0 0.0
  %1336 = vmatprep.subr.mxu0 0.0
  %1337 = vmatpush2.msra.mxu0 0.0
  %1338 = vmatprep.subr.mxu0 0.0
  %1339 = vmatpush2.msra.mxu0 0.0
  %1340 = vmatprep.subr.mxu0 0.0
  %1341 = vmatpush2.msra.mxu0 0.0
  %1342 = vmatprep.subr.mxu0 0.0
  %1343 = vmatpush2.msra.mxu0 0.0
  %1344 = vmatprep.subr.mxu0 0.0
  %1345 = vmatpush2.msra.mxu0 0.0
  %1346 = vmatprep.subr.mxu0 0.0
  %1347 = vmatpush2.msra.mxu0 0.0
  %1348 = vmatprep.subr.mxu0 0.0
  %1349 = vmatpush2.msra.mxu0 0.0
  %1350 = vmatprep.mubr.f32.mxu0 0.0
  %1351 = vmatmul.mubr.f32.gmra.mxu0 %v1196
  %v1352 = vpop.f32.mrf.mxu0
  %v1353 = vadd.f32 0.0, %v1352
  %v1354 = vpop.f32.mrf.mxu0
  %1355 = vdwg.mxu0
  %v1357 = vrot.slane %v1353, 7
  %v1360 = vadd.f32 %v20, %v1357
  %v1361 = vadd.f32 %v28, %v1353
  %v1362 = vxor.u32 %v1360, 2147483648
  %v1363 = vxor.u32 %v1361, 2147483648
  %v1364 = vmul.f32 %v1362, 1.442695
  %v1365 = vpow.pop %v1364
  %v1366 = vmul.f32 %v1363, 1.442695
  %v1367 = vpow.pop %v1366
  %v1368 = vadd.f32 %v1365, 1.0
  %v1369 = vadd.f32 %v1367, 1.0
  %v1370 = vrcp.pop %v1368
  %v1371 = vmul.f32 1.0, %v1370
  %v1372 = vrcp.pop %v1369
  %v1373 = vmul.f32 1.0, %v1372
  %1374 = vmatprep.subr.mxu0 0.0
  %1375 = vmatpush1.msra.mxu0 0.0
  %1376 = vmatprep.subr.mxu0 0.0
  %1377 = vmatpush1.msra.mxu0 0.0
  %1378 = vmatprep.subr.mxu0 0.0
  %1379 = vmatpush1.msra.mxu0 0.0
  %1380 = vmatprep.subr.mxu0 0.0
  %1381 = vmatpush1.msra.mxu0 0.0
  %1382 = vmatprep.subr.mxu0 0.0
  %1383 = vmatpush1.msra.mxu0 0.0
  %1384 = vmatprep.subr.mxu0 0.0
  %1385 = vmatpush1.msra.mxu0 0.0
  %1386 = vmatprep.subr.mxu0 0.0
  %1387 = vmatpush1.msra.mxu0 0.0
  %1388 = vmatprep.subr.mxu0 0.0
  %1389 = vmatpush1.msra.mxu0 0.0
  %1390 = vmatprep.subr.mxu0 0.0
  %1391 = vmatpush1.msra.mxu0 0.0
  %1392 = vmatprep.subr.mxu0 0.0
  %1393 = vmatpush1.msra.mxu0 0.0
  %1394 = vmatprep.subr.mxu0 0.0
  %1395 = vmatpush1.msra.mxu0 0.0
  %1396 = vmatprep.subr.mxu0 0.0
  %1397 = vmatpush1.msra.mxu0 0.0
  %1398 = vmatprep.subr.mxu0 0.0
  %1399 = vmatpush1.msra.mxu0 %v44
  %1400 = vmatprep.subr.mxu0 0.0
  %1401 = vmatpush1.msra.mxu0 %v43
  %1402 = vmatprep.subr.mxu0 0.0
  %1403 = vmatpush1.msra.mxu0 %v42
  %1404 = vmatprep.subr.mxu0 0.0
  %1405 = vmatpush1.msra.mxu0 %v41
  %1406 = vmatprep.subr.mxu0 0.0
  %1407 = vmatpush2.msra.mxu0 0.0
  %1408 = vmatprep.subr.mxu0 0.0
  %1409 = vmatpush2.msra.mxu0 0.0
  %1410 = vmatprep.subr.mxu0 0.0
  %1411 = vmatpush2.msra.mxu0 0.0
  %1412 = vmatprep.subr.mxu0 0.0
  %1413 = vmatpush2.msra.mxu0 0.0
  %1414 = vmatprep.subr.mxu0 0.0
  %1415 = vmatpush2.msra.mxu0 0.0
  %1416 = vmatprep.subr.mxu0 0.0
  %1417 = vmatpush2.msra.mxu0 0.0
  %1418 = vmatprep.subr.mxu0 0.0
  %1419 = vmatpush2.msra.mxu0 0.0
  %1420 = vmatprep.subr.mxu0 0.0
  %1421 = vmatpush2.msra.mxu0 0.0
  %1422 = vmatprep.subr.mxu0 0.0
  %1423 = vmatpush2.msra.mxu0 0.0
  %1424 = vmatprep.subr.mxu0 0.0
  %1425 = vmatpush2.msra.mxu0 0.0
  %1426 = vmatprep.subr.mxu0 0.0
  %1427 = vmatpush2.msra.mxu0 0.0
  %1428 = vmatprep.subr.mxu0 0.0
  %1429 = vmatpush2.msra.mxu0 0.0
  %1430 = vmatprep.subr.mxu0 0.0
  %1431 = vmatpush2.msra.mxu0 0.0
  %1432 = vmatprep.subr.mxu0 0.0
  %1433 = vmatpush2.msra.mxu0 0.0
  %1434 = vmatprep.subr.mxu0 0.0
  %1435 = vmatpush2.msra.mxu0 0.0
  %1436 = vmatprep.subr.mxu0 0.0
  %1437 = vmatpush2.msra.mxu0 0.0
  %1438 = vmatprep.mubr.f32.mxu0 0.0
  %1439 = vmatmul.mubr.f32.gmra.mxu0 %v1196
  %v1440 = vpop.f32.mrf.mxu0
  %v1441 = vadd.f32 0.0, %v1440
  %v1442 = vpop.f32.mrf.mxu0
  %1443 = vdwg.mxu0
  %v1445 = vrot.slane %v1441, 6
  %v1446 = vrot.slane %v1441, 7
  %v1449 = vadd.f32 %v20, %v1445
  %v1450 = vadd.f32 %v28, %v1446
  %v1451 = vtanh.pop %v1449
  %v1452 = vtanh.pop %v1450
  %1453 = vmatprep.subr.mxu0 0.0
  %1454 = vmatpush1.msra.mxu0 0.0
  %1455 = vmatprep.subr.mxu0 0.0
  %1456 = vmatpush1.msra.mxu0 0.0
  %1457 = vmatprep.subr.mxu0 0.0
  %1458 = vmatpush1.msra.mxu0 0.0
  %1459 = vmatprep.subr.mxu0 0.0
  %1460 = vmatpush1.msra.mxu0 0.0
  %1461 = vmatprep.subr.mxu0 0.0
  %1462 = vmatpush1.msra.mxu0 0.0
  %1463 = vmatprep.subr.mxu0 0.0
  %1464 = vmatpush1.msra.mxu0 0.0
  %1465 = vmatprep.subr.mxu0 0.0
  %1466 = vmatpush1.msra.mxu0 0.0
  %1467 = vmatprep.subr.mxu0 0.0
  %1468 = vmatpush1.msra.mxu0 0.0
  %1469 = vmatprep.subr.mxu0 0.0
  %1470 = vmatpush1.msra.mxu0 0.0
  %1471 = vmatprep.subr.mxu0 0.0
  %1472 = vmatpush1.msra.mxu0 0.0
  %1473 = vmatprep.subr.mxu0 0.0
  %1474 = vmatpush1.msra.mxu0 0.0
  %1475 = vmatprep.subr.mxu0 0.0
  %1476 = vmatpush1.msra.mxu0 0.0
  %1477 = vmatprep.subr.mxu0 0.0
  %1478 = vmatpush1.msra.mxu0 %v48
  %1479 = vmatprep.subr.mxu0 0.0
  %1480 = vmatpush1.msra.mxu0 %v47
  %1481 = vmatprep.subr.mxu0 0.0
  %1482 = vmatpush1.msra.mxu0 %v46
  %1483 = vmatprep.subr.mxu0 0.0
  %1484 = vmatpush1.msra.mxu0 %v45
  %1485 = vmatprep.subr.mxu0 0.0
  %1486 = vmatpush2.msra.mxu0 0.0
  %1487 = vmatprep.subr.mxu0 0.0
  %1488 = vmatpush2.msra.mxu0 0.0
  %1489 = vmatprep.subr.mxu0 0.0
  %1490 = vmatpush2.msra.mxu0 0.0
  %1491 = vmatprep.subr.mxu0 0.0
  %1492 = vmatpush2.msra.mxu0 0.0
  %1493 = vmatprep.subr.mxu0 0.0
  %1494 = vmatpush2.msra.mxu0 0.0
  %1495 = vmatprep.subr.mxu0 0.0
  %1496 = vmatpush2.msra.mxu0 0.0
  %1497 = vmatprep.subr.mxu0 0.0
  %1498 = vmatpush2.msra.mxu0 0.0
  %1499 = vmatprep.subr.mxu0 0.0
  %1500 = vmatpush2.msra.mxu0 0.0
  %1501 = vmatprep.subr.mxu0 0.0
  %1502 = vmatpush2.msra.mxu0 0.0
  %1503 = vmatprep.subr.mxu0 0.0
  %1504 = vmatpush2.msra.mxu0 0.0
  %1505 = vmatprep.subr.mxu0 0.0
  %1506 = vmatpush2.msra.mxu0 0.0
  %1507 = vmatprep.subr.mxu0 0.0
  %1508 = vmatpush2.msra.mxu0 0.0
  %1509 = vmatprep.subr.mxu0 0.0
  %1510 = vmatpush2.msra.mxu0 0.0
  %1511 = vmatprep.subr.mxu0 0.0
  %1512 = vmatpush2.msra.mxu0 0.0
  %1513 = vmatprep.subr.mxu0 0.0
  %1514 = vmatpush2.msra.mxu0 0.0
  %1515 = vmatprep.subr.mxu0 0.0
  %1516 = vmatpush2.msra.mxu0 0.0
  %1517 = vmatprep.mubr.f32.mxu0 0.0
  %1518 = vmatmul.mubr.f32.gmra.mxu0 %v1196
  %v1519 = vpop.f32.mrf.mxu0
  %v1520 = vadd.f32 0.0, %v1519
  %v1521 = vpop.f32.mrf.mxu0
  %1522 = vdwg.mxu0
  %v1524 = vrot.slane %v1520, 5
  %v1525 = vrot.slane %v1520, 6
  %v1528 = vadd.f32 %v20, %v1524
  %v1529 = vadd.f32 %v28, %v1525
  %v1530 = vxor.u32 %v1528, 2147483648
  %v1531 = vxor.u32 %v1529, 2147483648
  %v1532 = vmul.f32 %v1530, 1.442695
  %v1533 = vpow.pop %v1532
  %v1534 = vmul.f32 %v1531, 1.442695
  %v1535 = vpow.pop %v1534
  %v1536 = vadd.f32 %v1533, 1.0
  %v1537 = vadd.f32 %v1535, 1.0
  %v1538 = vrcp.pop %v1536
  %v1539 = vmul.f32 1.0, %v1538
  %v1540 = vrcp.pop %v1537
  %v1541 = vmul.f32 1.0, %v1540
  %v1542 = vmul.f32 %v1371, %v1177
  %v1543 = vmul.f32 %v1373, %v1178
  %v1546 = vrot.slane %v1451, 2
  %v1547 = vrot.slane %v1452, 2
  %v1550 = vmul.f32 %v1283, %v1546
  %v1551 = vmul.f32 %v1285, %v1547
  %v1554 = vrot.slane %v1550, 7
  %v1555 = vrot.slane %v1551, 7
  %v1558 = vadd.f32 %v1542, %v1554
  %v1559 = vadd.f32 %v1543, %v1555
  %v1560 = vtanh.pop %v1558
  %v1561 = vtanh.pop %v1559
  %v1564 = vrot.slane %v1560, 6
  %v1565 = vrot.slane %v1561, 6
  %v1568 = vmul.f32 %v1539, %v1564
  %v1569 = vmul.f32 %v1541, %v1565
  %1570 = vst.msk [vmem:[#allocation2] sm:$0x8] %vm425, %v1568
  %1571 = vst.msk [vmem:[#allocation2 + $0x8] sm:$0x8] %vm425, %v1569
  %v1574 = vrot.slane %v1568, 3
  %v1575 = vrot.slane %v1569, 2
  %v1576 = vsel %vm432, %v1575, %v1574
  %v1577 = vsel %vm49, %v1576, 0
  %1579 = vmatprep.subr.mxu0 0.0
  %1580 = vmatpush1.msra.mxu0 0.0
  %1581 = vmatprep.subr.mxu0 0.0
  %1582 = vmatpush1.msra.mxu0 0.0
  %1583 = vmatprep.subr.mxu0 0.0
  %1584 = vmatpush1.msra.mxu0 0.0
  %1585 = vmatprep.subr.mxu0 0.0
  %1586 = vmatpush1.msra.mxu0 0.0
  %1587 = vmatprep.subr.mxu0 0.0
  %1588 = vmatpush1.msra.mxu0 0.0
  %1589 = vmatprep.subr.mxu0 0.0
  %1590 = vmatpush1.msra.mxu0 0.0
  %1591 = vmatprep.subr.mxu0 0.0
  %1592 = vmatpush1.msra.mxu0 0.0
  %1593 = vmatprep.subr.mxu0 0.0
  %1594 = vmatpush1.msra.mxu0 0.0
  %1595 = vmatprep.subr.mxu0 0.0
  %1596 = vmatpush1.msra.mxu0 0.0
  %1597 = vmatprep.subr.mxu0 0.0
  %1598 = vmatpush1.msra.mxu0 0.0
  %1599 = vmatprep.subr.mxu0 0.0
  %1600 = vmatpush1.msra.mxu0 0.0
  %1601 = vmatprep.subr.mxu0 0.0
  %1602 = vmatpush1.msra.mxu0 0.0
  %1603 = vmatprep.subr.mxu0 0.0
  %1604 = vmatpush1.msra.mxu0 %v36
  %1605 = vmatprep.subr.mxu0 0.0
  %1606 = vmatpush1.msra.mxu0 %v35
  %1607 = vmatprep.subr.mxu0 0.0
  %1608 = vmatpush1.msra.mxu0 %v34
  %1609 = vmatprep.subr.mxu0 0.0
  %1610 = vmatpush1.msra.mxu0 %v33
  %1611 = vmatprep.subr.mxu0 0.0
  %1612 = vmatpush2.msra.mxu0 0.0
  %1613 = vmatprep.subr.mxu0 0.0
  %1614 = vmatpush2.msra.mxu0 0.0
  %1615 = vmatprep.subr.mxu0 0.0
  %1616 = vmatpush2.msra.mxu0 0.0
  %1617 = vmatprep.subr.mxu0 0.0
  %1618 = vmatpush2.msra.mxu0 0.0
  %1619 = vmatprep.subr.mxu0 0.0
  %1620 = vmatpush2.msra.mxu0 0.0
  %1621 = vmatprep.subr.mxu0 0.0
  %1622 = vmatpush2.msra.mxu0 0.0
  %1623 = vmatprep.subr.mxu0 0.0
  %1624 = vmatpush2.msra.mxu0 0.0
  %1625 = vmatprep.subr.mxu0 0.0
  %1626 = vmatpush2.msra.mxu0 0.0
  %1627 = vmatprep.subr.mxu0 0.0
  %1628 = vmatpush2.msra.mxu0 0.0
  %1629 = vmatprep.subr.mxu0 0.0
  %1630 = vmatpush2.msra.mxu0 0.0
  %1631 = vmatprep.subr.mxu0 0.0
  %1632 = vmatpush2.msra.mxu0 0.0
  %1633 = vmatprep.subr.mxu0 0.0
  %1634 = vmatpush2.msra.mxu0 0.0
  %1635 = vmatprep.subr.mxu0 0.0
  %1636 = vmatpush2.msra.mxu0 0.0
  %1637 = vmatprep.subr.mxu0 0.0
  %1638 = vmatpush2.msra.mxu0 0.0
  %1639 = vmatprep.subr.mxu0 0.0
  %1640 = vmatpush2.msra.mxu0 0.0
  %1641 = vmatprep.subr.mxu0 0.0
  %1642 = vmatpush2.msra.mxu0 0.0
  %1643 = vmatprep.mubr.f32.mxu0 0.0
  %1644 = vmatmul.mubr.f32.gmra.mxu0 %v1577
  %v1645 = vpop.f32.mrf.mxu0
  %v1646 = vadd.f32 0.0, %v1645
  %v1647 = vpop.f32.mrf.mxu0
  %1648 = vdwg.mxu0
  %v1650 = vrot.slane %v1646, 1
  %v1653 = vadd.f32 %v21, %v1646
  %v1654 = vadd.f32 %v29, %v1650
  %v1655 = vxor.u32 %v1653, 2147483648
  %v1656 = vxor.u32 %v1654, 2147483648
  %v1657 = vmul.f32 %v1655, 1.442695
  %v1658 = vpow.pop %v1657
  %v1659 = vmul.f32 %v1656, 1.442695
  %v1660 = vpow.pop %v1659
  %v1661 = vadd.f32 %v1658, 1.0
  %v1662 = vadd.f32 %v1660, 1.0
  %v1663 = vrcp.pop %v1661
  %v1664 = vmul.f32 1.0, %v1663
  %v1665 = vrcp.pop %v1662
  %v1666 = vmul.f32 1.0, %v1665
  %1667 = vmatprep.subr.mxu0 0.0
  %1668 = vmatpush1.msra.mxu0 0.0
  %1669 = vmatprep.subr.mxu0 0.0
  %1670 = vmatpush1.msra.mxu0 0.0
  %1671 = vmatprep.subr.mxu0 0.0
  %1672 = vmatpush1.msra.mxu0 0.0
  %1673 = vmatprep.subr.mxu0 0.0
  %1674 = vmatpush1.msra.mxu0 0.0
  %1675 = vmatprep.subr.mxu0 0.0
  %1676 = vmatpush1.msra.mxu0 0.0
  %1677 = vmatprep.subr.mxu0 0.0
  %1678 = vmatpush1.msra.mxu0 0.0
  %1679 = vmatprep.subr.mxu0 0.0
  %1680 = vmatpush1.msra.mxu0 0.0
  %1681 = vmatprep.subr.mxu0 0.0
  %1682 = vmatpush1.msra.mxu0 0.0
  %1683 = vmatprep.subr.mxu0 0.0
  %1684 = vmatpush1.msra.mxu0 0.0
  %1685 = vmatprep.subr.mxu0 0.0
  %1686 = vmatpush1.msra.mxu0 0.0
  %1687 = vmatprep.subr.mxu0 0.0
  %1688 = vmatpush1.msra.mxu0 0.0
  %1689 = vmatprep.subr.mxu0 0.0
  %1690 = vmatpush1.msra.mxu0 0.0
  %1691 = vmatprep.subr.mxu0 0.0
  %1692 = vmatpush1.msra.mxu0 %v40
  %1693 = vmatprep.subr.mxu0 0.0
  %1694 = vmatpush1.msra.mxu0 %v39
  %1695 = vmatprep.subr.mxu0 0.0
  %1696 = vmatpush1.msra.mxu0 %v38
  %1697 = vmatprep.subr.mxu0 0.0
  %1698 = vmatpush1.msra.mxu0 %v37
  %1699 = vmatprep.subr.mxu0 0.0
  %1700 = vmatpush2.msra.mxu0 0.0
  %1701 = vmatprep.subr.mxu0 0.0
  %1702 = vmatpush2.msra.mxu0 0.0
  %1703 = vmatprep.subr.mxu0 0.0
  %1704 = vmatpush2.msra.mxu0 0.0
  %1705 = vmatprep.subr.mxu0 0.0
  %1706 = vmatpush2.msra.mxu0 0.0
  %1707 = vmatprep.subr.mxu0 0.0
  %1708 = vmatpush2.msra.mxu0 0.0
  %1709 = vmatprep.subr.mxu0 0.0
  %1710 = vmatpush2.msra.mxu0 0.0
  %1711 = vmatprep.subr.mxu0 0.0
  %1712 = vmatpush2.msra.mxu0 0.0
  %1713 = vmatprep.subr.mxu0 0.0
  %1714 = vmatpush2.msra.mxu0 0.0
  %1715 = vmatprep.subr.mxu0 0.0
  %1716 = vmatpush2.msra.mxu0 0.0
  %1717 = vmatprep.subr.mxu0 0.0
  %1718 = vmatpush2.msra.mxu0 0.0
  %1719 = vmatprep.subr.mxu0 0.0
  %1720 = vmatpush2.msra.mxu0 0.0
  %1721 = vmatprep.subr.mxu0 0.0
  %1722 = vmatpush2.msra.mxu0 0.0
  %1723 = vmatprep.subr.mxu0 0.0
  %1724 = vmatpush2.msra.mxu0 0.0
  %1725 = vmatprep.subr.mxu0 0.0
  %1726 = vmatpush2.msra.mxu0 0.0
  %1727 = vmatprep.subr.mxu0 0.0
  %1728 = vmatpush2.msra.mxu0 0.0
  %1729 = vmatprep.subr.mxu0 0.0
  %1730 = vmatpush2.msra.mxu0 0.0
  %1731 = vmatprep.mubr.f32.mxu0 0.0
  %1732 = vmatmul.mubr.f32.gmra.mxu0 %v1577
  %v1733 = vpop.f32.mrf.mxu0
  %v1734 = vadd.f32 0.0, %v1733
  %v1735 = vpop.f32.mrf.mxu0
  %1736 = vdwg.mxu0
  %v1738 = vrot.slane %v1734, 7
  %v1741 = vadd.f32 %v21, %v1738
  %v1742 = vadd.f32 %v29, %v1734
  %v1743 = vxor.u32 %v1741, 2147483648
  %v1744 = vxor.u32 %v1742, 2147483648
  %v1745 = vmul.f32 %v1743, 1.442695
  %v1746 = vpow.pop %v1745
  %v1747 = vmul.f32 %v1744, 1.442695
  %v1748 = vpow.pop %v1747
  %v1749 = vadd.f32 %v1746, 1.0
  %v1750 = vadd.f32 %v1748, 1.0
  %v1751 = vrcp.pop %v1749
  %v1752 = vmul.f32 1.0, %v1751
  %v1753 = vrcp.pop %v1750
  %v1754 = vmul.f32 1.0, %v1753
  %1755 = vmatprep.subr.mxu0 0.0
  %1756 = vmatpush1.msra.mxu0 0.0
  %1757 = vmatprep.subr.mxu0 0.0
  %1758 = vmatpush1.msra.mxu0 0.0
  %1759 = vmatprep.subr.mxu0 0.0
  %1760 = vmatpush1.msra.mxu0 0.0
  %1761 = vmatprep.subr.mxu0 0.0
  %1762 = vmatpush1.msra.mxu0 0.0
  %1763 = vmatprep.subr.mxu0 0.0
  %1764 = vmatpush1.msra.mxu0 0.0
  %1765 = vmatprep.subr.mxu0 0.0
  %1766 = vmatpush1.msra.mxu0 0.0
  %1767 = vmatprep.subr.mxu0 0.0
  %1768 = vmatpush1.msra.mxu0 0.0
  %1769 = vmatprep.subr.mxu0 0.0
  %1770 = vmatpush1.msra.mxu0 0.0
  %1771 = vmatprep.subr.mxu0 0.0
  %1772 = vmatpush1.msra.mxu0 0.0
  %1773 = vmatprep.subr.mxu0 0.0
  %1774 = vmatpush1.msra.mxu0 0.0
  %1775 = vmatprep.subr.mxu0 0.0
  %1776 = vmatpush1.msra.mxu0 0.0
  %1777 = vmatprep.subr.mxu0 0.0
  %1778 = vmatpush1.msra.mxu0 0.0
  %1779 = vmatprep.subr.mxu0 0.0
  %1780 = vmatpush1.msra.mxu0 %v44
  %1781 = vmatprep.subr.mxu0 0.0
  %1782 = vmatpush1.msra.mxu0 %v43
  %1783 = vmatprep.subr.mxu0 0.0
  %1784 = vmatpush1.msra.mxu0 %v42
  %1785 = vmatprep.subr.mxu0 0.0
  %1786 = vmatpush1.msra.mxu0 %v41
  %1787 = vmatprep.subr.mxu0 0.0
  %1788 = vmatpush2.msra.mxu0 0.0
  %1789 = vmatprep.subr.mxu0 0.0
  %1790 = vmatpush2.msra.mxu0 0.0
  %1791 = vmatprep.subr.mxu0 0.0
  %1792 = vmatpush2.msra.mxu0 0.0
  %1793 = vmatprep.subr.mxu0 0.0
  %1794 = vmatpush2.msra.mxu0 0.0
  %1795 = vmatprep.subr.mxu0 0.0
  %1796 = vmatpush2.msra.mxu0 0.0
  %1797 = vmatprep.subr.mxu0 0.0
  %1798 = vmatpush2.msra.mxu0 0.0
  %1799 = vmatprep.subr.mxu0 0.0
  %1800 = vmatpush2.msra.mxu0 0.0
  %1801 = vmatprep.subr.mxu0 0.0
  %1802 = vmatpush2.msra.mxu0 0.0
  %1803 = vmatprep.subr.mxu0 0.0
  %1804 = vmatpush2.msra.mxu0 0.0
  %1805 = vmatprep.subr.mxu0 0.0
  %1806 = vmatpush2.msra.mxu0 0.0
  %1807 = vmatprep.subr.mxu0 0.0
  %1808 = vmatpush2.msra.mxu0 0.0
  %1809 = vmatprep.subr.mxu0 0.0
  %1810 = vmatpush2.msra.mxu0 0.0
  %1811 = vmatprep.subr.mxu0 0.0
  %1812 = vmatpush2.msra.mxu0 0.0
  %1813 = vmatprep.subr.mxu0 0.0
  %1814 = vmatpush2.msra.mxu0 0.0
  %1815 = vmatprep.subr.mxu0 0.0
  %1816 = vmatpush2.msra.mxu0 0.0
  %1817 = vmatprep.subr.mxu0 0.0
  %1818 = vmatpush2.msra.mxu0 0.0
  %1819 = vmatprep.mubr.f32.mxu0 0.0
  %1820 = vmatmul.mubr.f32.gmra.mxu0 %v1577
  %v1821 = vpop.f32.mrf.mxu0
  %v1822 = vadd.f32 0.0, %v1821
  %v1823 = vpop.f32.mrf.mxu0
  %1824 = vdwg.mxu0
  %v1826 = vrot.slane %v1822, 6
  %v1827 = vrot.slane %v1822, 7
  %v1830 = vadd.f32 %v21, %v1826
  %v1831 = vadd.f32 %v29, %v1827
  %v1832 = vtanh.pop %v1830
  %v1833 = vtanh.pop %v1831
  %1834 = vmatprep.subr.mxu0 0.0
  %1835 = vmatpush1.msra.mxu0 0.0
  %1836 = vmatprep.subr.mxu0 0.0
  %1837 = vmatpush1.msra.mxu0 0.0
  %1838 = vmatprep.subr.mxu0 0.0
  %1839 = vmatpush1.msra.mxu0 0.0
  %1840 = vmatprep.subr.mxu0 0.0
  %1841 = vmatpush1.msra.mxu0 0.0
  %1842 = vmatprep.subr.mxu0 0.0
  %1843 = vmatpush1.msra.mxu0 0.0
  %1844 = vmatprep.subr.mxu0 0.0
  %1845 = vmatpush1.msra.mxu0 0.0
  %1846 = vmatprep.subr.mxu0 0.0
  %1847 = vmatpush1.msra.mxu0 0.0
  %1848 = vmatprep.subr.mxu0 0.0
  %1849 = vmatpush1.msra.mxu0 0.0
  %1850 = vmatprep.subr.mxu0 0.0
  %1851 = vmatpush1.msra.mxu0 0.0
  %1852 = vmatprep.subr.mxu0 0.0
  %1853 = vmatpush1.msra.mxu0 0.0
  %1854 = vmatprep.subr.mxu0 0.0
  %1855 = vmatpush1.msra.mxu0 0.0
  %1856 = vmatprep.subr.mxu0 0.0
  %1857 = vmatpush1.msra.mxu0 0.0
  %1858 = vmatprep.subr.mxu0 0.0
  %1859 = vmatpush1.msra.mxu0 %v48
  %1860 = vmatprep.subr.mxu0 0.0
  %1861 = vmatpush1.msra.mxu0 %v47
  %1862 = vmatprep.subr.mxu0 0.0
  %1863 = vmatpush1.msra.mxu0 %v46
  %1864 = vmatprep.subr.mxu0 0.0
  %1865 = vmatpush1.msra.mxu0 %v45
  %1866 = vmatprep.subr.mxu0 0.0
  %1867 = vmatpush2.msra.mxu0 0.0
  %1868 = vmatprep.subr.mxu0 0.0
  %1869 = vmatpush2.msra.mxu0 0.0
  %1870 = vmatprep.subr.mxu0 0.0
  %1871 = vmatpush2.msra.mxu0 0.0
  %1872 = vmatprep.subr.mxu0 0.0
  %1873 = vmatpush2.msra.mxu0 0.0
  %1874 = vmatprep.subr.mxu0 0.0
  %1875 = vmatpush2.msra.mxu0 0.0
  %1876 = vmatprep.subr.mxu0 0.0
  %1877 = vmatpush2.msra.mxu0 0.0
  %1878 = vmatprep.subr.mxu0 0.0
  %1879 = vmatpush2.msra.mxu0 0.0
  %1880 = vmatprep.subr.mxu0 0.0
  %1881 = vmatpush2.msra.mxu0 0.0
  %1882 = vmatprep.subr.mxu0 0.0
  %1883 = vmatpush2.msra.mxu0 0.0
  %1884 = vmatprep.subr.mxu0 0.0
  %1885 = vmatpush2.msra.mxu0 0.0
  %1886 = vmatprep.subr.mxu0 0.0
  %1887 = vmatpush2.msra.mxu0 0.0
  %1888 = vmatprep.subr.mxu0 0.0
  %1889 = vmatpush2.msra.mxu0 0.0
  %1890 = vmatprep.subr.mxu0 0.0
  %1891 = vmatpush2.msra.mxu0 0.0
  %1892 = vmatprep.subr.mxu0 0.0
  %1893 = vmatpush2.msra.mxu0 0.0
  %1894 = vmatprep.subr.mxu0 0.0
  %1895 = vmatpush2.msra.mxu0 0.0
  %1896 = vmatprep.subr.mxu0 0.0
  %1897 = vmatpush2.msra.mxu0 0.0
  %1898 = vmatprep.mubr.f32.mxu0 0.0
  %1899 = vmatmul.mubr.f32.gmra.mxu0 %v1577
  %v1900 = vpop.f32.mrf.mxu0
  %v1901 = vadd.f32 0.0, %v1900
  %v1902 = vpop.f32.mrf.mxu0
  %1903 = vdwg.mxu0
  %v1905 = vrot.slane %v1901, 5
  %v1906 = vrot.slane %v1901, 6
  %v1909 = vadd.f32 %v21, %v1905
  %v1910 = vadd.f32 %v29, %v1906
  %v1911 = vxor.u32 %v1909, 2147483648
  %v1912 = vxor.u32 %v1910, 2147483648
  %v1913 = vmul.f32 %v1911, 1.442695
  %v1914 = vpow.pop %v1913
  %v1915 = vmul.f32 %v1912, 1.442695
  %v1916 = vpow.pop %v1915
  %v1917 = vadd.f32 %v1914, 1.0
  %v1918 = vadd.f32 %v1916, 1.0
  %v1919 = vrcp.pop %v1917
  %v1920 = vmul.f32 1.0, %v1919
  %v1921 = vrcp.pop %v1918
  %v1922 = vmul.f32 1.0, %v1921
  %v1923 = vmul.f32 %v1752, %v1558
  %v1924 = vmul.f32 %v1754, %v1559
  %v1927 = vrot.slane %v1832, 2
  %v1928 = vrot.slane %v1833, 2
  %v1931 = vmul.f32 %v1664, %v1927
  %v1932 = vmul.f32 %v1666, %v1928
  %v1935 = vrot.slane %v1931, 7
  %v1936 = vrot.slane %v1932, 7
  %v1939 = vadd.f32 %v1923, %v1935
  %v1940 = vadd.f32 %v1924, %v1936
  %v1941 = vtanh.pop %v1939
  %v1942 = vtanh.pop %v1940
  %v1945 = vrot.slane %v1941, 6
  %v1946 = vrot.slane %v1942, 6
  %v1949 = vmul.f32 %v1920, %v1945
  %v1950 = vmul.f32 %v1922, %v1946
  %1951 = vst.msk [vmem:[#allocation2 + $0x1] sm:$0x8] %vm425, %v1949
  %1952 = vst.msk [vmem:[#allocation2 + $0x9] sm:$0x8] %vm425, %v1950
  %v1955 = vrot.slane %v1949, 3
  %v1956 = vrot.slane %v1950, 2
  %v1957 = vsel %vm432, %v1956, %v1955
  %v1958 = vsel %vm49, %v1957, 0
  %1960 = vmatprep.subr.mxu0 0.0
  %1961 = vmatpush1.msra.mxu0 0.0
  %1962 = vmatprep.subr.mxu0 0.0
  %1963 = vmatpush1.msra.mxu0 0.0
  %1964 = vmatprep.subr.mxu0 0.0
  %1965 = vmatpush1.msra.mxu0 0.0
  %1966 = vmatprep.subr.mxu0 0.0
  %1967 = vmatpush1.msra.mxu0 0.0
  %1968 = vmatprep.subr.mxu0 0.0
  %1969 = vmatpush1.msra.mxu0 0.0
  %1970 = vmatprep.subr.mxu0 0.0
  %1971 = vmatpush1.msra.mxu0 0.0
  %1972 = vmatprep.subr.mxu0 0.0
  %1973 = vmatpush1.msra.mxu0 0.0
  %1974 = vmatprep.subr.mxu0 0.0
  %1975 = vmatpush1.msra.mxu0 0.0
  %1976 = vmatprep.subr.mxu0 0.0
  %1977 = vmatpush1.msra.mxu0 0.0
  %1978 = vmatprep.subr.mxu0 0.0
  %1979 = vmatpush1.msra.mxu0 0.0
  %1980 = vmatprep.subr.mxu0 0.0
  %1981 = vmatpush1.msra.mxu0 0.0
  %1982 = vmatprep.subr.mxu0 0.0
  %1983 = vmatpush1.msra.mxu0 0.0
  %1984 = vmatprep.subr.mxu0 0.0
  %1985 = vmatpush1.msra.mxu0 %v36
  %1986 = vmatprep.subr.mxu0 0.0
  %1987 = vmatpush1.msra.mxu0 %v35
  %1988 = vmatprep.subr.mxu0 0.0
  %1989 = vmatpush1.msra.mxu0 %v34
  %1990 = vmatprep.subr.mxu0 0.0
  %1991 = vmatpush1.msra.mxu0 %v33
  %1992 = vmatprep.subr.mxu0 0.0
  %1993 = vmatpush2.msra.mxu0 0.0
  %1994 = vmatprep.subr.mxu0 0.0
  %1995 = vmatpush2.msra.mxu0 0.0
  %1996 = vmatprep.subr.mxu0 0.0
  %1997 = vmatpush2.msra.mxu0 0.0
  %1998 = vmatprep.subr.mxu0 0.0
  %1999 = vmatpush2.msra.mxu0 0.0
  %2000 = vmatprep.subr.mxu0 0.0
  %2001 = vmatpush2.msra.mxu0 0.0
  %2002 = vmatprep.subr.mxu0 0.0
  %2003 = vmatpush2.msra.mxu0 0.0
  %2004 = vmatprep.subr.mxu0 0.0
  %2005 = vmatpush2.msra.mxu0 0.0
  %2006 = vmatprep.subr.mxu0 0.0
  %2007 = vmatpush2.msra.mxu0 0.0
  %2008 = vmatprep.subr.mxu0 0.0
  %2009 = vmatpush2.msra.mxu0 0.0
  %2010 = vmatprep.subr.mxu0 0.0
  %2011 = vmatpush2.msra.mxu0 0.0
  %2012 = vmatprep.subr.mxu0 0.0
  %2013 = vmatpush2.msra.mxu0 0.0
  %2014 = vmatprep.subr.mxu0 0.0
  %2015 = vmatpush2.msra.mxu0 0.0
  %2016 = vmatprep.subr.mxu0 0.0
  %2017 = vmatpush2.msra.mxu0 0.0
  %2018 = vmatprep.subr.mxu0 0.0
  %2019 = vmatpush2.msra.mxu0 0.0
  %2020 = vmatprep.subr.mxu0 0.0
  %2021 = vmatpush2.msra.mxu0 0.0
  %2022 = vmatprep.subr.mxu0 0.0
  %2023 = vmatpush2.msra.mxu0 0.0
  %2024 = vmatprep.mubr.f32.mxu0 0.0
  %2025 = vmatmul.mubr.f32.gmra.mxu0 %v1958
  %v2026 = vpop.f32.mrf.mxu0
  %v2027 = vadd.f32 0.0, %v2026
  %v2028 = vpop.f32.mrf.mxu0
  %2029 = vdwg.mxu0
  %v2031 = vrot.slane %v2027, 1
  %v2034 = vadd.f32 %v22, %v2027
  %v2035 = vadd.f32 %v30, %v2031
  %v2036 = vxor.u32 %v2034, 2147483648
  %v2037 = vxor.u32 %v2035, 2147483648
  %v2038 = vmul.f32 %v2036, 1.442695
  %v2039 = vpow.pop %v2038
  %v2040 = vmul.f32 %v2037, 1.442695
  %v2041 = vpow.pop %v2040
  %v2042 = vadd.f32 %v2039, 1.0
  %v2043 = vadd.f32 %v2041, 1.0
  %v2044 = vrcp.pop %v2042
  %v2045 = vmul.f32 1.0, %v2044
  %v2046 = vrcp.pop %v2043
  %v2047 = vmul.f32 1.0, %v2046
  %2048 = vmatprep.subr.mxu0 0.0
  %2049 = vmatpush1.msra.mxu0 0.0
  %2050 = vmatprep.subr.mxu0 0.0
  %2051 = vmatpush1.msra.mxu0 0.0
  %2052 = vmatprep.subr.mxu0 0.0
  %2053 = vmatpush1.msra.mxu0 0.0
  %2054 = vmatprep.subr.mxu0 0.0
  %2055 = vmatpush1.msra.mxu0 0.0
  %2056 = vmatprep.subr.mxu0 0.0
  %2057 = vmatpush1.msra.mxu0 0.0
  %2058 = vmatprep.subr.mxu0 0.0
  %2059 = vmatpush1.msra.mxu0 0.0
  %2060 = vmatprep.subr.mxu0 0.0
  %2061 = vmatpush1.msra.mxu0 0.0
  %2062 = vmatprep.subr.mxu0 0.0
  %2063 = vmatpush1.msra.mxu0 0.0
  %2064 = vmatprep.subr.mxu0 0.0
  %2065 = vmatpush1.msra.mxu0 0.0
  %2066 = vmatprep.subr.mxu0 0.0
  %2067 = vmatpush1.msra.mxu0 0.0
  %2068 = vmatprep.subr.mxu0 0.0
  %2069 = vmatpush1.msra.mxu0 0.0
  %2070 = vmatprep.subr.mxu0 0.0
  %2071 = vmatpush1.msra.mxu0 0.0
  %2072 = vmatprep.subr.mxu0 0.0
  %2073 = vmatpush1.msra.mxu0 %v40
  %2074 = vmatprep.subr.mxu0 0.0
  %2075 = vmatpush1.msra.mxu0 %v39
  %2076 = vmatprep.subr.mxu0 0.0
  %2077 = vmatpush1.msra.mxu0 %v38
  %2078 = vmatprep.subr.mxu0 0.0
  %2079 = vmatpush1.msra.mxu0 %v37
  %2080 = vmatprep.subr.mxu0 0.0
  %2081 = vmatpush2.msra.mxu0 0.0
  %2082 = vmatprep.subr.mxu0 0.0
  %2083 = vmatpush2.msra.mxu0 0.0
  %2084 = vmatprep.subr.mxu0 0.0
  %2085 = vmatpush2.msra.mxu0 0.0
  %2086 = vmatprep.subr.mxu0 0.0
  %2087 = vmatpush2.msra.mxu0 0.0
  %2088 = vmatprep.subr.mxu0 0.0
  %2089 = vmatpush2.msra.mxu0 0.0
  %2090 = vmatprep.subr.mxu0 0.0
  %2091 = vmatpush2.msra.mxu0 0.0
  %2092 = vmatprep.subr.mxu0 0.0
  %2093 = vmatpush2.msra.mxu0 0.0
  %2094 = vmatprep.subr.mxu0 0.0
  %2095 = vmatpush2.msra.mxu0 0.0
  %2096 = vmatprep.subr.mxu0 0.0
  %2097 = vmatpush2.msra.mxu0 0.0
  %2098 = vmatprep.subr.mxu0 0.0
  %2099 = vmatpush2.msra.mxu0 0.0
  %2100 = vmatprep.subr.mxu0 0.0
  %2101 = vmatpush2.msra.mxu0 0.0
  %2102 = vmatprep.subr.mxu0 0.0
  %2103 = vmatpush2.msra.mxu0 0.0
  %2104 = vmatprep.subr.mxu0 0.0
  %2105 = vmatpush2.msra.mxu0 0.0
  %2106 = vmatprep.subr.mxu0 0.0
  %2107 = vmatpush2.msra.mxu0 0.0
  %2108 = vmatprep.subr.mxu0 0.0
  %2109 = vmatpush2.msra.mxu0 0.0
  %2110 = vmatprep.subr.mxu0 0.0
  %2111 = vmatpush2.msra.mxu0 0.0
  %2112 = vmatprep.mubr.f32.mxu0 0.0
  %2113 = vmatmul.mubr.f32.gmra.mxu0 %v1958
  %v2114 = vpop.f32.mrf.mxu0
  %v2115 = vadd.f32 0.0, %v2114
  %v2116 = vpop.f32.mrf.mxu0
  %2117 = vdwg.mxu0
  %v2119 = vrot.slane %v2115, 7
  %v2122 = vadd.f32 %v22, %v2119
  %v2123 = vadd.f32 %v30, %v2115
  %v2124 = vxor.u32 %v2122, 2147483648
  %v2125 = vxor.u32 %v2123, 2147483648
  %v2126 = vmul.f32 %v2124, 1.442695
  %v2127 = vpow.pop %v2126
  %v2128 = vmul.f32 %v2125, 1.442695
  %v2129 = vpow.pop %v2128
  %v2130 = vadd.f32 %v2127, 1.0
  %v2131 = vadd.f32 %v2129, 1.0
  %v2132 = vrcp.pop %v2130
  %v2133 = vmul.f32 1.0, %v2132
  %v2134 = vrcp.pop %v2131
  %v2135 = vmul.f32 1.0, %v2134
  %2136 = vmatprep.subr.mxu0 0.0
  %2137 = vmatpush1.msra.mxu0 0.0
  %2138 = vmatprep.subr.mxu0 0.0
  %2139 = vmatpush1.msra.mxu0 0.0
  %2140 = vmatprep.subr.mxu0 0.0
  %2141 = vmatpush1.msra.mxu0 0.0
  %2142 = vmatprep.subr.mxu0 0.0
  %2143 = vmatpush1.msra.mxu0 0.0
  %2144 = vmatprep.subr.mxu0 0.0
  %2145 = vmatpush1.msra.mxu0 0.0
  %2146 = vmatprep.subr.mxu0 0.0
  %2147 = vmatpush1.msra.mxu0 0.0
  %2148 = vmatprep.subr.mxu0 0.0
  %2149 = vmatpush1.msra.mxu0 0.0
  %2150 = vmatprep.subr.mxu0 0.0
  %2151 = vmatpush1.msra.mxu0 0.0
  %2152 = vmatprep.subr.mxu0 0.0
  %2153 = vmatpush1.msra.mxu0 0.0
  %2154 = vmatprep.subr.mxu0 0.0
  %2155 = vmatpush1.msra.mxu0 0.0
  %2156 = vmatprep.subr.mxu0 0.0
  %2157 = vmatpush1.msra.mxu0 0.0
  %2158 = vmatprep.subr.mxu0 0.0
  %2159 = vmatpush1.msra.mxu0 0.0
  %2160 = vmatprep.subr.mxu0 0.0
  %2161 = vmatpush1.msra.mxu0 %v44
  %2162 = vmatprep.subr.mxu0 0.0
  %2163 = vmatpush1.msra.mxu0 %v43
  %2164 = vmatprep.subr.mxu0 0.0
  %2165 = vmatpush1.msra.mxu0 %v42
  %2166 = vmatprep.subr.mxu0 0.0
  %2167 = vmatpush1.msra.mxu0 %v41
  %2168 = vmatprep.subr.mxu0 0.0
  %2169 = vmatpush2.msra.mxu0 0.0
  %2170 = vmatprep.subr.mxu0 0.0
  %2171 = vmatpush2.msra.mxu0 0.0
  %2172 = vmatprep.subr.mxu0 0.0
  %2173 = vmatpush2.msra.mxu0 0.0
  %2174 = vmatprep.subr.mxu0 0.0
  %2175 = vmatpush2.msra.mxu0 0.0
  %2176 = vmatprep.subr.mxu0 0.0
  %2177 = vmatpush2.msra.mxu0 0.0
  %2178 = vmatprep.subr.mxu0 0.0
  %2179 = vmatpush2.msra.mxu0 0.0
  %2180 = vmatprep.subr.mxu0 0.0
  %2181 = vmatpush2.msra.mxu0 0.0
  %2182 = vmatprep.subr.mxu0 0.0
  %2183 = vmatpush2.msra.mxu0 0.0
  %2184 = vmatprep.subr.mxu0 0.0
  %2185 = vmatpush2.msra.mxu0 0.0
  %2186 = vmatprep.subr.mxu0 0.0
  %2187 = vmatpush2.msra.mxu0 0.0
  %2188 = vmatprep.subr.mxu0 0.0
  %2189 = vmatpush2.msra.mxu0 0.0
  %2190 = vmatprep.subr.mxu0 0.0
  %2191 = vmatpush2.msra.mxu0 0.0
  %2192 = vmatprep.subr.mxu0 0.0
  %2193 = vmatpush2.msra.mxu0 0.0
  %2194 = vmatprep.subr.mxu0 0.0
  %2195 = vmatpush2.msra.mxu0 0.0
  %2196 = vmatprep.subr.mxu0 0.0
  %2197 = vmatpush2.msra.mxu0 0.0
  %2198 = vmatprep.subr.mxu0 0.0
  %2199 = vmatpush2.msra.mxu0 0.0
  %2200 = vmatprep.mubr.f32.mxu0 0.0
  %2201 = vmatmul.mubr.f32.gmra.mxu0 %v1958
  %v2202 = vpop.f32.mrf.mxu0
  %v2203 = vadd.f32 0.0, %v2202
  %v2204 = vpop.f32.mrf.mxu0
  %2205 = vdwg.mxu0
  %v2207 = vrot.slane %v2203, 6
  %v2208 = vrot.slane %v2203, 7
  %v2211 = vadd.f32 %v22, %v2207
  %v2212 = vadd.f32 %v30, %v2208
  %v2213 = vtanh.pop %v2211
  %v2214 = vtanh.pop %v2212
  %2215 = vmatprep.subr.mxu0 0.0
  %2216 = vmatpush1.msra.mxu0 0.0
  %2217 = vmatprep.subr.mxu0 0.0
  %2218 = vmatpush1.msra.mxu0 0.0
  %2219 = vmatprep.subr.mxu0 0.0
  %2220 = vmatpush1.msra.mxu0 0.0
  %2221 = vmatprep.subr.mxu0 0.0
  %2222 = vmatpush1.msra.mxu0 0.0
  %2223 = vmatprep.subr.mxu0 0.0
  %2224 = vmatpush1.msra.mxu0 0.0
  %2225 = vmatprep.subr.mxu0 0.0
  %2226 = vmatpush1.msra.mxu0 0.0
  %2227 = vmatprep.subr.mxu0 0.0
  %2228 = vmatpush1.msra.mxu0 0.0
  %2229 = vmatprep.subr.mxu0 0.0
  %2230 = vmatpush1.msra.mxu0 0.0
  %2231 = vmatprep.subr.mxu0 0.0
  %2232 = vmatpush1.msra.mxu0 0.0
  %2233 = vmatprep.subr.mxu0 0.0
  %2234 = vmatpush1.msra.mxu0 0.0
  %2235 = vmatprep.subr.mxu0 0.0
  %2236 = vmatpush1.msra.mxu0 0.0
  %2237 = vmatprep.subr.mxu0 0.0
  %2238 = vmatpush1.msra.mxu0 0.0
  %2239 = vmatprep.subr.mxu0 0.0
  %2240 = vmatpush1.msra.mxu0 %v48
  %2241 = vmatprep.subr.mxu0 0.0
  %2242 = vmatpush1.msra.mxu0 %v47
  %2243 = vmatprep.subr.mxu0 0.0
  %2244 = vmatpush1.msra.mxu0 %v46
  %2245 = vmatprep.subr.mxu0 0.0
  %2246 = vmatpush1.msra.mxu0 %v45
  %2247 = vmatprep.subr.mxu0 0.0
  %2248 = vmatpush2.msra.mxu0 0.0
  %2249 = vmatprep.subr.mxu0 0.0
  %2250 = vmatpush2.msra.mxu0 0.0
  %2251 = vmatprep.subr.mxu0 0.0
  %2252 = vmatpush2.msra.mxu0 0.0
  %2253 = vmatprep.subr.mxu0 0.0
  %2254 = vmatpush2.msra.mxu0 0.0
  %2255 = vmatprep.subr.mxu0 0.0
  %2256 = vmatpush2.msra.mxu0 0.0
  %2257 = vmatprep.subr.mxu0 0.0
  %2258 = vmatpush2.msra.mxu0 0.0
  %2259 = vmatprep.subr.mxu0 0.0
  %2260 = vmatpush2.msra.mxu0 0.0
  %2261 = vmatprep.subr.mxu0 0.0
  %2262 = vmatpush2.msra.mxu0 0.0
  %2263 = vmatprep.subr.mxu0 0.0
  %2264 = vmatpush2.msra.mxu0 0.0
  %2265 = vmatprep.subr.mxu0 0.0
  %2266 = vmatpush2.msra.mxu0 0.0
  %2267 = vmatprep.subr.mxu0 0.0
  %2268 = vmatpush2.msra.mxu0 0.0
  %2269 = vmatprep.subr.mxu0 0.0
  %2270 = vmatpush2.msra.mxu0 0.0
  %2271 = vmatprep.subr.mxu0 0.0
  %2272 = vmatpush2.msra.mxu0 0.0
  %2273 = vmatprep.subr.mxu0 0.0
  %2274 = vmatpush2.msra.mxu0 0.0
  %2275 = vmatprep.subr.mxu0 0.0
  %2276 = vmatpush2.msra.mxu0 0.0
  %2277 = vmatprep.subr.mxu0 0.0
  %2278 = vmatpush2.msra.mxu0 0.0
  %2279 = vmatprep.mubr.f32.mxu0 0.0
  %2280 = vmatmul.mubr.f32.gmra.mxu0 %v1958
  %v2281 = vpop.f32.mrf.mxu0
  %v2282 = vadd.f32 0.0, %v2281
  %v2283 = vpop.f32.mrf.mxu0
  %2284 = vdwg.mxu0
  %v2286 = vrot.slane %v2282, 5
  %v2287 = vrot.slane %v2282, 6
  %v2290 = vadd.f32 %v22, %v2286
  %v2291 = vadd.f32 %v30, %v2287
  %v2292 = vxor.u32 %v2290, 2147483648
  %v2293 = vxor.u32 %v2291, 2147483648
  %v2294 = vmul.f32 %v2292, 1.442695
  %v2295 = vpow.pop %v2294
  %v2296 = vmul.f32 %v2293, 1.442695
  %v2297 = vpow.pop %v2296
  %v2298 = vadd.f32 %v2295, 1.0
  %v2299 = vadd.f32 %v2297, 1.0
  %v2300 = vrcp.pop %v2298
  %v2301 = vmul.f32 1.0, %v2300
  %v2302 = vrcp.pop %v2299
  %v2303 = vmul.f32 1.0, %v2302
  %v2304 = vmul.f32 %v2133, %v1939
  %v2305 = vmul.f32 %v2135, %v1940
  %v2308 = vrot.slane %v2213, 2
  %v2309 = vrot.slane %v2214, 2
  %v2312 = vmul.f32 %v2045, %v2308
  %v2313 = vmul.f32 %v2047, %v2309
  %v2316 = vrot.slane %v2312, 7
  %v2317 = vrot.slane %v2313, 7
  %v2320 = vadd.f32 %v2304, %v2316
  %v2321 = vadd.f32 %v2305, %v2317
  %v2322 = vtanh.pop %v2320
  %v2323 = vtanh.pop %v2321
  %v2326 = vrot.slane %v2322, 6
  %v2327 = vrot.slane %v2323, 6
  %v2330 = vmul.f32 %v2301, %v2326
  %v2331 = vmul.f32 %v2303, %v2327
  %2332 = vst.msk [vmem:[#allocation2 + $0x2] sm:$0x8] %vm425, %v2330
  %2333 = vst.msk [vmem:[#allocation2 + $0xa] sm:$0x8] %vm425, %v2331
  %v2336 = vrot.slane %v2330, 3
  %v2337 = vrot.slane %v2331, 2
  %v2338 = vsel %vm432, %v2337, %v2336
  %v2339 = vsel %vm49, %v2338, 0
  %2341 = vmatprep.subr.mxu0 0.0
  %2342 = vmatpush1.msra.mxu0 0.0
  %2343 = vmatprep.subr.mxu0 0.0
  %2344 = vmatpush1.msra.mxu0 0.0
  %2345 = vmatprep.subr.mxu0 0.0
  %2346 = vmatpush1.msra.mxu0 0.0
  %2347 = vmatprep.subr.mxu0 0.0
  %2348 = vmatpush1.msra.mxu0 0.0
  %2349 = vmatprep.subr.mxu0 0.0
  %2350 = vmatpush1.msra.mxu0 0.0
  %2351 = vmatprep.subr.mxu0 0.0
  %2352 = vmatpush1.msra.mxu0 0.0
  %2353 = vmatprep.subr.mxu0 0.0
  %2354 = vmatpush1.msra.mxu0 0.0
  %2355 = vmatprep.subr.mxu0 0.0
  %2356 = vmatpush1.msra.mxu0 0.0
  %2357 = vmatprep.subr.mxu0 0.0
  %2358 = vmatpush1.msra.mxu0 0.0
  %2359 = vmatprep.subr.mxu0 0.0
  %2360 = vmatpush1.msra.mxu0 0.0
  %2361 = vmatprep.subr.mxu0 0.0
  %2362 = vmatpush1.msra.mxu0 0.0
  %2363 = vmatprep.subr.mxu0 0.0
  %2364 = vmatpush1.msra.mxu0 0.0
  %2365 = vmatprep.subr.mxu0 0.0
  %2366 = vmatpush1.msra.mxu0 %v36
  %2367 = vmatprep.subr.mxu0 0.0
  %2368 = vmatpush1.msra.mxu0 %v35
  %2369 = vmatprep.subr.mxu0 0.0
  %2370 = vmatpush1.msra.mxu0 %v34
  %2371 = vmatprep.subr.mxu0 0.0
  %2372 = vmatpush1.msra.mxu0 %v33
  %2373 = vmatprep.subr.mxu0 0.0
  %2374 = vmatpush2.msra.mxu0 0.0
  %2375 = vmatprep.subr.mxu0 0.0
  %2376 = vmatpush2.msra.mxu0 0.0
  %2377 = vmatprep.subr.mxu0 0.0
  %2378 = vmatpush2.msra.mxu0 0.0
  %2379 = vmatprep.subr.mxu0 0.0
  %2380 = vmatpush2.msra.mxu0 0.0
  %2381 = vmatprep.subr.mxu0 0.0
  %2382 = vmatpush2.msra.mxu0 0.0
  %2383 = vmatprep.subr.mxu0 0.0
  %2384 = vmatpush2.msra.mxu0 0.0
  %2385 = vmatprep.subr.mxu0 0.0
  %2386 = vmatpush2.msra.mxu0 0.0
  %2387 = vmatprep.subr.mxu0 0.0
  %2388 = vmatpush2.msra.mxu0 0.0
  %2389 = vmatprep.subr.mxu0 0.0
  %2390 = vmatpush2.msra.mxu0 0.0
  %2391 = vmatprep.subr.mxu0 0.0
  %2392 = vmatpush2.msra.mxu0 0.0
  %2393 = vmatprep.subr.mxu0 0.0
  %2394 = vmatpush2.msra.mxu0 0.0
  %2395 = vmatprep.subr.mxu0 0.0
  %2396 = vmatpush2.msra.mxu0 0.0
  %2397 = vmatprep.subr.mxu0 0.0
  %2398 = vmatpush2.msra.mxu0 0.0
  %2399 = vmatprep.subr.mxu0 0.0
  %2400 = vmatpush2.msra.mxu0 0.0
  %2401 = vmatprep.subr.mxu0 0.0
  %2402 = vmatpush2.msra.mxu0 0.0
  %2403 = vmatprep.subr.mxu0 0.0
  %2404 = vmatpush2.msra.mxu0 0.0
  %2405 = vmatprep.mubr.f32.mxu0 0.0
  %2406 = vmatmul.mubr.f32.gmra.mxu0 %v2339
  %v2407 = vpop.f32.mrf.mxu0
  %v2408 = vadd.f32 0.0, %v2407
  %v2409 = vpop.f32.mrf.mxu0
  %2410 = vdwg.mxu0
  %v2412 = vrot.slane %v2408, 1
  %v2415 = vadd.f32 %v23, %v2408
  %v2416 = vadd.f32 %v31, %v2412
  %v2417 = vxor.u32 %v2415, 2147483648
  %v2418 = vxor.u32 %v2416, 2147483648
  %v2419 = vmul.f32 %v2417, 1.442695
  %v2420 = vpow.pop %v2419
  %v2421 = vmul.f32 %v2418, 1.442695
  %v2422 = vpow.pop %v2421
  %v2423 = vadd.f32 %v2420, 1.0
  %v2424 = vadd.f32 %v2422, 1.0
  %v2425 = vrcp.pop %v2423
  %v2426 = vmul.f32 1.0, %v2425
  %v2427 = vrcp.pop %v2424
  %v2428 = vmul.f32 1.0, %v2427
  %2429 = vmatprep.subr.mxu0 0.0
  %2430 = vmatpush1.msra.mxu0 0.0
  %2431 = vmatprep.subr.mxu0 0.0
  %2432 = vmatpush1.msra.mxu0 0.0
  %2433 = vmatprep.subr.mxu0 0.0
  %2434 = vmatpush1.msra.mxu0 0.0
  %2435 = vmatprep.subr.mxu0 0.0
  %2436 = vmatpush1.msra.mxu0 0.0
  %2437 = vmatprep.subr.mxu0 0.0
  %2438 = vmatpush1.msra.mxu0 0.0
  %2439 = vmatprep.subr.mxu0 0.0
  %2440 = vmatpush1.msra.mxu0 0.0
  %2441 = vmatprep.subr.mxu0 0.0
  %2442 = vmatpush1.msra.mxu0 0.0
  %2443 = vmatprep.subr.mxu0 0.0
  %2444 = vmatpush1.msra.mxu0 0.0
  %2445 = vmatprep.subr.mxu0 0.0
  %2446 = vmatpush1.msra.mxu0 0.0
  %2447 = vmatprep.subr.mxu0 0.0
  %2448 = vmatpush1.msra.mxu0 0.0
  %2449 = vmatprep.subr.mxu0 0.0
  %2450 = vmatpush1.msra.mxu0 0.0
  %2451 = vmatprep.subr.mxu0 0.0
  %2452 = vmatpush1.msra.mxu0 0.0
  %2453 = vmatprep.subr.mxu0 0.0
  %2454 = vmatpush1.msra.mxu0 %v40
  %2455 = vmatprep.subr.mxu0 0.0
  %2456 = vmatpush1.msra.mxu0 %v39
  %2457 = vmatprep.subr.mxu0 0.0
  %2458 = vmatpush1.msra.mxu0 %v38
  %2459 = vmatprep.subr.mxu0 0.0
  %2460 = vmatpush1.msra.mxu0 %v37
  %2461 = vmatprep.subr.mxu0 0.0
  %2462 = vmatpush2.msra.mxu0 0.0
  %2463 = vmatprep.subr.mxu0 0.0
  %2464 = vmatpush2.msra.mxu0 0.0
  %2465 = vmatprep.subr.mxu0 0.0
  %2466 = vmatpush2.msra.mxu0 0.0
  %2467 = vmatprep.subr.mxu0 0.0
  %2468 = vmatpush2.msra.mxu0 0.0
  %2469 = vmatprep.subr.mxu0 0.0
  %2470 = vmatpush2.msra.mxu0 0.0
  %2471 = vmatprep.subr.mxu0 0.0
  %2472 = vmatpush2.msra.mxu0 0.0
  %2473 = vmatprep.subr.mxu0 0.0
  %2474 = vmatpush2.msra.mxu0 0.0
  %2475 = vmatprep.subr.mxu0 0.0
  %2476 = vmatpush2.msra.mxu0 0.0
  %2477 = vmatprep.subr.mxu0 0.0
  %2478 = vmatpush2.msra.mxu0 0.0
  %2479 = vmatprep.subr.mxu0 0.0
  %2480 = vmatpush2.msra.mxu0 0.0
  %2481 = vmatprep.subr.mxu0 0.0
  %2482 = vmatpush2.msra.mxu0 0.0
  %2483 = vmatprep.subr.mxu0 0.0
  %2484 = vmatpush2.msra.mxu0 0.0
  %2485 = vmatprep.subr.mxu0 0.0
  %2486 = vmatpush2.msra.mxu0 0.0
  %2487 = vmatprep.subr.mxu0 0.0
  %2488 = vmatpush2.msra.mxu0 0.0
  %2489 = vmatprep.subr.mxu0 0.0
  %2490 = vmatpush2.msra.mxu0 0.0
  %2491 = vmatprep.subr.mxu0 0.0
  %2492 = vmatpush2.msra.mxu0 0.0
  %2493 = vmatprep.mubr.f32.mxu0 0.0
  %2494 = vmatmul.mubr.f32.gmra.mxu0 %v2339
  %v2495 = vpop.f32.mrf.mxu0
  %v2496 = vadd.f32 0.0, %v2495
  %v2497 = vpop.f32.mrf.mxu0
  %2498 = vdwg.mxu0
  %v2500 = vrot.slane %v2496, 7
  %v2503 = vadd.f32 %v23, %v2500
  %v2504 = vadd.f32 %v31, %v2496
  %v2505 = vxor.u32 %v2503, 2147483648
  %v2506 = vxor.u32 %v2504, 2147483648
  %v2507 = vmul.f32 %v2505, 1.442695
  %v2508 = vpow.pop %v2507
  %v2509 = vmul.f32 %v2506, 1.442695
  %v2510 = vpow.pop %v2509
  %v2511 = vadd.f32 %v2508, 1.0
  %v2512 = vadd.f32 %v2510, 1.0
  %v2513 = vrcp.pop %v2511
  %v2514 = vmul.f32 1.0, %v2513
  %v2515 = vrcp.pop %v2512
  %v2516 = vmul.f32 1.0, %v2515
  %2517 = vmatprep.subr.mxu0 0.0
  %2518 = vmatpush1.msra.mxu0 0.0
  %2519 = vmatprep.subr.mxu0 0.0
  %2520 = vmatpush1.msra.mxu0 0.0
  %2521 = vmatprep.subr.mxu0 0.0
  %2522 = vmatpush1.msra.mxu0 0.0
  %2523 = vmatprep.subr.mxu0 0.0
  %2524 = vmatpush1.msra.mxu0 0.0
  %2525 = vmatprep.subr.mxu0 0.0
  %2526 = vmatpush1.msra.mxu0 0.0
  %2527 = vmatprep.subr.mxu0 0.0
  %2528 = vmatpush1.msra.mxu0 0.0
  %2529 = vmatprep.subr.mxu0 0.0
  %2530 = vmatpush1.msra.mxu0 0.0
  %2531 = vmatprep.subr.mxu0 0.0
  %2532 = vmatpush1.msra.mxu0 0.0
  %2533 = vmatprep.subr.mxu0 0.0
  %2534 = vmatpush1.msra.mxu0 0.0
  %2535 = vmatprep.subr.mxu0 0.0
  %2536 = vmatpush1.msra.mxu0 0.0
  %2537 = vmatprep.subr.mxu0 0.0
  %2538 = vmatpush1.msra.mxu0 0.0
  %2539 = vmatprep.subr.mxu0 0.0
  %2540 = vmatpush1.msra.mxu0 0.0
  %2541 = vmatprep.subr.mxu0 0.0
  %2542 = vmatpush1.msra.mxu0 %v44
  %2543 = vmatprep.subr.mxu0 0.0
  %2544 = vmatpush1.msra.mxu0 %v43
  %2545 = vmatprep.subr.mxu0 0.0
  %2546 = vmatpush1.msra.mxu0 %v42
  %2547 = vmatprep.subr.mxu0 0.0
  %2548 = vmatpush1.msra.mxu0 %v41
  %2549 = vmatprep.subr.mxu0 0.0
  %2550 = vmatpush2.msra.mxu0 0.0
  %2551 = vmatprep.subr.mxu0 0.0
  %2552 = vmatpush2.msra.mxu0 0.0
  %2553 = vmatprep.subr.mxu0 0.0
  %2554 = vmatpush2.msra.mxu0 0.0
  %2555 = vmatprep.subr.mxu0 0.0
  %2556 = vmatpush2.msra.mxu0 0.0
  %2557 = vmatprep.subr.mxu0 0.0
  %2558 = vmatpush2.msra.mxu0 0.0
  %2559 = vmatprep.subr.mxu0 0.0
  %2560 = vmatpush2.msra.mxu0 0.0
  %2561 = vmatprep.subr.mxu0 0.0
  %2562 = vmatpush2.msra.mxu0 0.0
  %2563 = vmatprep.subr.mxu0 0.0
  %2564 = vmatpush2.msra.mxu0 0.0
  %2565 = vmatprep.subr.mxu0 0.0
  %2566 = vmatpush2.msra.mxu0 0.0
  %2567 = vmatprep.subr.mxu0 0.0
  %2568 = vmatpush2.msra.mxu0 0.0
  %2569 = vmatprep.subr.mxu0 0.0
  %2570 = vmatpush2.msra.mxu0 0.0
  %2571 = vmatprep.subr.mxu0 0.0
  %2572 = vmatpush2.msra.mxu0 0.0
  %2573 = vmatprep.subr.mxu0 0.0
  %2574 = vmatpush2.msra.mxu0 0.0
  %2575 = vmatprep.subr.mxu0 0.0
  %2576 = vmatpush2.msra.mxu0 0.0
  %2577 = vmatprep.subr.mxu0 0.0
  %2578 = vmatpush2.msra.mxu0 0.0
  %2579 = vmatprep.subr.mxu0 0.0
  %2580 = vmatpush2.msra.mxu0 0.0
  %2581 = vmatprep.mubr.f32.mxu0 0.0
  %2582 = vmatmul.mubr.f32.gmra.mxu0 %v2339
  %v2583 = vpop.f32.mrf.mxu0
  %v2584 = vadd.f32 0.0, %v2583
  %v2585 = vpop.f32.mrf.mxu0
  %2586 = vdwg.mxu0
  %v2588 = vrot.slane %v2584, 6
  %v2589 = vrot.slane %v2584, 7
  %v2592 = vadd.f32 %v23, %v2588
  %v2593 = vadd.f32 %v31, %v2589
  %v2594 = vtanh.pop %v2592
  %v2595 = vtanh.pop %v2593
  %2596 = vmatprep.subr.mxu0 0.0
  %2597 = vmatpush1.msra.mxu0 0.0
  %2598 = vmatprep.subr.mxu0 0.0
  %2599 = vmatpush1.msra.mxu0 0.0
  %2600 = vmatprep.subr.mxu0 0.0
  %2601 = vmatpush1.msra.mxu0 0.0
  %2602 = vmatprep.subr.mxu0 0.0
  %2603 = vmatpush1.msra.mxu0 0.0
  %2604 = vmatprep.subr.mxu0 0.0
  %2605 = vmatpush1.msra.mxu0 0.0
  %2606 = vmatprep.subr.mxu0 0.0
  %2607 = vmatpush1.msra.mxu0 0.0
  %2608 = vmatprep.subr.mxu0 0.0
  %2609 = vmatpush1.msra.mxu0 0.0
  %2610 = vmatprep.subr.mxu0 0.0
  %2611 = vmatpush1.msra.mxu0 0.0
  %2612 = vmatprep.subr.mxu0 0.0
  %2613 = vmatpush1.msra.mxu0 0.0
  %2614 = vmatprep.subr.mxu0 0.0
  %2615 = vmatpush1.msra.mxu0 0.0
  %2616 = vmatprep.subr.mxu0 0.0
  %2617 = vmatpush1.msra.mxu0 0.0
  %2618 = vmatprep.subr.mxu0 0.0
  %2619 = vmatpush1.msra.mxu0 0.0
  %2620 = vmatprep.subr.mxu0 0.0
  %2621 = vmatpush1.msra.mxu0 %v48
  %2622 = vmatprep.subr.mxu0 0.0
  %2623 = vmatpush1.msra.mxu0 %v47
  %2624 = vmatprep.subr.mxu0 0.0
  %2625 = vmatpush1.msra.mxu0 %v46
  %2626 = vmatprep.subr.mxu0 0.0
  %2627 = vmatpush1.msra.mxu0 %v45
  %2628 = vmatprep.subr.mxu0 0.0
  %2629 = vmatpush2.msra.mxu0 0.0
  %2630 = vmatprep.subr.mxu0 0.0
  %2631 = vmatpush2.msra.mxu0 0.0
  %2632 = vmatprep.subr.mxu0 0.0
  %2633 = vmatpush2.msra.mxu0 0.0
  %2634 = vmatprep.subr.mxu0 0.0
  %2635 = vmatpush2.msra.mxu0 0.0
  %2636 = vmatprep.subr.mxu0 0.0
  %2637 = vmatpush2.msra.mxu0 0.0
  %2638 = vmatprep.subr.mxu0 0.0
  %2639 = vmatpush2.msra.mxu0 0.0
  %2640 = vmatprep.subr.mxu0 0.0
  %2641 = vmatpush2.msra.mxu0 0.0
  %2642 = vmatprep.subr.mxu0 0.0
  %2643 = vmatpush2.msra.mxu0 0.0
  %2644 = vmatprep.subr.mxu0 0.0
  %2645 = vmatpush2.msra.mxu0 0.0
  %2646 = vmatprep.subr.mxu0 0.0
  %2647 = vmatpush2.msra.mxu0 0.0
  %2648 = vmatprep.subr.mxu0 0.0
  %2649 = vmatpush2.msra.mxu0 0.0
  %2650 = vmatprep.subr.mxu0 0.0
  %2651 = vmatpush2.msra.mxu0 0.0
  %2652 = vmatprep.subr.mxu0 0.0
  %2653 = vmatpush2.msra.mxu0 0.0
  %2654 = vmatprep.subr.mxu0 0.0
  %2655 = vmatpush2.msra.mxu0 0.0
  %2656 = vmatprep.subr.mxu0 0.0
  %2657 = vmatpush2.msra.mxu0 0.0
  %2658 = vmatprep.subr.mxu0 0.0
  %2659 = vmatpush2.msra.mxu0 0.0
  %2660 = vmatprep.mubr.f32.mxu0 0.0
  %2661 = vmatmul.mubr.f32.gmra.mxu0 %v2339
  %v2662 = vpop.f32.mrf.mxu0
  %v2663 = vadd.f32 0.0, %v2662
  %v2664 = vpop.f32.mrf.mxu0
  %2665 = vdwg.mxu0
  %v2667 = vrot.slane %v2663, 5
  %v2668 = vrot.slane %v2663, 6
  %v2671 = vadd.f32 %v23, %v2667
  %v2672 = vadd.f32 %v31, %v2668
  %v2673 = vxor.u32 %v2671, 2147483648
  %v2674 = vxor.u32 %v2672, 2147483648
  %v2675 = vmul.f32 %v2673, 1.442695
  %v2676 = vpow.pop %v2675
  %v2677 = vmul.f32 %v2674, 1.442695
  %v2678 = vpow.pop %v2677
  %v2679 = vadd.f32 %v2676, 1.0
  %v2680 = vadd.f32 %v2678, 1.0
  %v2681 = vrcp.pop %v2679
  %v2682 = vmul.f32 1.0, %v2681
  %v2683 = vrcp.pop %v2680
  %v2684 = vmul.f32 1.0, %v2683
  %v2685 = vmul.f32 %v2514, %v2320
  %v2686 = vmul.f32 %v2516, %v2321
  %v2689 = vrot.slane %v2594, 2
  %v2690 = vrot.slane %v2595, 2
  %v2693 = vmul.f32 %v2426, %v2689
  %v2694 = vmul.f32 %v2428, %v2690
  %v2697 = vrot.slane %v2693, 7
  %v2698 = vrot.slane %v2694, 7
  %v2701 = vadd.f32 %v2685, %v2697
  %v2702 = vadd.f32 %v2686, %v2698
  %v2703 = vtanh.pop %v2701
  %v2704 = vtanh.pop %v2702
  %v2707 = vrot.slane %v2703, 6
  %v2708 = vrot.slane %v2704, 6
  %v2711 = vmul.f32 %v2682, %v2707
  %v2712 = vmul.f32 %v2684, %v2708
  %2713 = vst.msk [vmem:[#allocation2 + $0x3] sm:$0x8] %vm425, %v2711
  %2714 = vst.msk [vmem:[#allocation2 + $0xb] sm:$0x8] %vm425, %v2712
  %v2717 = vrot.slane %v2711, 3
  %v2718 = vrot.slane %v2712, 2
  %v2719 = vsel %vm432, %v2718, %v2717
  %v2720 = vsel %vm49, %v2719, 0
  %2722 = vmatprep.subr.mxu0 0.0
  %2723 = vmatpush1.msra.mxu0 0.0
  %2724 = vmatprep.subr.mxu0 0.0
  %2725 = vmatpush1.msra.mxu0 0.0
  %2726 = vmatprep.subr.mxu0 0.0
  %2727 = vmatpush1.msra.mxu0 0.0
  %2728 = vmatprep.subr.mxu0 0.0
  %2729 = vmatpush1.msra.mxu0 0.0
  %2730 = vmatprep.subr.mxu0 0.0
  %2731 = vmatpush1.msra.mxu0 0.0
  %2732 = vmatprep.subr.mxu0 0.0
  %2733 = vmatpush1.msra.mxu0 0.0
  %2734 = vmatprep.subr.mxu0 0.0
  %2735 = vmatpush1.msra.mxu0 0.0
  %2736 = vmatprep.subr.mxu0 0.0
  %2737 = vmatpush1.msra.mxu0 0.0
  %2738 = vmatprep.subr.mxu0 0.0
  %2739 = vmatpush1.msra.mxu0 0.0
  %2740 = vmatprep.subr.mxu0 0.0
  %2741 = vmatpush1.msra.mxu0 0.0
  %2742 = vmatprep.subr.mxu0 0.0
  %2743 = vmatpush1.msra.mxu0 0.0
  %2744 = vmatprep.subr.mxu0 0.0
  %2745 = vmatpush1.msra.mxu0 0.0
  %2746 = vmatprep.subr.mxu0 0.0
  %2747 = vmatpush1.msra.mxu0 %v36
  %2748 = vmatprep.subr.mxu0 0.0
  %2749 = vmatpush1.msra.mxu0 %v35
  %2750 = vmatprep.subr.mxu0 0.0
  %2751 = vmatpush1.msra.mxu0 %v34
  %2752 = vmatprep.subr.mxu0 0.0
  %2753 = vmatpush1.msra.mxu0 %v33
  %2754 = vmatprep.subr.mxu0 0.0
  %2755 = vmatpush2.msra.mxu0 0.0
  %2756 = vmatprep.subr.mxu0 0.0
  %2757 = vmatpush2.msra.mxu0 0.0
  %2758 = vmatprep.subr.mxu0 0.0
  %2759 = vmatpush2.msra.mxu0 0.0
  %2760 = vmatprep.subr.mxu0 0.0
  %2761 = vmatpush2.msra.mxu0 0.0
  %2762 = vmatprep.subr.mxu0 0.0
  %2763 = vmatpush2.msra.mxu0 0.0
  %2764 = vmatprep.subr.mxu0 0.0
  %2765 = vmatpush2.msra.mxu0 0.0
  %2766 = vmatprep.subr.mxu0 0.0
  %2767 = vmatpush2.msra.mxu0 0.0
  %2768 = vmatprep.subr.mxu0 0.0
  %2769 = vmatpush2.msra.mxu0 0.0
  %2770 = vmatprep.subr.mxu0 0.0
  %2771 = vmatpush2.msra.mxu0 0.0
  %2772 = vmatprep.subr.mxu0 0.0
  %2773 = vmatpush2.msra.mxu0 0.0
  %2774 = vmatprep.subr.mxu0 0.0
  %2775 = vmatpush2.msra.mxu0 0.0
  %2776 = vmatprep.subr.mxu0 0.0
  %2777 = vmatpush2.msra.mxu0 0.0
  %2778 = vmatprep.subr.mxu0 0.0
  %2779 = vmatpush2.msra.mxu0 0.0
  %2780 = vmatprep.subr.mxu0 0.0
  %2781 = vmatpush2.msra.mxu0 0.0
  %2782 = vmatprep.subr.mxu0 0.0
  %2783 = vmatpush2.msra.mxu0 0.0
  %2784 = vmatprep.subr.mxu0 0.0
  %2785 = vmatpush2.msra.mxu0 0.0
  %2786 = vmatprep.mubr.f32.mxu0 0.0
  %2787 = vmatmul.mubr.f32.gmra.mxu0 %v2720
  %v2788 = vpop.f32.mrf.mxu0
  %v2789 = vadd.f32 0.0, %v2788
  %v2790 = vpop.f32.mrf.mxu0
  %2791 = vdwg.mxu0
  %v2793 = vrot.slane %v2789, 1
  %v2796 = vadd.f32 %v24, %v2789
  %v2797 = vadd.f32 %v32, %v2793
  %v2798 = vxor.u32 %v2796, 2147483648
  %v2799 = vxor.u32 %v2797, 2147483648
  %v2800 = vmul.f32 %v2798, 1.442695
  %v2801 = vpow.pop %v2800
  %v2802 = vmul.f32 %v2799, 1.442695
  %v2803 = vpow.pop %v2802
  %v2804 = vadd.f32 %v2801, 1.0
  %v2805 = vadd.f32 %v2803, 1.0
  %v2806 = vrcp.pop %v2804
  %v2807 = vmul.f32 1.0, %v2806
  %v2808 = vrcp.pop %v2805
  %v2809 = vmul.f32 1.0, %v2808
  %2810 = vmatprep.subr.mxu0 0.0
  %2811 = vmatpush1.msra.mxu0 0.0
  %2812 = vmatprep.subr.mxu0 0.0
  %2813 = vmatpush1.msra.mxu0 0.0
  %2814 = vmatprep.subr.mxu0 0.0
  %2815 = vmatpush1.msra.mxu0 0.0
  %2816 = vmatprep.subr.mxu0 0.0
  %2817 = vmatpush1.msra.mxu0 0.0
  %2818 = vmatprep.subr.mxu0 0.0
  %2819 = vmatpush1.msra.mxu0 0.0
  %2820 = vmatprep.subr.mxu0 0.0
  %2821 = vmatpush1.msra.mxu0 0.0
  %2822 = vmatprep.subr.mxu0 0.0
  %2823 = vmatpush1.msra.mxu0 0.0
  %2824 = vmatprep.subr.mxu0 0.0
  %2825 = vmatpush1.msra.mxu0 0.0
  %2826 = vmatprep.subr.mxu0 0.0
  %2827 = vmatpush1.msra.mxu0 0.0
  %2828 = vmatprep.subr.mxu0 0.0
  %2829 = vmatpush1.msra.mxu0 0.0
  %2830 = vmatprep.subr.mxu0 0.0
  %2831 = vmatpush1.msra.mxu0 0.0
  %2832 = vmatprep.subr.mxu0 0.0
  %2833 = vmatpush1.msra.mxu0 0.0
  %2834 = vmatprep.subr.mxu0 0.0
  %2835 = vmatpush1.msra.mxu0 %v40
  %2836 = vmatprep.subr.mxu0 0.0
  %2837 = vmatpush1.msra.mxu0 %v39
  %2838 = vmatprep.subr.mxu0 0.0
  %2839 = vmatpush1.msra.mxu0 %v38
  %2840 = vmatprep.subr.mxu0 0.0
  %2841 = vmatpush1.msra.mxu0 %v37
  %2842 = vmatprep.subr.mxu0 0.0
  %2843 = vmatpush2.msra.mxu0 0.0
  %2844 = vmatprep.subr.mxu0 0.0
  %2845 = vmatpush2.msra.mxu0 0.0
  %2846 = vmatprep.subr.mxu0 0.0
  %2847 = vmatpush2.msra.mxu0 0.0
  %2848 = vmatprep.subr.mxu0 0.0
  %2849 = vmatpush2.msra.mxu0 0.0
  %2850 = vmatprep.subr.mxu0 0.0
  %2851 = vmatpush2.msra.mxu0 0.0
  %2852 = vmatprep.subr.mxu0 0.0
  %2853 = vmatpush2.msra.mxu0 0.0
  %2854 = vmatprep.subr.mxu0 0.0
  %2855 = vmatpush2.msra.mxu0 0.0
  %2856 = vmatprep.subr.mxu0 0.0
  %2857 = vmatpush2.msra.mxu0 0.0
  %2858 = vmatprep.subr.mxu0 0.0
  %2859 = vmatpush2.msra.mxu0 0.0
  %2860 = vmatprep.subr.mxu0 0.0
  %2861 = vmatpush2.msra.mxu0 0.0
  %2862 = vmatprep.subr.mxu0 0.0
  %2863 = vmatpush2.msra.mxu0 0.0
  %2864 = vmatprep.subr.mxu0 0.0
  %2865 = vmatpush2.msra.mxu0 0.0
  %2866 = vmatprep.subr.mxu0 0.0
  %2867 = vmatpush2.msra.mxu0 0.0
  %2868 = vmatprep.subr.mxu0 0.0
  %2869 = vmatpush2.msra.mxu0 0.0
  %2870 = vmatprep.subr.mxu0 0.0
  %2871 = vmatpush2.msra.mxu0 0.0
  %2872 = vmatprep.subr.mxu0 0.0
  %2873 = vmatpush2.msra.mxu0 0.0
  %2874 = vmatprep.mubr.f32.mxu0 0.0
  %2875 = vmatmul.mubr.f32.gmra.mxu0 %v2720
  %v2876 = vpop.f32.mrf.mxu0
  %v2877 = vadd.f32 0.0, %v2876
  %v2878 = vpop.f32.mrf.mxu0
  %2879 = vdwg.mxu0
  %v2881 = vrot.slane %v2877, 7
  %v2884 = vadd.f32 %v24, %v2881
  %v2885 = vadd.f32 %v32, %v2877
  %v2886 = vxor.u32 %v2884, 2147483648
  %v2887 = vxor.u32 %v2885, 2147483648
  %v2888 = vmul.f32 %v2886, 1.442695
  %v2889 = vpow.pop %v2888
  %v2890 = vmul.f32 %v2887, 1.442695
  %v2891 = vpow.pop %v2890
  %v2892 = vadd.f32 %v2889, 1.0
  %v2893 = vadd.f32 %v2891, 1.0
  %v2894 = vrcp.pop %v2892
  %v2895 = vmul.f32 1.0, %v2894
  %v2896 = vrcp.pop %v2893
  %v2897 = vmul.f32 1.0, %v2896
  %2898 = vmatprep.subr.mxu0 0.0
  %2899 = vmatpush1.msra.mxu0 0.0
  %2900 = vmatprep.subr.mxu0 0.0
  %2901 = vmatpush1.msra.mxu0 0.0
  %2902 = vmatprep.subr.mxu0 0.0
  %2903 = vmatpush1.msra.mxu0 0.0
  %2904 = vmatprep.subr.mxu0 0.0
  %2905 = vmatpush1.msra.mxu0 0.0
  %2906 = vmatprep.subr.mxu0 0.0
  %2907 = vmatpush1.msra.mxu0 0.0
  %2908 = vmatprep.subr.mxu0 0.0
  %2909 = vmatpush1.msra.mxu0 0.0
  %2910 = vmatprep.subr.mxu0 0.0
  %2911 = vmatpush1.msra.mxu0 0.0
  %2912 = vmatprep.subr.mxu0 0.0
  %2913 = vmatpush1.msra.mxu0 0.0
  %2914 = vmatprep.subr.mxu0 0.0
  %2915 = vmatpush1.msra.mxu0 0.0
  %2916 = vmatprep.subr.mxu0 0.0
  %2917 = vmatpush1.msra.mxu0 0.0
  %2918 = vmatprep.subr.mxu0 0.0
  %2919 = vmatpush1.msra.mxu0 0.0
  %2920 = vmatprep.subr.mxu0 0.0
  %2921 = vmatpush1.msra.mxu0 0.0
  %2922 = vmatprep.subr.mxu0 0.0
  %2923 = vmatpush1.msra.mxu0 %v44
  %2924 = vmatprep.subr.mxu0 0.0
  %2925 = vmatpush1.msra.mxu0 %v43
  %2926 = vmatprep.subr.mxu0 0.0
  %2927 = vmatpush1.msra.mxu0 %v42
  %2928 = vmatprep.subr.mxu0 0.0
  %2929 = vmatpush1.msra.mxu0 %v41
  %2930 = vmatprep.subr.mxu0 0.0
  %2931 = vmatpush2.msra.mxu0 0.0
  %2932 = vmatprep.subr.mxu0 0.0
  %2933 = vmatpush2.msra.mxu0 0.0
  %2934 = vmatprep.subr.mxu0 0.0
  %2935 = vmatpush2.msra.mxu0 0.0
  %2936 = vmatprep.subr.mxu0 0.0
  %2937 = vmatpush2.msra.mxu0 0.0
  %2938 = vmatprep.subr.mxu0 0.0
  %2939 = vmatpush2.msra.mxu0 0.0
  %2940 = vmatprep.subr.mxu0 0.0
  %2941 = vmatpush2.msra.mxu0 0.0
  %2942 = vmatprep.subr.mxu0 0.0
  %2943 = vmatpush2.msra.mxu0 0.0
  %2944 = vmatprep.subr.mxu0 0.0
  %2945 = vmatpush2.msra.mxu0 0.0
  %2946 = vmatprep.subr.mxu0 0.0
  %2947 = vmatpush2.msra.mxu0 0.0
  %2948 = vmatprep.subr.mxu0 0.0
  %2949 = vmatpush2.msra.mxu0 0.0
  %2950 = vmatprep.subr.mxu0 0.0
  %2951 = vmatpush2.msra.mxu0 0.0
  %2952 = vmatprep.subr.mxu0 0.0
  %2953 = vmatpush2.msra.mxu0 0.0
  %2954 = vmatprep.subr.mxu0 0.0
  %2955 = vmatpush2.msra.mxu0 0.0
  %2956 = vmatprep.subr.mxu0 0.0
  %2957 = vmatpush2.msra.mxu0 0.0
  %2958 = vmatprep.subr.mxu0 0.0
  %2959 = vmatpush2.msra.mxu0 0.0
  %2960 = vmatprep.subr.mxu0 0.0
  %2961 = vmatpush2.msra.mxu0 0.0
  %2962 = vmatprep.mubr.f32.mxu0 0.0
  %2963 = vmatmul.mubr.f32.gmra.mxu0 %v2720
  %v2964 = vpop.f32.mrf.mxu0
  %v2965 = vadd.f32 0.0, %v2964
  %v2966 = vpop.f32.mrf.mxu0
  %2967 = vdwg.mxu0
  %v2969 = vrot.slane %v2965, 6
  %v2970 = vrot.slane %v2965, 7
  %v2973 = vadd.f32 %v24, %v2969
  %v2974 = vadd.f32 %v32, %v2970
  %v2975 = vtanh.pop %v2973
  %v2976 = vtanh.pop %v2974
  %2977 = vmatprep.subr.mxu0 0.0
  %2978 = vmatpush1.msra.mxu0 0.0
  %2979 = vmatprep.subr.mxu0 0.0
  %2980 = vmatpush1.msra.mxu0 0.0
  %2981 = vmatprep.subr.mxu0 0.0
  %2982 = vmatpush1.msra.mxu0 0.0
  %2983 = vmatprep.subr.mxu0 0.0
  %2984 = vmatpush1.msra.mxu0 0.0
  %2985 = vmatprep.subr.mxu0 0.0
  %2986 = vmatpush1.msra.mxu0 0.0
  %2987 = vmatprep.subr.mxu0 0.0
  %2988 = vmatpush1.msra.mxu0 0.0
  %2989 = vmatprep.subr.mxu0 0.0
  %2990 = vmatpush1.msra.mxu0 0.0
  %2991 = vmatprep.subr.mxu0 0.0
  %2992 = vmatpush1.msra.mxu0 0.0
  %2993 = vmatprep.subr.mxu0 0.0
  %2994 = vmatpush1.msra.mxu0 0.0
  %2995 = vmatprep.subr.mxu0 0.0
  %2996 = vmatpush1.msra.mxu0 0.0
  %2997 = vmatprep.subr.mxu0 0.0
  %2998 = vmatpush1.msra.mxu0 0.0
  %2999 = vmatprep.subr.mxu0 0.0
  %3000 = vmatpush1.msra.mxu0 0.0
  %3001 = vmatprep.subr.mxu0 0.0
  %3002 = vmatpush1.msra.mxu0 %v48
  %3003 = vmatprep.subr.mxu0 0.0
  %3004 = vmatpush1.msra.mxu0 %v47
  %3005 = vmatprep.subr.mxu0 0.0
  %3006 = vmatpush1.msra.mxu0 %v46
  %3007 = vmatprep.subr.mxu0 0.0
  %3008 = vmatpush1.msra.mxu0 %v45
  %3009 = vmatprep.subr.mxu0 0.0
  %3010 = vmatpush2.msra.mxu0 0.0
  %3011 = vmatprep.subr.mxu0 0.0
  %3012 = vmatpush2.msra.mxu0 0.0
  %3013 = vmatprep.subr.mxu0 0.0
  %3014 = vmatpush2.msra.mxu0 0.0
  %3015 = vmatprep.subr.mxu0 0.0
  %3016 = vmatpush2.msra.mxu0 0.0
  %3017 = vmatprep.subr.mxu0 0.0
  %3018 = vmatpush2.msra.mxu0 0.0
  %3019 = vmatprep.subr.mxu0 0.0
  %3020 = vmatpush2.msra.mxu0 0.0
  %3021 = vmatprep.subr.mxu0 0.0
  %3022 = vmatpush2.msra.mxu0 0.0
  %3023 = vmatprep.subr.mxu0 0.0
  %3024 = vmatpush2.msra.mxu0 0.0
  %3025 = vmatprep.subr.mxu0 0.0
  %3026 = vmatpush2.msra.mxu0 0.0
  %3027 = vmatprep.subr.mxu0 0.0
  %3028 = vmatpush2.msra.mxu0 0.0
  %3029 = vmatprep.subr.mxu0 0.0
  %3030 = vmatpush2.msra.mxu0 0.0
  %3031 = vmatprep.subr.mxu0 0.0
  %3032 = vmatpush2.msra.mxu0 0.0
  %3033 = vmatprep.subr.mxu0 0.0
  %3034 = vmatpush2.msra.mxu0 0.0
  %3035 = vmatprep.subr.mxu0 0.0
  %3036 = vmatpush2.msra.mxu0 0.0
  %3037 = vmatprep.subr.mxu0 0.0
  %3038 = vmatpush2.msra.mxu0 0.0
  %3039 = vmatprep.subr.mxu0 0.0
  %3040 = vmatpush2.msra.mxu0 0.0
  %3041 = vmatprep.mubr.f32.mxu0 0.0
  %3042 = vmatmul.mubr.f32.gmra.mxu0 %v2720
  %v3043 = vpop.f32.mrf.mxu0
  %v3044 = vadd.f32 0.0, %v3043
  %v3045 = vpop.f32.mrf.mxu0
  %3046 = vdwg.mxu0
  %v3048 = vrot.slane %v3044, 5
  %v3049 = vrot.slane %v3044, 6
  %v3052 = vadd.f32 %v24, %v3048
  %v3053 = vadd.f32 %v32, %v3049
  %v3054 = vxor.u32 %v3052, 2147483648
  %v3055 = vxor.u32 %v3053, 2147483648
  %v3056 = vmul.f32 %v3054, 1.442695
  %v3057 = vpow.pop %v3056
  %v3058 = vmul.f32 %v3055, 1.442695
  %v3059 = vpow.pop %v3058
  %v3060 = vadd.f32 %v3057, 1.0
  %v3061 = vadd.f32 %v3059, 1.0
  %v3062 = vrcp.pop %v3060
  %v3063 = vmul.f32 1.0, %v3062
  %v3064 = vrcp.pop %v3061
  %v3065 = vmul.f32 1.0, %v3064
  %v3066 = vmul.f32 %v2895, %v2701
  %v3067 = vmul.f32 %v2897, %v2702
  %v3070 = vrot.slane %v2975, 2
  %v3071 = vrot.slane %v2976, 2
  %v3074 = vmul.f32 %v2807, %v3070
  %v3075 = vmul.f32 %v2809, %v3071
  %v3078 = vrot.slane %v3074, 7
  %v3079 = vrot.slane %v3075, 7
  %v3082 = vadd.f32 %v3066, %v3078
  %v3083 = vadd.f32 %v3067, %v3079
  %v3084 = vtanh.pop %v3082
  %v3085 = vtanh.pop %v3083
  %v3088 = vrot.slane %v3084, 6
  %v3089 = vrot.slane %v3085, 6
  %v3092 = vmul.f32 %v3063, %v3088
  %v3093 = vmul.f32 %v3065, %v3089
  %3094 = vst.msk [vmem:[#allocation2 + $0x4] sm:$0x8] %vm425, %v3092
  %3095 = vst.msk [vmem:[#allocation2 + $0xc] sm:$0x8] %vm425, %v3093
  %v3096 = vld [vmem:[#allocation2] sm:$0xff]
  %v3097 = vld [vmem:[#allocation2 + $0x8] sm:$0xff]
  %v3098 = vld [vmem:[%s2] sm:$0xff]
  %v3099 = vld [vmem:[%s2 + $0x8] sm:$0xff]
  %v3100 = vld [vmem:[%s2 + $0x10] sm:$0xff]
  %v3101 = vld [vmem:[%s2 + $0x18] sm:$0xff]
  %v3102 = vld [vmem:[%s3] sm:$0x1]
  %v3104 = vlaneseq
  %v3105 = vshrl.u32 %v3104, 7
  %v3106 = vsub.s32 0, %v3105
  %v3107 = vrot.slane %v3102, %v3106
  %v3110 = vsel %vm49, %v3096, 0
  %v3113 = vsel %vm49, %v3097, 0
  %3115 = vmatprep.subr.mxu0 0.0
  %3116 = vmatpush1.msra.mxu0 0.0
  %3117 = vmatprep.subr.mxu0 0.0
  %3118 = vmatpush1.msra.mxu0 0.0
  %3119 = vmatprep.subr.mxu0 0.0
  %3120 = vmatpush1.msra.mxu0 0.0
  %3121 = vmatprep.subr.mxu0 0.0
  %3122 = vmatpush1.msra.mxu0 0.0
  %3123 = vmatprep.subr.mxu0 0.0
  %3124 = vmatpush1.msra.mxu0 0.0
  %3125 = vmatprep.subr.mxu0 0.0
  %3126 = vmatpush1.msra.mxu0 0.0
  %3127 = vmatprep.subr.mxu0 0.0
  %3128 = vmatpush1.msra.mxu0 0.0
  %3129 = vmatprep.subr.mxu0 0.0
  %3130 = vmatpush1.msra.mxu0 0.0
  %3131 = vmatprep.subr.mxu0 0.0
  %3132 = vmatpush1.msra.mxu0 0.0
  %3133 = vmatprep.subr.mxu0 0.0
  %3134 = vmatpush1.msra.mxu0 0.0
  %3135 = vmatprep.subr.mxu0 0.0
  %3136 = vmatpush1.msra.mxu0 0.0
  %3137 = vmatprep.subr.mxu0 0.0
  %3138 = vmatpush1.msra.mxu0 0.0
  %3139 = vmatprep.subr.mxu0 0.0
  %3140 = vmatpush1.msra.mxu0 %v3101
  %3141 = vmatprep.subr.mxu0 0.0
  %3142 = vmatpush1.msra.mxu0 %v3100
  %3143 = vmatprep.subr.mxu0 0.0
  %3144 = vmatpush1.msra.mxu0 %v3099
  %3145 = vmatprep.subr.mxu0 0.0
  %3146 = vmatpush1.msra.mxu0 %v3098
  %3147 = vmatprep.subr.mxu0 0.0
  %3148 = vmatpush2.msra.mxu0 0.0
  %3149 = vmatprep.subr.mxu0 0.0
  %3150 = vmatpush2.msra.mxu0 0.0
  %3151 = vmatprep.subr.mxu0 0.0
  %3152 = vmatpush2.msra.mxu0 0.0
  %3153 = vmatprep.subr.mxu0 0.0
  %3154 = vmatpush2.msra.mxu0 0.0
  %3155 = vmatprep.subr.mxu0 0.0
  %3156 = vmatpush2.msra.mxu0 0.0
  %3157 = vmatprep.subr.mxu0 0.0
  %3158 = vmatpush2.msra.mxu0 0.0
  %3159 = vmatprep.subr.mxu0 0.0
  %3160 = vmatpush2.msra.mxu0 0.0
  %3161 = vmatprep.subr.mxu0 0.0
  %3162 = vmatpush2.msra.mxu0 0.0
  %3163 = vmatprep.subr.mxu0 0.0
  %3164 = vmatpush2.msra.mxu0 0.0
  %3165 = vmatprep.subr.mxu0 0.0
  %3166 = vmatpush2.msra.mxu0 0.0
  %3167 = vmatprep.subr.mxu0 0.0
  %3168 = vmatpush2.msra.mxu0 0.0
  %3169 = vmatprep.subr.mxu0 0.0
  %3170 = vmatpush2.msra.mxu0 0.0
  %3171 = vmatprep.subr.mxu0 0.0
  %3172 = vmatpush2.msra.mxu0 0.0
  %3173 = vmatprep.subr.mxu0 0.0
  %3174 = vmatpush2.msra.mxu0 0.0
  %3175 = vmatprep.subr.mxu0 0.0
  %3176 = vmatpush2.msra.mxu0 0.0
  %3177 = vmatprep.subr.mxu0 0.0
  %3178 = vmatpush2.msra.mxu0 0.0
  %3179 = vmatprep.mubr.f32.mxu0 0.0
  %3180 = vmatmul.mubr.f32.gmra.mxu0 %v3110
  %v3181 = vpop.f32.mrf.mxu0
  %v3182 = vadd.f32 %v3107, %v3181
  %v3183 = vpop.f32.mrf.mxu0
  %3184 = vmatprep.mubr.f32.mxu0 0.0
  %3185 = vmatmul.mubr.f32.gmra.mxu0 %v3113
  %v3186 = vpop.f32.mrf.mxu0
  %v3187 = vadd.f32 %v3107, %v3186
  %v3188 = vpop.f32.mrf.mxu0
  %3189 = vdwg.mxu0
  %vm3190 = vcmask 56320
  %3191 = vst.msk [vmem:[%s4] sm:$0xff] %vm3190, %v3182
  %3192 = vst.msk [vmem:[%s4 + $0x8] sm:$0xff] %vm3190, %v3187
  // Predicated region
  $region18: #{cnn_rnn_forward.3} parent=0 // pred_check
    _
  $region19: #{cnn_rnn_forward.3} parent=0 // pred_check_branch
    %3194 = sbr.rel (0) target = $region21
  $region20: #{cnn_rnn_forward.3} parent=0 // pred_region
    _
  $region21: #{cnn_rnn_forward.3} parent=0 // pred_fallthru
    _
  // Predicated region
  $region22: #{cnn_rnn_forward.3} parent=0 // pred_check
    _
  $region23: #{cnn_rnn_forward.3} parent=0 // pred_check_branch
    %3196 = sbr.rel (0) target = $region25
  $region24: #{cnn_rnn_forward.3} parent=0 // pred_region
    _
  $region25: #{cnn_rnn_forward.3} parent=0 // pred_fallthru
    _

// kernel: cnn_rnn_forward.2
$region0: #{cnn_rnn_forward.2}
  #allocation0 [shape = 'u32[]', space=smem, size = 0x4, offset = 0x4, fixed_abs, tag = 'smem constant byte address 0x4 - core index']
  #allocation1 [shape = 'u32[144,128]{1,0:T(1,128)}', space=vmem, size = 0x12000, scoped, tag = 'internal scratch']
  %s0 = inlined_call_operand.vmem [shape: f32[16,256,36], index: 0, kind: input, shape index: {}]
  %s1 = inlined_call_operand.vmem [shape: f32[36,32], index: 1, kind: input, shape index: {}]
  %s2 = inlined_call_operand.vmem [shape: f32[1,32], index: 2, kind: input, shape index: {}]
  %s3 = inlined_call_operand.vmem [shape: f32[32,128], index: 3, kind: input, shape index: {}]
  %s4 = inlined_call_operand.vmem [shape: f32[1,128], index: 4, kind: input, shape index: {}]
  %s5 = inlined_call_operand.vmem [shape: f32[16,128], index: 5, kind: output, shape index: {}]
  %s6 = sld [smem:[#allocation0]]
  $region30: #{cnn_rnn_forward.2} parent=0
    _
  %s8 = ssub.s32 1, %s6
  %s9 = scalar_select 0, %s8, %s6
  // Predicated region
  $region2: #{cnn_rnn_forward.2} parent=0 // pred_check
    _
  $region3: #{cnn_rnn_forward.2} parent=0 // pred_check_branch
    %11 = sbr.rel (0) target = $region5
  $region4: #{cnn_rnn_forward.2} parent=0 // pred_region
    _
  $region5: #{cnn_rnn_forward.2} parent=0 // pred_fallthru
    _
  // Predicated region
  $region6: #{cnn_rnn_forward.2} parent=0 // pred_check
    _
  $region7: #{cnn_rnn_forward.2} parent=0 // pred_check_branch
    %13 = sbr.rel (0) target = $region9
  $region8: #{cnn_rnn_forward.2} parent=0 // pred_region
    _
  $region9: #{cnn_rnn_forward.2} parent=0 // pred_fallthru
    _
  // Predicated region
  $region10: #{cnn_rnn_forward.2} parent=0 // pred_check
    _
  $region11: #{cnn_rnn_forward.2} parent=0 // pred_check_branch
    %15 = sbr.rel (0) target = $region13
  $region12: #{cnn_rnn_forward.2} parent=0 // pred_region
    _
  $region13: #{cnn_rnn_forward.2} parent=0 // pred_fallthru
    _
  // Predicated region
  $region14: #{cnn_rnn_forward.2} parent=0 // pred_check
    _
  $region15: #{cnn_rnn_forward.2} parent=0 // pred_check_branch
    %17 = sbr.rel (0) target = $region17
  $region16: #{cnn_rnn_forward.2} parent=0 // pred_region
    _
  $region17: #{cnn_rnn_forward.2} parent=0 // pred_fallthru
    _
  // Predicated region
  $region18: #{cnn_rnn_forward.2} parent=0 // pred_check
    _
  $region19: #{cnn_rnn_forward.2} parent=0 // pred_check_branch
    %19 = sbr.rel (0) target = $region21
  $region20: #{cnn_rnn_forward.2} parent=0 // pred_region
    _
  $region21: #{cnn_rnn_forward.2} parent=0 // pred_fallthru
    _
  %v20 = vld [vmem:[%s0] sm:$0xff]
  %v21 = vld [vmem:[%s0 + $0x8] sm:$0xff]
  %v22 = vld [vmem:[%s0 + $0x10] sm:$0xff]
  %v23 = vld [vmem:[%s0 + $0x18] sm:$0xff]
  %v24 = vld [vmem:[%s0 + $0x20] sm:$0xff]
  %v25 = vld [vmem:[%s0 + $0x28] sm:$0xff]
  %v26 = vld [vmem:[%s0 + $0x30] sm:$0xff]
  %v27 = vld [vmem:[%s0 + $0x38] sm:$0xff]
  %v28 = vld [vmem:[%s0 + $0x40] sm:$0xff]
  %v29 = vld [vmem:[%s0 + $0x48] sm:$0xff]
  %v30 = vld [vmem:[%s0 + $0x50] sm:$0xff]
  %v31 = vld [vmem:[%s0 + $0x58] sm:$0xff]
  %v32 = vld [vmem:[%s0 + $0x60] sm:$0xff]
  %v33 = vld [vmem:[%s0 + $0x68] sm:$0xff]
  %v34 = vld [vmem:[%s0 + $0x70] sm:$0xff]
  %v35 = vld [vmem:[%s0 + $0x78] sm:$0xff]
  %v36 = vld [vmem:[%s0 + $0x80] sm:$0xff]
  %v37 = vld [vmem:[%s0 + $0x88] sm:$0xff]
  %v38 = vld [vmem:[%s0 + $0x90] sm:$0xff]
  %v39 = vld [vmem:[%s0 + $0x98] sm:$0xff]
  %v40 = vld [vmem:[%s0 + $0xa0] sm:$0xff]
  %v41 = vld [vmem:[%s0 + $0xa8] sm:$0xff]
  %v42 = vld [vmem:[%s0 + $0xb0] sm:$0xff]
  %v43 = vld [vmem:[%s0 + $0xb8] sm:$0xff]
  %v44 = vld [vmem:[%s0 + $0xc0] sm:$0xff]
  %v45 = vld [vmem:[%s0 + $0xc8] sm:$0xff]
  %v46 = vld [vmem:[%s0 + $0xd0] sm:$0xff]
  %v47 = vld [vmem:[%s0 + $0xd8] sm:$0xff]
  %v48 = vld [vmem:[%s0 + $0xe0] sm:$0xff]
  %v49 = vld [vmem:[%s0 + $0xe8] sm:$0xff]
  %v50 = vld [vmem:[%s0 + $0xf0] sm:$0xff]
  %v51 = vld [vmem:[%s0 + $0xf8] sm:$0xff]
  %v52 = vld [vmem:[%s0 + $0x100] sm:$0xff]
  %v53 = vld [vmem:[%s0 + $0x108] sm:$0xff]
  %v54 = vld [vmem:[%s0 + $0x110] sm:$0xff]
  %v55 = vld [vmem:[%s0 + $0x118] sm:$0xff]
  %v56 = vld [vmem:[%s0 + $0x120] sm:$0xff]
  %v57 = vld [vmem:[%s0 + $0x128] sm:$0xff]
  %v58 = vld [vmem:[%s0 + $0x130] sm:$0xff]
  %v59 = vld [vmem:[%s0 + $0x138] sm:$0xff]
  %v60 = vld [vmem:[%s0 + $0x140] sm:$0xff]
  %v61 = vld [vmem:[%s0 + $0x148] sm:$0xff]
  %v62 = vld [vmem:[%s0 + $0x150] sm:$0xff]
  %v63 = vld [vmem:[%s0 + $0x158] sm:$0xff]
  %v64 = vld [vmem:[%s0 + $0x160] sm:$0xff]
  %v65 = vld [vmem:[%s0 + $0x168] sm:$0xff]
  %v66 = vld [vmem:[%s0 + $0x170] sm:$0xff]
  %v67 = vld [vmem:[%s0 + $0x178] sm:$0xff]
  %v68 = vld [vmem:[%s0 + $0x180] sm:$0xff]
  %v69 = vld [vmem:[%s0 + $0x188] sm:$0xff]
  %v70 = vld [vmem:[%s0 + $0x190] sm:$0xff]
  %v71 = vld [vmem:[%s0 + $0x198] sm:$0xff]
  %v72 = vld [vmem:[%s0 + $0x1a0] sm:$0xff]
  %v73 = vld [vmem:[%s0 + $0x1a8] sm:$0xff]
  %v74 = vld [vmem:[%s0 + $0x1b0] sm:$0xff]
  %v75 = vld [vmem:[%s0 + $0x1b8] sm:$0xff]
  %v76 = vld [vmem:[%s0 + $0x1c0] sm:$0xff]
  %v77 = vld [vmem:[%s0 + $0x1c8] sm:$0xff]
  %v78 = vld [vmem:[%s0 + $0x1d0] sm:$0xff]
  %v79 = vld [vmem:[%s0 + $0x1d8] sm:$0xff]
  %v80 = vld [vmem:[%s0 + $0x1e0] sm:$0xff]
  %v81 = vld [vmem:[%s0 + $0x1e8] sm:$0xff]
  %v82 = vld [vmem:[%s0 + $0x1f0] sm:$0xff]
  %v83 = vld [vmem:[%s0 + $0x1f8] sm:$0xff]
  %v84 = vld [vmem:[%s0 + $0x200] sm:$0xff]
  %v85 = vld [vmem:[%s0 + $0x208] sm:$0xff]
  %v86 = vld [vmem:[%s0 + $0x210] sm:$0xff]
  %v87 = vld [vmem:[%s0 + $0x218] sm:$0xff]
  %v88 = vld [vmem:[%s0 + $0x220] sm:$0xff]
  %v89 = vld [vmem:[%s0 + $0x228] sm:$0xff]
  %v90 = vld [vmem:[%s0 + $0x230] sm:$0xff]
  %v91 = vld [vmem:[%s0 + $0x238] sm:$0xff]
  %v92 = vld [vmem:[%s0 + $0x240] sm:$0xff]
  %v93 = vld [vmem:[%s0 + $0x248] sm:$0xff]
  %v94 = vld [vmem:[%s0 + $0x250] sm:$0xff]
  %v95 = vld [vmem:[%s0 + $0x258] sm:$0xff]
  %v96 = vld [vmem:[%s0 + $0x260] sm:$0xff]
  %v97 = vld [vmem:[%s0 + $0x268] sm:$0xff]
  %v98 = vld [vmem:[%s0 + $0x270] sm:$0xff]
  %v99 = vld [vmem:[%s0 + $0x278] sm:$0xff]
  %v100 = vld [vmem:[%s0 + $0x280] sm:$0xff]
  %v101 = vld [vmem:[%s0 + $0x288] sm:$0xff]
  %v102 = vld [vmem:[%s0 + $0x290] sm:$0xff]
  %v103 = vld [vmem:[%s0 + $0x298] sm:$0xff]
  %v104 = vld [vmem:[%s0 + $0x2a0] sm:$0xff]
  %v105 = vld [vmem:[%s0 + $0x2a8] sm:$0xff]
  %v106 = vld [vmem:[%s0 + $0x2b0] sm:$0xff]
  %v107 = vld [vmem:[%s0 + $0x2b8] sm:$0xff]
  %v108 = vld [vmem:[%s0 + $0x2c0] sm:$0xff]
  %v109 = vld [vmem:[%s0 + $0x2c8] sm:$0xff]
  %v110 = vld [vmem:[%s0 + $0x2d0] sm:$0xff]
  %v111 = vld [vmem:[%s0 + $0x2d8] sm:$0xff]
  %v112 = vld [vmem:[%s0 + $0x2e0] sm:$0xff]
  %v113 = vld [vmem:[%s0 + $0x2e8] sm:$0xff]
  %v114 = vld [vmem:[%s0 + $0x2f0] sm:$0xff]
  %v115 = vld [vmem:[%s0 + $0x2f8] sm:$0xff]
  %v116 = vld [vmem:[%s0 + $0x300] sm:$0xff]
  %v117 = vld [vmem:[%s0 + $0x308] sm:$0xff]
  %v118 = vld [vmem:[%s0 + $0x310] sm:$0xff]
  %v119 = vld [vmem:[%s0 + $0x318] sm:$0xff]
  %v120 = vld [vmem:[%s0 + $0x320] sm:$0xff]
  %v121 = vld [vmem:[%s0 + $0x328] sm:$0xff]
  %v122 = vld [vmem:[%s0 + $0x330] sm:$0xff]
  %v123 = vld [vmem:[%s0 + $0x338] sm:$0xff]
  %v124 = vld [vmem:[%s0 + $0x340] sm:$0xff]
  %v125 = vld [vmem:[%s0 + $0x348] sm:$0xff]
  %v126 = vld [vmem:[%s0 + $0x350] sm:$0xff]
  %v127 = vld [vmem:[%s0 + $0x358] sm:$0xff]
  %v128 = vld [vmem:[%s0 + $0x360] sm:$0xff]
  %v129 = vld [vmem:[%s0 + $0x368] sm:$0xff]
  %v130 = vld [vmem:[%s0 + $0x370] sm:$0xff]
  %v131 = vld [vmem:[%s0 + $0x378] sm:$0xff]
  %v132 = vld [vmem:[%s0 + $0x380] sm:$0xff]
  %v133 = vld [vmem:[%s0 + $0x388] sm:$0xff]
  %v134 = vld [vmem:[%s0 + $0x390] sm:$0xff]
  %v135 = vld [vmem:[%s0 + $0x398] sm:$0xff]
  %v136 = vld [vmem:[%s0 + $0x3a0] sm:$0xff]
  %v137 = vld [vmem:[%s0 + $0x3a8] sm:$0xff]
  %v138 = vld [vmem:[%s0 + $0x3b0] sm:$0xff]
  %v139 = vld [vmem:[%s0 + $0x3b8] sm:$0xff]
  %v140 = vld [vmem:[%s0 + $0x3c0] sm:$0xff]
  %v141 = vld [vmem:[%s0 + $0x3c8] sm:$0xff]
  %v142 = vld [vmem:[%s0 + $0x3d0] sm:$0xff]
  %v143 = vld [vmem:[%s0 + $0x3d8] sm:$0xff]
  %v144 = vld [vmem:[%s0 + $0x3e0] sm:$0xff]
  %v145 = vld [vmem:[%s0 + $0x3e8] sm:$0xff]
  %v146 = vld [vmem:[%s0 + $0x3f0] sm:$0xff]
  %v147 = vld [vmem:[%s0 + $0x3f8] sm:$0xff]
  %v148 = vld [vmem:[%s0 + $0x400] sm:$0xff]
  %v149 = vld [vmem:[%s0 + $0x408] sm:$0xff]
  %v150 = vld [vmem:[%s0 + $0x410] sm:$0xff]
  %v151 = vld [vmem:[%s0 + $0x418] sm:$0xff]
  %v152 = vld [vmem:[%s0 + $0x420] sm:$0xff]
  %v153 = vld [vmem:[%s0 + $0x428] sm:$0xff]
  %v154 = vld [vmem:[%s0 + $0x430] sm:$0xff]
  %v155 = vld [vmem:[%s0 + $0x438] sm:$0xff]
  %v156 = vld [vmem:[%s0 + $0x440] sm:$0xff]
  %v157 = vld [vmem:[%s0 + $0x448] sm:$0xff]
  %v158 = vld [vmem:[%s0 + $0x450] sm:$0xff]
  %v159 = vld [vmem:[%s0 + $0x458] sm:$0xff]
  %v160 = vld [vmem:[%s0 + $0x460] sm:$0xff]
  %v161 = vld [vmem:[%s0 + $0x468] sm:$0xff]
  %v162 = vld [vmem:[%s0 + $0x470] sm:$0xff]
  %v163 = vld [vmem:[%s0 + $0x478] sm:$0xff]
  %v164 = vld [vmem:[%s0 + $0x480] sm:$0xff]
  %v165 = vld [vmem:[%s0 + $0x488] sm:$0xff]
  %v166 = vld [vmem:[%s0 + $0x490] sm:$0xff]
  %v167 = vld [vmem:[%s0 + $0x498] sm:$0xff]
  %v168 = vld [vmem:[%s0 + $0x4a0] sm:$0xff]
  %v169 = vld [vmem:[%s0 + $0x4a8] sm:$0xff]
  %v170 = vld [vmem:[%s0 + $0x4b0] sm:$0xff]
  %v171 = vld [vmem:[%s0 + $0x4b8] sm:$0xff]
  %v172 = vld [vmem:[%s0 + $0x4c0] sm:$0xff]
  %v173 = vld [vmem:[%s0 + $0x4c8] sm:$0xff]
  %v174 = vld [vmem:[%s0 + $0x4d0] sm:$0xff]
  %v175 = vld [vmem:[%s0 + $0x4d8] sm:$0xff]
  %v176 = vld [vmem:[%s0 + $0x4e0] sm:$0xff]
  %v177 = vld [vmem:[%s0 + $0x4e8] sm:$0xff]
  %v178 = vld [vmem:[%s0 + $0x4f0] sm:$0xff]
  %v179 = vld [vmem:[%s0 + $0x4f8] sm:$0xff]
  %v180 = vld [vmem:[%s0 + $0x500] sm:$0xff]
  %v181 = vld [vmem:[%s0 + $0x508] sm:$0xff]
  %v182 = vld [vmem:[%s0 + $0x510] sm:$0xff]
  %v183 = vld [vmem:[%s0 + $0x518] sm:$0xff]
  %v184 = vld [vmem:[%s0 + $0x520] sm:$0xff]
  %v185 = vld [vmem:[%s0 + $0x528] sm:$0xff]
  %v186 = vld [vmem:[%s0 + $0x530] sm:$0xff]
  %v187 = vld [vmem:[%s0 + $0x538] sm:$0xff]
  %v188 = vld [vmem:[%s0 + $0x540] sm:$0xff]
  %v189 = vld [vmem:[%s0 + $0x548] sm:$0xff]
  %v190 = vld [vmem:[%s0 + $0x550] sm:$0xff]
  %v191 = vld [vmem:[%s0 + $0x558] sm:$0xff]
  %v192 = vld [vmem:[%s0 + $0x560] sm:$0xff]
  %v193 = vld [vmem:[%s0 + $0x568] sm:$0xff]
  %v194 = vld [vmem:[%s0 + $0x570] sm:$0xff]
  %v195 = vld [vmem:[%s0 + $0x578] sm:$0xff]
  %v196 = vld [vmem:[%s0 + $0x580] sm:$0xff]
  %v197 = vld [vmem:[%s0 + $0x588] sm:$0xff]
  %v198 = vld [vmem:[%s0 + $0x590] sm:$0xff]
  %v199 = vld [vmem:[%s0 + $0x598] sm:$0xff]
  %v200 = vld [vmem:[%s0 + $0x5a0] sm:$0xff]
  %v201 = vld [vmem:[%s0 + $0x5a8] sm:$0xff]
  %v202 = vld [vmem:[%s0 + $0x5b0] sm:$0xff]
  %v203 = vld [vmem:[%s0 + $0x5b8] sm:$0xff]
  %v204 = vld [vmem:[%s0 + $0x5c0] sm:$0xff]
  %v205 = vld [vmem:[%s0 + $0x5c8] sm:$0xff]
  %v206 = vld [vmem:[%s0 + $0x5d0] sm:$0xff]
  %v207 = vld [vmem:[%s0 + $0x5d8] sm:$0xff]
  %v208 = vld [vmem:[%s0 + $0x5e0] sm:$0xff]
  %v209 = vld [vmem:[%s0 + $0x5e8] sm:$0xff]
  %v210 = vld [vmem:[%s0 + $0x5f0] sm:$0xff]
  %v211 = vld [vmem:[%s0 + $0x5f8] sm:$0xff]
  %v212 = vld [vmem:[%s0 + $0x600] sm:$0xff]
  %v213 = vld [vmem:[%s0 + $0x608] sm:$0xff]
  %v214 = vld [vmem:[%s0 + $0x610] sm:$0xff]
  %v215 = vld [vmem:[%s0 + $0x618] sm:$0xff]
  %v216 = vld [vmem:[%s0 + $0x620] sm:$0xff]
  %v217 = vld [vmem:[%s0 + $0x628] sm:$0xff]
  %v218 = vld [vmem:[%s0 + $0x630] sm:$0xff]
  %v219 = vld [vmem:[%s0 + $0x638] sm:$0xff]
  %v220 = vld [vmem:[%s0 + $0x640] sm:$0xff]
  %v221 = vld [vmem:[%s0 + $0x648] sm:$0xff]
  %v222 = vld [vmem:[%s0 + $0x650] sm:$0xff]
  %v223 = vld [vmem:[%s0 + $0x658] sm:$0xff]
  %v224 = vld [vmem:[%s0 + $0x660] sm:$0xff]
  %v225 = vld [vmem:[%s0 + $0x668] sm:$0xff]
  %v226 = vld [vmem:[%s0 + $0x670] sm:$0xff]
  %v227 = vld [vmem:[%s0 + $0x678] sm:$0xff]
  %v228 = vld [vmem:[%s0 + $0x680] sm:$0xff]
  %v229 = vld [vmem:[%s0 + $0x688] sm:$0xff]
  %v230 = vld [vmem:[%s0 + $0x690] sm:$0xff]
  %v231 = vld [vmem:[%s0 + $0x698] sm:$0xff]
  %v232 = vld [vmem:[%s0 + $0x6a0] sm:$0xff]
  %v233 = vld [vmem:[%s0 + $0x6a8] sm:$0xff]
  %v234 = vld [vmem:[%s0 + $0x6b0] sm:$0xff]
  %v235 = vld [vmem:[%s0 + $0x6b8] sm:$0xff]
  %v236 = vld [vmem:[%s0 + $0x6c0] sm:$0xff]
  %v237 = vld [vmem:[%s0 + $0x6c8] sm:$0xff]
  %v238 = vld [vmem:[%s0 + $0x6d0] sm:$0xff]
  %v239 = vld [vmem:[%s0 + $0x6d8] sm:$0xff]
  %v240 = vld [vmem:[%s0 + $0x6e0] sm:$0xff]
  %v241 = vld [vmem:[%s0 + $0x6e8] sm:$0xff]
  %v242 = vld [vmem:[%s0 + $0x6f0] sm:$0xff]
  %v243 = vld [vmem:[%s0 + $0x6f8] sm:$0xff]
  %v244 = vld [vmem:[%s0 + $0x700] sm:$0xff]
  %v245 = vld [vmem:[%s0 + $0x708] sm:$0xff]
  %v246 = vld [vmem:[%s0 + $0x710] sm:$0xff]
  %v247 = vld [vmem:[%s0 + $0x718] sm:$0xff]
  %v248 = vld [vmem:[%s0 + $0x720] sm:$0xff]
  %v249 = vld [vmem:[%s0 + $0x728] sm:$0xff]
  %v250 = vld [vmem:[%s0 + $0x730] sm:$0xff]
  %v251 = vld [vmem:[%s0 + $0x738] sm:$0xff]
  %v252 = vld [vmem:[%s0 + $0x740] sm:$0xff]
  %v253 = vld [vmem:[%s0 + $0x748] sm:$0xff]
  %v254 = vld [vmem:[%s0 + $0x750] sm:$0xff]
  %v255 = vld [vmem:[%s0 + $0x758] sm:$0xff]
  %v256 = vld [vmem:[%s0 + $0x760] sm:$0xff]
  %v257 = vld [vmem:[%s0 + $0x768] sm:$0xff]
  %v258 = vld [vmem:[%s0 + $0x770] sm:$0xff]
  %v259 = vld [vmem:[%s0 + $0x778] sm:$0xff]
  %v260 = vld [vmem:[%s0 + $0x780] sm:$0xff]
  %v261 = vld [vmem:[%s0 + $0x788] sm:$0xff]
  %v262 = vld [vmem:[%s0 + $0x790] sm:$0xff]
  %v263 = vld [vmem:[%s0 + $0x798] sm:$0xff]
  %v264 = vld [vmem:[%s0 + $0x7a0] sm:$0xff]
  %v265 = vld [vmem:[%s0 + $0x7a8] sm:$0xff]
  %v266 = vld [vmem:[%s0 + $0x7b0] sm:$0xff]
  %v267 = vld [vmem:[%s0 + $0x7b8] sm:$0xff]
  %v268 = vld [vmem:[%s0 + $0x7c0] sm:$0xff]
  %v269 = vld [vmem:[%s0 + $0x7c8] sm:$0xff]
  %v270 = vld [vmem:[%s0 + $0x7d0] sm:$0xff]
  %v271 = vld [vmem:[%s0 + $0x7d8] sm:$0xff]
  %v272 = vld [vmem:[%s0 + $0x7e0] sm:$0xff]
  %v273 = vld [vmem:[%s0 + $0x7e8] sm:$0xff]
  %v274 = vld [vmem:[%s0 + $0x7f0] sm:$0xff]
  %v275 = vld [vmem:[%s0 + $0x7f8] sm:$0xff]
  %v276 = vld [vmem:[%s0 + $0x800] sm:$0xff]
  %v277 = vld [vmem:[%s0 + $0x808] sm:$0xff]
  %v278 = vld [vmem:[%s0 + $0x810] sm:$0xff]
  %v279 = vld [vmem:[%s0 + $0x818] sm:$0xff]
  %v280 = vld [vmem:[%s0 + $0x820] sm:$0xff]
  %v281 = vld [vmem:[%s0 + $0x828] sm:$0xff]
  %v282 = vld [vmem:[%s0 + $0x830] sm:$0xff]
  %v283 = vld [vmem:[%s0 + $0x838] sm:$0xff]
  %v284 = vld [vmem:[%s0 + $0x840] sm:$0xff]
  %v285 = vld [vmem:[%s0 + $0x848] sm:$0xff]
  %v286 = vld [vmem:[%s0 + $0x850] sm:$0xff]
  %v287 = vld [vmem:[%s0 + $0x858] sm:$0xff]
  %v288 = vld [vmem:[%s0 + $0x860] sm:$0xff]
  %v289 = vld [vmem:[%s0 + $0x868] sm:$0xff]
  %v290 = vld [vmem:[%s0 + $0x870] sm:$0xff]
  %v291 = vld [vmem:[%s0 + $0x878] sm:$0xff]
  %v292 = vld [vmem:[%s0 + $0x880] sm:$0xff]
  %v293 = vld [vmem:[%s0 + $0x888] sm:$0xff]
  %v294 = vld [vmem:[%s0 + $0x890] sm:$0xff]
  %v295 = vld [vmem:[%s0 + $0x898] sm:$0xff]
  %v296 = vld [vmem:[%s0 + $0x8a0] sm:$0xff]
  %v297 = vld [vmem:[%s0 + $0x8a8] sm:$0xff]
  %v298 = vld [vmem:[%s0 + $0x8b0] sm:$0xff]
  %v299 = vld [vmem:[%s0 + $0x8b8] sm:$0xff]
  %v300 = vld [vmem:[%s0 + $0x8c0] sm:$0xff]
  %v301 = vld [vmem:[%s0 + $0x8c8] sm:$0xff]
  %v302 = vld [vmem:[%s0 + $0x8d0] sm:$0xff]
  %v303 = vld [vmem:[%s0 + $0x8d8] sm:$0xff]
  %v304 = vld [vmem:[%s0 + $0x8e0] sm:$0xff]
  %v305 = vld [vmem:[%s0 + $0x8e8] sm:$0xff]
  %v306 = vld [vmem:[%s0 + $0x8f0] sm:$0xff]
  %v307 = vld [vmem:[%s0 + $0x8f8] sm:$0xff]
  %v308 = vld [vmem:[%s0 + $0x900] sm:$0xff]
  %v309 = vld [vmem:[%s0 + $0x908] sm:$0xff]
  %v310 = vld [vmem:[%s0 + $0x910] sm:$0xff]
  %v311 = vld [vmem:[%s0 + $0x918] sm:$0xff]
  %v312 = vld [vmem:[%s0 + $0x920] sm:$0xff]
  %v313 = vld [vmem:[%s0 + $0x928] sm:$0xff]
  %v314 = vld [vmem:[%s0 + $0x930] sm:$0xff]
  %v315 = vld [vmem:[%s0 + $0x938] sm:$0xff]
  %v316 = vld [vmem:[%s0 + $0x940] sm:$0xff]
  %v317 = vld [vmem:[%s0 + $0x948] sm:$0xff]
  %v318 = vld [vmem:[%s0 + $0x950] sm:$0xff]
  %v319 = vld [vmem:[%s0 + $0x958] sm:$0xff]
  %v320 = vld [vmem:[%s0 + $0x960] sm:$0xff]
  %v321 = vld [vmem:[%s0 + $0x968] sm:$0xff]
  %v322 = vld [vmem:[%s0 + $0x970] sm:$0xff]
  %v323 = vld [vmem:[%s0 + $0x978] sm:$0xff]
  %v324 = vld [vmem:[%s0 + $0x980] sm:$0xff]
  %v325 = vld [vmem:[%s0 + $0x988] sm:$0xff]
  %v326 = vld [vmem:[%s0 + $0x990] sm:$0xff]
  %v327 = vld [vmem:[%s0 + $0x998] sm:$0xff]
  %v328 = vld [vmem:[%s0 + $0x9a0] sm:$0xff]
  %v329 = vld [vmem:[%s0 + $0x9a8] sm:$0xff]
  %v330 = vld [vmem:[%s0 + $0x9b0] sm:$0xff]
  %v331 = vld [vmem:[%s0 + $0x9b8] sm:$0xff]
  %v332 = vld [vmem:[%s0 + $0x9c0] sm:$0xff]
  %v333 = vld [vmem:[%s0 + $0x9c8] sm:$0xff]
  %v334 = vld [vmem:[%s0 + $0x9d0] sm:$0xff]
  %v335 = vld [vmem:[%s0 + $0x9d8] sm:$0xff]
  %v336 = vld [vmem:[%s0 + $0x9e0] sm:$0xff]
  %v337 = vld [vmem:[%s0 + $0x9e8] sm:$0xff]
  %v338 = vld [vmem:[%s0 + $0x9f0] sm:$0xff]
  %v339 = vld [vmem:[%s0 + $0x9f8] sm:$0xff]
  %v340 = vld [vmem:[%s0 + $0xa00] sm:$0xff]
  %v341 = vld [vmem:[%s0 + $0xa08] sm:$0xff]
  %v342 = vld [vmem:[%s0 + $0xa10] sm:$0xff]
  %v343 = vld [vmem:[%s0 + $0xa18] sm:$0xff]
  %v344 = vld [vmem:[%s0 + $0xa20] sm:$0xff]
  %v345 = vld [vmem:[%s0 + $0xa28] sm:$0xff]
  %v346 = vld [vmem:[%s0 + $0xa30] sm:$0xff]
  %v347 = vld [vmem:[%s0 + $0xa38] sm:$0xff]
  %v348 = vld [vmem:[%s0 + $0xa40] sm:$0xff]
  %v349 = vld [vmem:[%s0 + $0xa48] sm:$0xff]
  %v350 = vld [vmem:[%s0 + $0xa50] sm:$0xff]
  %v351 = vld [vmem:[%s0 + $0xa58] sm:$0xff]
  %v352 = vld [vmem:[%s0 + $0xa60] sm:$0xff]
  %v353 = vld [vmem:[%s0 + $0xa68] sm:$0xff]
  %v354 = vld [vmem:[%s0 + $0xa70] sm:$0xff]
  %v355 = vld [vmem:[%s0 + $0xa78] sm:$0xff]
  %v356 = vld [vmem:[%s0 + $0xa80] sm:$0xff]
  %v357 = vld [vmem:[%s0 + $0xa88] sm:$0xff]
  %v358 = vld [vmem:[%s0 + $0xa90] sm:$0xff]
  %v359 = vld [vmem:[%s0 + $0xa98] sm:$0xff]
  %v360 = vld [vmem:[%s0 + $0xaa0] sm:$0xff]
  %v361 = vld [vmem:[%s0 + $0xaa8] sm:$0xff]
  %v362 = vld [vmem:[%s0 + $0xab0] sm:$0xff]
  %v363 = vld [vmem:[%s0 + $0xab8] sm:$0xff]
  %v364 = vld [vmem:[%s0 + $0xac0] sm:$0xff]
  %v365 = vld [vmem:[%s0 + $0xac8] sm:$0xff]
  %v366 = vld [vmem:[%s0 + $0xad0] sm:$0xff]
  %v367 = vld [vmem:[%s0 + $0xad8] sm:$0xff]
  %v368 = vld [vmem:[%s0 + $0xae0] sm:$0xff]
  %v369 = vld [vmem:[%s0 + $0xae8] sm:$0xff]
  %v370 = vld [vmem:[%s0 + $0xaf0] sm:$0xff]
  %v371 = vld [vmem:[%s0 + $0xaf8] sm:$0xff]
  %v372 = vld [vmem:[%s0 + $0xb00] sm:$0xff]
  %v373 = vld [vmem:[%s0 + $0xb08] sm:$0xff]
  %v374 = vld [vmem:[%s0 + $0xb10] sm:$0xff]
  %v375 = vld [vmem:[%s0 + $0xb18] sm:$0xff]
  %v376 = vld [vmem:[%s0 + $0xb20] sm:$0xff]
  %v377 = vld [vmem:[%s0 + $0xb28] sm:$0xff]
  %v378 = vld [vmem:[%s0 + $0xb30] sm:$0xff]
  %v379 = vld [vmem:[%s0 + $0xb38] sm:$0xff]
  %v380 = vld [vmem:[%s0 + $0xb40] sm:$0xff]
  %v381 = vld [vmem:[%s0 + $0xb48] sm:$0xff]
  %v382 = vld [vmem:[%s0 + $0xb50] sm:$0xff]
  %v383 = vld [vmem:[%s0 + $0xb58] sm:$0xff]
  %v384 = vld [vmem:[%s0 + $0xb60] sm:$0xff]
  %v385 = vld [vmem:[%s0 + $0xb68] sm:$0xff]
  %v386 = vld [vmem:[%s0 + $0xb70] sm:$0xff]
  %v387 = vld [vmem:[%s0 + $0xb78] sm:$0xff]
  %v388 = vld [vmem:[%s0 + $0xb80] sm:$0xff]
  %v389 = vld [vmem:[%s0 + $0xb88] sm:$0xff]
  %v390 = vld [vmem:[%s0 + $0xb90] sm:$0xff]
  %v391 = vld [vmem:[%s0 + $0xb98] sm:$0xff]
  %v392 = vld [vmem:[%s0 + $0xba0] sm:$0xff]
  %v393 = vld [vmem:[%s0 + $0xba8] sm:$0xff]
  %v394 = vld [vmem:[%s0 + $0xbb0] sm:$0xff]
  %v395 = vld [vmem:[%s0 + $0xbb8] sm:$0xff]
  %v396 = vld [vmem:[%s0 + $0xbc0] sm:$0xff]
  %v397 = vld [vmem:[%s0 + $0xbc8] sm:$0xff]
  %v398 = vld [vmem:[%s0 + $0xbd0] sm:$0xff]
  %v399 = vld [vmem:[%s0 + $0xbd8] sm:$0xff]
  %v400 = vld [vmem:[%s0 + $0xbe0] sm:$0xff]
  %v401 = vld [vmem:[%s0 + $0xbe8] sm:$0xff]
  %v402 = vld [vmem:[%s0 + $0xbf0] sm:$0xff]
  %v403 = vld [vmem:[%s0 + $0xbf8] sm:$0xff]
  %v404 = vld [vmem:[%s0 + $0xc00] sm:$0xff]
  %v405 = vld [vmem:[%s0 + $0xc08] sm:$0xff]
  %v406 = vld [vmem:[%s0 + $0xc10] sm:$0xff]
  %v407 = vld [vmem:[%s0 + $0xc18] sm:$0xff]
  %v408 = vld [vmem:[%s0 + $0xc20] sm:$0xff]
  %v409 = vld [vmem:[%s0 + $0xc28] sm:$0xff]
  %v410 = vld [vmem:[%s0 + $0xc30] sm:$0xff]
  %v411 = vld [vmem:[%s0 + $0xc38] sm:$0xff]
  %v412 = vld [vmem:[%s0 + $0xc40] sm:$0xff]
  %v413 = vld [vmem:[%s0 + $0xc48] sm:$0xff]
  %v414 = vld [vmem:[%s0 + $0xc50] sm:$0xff]
  %v415 = vld [vmem:[%s0 + $0xc58] sm:$0xff]
  %v416 = vld [vmem:[%s0 + $0xc60] sm:$0xff]
  %v417 = vld [vmem:[%s0 + $0xc68] sm:$0xff]
  %v418 = vld [vmem:[%s0 + $0xc70] sm:$0xff]
  %v419 = vld [vmem:[%s0 + $0xc78] sm:$0xff]
  %v420 = vld [vmem:[%s0 + $0xc80] sm:$0xff]
  %v421 = vld [vmem:[%s0 + $0xc88] sm:$0xff]
  %v422 = vld [vmem:[%s0 + $0xc90] sm:$0xff]
  %v423 = vld [vmem:[%s0 + $0xc98] sm:$0xff]
  %v424 = vld [vmem:[%s0 + $0xca0] sm:$0xff]
  %v425 = vld [vmem:[%s0 + $0xca8] sm:$0xff]
  %v426 = vld [vmem:[%s0 + $0xcb0] sm:$0xff]
  %v427 = vld [vmem:[%s0 + $0xcb8] sm:$0xff]
  %v428 = vld [vmem:[%s0 + $0xcc0] sm:$0xff]
  %v429 = vld [vmem:[%s0 + $0xcc8] sm:$0xff]
  %v430 = vld [vmem:[%s0 + $0xcd0] sm:$0xff]
  %v431 = vld [vmem:[%s0 + $0xcd8] sm:$0xff]
  %v432 = vld [vmem:[%s0 + $0xce0] sm:$0xff]
  %v433 = vld [vmem:[%s0 + $0xce8] sm:$0xff]
  %v434 = vld [vmem:[%s0 + $0xcf0] sm:$0xff]
  %v435 = vld [vmem:[%s0 + $0xcf8] sm:$0xff]
  %v436 = vld [vmem:[%s0 + $0xd00] sm:$0xff]
  %v437 = vld [vmem:[%s0 + $0xd08] sm:$0xff]
  %v438 = vld [vmem:[%s0 + $0xd10] sm:$0xff]
  %v439 = vld [vmem:[%s0 + $0xd18] sm:$0xff]
  %v440 = vld [vmem:[%s0 + $0xd20] sm:$0xff]
  %v441 = vld [vmem:[%s0 + $0xd28] sm:$0xff]
  %v442 = vld [vmem:[%s0 + $0xd30] sm:$0xff]
  %v443 = vld [vmem:[%s0 + $0xd38] sm:$0xff]
  %v444 = vld [vmem:[%s0 + $0xd40] sm:$0xff]
  %v445 = vld [vmem:[%s0 + $0xd48] sm:$0xff]
  %v446 = vld [vmem:[%s0 + $0xd50] sm:$0xff]
  %v447 = vld [vmem:[%s0 + $0xd58] sm:$0xff]
  %v448 = vld [vmem:[%s0 + $0xd60] sm:$0xff]
  %v449 = vld [vmem:[%s0 + $0xd68] sm:$0xff]
  %v450 = vld [vmem:[%s0 + $0xd70] sm:$0xff]
  %v451 = vld [vmem:[%s0 + $0xd78] sm:$0xff]
  %v452 = vld [vmem:[%s0 + $0xd80] sm:$0xff]
  %v453 = vld [vmem:[%s0 + $0xd88] sm:$0xff]
  %v454 = vld [vmem:[%s0 + $0xd90] sm:$0xff]
  %v455 = vld [vmem:[%s0 + $0xd98] sm:$0xff]
  %v456 = vld [vmem:[%s0 + $0xda0] sm:$0xff]
  %v457 = vld [vmem:[%s0 + $0xda8] sm:$0xff]
  %v458 = vld [vmem:[%s0 + $0xdb0] sm:$0xff]
  %v459 = vld [vmem:[%s0 + $0xdb8] sm:$0xff]
  %v460 = vld [vmem:[%s0 + $0xdc0] sm:$0xff]
  %v461 = vld [vmem:[%s0 + $0xdc8] sm:$0xff]
  %v462 = vld [vmem:[%s0 + $0xdd0] sm:$0xff]
  %v463 = vld [vmem:[%s0 + $0xdd8] sm:$0xff]
  %v464 = vld [vmem:[%s0 + $0xde0] sm:$0xff]
  %v465 = vld [vmem:[%s0 + $0xde8] sm:$0xff]
  %v466 = vld [vmem:[%s0 + $0xdf0] sm:$0xff]
  %v467 = vld [vmem:[%s0 + $0xdf8] sm:$0xff]
  %v468 = vld [vmem:[%s0 + $0xe00] sm:$0xff]
  %v469 = vld [vmem:[%s0 + $0xe08] sm:$0xff]
  %v470 = vld [vmem:[%s0 + $0xe10] sm:$0xff]
  %v471 = vld [vmem:[%s0 + $0xe18] sm:$0xff]
  %v472 = vld [vmem:[%s0 + $0xe20] sm:$0xff]
  %v473 = vld [vmem:[%s0 + $0xe28] sm:$0xff]
  %v474 = vld [vmem:[%s0 + $0xe30] sm:$0xff]
  %v475 = vld [vmem:[%s0 + $0xe38] sm:$0xff]
  %v476 = vld [vmem:[%s0 + $0xe40] sm:$0xff]
  %v477 = vld [vmem:[%s0 + $0xe48] sm:$0xff]
  %v478 = vld [vmem:[%s0 + $0xe50] sm:$0xff]
  %v479 = vld [vmem:[%s0 + $0xe58] sm:$0xff]
  %v480 = vld [vmem:[%s0 + $0xe60] sm:$0xff]
  %v481 = vld [vmem:[%s0 + $0xe68] sm:$0xff]
  %v482 = vld [vmem:[%s0 + $0xe70] sm:$0xff]
  %v483 = vld [vmem:[%s0 + $0xe78] sm:$0xff]
  %v484 = vld [vmem:[%s0 + $0xe80] sm:$0xff]
  %v485 = vld [vmem:[%s0 + $0xe88] sm:$0xff]
  %v486 = vld [vmem:[%s0 + $0xe90] sm:$0xff]
  %v487 = vld [vmem:[%s0 + $0xe98] sm:$0xff]
  %v488 = vld [vmem:[%s0 + $0xea0] sm:$0xff]
  %v489 = vld [vmem:[%s0 + $0xea8] sm:$0xff]
  %v490 = vld [vmem:[%s0 + $0xeb0] sm:$0xff]
  %v491 = vld [vmem:[%s0 + $0xeb8] sm:$0xff]
  %v492 = vld [vmem:[%s0 + $0xec0] sm:$0xff]
  %v493 = vld [vmem:[%s0 + $0xec8] sm:$0xff]
  %v494 = vld [vmem:[%s0 + $0xed0] sm:$0xff]
  %v495 = vld [vmem:[%s0 + $0xed8] sm:$0xff]
  %v496 = vld [vmem:[%s0 + $0xee0] sm:$0xff]
  %v497 = vld [vmem:[%s0 + $0xee8] sm:$0xff]
  %v498 = vld [vmem:[%s0 + $0xef0] sm:$0xff]
  %v499 = vld [vmem:[%s0 + $0xef8] sm:$0xff]
  %v500 = vld [vmem:[%s0 + $0xf00] sm:$0xff]
  %v501 = vld [vmem:[%s0 + $0xf08] sm:$0xff]
  %v502 = vld [vmem:[%s0 + $0xf10] sm:$0xff]
  %v503 = vld [vmem:[%s0 + $0xf18] sm:$0xff]
  %v504 = vld [vmem:[%s0 + $0xf20] sm:$0xff]
  %v505 = vld [vmem:[%s0 + $0xf28] sm:$0xff]
  %v506 = vld [vmem:[%s0 + $0xf30] sm:$0xff]
  %v507 = vld [vmem:[%s0 + $0xf38] sm:$0xff]
  %v508 = vld [vmem:[%s0 + $0xf40] sm:$0xff]
  %v509 = vld [vmem:[%s0 + $0xf48] sm:$0xff]
  %v510 = vld [vmem:[%s0 + $0xf50] sm:$0xff]
  %v511 = vld [vmem:[%s0 + $0xf58] sm:$0xff]
  %v512 = vld [vmem:[%s0 + $0xf60] sm:$0xff]
  %v513 = vld [vmem:[%s0 + $0xf68] sm:$0xff]
  %v514 = vld [vmem:[%s0 + $0xf70] sm:$0xff]
  %v515 = vld [vmem:[%s0 + $0xf78] sm:$0xff]
  %v516 = vld [vmem:[%s0 + $0xf80] sm:$0xff]
  %v517 = vld [vmem:[%s0 + $0xf88] sm:$0xff]
  %v518 = vld [vmem:[%s0 + $0xf90] sm:$0xff]
  %v519 = vld [vmem:[%s0 + $0xf98] sm:$0xff]
  %v520 = vld [vmem:[%s0 + $0xfa0] sm:$0xff]
  %v521 = vld [vmem:[%s0 + $0xfa8] sm:$0xff]
  %v522 = vld [vmem:[%s0 + $0xfb0] sm:$0xff]
  %v523 = vld [vmem:[%s0 + $0xfb8] sm:$0xff]
  %v524 = vld [vmem:[%s0 + $0xfc0] sm:$0xff]
  %v525 = vld [vmem:[%s0 + $0xfc8] sm:$0xff]
  %v526 = vld [vmem:[%s0 + $0xfd0] sm:$0xff]
  %v527 = vld [vmem:[%s0 + $0xfd8] sm:$0xff]
  %v528 = vld [vmem:[%s0 + $0xfe0] sm:$0xff]
  %v529 = vld [vmem:[%s0 + $0xfe8] sm:$0xff]
  %v530 = vld [vmem:[%s0 + $0xff0] sm:$0xff]
  %v531 = vld [vmem:[%s0 + $0xff8] sm:$0xff]
  %v532 = vld [vmem:[%s1] sm:$0xff]
  %v533 = vld [vmem:[%s1 + $0x8] sm:$0xff]
  %v534 = vld [vmem:[%s1 + $0x10] sm:$0xff]
  %v535 = vld [vmem:[%s1 + $0x18] sm:$0xff]
  %v536 = vld [vmem:[%s1 + $0x20] sm:$0xf]
  %v537 = vld [vmem:[%s2] sm:$0x1]
  %v539 = vlaneseq
  %v540 = vshrl.u32 %v539, 7
  %v541 = vsub.s32 0, %v540
  %v542 = vrot.slane %v537, %v541
  %vm544 = vcmask 293888
  %v546 = vsel %vm544, %v20, 0
  %v549 = vsel %vm544, %v21, 0
  %v552 = vsel %vm544, %v22, 0
  %v555 = vsel %vm544, %v23, 0
  %v558 = vsel %vm544, %v24, 0
  %v561 = vsel %vm544, %v25, 0
  %v564 = vsel %vm544, %v26, 0
  %v567 = vsel %vm544, %v27, 0
  %v570 = vsel %vm544, %v28, 0
  %v573 = vsel %vm544, %v29, 0
  %v576 = vsel %vm544, %v30, 0
  %v579 = vsel %vm544, %v31, 0
  %v582 = vsel %vm544, %v32, 0
  %v585 = vsel %vm544, %v33, 0
  %v588 = vsel %vm544, %v34, 0
  %v591 = vsel %vm544, %v35, 0
  %v594 = vsel %vm544, %v36, 0
  %v597 = vsel %vm544, %v37, 0
  %v600 = vsel %vm544, %v38, 0
  %v603 = vsel %vm544, %v39, 0
  %v606 = vsel %vm544, %v40, 0
  %v609 = vsel %vm544, %v41, 0
  %v612 = vsel %vm544, %v42, 0
  %v615 = vsel %vm544, %v43, 0
  %v618 = vsel %vm544, %v44, 0
  %v621 = vsel %vm544, %v45, 0
  %v624 = vsel %vm544, %v46, 0
  %v627 = vsel %vm544, %v47, 0
  %v630 = vsel %vm544, %v48, 0
  %v633 = vsel %vm544, %v49, 0
  %v636 = vsel %vm544, %v50, 0
  %v639 = vsel %vm544, %v51, 0
  %v642 = vsel %vm544, %v52, 0
  %v645 = vsel %vm544, %v53, 0
  %v648 = vsel %vm544, %v54, 0
  %v651 = vsel %vm544, %v55, 0
  %v654 = vsel %vm544, %v56, 0
  %v657 = vsel %vm544, %v57, 0
  %v660 = vsel %vm544, %v58, 0
  %v663 = vsel %vm544, %v59, 0
  %v666 = vsel %vm544, %v60, 0
  %v669 = vsel %vm544, %v61, 0
  %v672 = vsel %vm544, %v62, 0
  %v675 = vsel %vm544, %v63, 0
  %v678 = vsel %vm544, %v64, 0
  %v681 = vsel %vm544, %v65, 0
  %v684 = vsel %vm544, %v66, 0
  %v687 = vsel %vm544, %v67, 0
  %v690 = vsel %vm544, %v68, 0
  %v693 = vsel %vm544, %v69, 0
  %v696 = vsel %vm544, %v70, 0
  %v699 = vsel %vm544, %v71, 0
  %v702 = vsel %vm544, %v72, 0
  %v705 = vsel %vm544, %v73, 0
  %v708 = vsel %vm544, %v74, 0
  %v711 = vsel %vm544, %v75, 0
  %v714 = vsel %vm544, %v76, 0
  %v717 = vsel %vm544, %v77, 0
  %v720 = vsel %vm544, %v78, 0
  %v723 = vsel %vm544, %v79, 0
  %v726 = vsel %vm544, %v80, 0
  %v729 = vsel %vm544, %v81, 0
  %v732 = vsel %vm544, %v82, 0
  %v735 = vsel %vm544, %v83, 0
  %v738 = vsel %vm544, %v84, 0
  %v741 = vsel %vm544, %v85, 0
  %v744 = vsel %vm544, %v86, 0
  %v747 = vsel %vm544, %v87, 0
  %v750 = vsel %vm544, %v88, 0
  %v753 = vsel %vm544, %v89, 0
  %v756 = vsel %vm544, %v90, 0
  %v759 = vsel %vm544, %v91, 0
  %v762 = vsel %vm544, %v92, 0
  %v765 = vsel %vm544, %v93, 0
  %v768 = vsel %vm544, %v94, 0
  %v771 = vsel %vm544, %v95, 0
  %v774 = vsel %vm544, %v96, 0
  %v777 = vsel %vm544, %v97, 0
  %v780 = vsel %vm544, %v98, 0
  %v783 = vsel %vm544, %v99, 0
  %v786 = vsel %vm544, %v100, 0
  %v789 = vsel %vm544, %v101, 0
  %v792 = vsel %vm544, %v102, 0
  %v795 = vsel %vm544, %v103, 0
  %v798 = vsel %vm544, %v104, 0
  %v801 = vsel %vm544, %v105, 0
  %v804 = vsel %vm544, %v106, 0
  %v807 = vsel %vm544, %v107, 0
  %v810 = vsel %vm544, %v108, 0
  %v813 = vsel %vm544, %v109, 0
  %v816 = vsel %vm544, %v110, 0
  %v819 = vsel %vm544, %v111, 0
  %v822 = vsel %vm544, %v112, 0
  %v825 = vsel %vm544, %v113, 0
  %v828 = vsel %vm544, %v114, 0
  %v831 = vsel %vm544, %v115, 0
  %v834 = vsel %vm544, %v116, 0
  %v837 = vsel %vm544, %v117, 0
  %v840 = vsel %vm544, %v118, 0
  %v843 = vsel %vm544, %v119, 0
  %v846 = vsel %vm544, %v120, 0
  %v849 = vsel %vm544, %v121, 0
  %v852 = vsel %vm544, %v122, 0
  %v855 = vsel %vm544, %v123, 0
  %v858 = vsel %vm544, %v124, 0
  %v861 = vsel %vm544, %v125, 0
  %v864 = vsel %vm544, %v126, 0
  %v867 = vsel %vm544, %v127, 0
  %v870 = vsel %vm544, %v128, 0
  %v873 = vsel %vm544, %v129, 0
  %v876 = vsel %vm544, %v130, 0
  %v879 = vsel %vm544, %v131, 0
  %v882 = vsel %vm544, %v132, 0
  %v885 = vsel %vm544, %v133, 0
  %v888 = vsel %vm544, %v134, 0
  %v891 = vsel %vm544, %v135, 0
  %v894 = vsel %vm544, %v136, 0
  %v897 = vsel %vm544, %v137, 0
  %v900 = vsel %vm544, %v138, 0
  %v903 = vsel %vm544, %v139, 0
  %v906 = vsel %vm544, %v140, 0
  %v909 = vsel %vm544, %v141, 0
  %v912 = vsel %vm544, %v142, 0
  %v915 = vsel %vm544, %v143, 0
  %v918 = vsel %vm544, %v144, 0
  %v921 = vsel %vm544, %v145, 0
  %v924 = vsel %vm544, %v146, 0
  %v927 = vsel %vm544, %v147, 0
  %v930 = vsel %vm544, %v148, 0
  %v933 = vsel %vm544, %v149, 0
  %v936 = vsel %vm544, %v150, 0
  %v939 = vsel %vm544, %v151, 0
  %v942 = vsel %vm544, %v152, 0
  %v945 = vsel %vm544, %v153, 0
  %v948 = vsel %vm544, %v154, 0
  %v951 = vsel %vm544, %v155, 0
  %v954 = vsel %vm544, %v156, 0
  %v957 = vsel %vm544, %v157, 0
  %v960 = vsel %vm544, %v158, 0
  %v963 = vsel %vm544, %v159, 0
  %v966 = vsel %vm544, %v160, 0
  %v969 = vsel %vm544, %v161, 0
  %v972 = vsel %vm544, %v162, 0
  %v975 = vsel %vm544, %v163, 0
  %v978 = vsel %vm544, %v164, 0
  %v981 = vsel %vm544, %v165, 0
  %v984 = vsel %vm544, %v166, 0
  %v987 = vsel %vm544, %v167, 0
  %v990 = vsel %vm544, %v168, 0
  %v993 = vsel %vm544, %v169, 0
  %v996 = vsel %vm544, %v170, 0
  %v999 = vsel %vm544, %v171, 0
  %v1002 = vsel %vm544, %v172, 0
  %v1005 = vsel %vm544, %v173, 0
  %v1008 = vsel %vm544, %v174, 0
  %v1011 = vsel %vm544, %v175, 0
  %v1014 = vsel %vm544, %v176, 0
  %v1017 = vsel %vm544, %v177, 0
  %v1020 = vsel %vm544, %v178, 0
  %v1023 = vsel %vm544, %v179, 0
  %v1026 = vsel %vm544, %v180, 0
  %v1029 = vsel %vm544, %v181, 0
  %v1032 = vsel %vm544, %v182, 0
  %v1035 = vsel %vm544, %v183, 0
  %v1038 = vsel %vm544, %v184, 0
  %v1041 = vsel %vm544, %v185, 0
  %v1044 = vsel %vm544, %v186, 0
  %v1047 = vsel %vm544, %v187, 0
  %v1050 = vsel %vm544, %v188, 0
  %v1053 = vsel %vm544, %v189, 0
  %v1056 = vsel %vm544, %v190, 0
  %v1059 = vsel %vm544, %v191, 0
  %v1062 = vsel %vm544, %v192, 0
  %v1065 = vsel %vm544, %v193, 0
  %v1068 = vsel %vm544, %v194, 0
  %v1071 = vsel %vm544, %v195, 0
  %v1074 = vsel %vm544, %v196, 0
  %v1077 = vsel %vm544, %v197, 0
  %v1080 = vsel %vm544, %v198, 0
  %v1083 = vsel %vm544, %v199, 0
  %v1086 = vsel %vm544, %v200, 0
  %v1089 = vsel %vm544, %v201, 0
  %v1092 = vsel %vm544, %v202, 0
  %v1095 = vsel %vm544, %v203, 0
  %v1098 = vsel %vm544, %v204, 0
  %v1101 = vsel %vm544, %v205, 0
  %v1104 = vsel %vm544, %v206, 0
  %v1107 = vsel %vm544, %v207, 0
  %v1110 = vsel %vm544, %v208, 0
  %v1113 = vsel %vm544, %v209, 0
  %v1116 = vsel %vm544, %v210, 0
  %v1119 = vsel %vm544, %v211, 0
  %v1122 = vsel %vm544, %v212, 0
  %v1125 = vsel %vm544, %v213, 0
  %v1128 = vsel %vm544, %v214, 0
  %v1131 = vsel %vm544, %v215, 0
  %v1134 = vsel %vm544, %v216, 0
  %v1137 = vsel %vm544, %v217, 0
  %v1140 = vsel %vm544, %v218, 0
  %v1143 = vsel %vm544, %v219, 0
  %v1146 = vsel %vm544, %v220, 0
  %v1149 = vsel %vm544, %v221, 0
  %v1152 = vsel %vm544, %v222, 0
  %v1155 = vsel %vm544, %v223, 0
  %v1158 = vsel %vm544, %v224, 0
  %v1161 = vsel %vm544, %v225, 0
  %v1164 = vsel %vm544, %v226, 0
  %v1167 = vsel %vm544, %v227, 0
  %v1170 = vsel %vm544, %v228, 0
  %v1173 = vsel %vm544, %v229, 0
  %v1176 = vsel %vm544, %v230, 0
  %v1179 = vsel %vm544, %v231, 0
  %v1182 = vsel %vm544, %v232, 0
  %v1185 = vsel %vm544, %v233, 0
  %v1188 = vsel %vm544, %v234, 0
  %v1191 = vsel %vm544, %v235, 0
  %v1194 = vsel %vm544, %v236, 0
  %v1197 = vsel %vm544, %v237, 0
  %v1200 = vsel %vm544, %v238, 0
  %v1203 = vsel %vm544, %v239, 0
  %v1206 = vsel %vm544, %v240, 0
  %v1209 = vsel %vm544, %v241, 0
  %v1212 = vsel %vm544, %v242, 0
  %v1215 = vsel %vm544, %v243, 0
  %v1218 = vsel %vm544, %v244, 0
  %v1221 = vsel %vm544, %v245, 0
  %v1224 = vsel %vm544, %v246, 0
  %v1227 = vsel %vm544, %v247, 0
  %v1230 = vsel %vm544, %v248, 0
  %v1233 = vsel %vm544, %v249, 0
  %v1236 = vsel %vm544, %v250, 0
  %v1239 = vsel %vm544, %v251, 0
  %v1242 = vsel %vm544, %v252, 0
  %v1245 = vsel %vm544, %v253, 0
  %v1248 = vsel %vm544, %v254, 0
  %v1251 = vsel %vm544, %v255, 0
  %v1254 = vsel %vm544, %v256, 0
  %v1257 = vsel %vm544, %v257, 0
  %v1260 = vsel %vm544, %v258, 0
  %v1263 = vsel %vm544, %v259, 0
  %v1266 = vsel %vm544, %v260, 0
  %v1269 = vsel %vm544, %v261, 0
  %v1272 = vsel %vm544, %v262, 0
  %v1275 = vsel %vm544, %v263, 0
  %v1278 = vsel %vm544, %v264, 0
  %v1281 = vsel %vm544, %v265, 0
  %v1284 = vsel %vm544, %v266, 0
  %v1287 = vsel %vm544, %v267, 0
  %v1290 = vsel %vm544, %v268, 0
  %v1293 = vsel %vm544, %v269, 0
  %v1296 = vsel %vm544, %v270, 0
  %v1299 = vsel %vm544, %v271, 0
  %v1302 = vsel %vm544, %v272, 0
  %v1305 = vsel %vm544, %v273, 0
  %v1308 = vsel %vm544, %v274, 0
  %v1311 = vsel %vm544, %v275, 0
  %v1314 = vsel %vm544, %v276, 0
  %v1317 = vsel %vm544, %v277, 0
  %v1320 = vsel %vm544, %v278, 0
  %v1323 = vsel %vm544, %v279, 0
  %v1326 = vsel %vm544, %v280, 0
  %v1329 = vsel %vm544, %v281, 0
  %v1332 = vsel %vm544, %v282, 0
  %v1335 = vsel %vm544, %v283, 0
  %v1338 = vsel %vm544, %v284, 0
  %v1341 = vsel %vm544, %v285, 0
  %v1344 = vsel %vm544, %v286, 0
  %v1347 = vsel %vm544, %v287, 0
  %v1350 = vsel %vm544, %v288, 0
  %v1353 = vsel %vm544, %v289, 0
  %v1356 = vsel %vm544, %v290, 0
  %v1359 = vsel %vm544, %v291, 0
  %v1362 = vsel %vm544, %v292, 0
  %v1365 = vsel %vm544, %v293, 0
  %v1368 = vsel %vm544, %v294, 0
  %v1371 = vsel %vm544, %v295, 0
  %v1374 = vsel %vm544, %v296, 0
  %v1377 = vsel %vm544, %v297, 0
  %v1380 = vsel %vm544, %v298, 0
  %v1383 = vsel %vm544, %v299, 0
  %v1386 = vsel %vm544, %v300, 0
  %v1389 = vsel %vm544, %v301, 0
  %v1392 = vsel %vm544, %v302, 0
  %v1395 = vsel %vm544, %v303, 0
  %v1398 = vsel %vm544, %v304, 0
  %v1401 = vsel %vm544, %v305, 0
  %v1404 = vsel %vm544, %v306, 0
  %v1407 = vsel %vm544, %v307, 0
  %v1410 = vsel %vm544, %v308, 0
  %v1413 = vsel %vm544, %v309, 0
  %v1416 = vsel %vm544, %v310, 0
  %v1419 = vsel %vm544, %v311, 0
  %v1422 = vsel %vm544, %v312, 0
  %v1425 = vsel %vm544, %v313, 0
  %v1428 = vsel %vm544, %v314, 0
  %v1431 = vsel %vm544, %v315, 0
  %v1434 = vsel %vm544, %v316, 0
  %v1437 = vsel %vm544, %v317, 0
  %v1440 = vsel %vm544, %v318, 0
  %v1443 = vsel %vm544, %v319, 0
  %v1446 = vsel %vm544, %v320, 0
  %v1449 = vsel %vm544, %v321, 0
  %v1452 = vsel %vm544, %v322, 0
  %v1455 = vsel %vm544, %v323, 0
  %v1458 = vsel %vm544, %v324, 0
  %v1461 = vsel %vm544, %v325, 0
  %v1464 = vsel %vm544, %v326, 0
  %v1467 = vsel %vm544, %v327, 0
  %v1470 = vsel %vm544, %v328, 0
  %v1473 = vsel %vm544, %v329, 0
  %v1476 = vsel %vm544, %v330, 0
  %v1479 = vsel %vm544, %v331, 0
  %v1482 = vsel %vm544, %v332, 0
  %v1485 = vsel %vm544, %v333, 0
  %v1488 = vsel %vm544, %v334, 0
  %v1491 = vsel %vm544, %v335, 0
  %v1494 = vsel %vm544, %v336, 0
  %v1497 = vsel %vm544, %v337, 0
  %v1500 = vsel %vm544, %v338, 0
  %v1503 = vsel %vm544, %v339, 0
  %v1506 = vsel %vm544, %v340, 0
  %v1509 = vsel %vm544, %v341, 0
  %v1512 = vsel %vm544, %v342, 0
  %v1515 = vsel %vm544, %v343, 0
  %v1518 = vsel %vm544, %v344, 0
  %v1521 = vsel %vm544, %v345, 0
  %v1524 = vsel %vm544, %v346, 0
  %v1527 = vsel %vm544, %v347, 0
  %v1530 = vsel %vm544, %v348, 0
  %v1533 = vsel %vm544, %v349, 0
  %v1536 = vsel %vm544, %v350, 0
  %v1539 = vsel %vm544, %v351, 0
  %v1542 = vsel %vm544, %v352, 0
  %v1545 = vsel %vm544, %v353, 0
  %v1548 = vsel %vm544, %v354, 0
  %v1551 = vsel %vm544, %v355, 0
  %v1554 = vsel %vm544, %v356, 0
  %v1557 = vsel %vm544, %v357, 0
  %v1560 = vsel %vm544, %v358, 0
  %v1563 = vsel %vm544, %v359, 0
  %v1566 = vsel %vm544, %v360, 0
  %v1569 = vsel %vm544, %v361, 0
  %v1572 = vsel %vm544, %v362, 0
  %v1575 = vsel %vm544, %v363, 0
  %v1578 = vsel %vm544, %v364, 0
  %v1581 = vsel %vm544, %v365, 0
  %v1584 = vsel %vm544, %v366, 0
  %v1587 = vsel %vm544, %v367, 0
  %v1590 = vsel %vm544, %v368, 0
  %v1593 = vsel %vm544, %v369, 0
  %v1596 = vsel %vm544, %v370, 0
  %v1599 = vsel %vm544, %v371, 0
  %v1602 = vsel %vm544, %v372, 0
  %v1605 = vsel %vm544, %v373, 0
  %v1608 = vsel %vm544, %v374, 0
  %v1611 = vsel %vm544, %v375, 0
  %v1614 = vsel %vm544, %v376, 0
  %v1617 = vsel %vm544, %v377, 0
  %v1620 = vsel %vm544, %v378, 0
  %v1623 = vsel %vm544, %v379, 0
  %v1626 = vsel %vm544, %v380, 0
  %v1629 = vsel %vm544, %v381, 0
  %v1632 = vsel %vm544, %v382, 0
  %v1635 = vsel %vm544, %v383, 0
  %v1638 = vsel %vm544, %v384, 0
  %v1641 = vsel %vm544, %v385, 0
  %v1644 = vsel %vm544, %v386, 0
  %v1647 = vsel %vm544, %v387, 0
  %v1650 = vsel %vm544, %v388, 0
  %v1653 = vsel %vm544, %v389, 0
  %v1656 = vsel %vm544, %v390, 0
  %v1659 = vsel %vm544, %v391, 0
  %v1662 = vsel %vm544, %v392, 0
  %v1665 = vsel %vm544, %v393, 0
  %v1668 = vsel %vm544, %v394, 0
  %v1671 = vsel %vm544, %v395, 0
  %v1674 = vsel %vm544, %v396, 0
  %v1677 = vsel %vm544, %v397, 0
  %v1680 = vsel %vm544, %v398, 0
  %v1683 = vsel %vm544, %v399, 0
  %v1686 = vsel %vm544, %v400, 0
  %v1689 = vsel %vm544, %v401, 0
  %v1692 = vsel %vm544, %v402, 0
  %v1695 = vsel %vm544, %v403, 0
  %v1698 = vsel %vm544, %v404, 0
  %v1701 = vsel %vm544, %v405, 0
  %v1704 = vsel %vm544, %v406, 0
  %v1707 = vsel %vm544, %v407, 0
  %v1710 = vsel %vm544, %v408, 0
  %v1713 = vsel %vm544, %v409, 0
  %v1716 = vsel %vm544, %v410, 0
  %v1719 = vsel %vm544, %v411, 0
  %v1722 = vsel %vm544, %v412, 0
  %v1725 = vsel %vm544, %v413, 0
  %v1728 = vsel %vm544, %v414, 0
  %v1731 = vsel %vm544, %v415, 0
  %v1734 = vsel %vm544, %v416, 0
  %v1737 = vsel %vm544, %v417, 0
  %v1740 = vsel %vm544, %v418, 0
  %v1743 = vsel %vm544, %v419, 0
  %v1746 = vsel %vm544, %v420, 0
  %v1749 = vsel %vm544, %v421, 0
  %v1752 = vsel %vm544, %v422, 0
  %v1755 = vsel %vm544, %v423, 0
  %v1758 = vsel %vm544, %v424, 0
  %v1761 = vsel %vm544, %v425, 0
  %v1764 = vsel %vm544, %v426, 0
  %v1767 = vsel %vm544, %v427, 0
  %v1770 = vsel %vm544, %v428, 0
  %v1773 = vsel %vm544, %v429, 0
  %v1776 = vsel %vm544, %v430, 0
  %v1779 = vsel %vm544, %v431, 0
  %v1782 = vsel %vm544, %v432, 0
  %v1785 = vsel %vm544, %v433, 0
  %v1788 = vsel %vm544, %v434, 0
  %v1791 = vsel %vm544, %v435, 0
  %v1794 = vsel %vm544, %v436, 0
  %v1797 = vsel %vm544, %v437, 0
  %v1800 = vsel %vm544, %v438, 0
  %v1803 = vsel %vm544, %v439, 0
  %v1806 = vsel %vm544, %v440, 0
  %v1809 = vsel %vm544, %v441, 0
  %v1812 = vsel %vm544, %v442, 0
  %v1815 = vsel %vm544, %v443, 0
  %v1818 = vsel %vm544, %v444, 0
  %v1821 = vsel %vm544, %v445, 0
  %v1824 = vsel %vm544, %v446, 0
  %v1827 = vsel %vm544, %v447, 0
  %v1830 = vsel %vm544, %v448, 0
  %v1833 = vsel %vm544, %v449, 0
  %v1836 = vsel %vm544, %v450, 0
  %v1839 = vsel %vm544, %v451, 0
  %v1842 = vsel %vm544, %v452, 0
  %v1845 = vsel %vm544, %v453, 0
  %v1848 = vsel %vm544, %v454, 0
  %v1851 = vsel %vm544, %v455, 0
  %v1854 = vsel %vm544, %v456, 0
  %v1857 = vsel %vm544, %v457, 0
  %v1860 = vsel %vm544, %v458, 0
  %v1863 = vsel %vm544, %v459, 0
  %v1866 = vsel %vm544, %v460, 0
  %v1869 = vsel %vm544, %v461, 0
  %v1872 = vsel %vm544, %v462, 0
  %v1875 = vsel %vm544, %v463, 0
  %v1878 = vsel %vm544, %v464, 0
  %v1881 = vsel %vm544, %v465, 0
  %v1884 = vsel %vm544, %v466, 0
  %v1887 = vsel %vm544, %v467, 0
  %v1890 = vsel %vm544, %v468, 0
  %v1893 = vsel %vm544, %v469, 0
  %v1896 = vsel %vm544, %v470, 0
  %v1899 = vsel %vm544, %v471, 0
  %v1902 = vsel %vm544, %v472, 0
  %v1905 = vsel %vm544, %v473, 0
  %v1908 = vsel %vm544, %v474, 0
  %v1911 = vsel %vm544, %v475, 0
  %v1914 = vsel %vm544, %v476, 0
  %v1917 = vsel %vm544, %v477, 0
  %v1920 = vsel %vm544, %v478, 0
  %v1923 = vsel %vm544, %v479, 0
  %v1926 = vsel %vm544, %v480, 0
  %v1929 = vsel %vm544, %v481, 0
  %v1932 = vsel %vm544, %v482, 0
  %v1935 = vsel %vm544, %v483, 0
  %v1938 = vsel %vm544, %v484, 0
  %v1941 = vsel %vm544, %v485, 0
  %v1944 = vsel %vm544, %v486, 0
  %v1947 = vsel %vm544, %v487, 0
  %v1950 = vsel %vm544, %v488, 0
  %v1953 = vsel %vm544, %v489, 0
  %v1956 = vsel %vm544, %v490, 0
  %v1959 = vsel %vm544, %v491, 0
  %v1962 = vsel %vm544, %v492, 0
  %v1965 = vsel %vm544, %v493, 0
  %v1968 = vsel %vm544, %v494, 0
  %v1971 = vsel %vm544, %v495, 0
  %v1974 = vsel %vm544, %v496, 0
  %v1977 = vsel %vm544, %v497, 0
  %v1980 = vsel %vm544, %v498, 0
  %v1983 = vsel %vm544, %v499, 0
  %v1986 = vsel %vm544, %v500, 0
  %v1989 = vsel %vm544, %v501, 0
  %v1992 = vsel %vm544, %v502, 0
  %v1995 = vsel %vm544, %v503, 0
  %v1998 = vsel %vm544, %v504, 0
  %v2001 = vsel %vm544, %v505, 0
  %v2004 = vsel %vm544, %v506, 0
  %v2007 = vsel %vm544, %v507, 0
  %v2010 = vsel %vm544, %v508, 0
  %v2013 = vsel %vm544, %v509, 0
  %v2016 = vsel %vm544, %v510, 0
  %v2019 = vsel %vm544, %v511, 0
  %v2022 = vsel %vm544, %v512, 0
  %v2025 = vsel %vm544, %v513, 0
  %v2028 = vsel %vm544, %v514, 0
  %v2031 = vsel %vm544, %v515, 0
  %v2034 = vsel %vm544, %v516, 0
  %v2037 = vsel %vm544, %v517, 0
  %v2040 = vsel %vm544, %v518, 0
  %v2043 = vsel %vm544, %v519, 0
  %v2046 = vsel %vm544, %v520, 0
  %v2049 = vsel %vm544, %v521, 0
  %v2052 = vsel %vm544, %v522, 0
  %v2055 = vsel %vm544, %v523, 0
  %v2058 = vsel %vm544, %v524, 0
  %v2061 = vsel %vm544, %v525, 0
  %v2064 = vsel %vm544, %v526, 0
  %v2067 = vsel %vm544, %v527, 0
  %v2070 = vsel %vm544, %v528, 0
  %v2073 = vsel %vm544, %v529, 0
  %v2076 = vsel %vm544, %v530, 0
  %v2079 = vsel %vm544, %v531, 0
  %vm2081 = vcmask 1043456
  %v2083 = vsel %vm2081, %v536, 0
  %2085 = vmatprep.subr.mxu0 0.0
  %2086 = vmatpush1.msra.mxu0 0.0
  %2087 = vmatprep.subr.mxu0 0.0
  %2088 = vmatpush1.msra.mxu0 0.0
  %2089 = vmatprep.subr.mxu0 0.0
  %2090 = vmatpush1.msra.mxu0 0.0
  %2091 = vmatprep.subr.mxu0 0.0
  %2092 = vmatpush1.msra.mxu0 0.0
  %2093 = vmatprep.subr.mxu0 0.0
  %2094 = vmatpush1.msra.mxu0 0.0
  %2095 = vmatprep.subr.mxu0 0.0
  %2096 = vmatpush1.msra.mxu0 0.0
  %2097 = vmatprep.subr.mxu0 0.0
  %2098 = vmatpush1.msra.mxu0 0.0
  %2099 = vmatprep.subr.mxu0 0.0
  %2100 = vmatpush1.msra.mxu0 0.0
  %2101 = vmatprep.subr.mxu0 0.0
  %2102 = vmatpush1.msra.mxu0 0.0
  %2103 = vmatprep.subr.mxu0 0.0
  %2104 = vmatpush1.msra.mxu0 0.0
  %2105 = vmatprep.subr.mxu0 0.0
  %2106 = vmatpush1.msra.mxu0 0.0
  %2107 = vmatprep.subr.mxu0 0.0
  %2108 = vmatpush1.msra.mxu0 %v2083
  %2109 = vmatprep.subr.mxu0 0.0
  %2110 = vmatpush1.msra.mxu0 %v535
  %2111 = vmatprep.subr.mxu0 0.0
  %2112 = vmatpush1.msra.mxu0 %v534
  %2113 = vmatprep.subr.mxu0 0.0
  %2114 = vmatpush1.msra.mxu0 %v533
  %2115 = vmatprep.subr.mxu0 0.0
  %2116 = vmatpush1.msra.mxu0 %v532
  %2117 = vmatprep.subr.mxu0 0.0
  %2118 = vmatpush2.msra.mxu0 0.0
  %2119 = vmatprep.subr.mxu0 0.0
  %2120 = vmatpush2.msra.mxu0 0.0
  %2121 = vmatprep.subr.mxu0 0.0
  %2122 = vmatpush2.msra.mxu0 0.0
  %2123 = vmatprep.subr.mxu0 0.0
  %2124 = vmatpush2.msra.mxu0 0.0
  %2125 = vmatprep.subr.mxu0 0.0
  %2126 = vmatpush2.msra.mxu0 0.0
  %2127 = vmatprep.subr.mxu0 0.0
  %2128 = vmatpush2.msra.mxu0 0.0
  %2129 = vmatprep.subr.mxu0 0.0
  %2130 = vmatpush2.msra.mxu0 0.0
  %2131 = vmatprep.subr.mxu0 0.0
  %2132 = vmatpush2.msra.mxu0 0.0
  %2133 = vmatprep.subr.mxu0 0.0
  %2134 = vmatpush2.msra.mxu0 0.0
  %2135 = vmatprep.subr.mxu0 0.0
  %2136 = vmatpush2.msra.mxu0 0.0
  %2137 = vmatprep.subr.mxu0 0.0
  %2138 = vmatpush2.msra.mxu0 0.0
  %2139 = vmatprep.subr.mxu0 0.0
  %2140 = vmatpush2.msra.mxu0 0.0
  %2141 = vmatprep.subr.mxu0 0.0
  %2142 = vmatpush2.msra.mxu0 0.0
  %2143 = vmatprep.subr.mxu0 0.0
  %2144 = vmatpush2.msra.mxu0 0.0
  %2145 = vmatprep.subr.mxu0 0.0
  %2146 = vmatpush2.msra.mxu0 0.0
  %2147 = vmatprep.subr.mxu0 0.0
  %2148 = vmatpush2.msra.mxu0 0.0
  %2149 = vmatprep.mubr.f32.mxu0 0.0
  %2150 = vmatmul.mubr.f32.gmra.mxu0 %v546
  %v2151 = vpop.f32.mrf.mxu0
  %v2152 = vadd.f32 %v542, %v2151
  %v2153 = vpop.f32.mrf.mxu0
  %2154 = vmatprep.mubr.f32.mxu0 0.0
  %2155 = vmatmul.mubr.f32.gmra.mxu0 %v549
  %v2156 = vpop.f32.mrf.mxu0
  %v2157 = vadd.f32 %v542, %v2156
  %v2158 = vpop.f32.mrf.mxu0
  %2159 = vmatprep.mubr.f32.mxu0 0.0
  %2160 = vmatmul.mubr.f32.gmra.mxu0 %v552
  %v2161 = vpop.f32.mrf.mxu0
  %v2162 = vadd.f32 %v542, %v2161
  %v2163 = vpop.f32.mrf.mxu0
  %2164 = vmatprep.mubr.f32.mxu0 0.0
  %2165 = vmatmul.mubr.f32.gmra.mxu0 %v555
  %v2166 = vpop.f32.mrf.mxu0
  %v2167 = vadd.f32 %v542, %v2166
  %v2168 = vpop.f32.mrf.mxu0
  %2169 = vmatprep.mubr.f32.mxu0 0.0
  %2170 = vmatmul.mubr.f32.gmra.mxu0 %v558
  %v2171 = vpop.f32.mrf.mxu0
  %v2172 = vadd.f32 %v542, %v2171
  %v2173 = vpop.f32.mrf.mxu0
  %2174 = vmatprep.mubr.f32.mxu0 0.0
  %2175 = vmatmul.mubr.f32.gmra.mxu0 %v561
  %v2176 = vpop.f32.mrf.mxu0
  %v2177 = vadd.f32 %v542, %v2176
  %v2178 = vpop.f32.mrf.mxu0
  %2179 = vmatprep.mubr.f32.mxu0 0.0
  %2180 = vmatmul.mubr.f32.gmra.mxu0 %v564
  %v2181 = vpop.f32.mrf.mxu0
  %v2182 = vadd.f32 %v542, %v2181
  %v2183 = vpop.f32.mrf.mxu0
  %2184 = vmatprep.mubr.f32.mxu0 0.0
  %2185 = vmatmul.mubr.f32.gmra.mxu0 %v567
  %v2186 = vpop.f32.mrf.mxu0
  %v2187 = vadd.f32 %v542, %v2186
  %v2188 = vpop.f32.mrf.mxu0
  %2189 = vmatprep.mubr.f32.mxu0 0.0
  %2190 = vmatmul.mubr.f32.gmra.mxu0 %v570
  %v2191 = vpop.f32.mrf.mxu0
  %v2192 = vadd.f32 %v542, %v2191
  %v2193 = vpop.f32.mrf.mxu0
  %2194 = vmatprep.mubr.f32.mxu0 0.0
  %2195 = vmatmul.mubr.f32.gmra.mxu0 %v573
  %v2196 = vpop.f32.mrf.mxu0
  %v2197 = vadd.f32 %v542, %v2196
  %v2198 = vpop.f32.mrf.mxu0
  %2199 = vmatprep.mubr.f32.mxu0 0.0
  %2200 = vmatmul.mubr.f32.gmra.mxu0 %v576
  %v2201 = vpop.f32.mrf.mxu0
  %v2202 = vadd.f32 %v542, %v2201
  %v2203 = vpop.f32.mrf.mxu0
  %2204 = vmatprep.mubr.f32.mxu0 0.0
  %2205 = vmatmul.mubr.f32.gmra.mxu0 %v579
  %v2206 = vpop.f32.mrf.mxu0
  %v2207 = vadd.f32 %v542, %v2206
  %v2208 = vpop.f32.mrf.mxu0
  %2209 = vmatprep.mubr.f32.mxu0 0.0
  %2210 = vmatmul.mubr.f32.gmra.mxu0 %v582
  %v2211 = vpop.f32.mrf.mxu0
  %v2212 = vadd.f32 %v542, %v2211
  %v2213 = vpop.f32.mrf.mxu0
  %2214 = vmatprep.mubr.f32.mxu0 0.0
  %2215 = vmatmul.mubr.f32.gmra.mxu0 %v585
  %v2216 = vpop.f32.mrf.mxu0
  %v2217 = vadd.f32 %v542, %v2216
  %v2218 = vpop.f32.mrf.mxu0
  %2219 = vmatprep.mubr.f32.mxu0 0.0
  %2220 = vmatmul.mubr.f32.gmra.mxu0 %v588
  %v2221 = vpop.f32.mrf.mxu0
  %v2222 = vadd.f32 %v542, %v2221
  %v2223 = vpop.f32.mrf.mxu0
  %2224 = vmatprep.mubr.f32.mxu0 0.0
  %2225 = vmatmul.mubr.f32.gmra.mxu0 %v591
  %v2226 = vpop.f32.mrf.mxu0
  %v2227 = vadd.f32 %v542, %v2226
  %v2228 = vpop.f32.mrf.mxu0
  %2229 = vmatprep.mubr.f32.mxu0 0.0
  %2230 = vmatmul.mubr.f32.gmra.mxu0 %v594
  %v2231 = vpop.f32.mrf.mxu0
  %v2232 = vadd.f32 %v542, %v2231
  %v2233 = vpop.f32.mrf.mxu0
  %2234 = vmatprep.mubr.f32.mxu0 0.0
  %2235 = vmatmul.mubr.f32.gmra.mxu0 %v597
  %v2236 = vpop.f32.mrf.mxu0
  %v2237 = vadd.f32 %v542, %v2236
  %v2238 = vpop.f32.mrf.mxu0
  %2239 = vmatprep.mubr.f32.mxu0 0.0
  %2240 = vmatmul.mubr.f32.gmra.mxu0 %v600
  %v2241 = vpop.f32.mrf.mxu0
  %v2242 = vadd.f32 %v542, %v2241
  %v2243 = vpop.f32.mrf.mxu0
  %2244 = vmatprep.mubr.f32.mxu0 0.0
  %2245 = vmatmul.mubr.f32.gmra.mxu0 %v603
  %v2246 = vpop.f32.mrf.mxu0
  %v2247 = vadd.f32 %v542, %v2246
  %v2248 = vpop.f32.mrf.mxu0
  %2249 = vmatprep.mubr.f32.mxu0 0.0
  %2250 = vmatmul.mubr.f32.gmra.mxu0 %v606
  %v2251 = vpop.f32.mrf.mxu0
  %v2252 = vadd.f32 %v542, %v2251
  %v2253 = vpop.f32.mrf.mxu0
  %2254 = vmatprep.mubr.f32.mxu0 0.0
  %2255 = vmatmul.mubr.f32.gmra.mxu0 %v609
  %v2256 = vpop.f32.mrf.mxu0
  %v2257 = vadd.f32 %v542, %v2256
  %v2258 = vpop.f32.mrf.mxu0
  %2259 = vmatprep.mubr.f32.mxu0 0.0
  %2260 = vmatmul.mubr.f32.gmra.mxu0 %v612
  %v2261 = vpop.f32.mrf.mxu0
  %v2262 = vadd.f32 %v542, %v2261
  %v2263 = vpop.f32.mrf.mxu0
  %2264 = vmatprep.mubr.f32.mxu0 0.0
  %2265 = vmatmul.mubr.f32.gmra.mxu0 %v615
  %v2266 = vpop.f32.mrf.mxu0
  %v2267 = vadd.f32 %v542, %v2266
  %v2268 = vpop.f32.mrf.mxu0
  %2269 = vmatprep.mubr.f32.mxu0 0.0
  %2270 = vmatmul.mubr.f32.gmra.mxu0 %v618
  %v2271 = vpop.f32.mrf.mxu0
  %v2272 = vadd.f32 %v542, %v2271
  %v2273 = vpop.f32.mrf.mxu0
  %2274 = vmatprep.mubr.f32.mxu0 0.0
  %2275 = vmatmul.mubr.f32.gmra.mxu0 %v621
  %v2276 = vpop.f32.mrf.mxu0
  %v2277 = vadd.f32 %v542, %v2276
  %v2278 = vpop.f32.mrf.mxu0
  %2279 = vmatprep.mubr.f32.mxu0 0.0
  %2280 = vmatmul.mubr.f32.gmra.mxu0 %v624
  %v2281 = vpop.f32.mrf.mxu0
  %v2282 = vadd.f32 %v542, %v2281
  %v2283 = vpop.f32.mrf.mxu0
  %2284 = vmatprep.mubr.f32.mxu0 0.0
  %2285 = vmatmul.mubr.f32.gmra.mxu0 %v627
  %v2286 = vpop.f32.mrf.mxu0
  %v2287 = vadd.f32 %v542, %v2286
  %v2288 = vpop.f32.mrf.mxu0
  %2289 = vmatprep.mubr.f32.mxu0 0.0
  %2290 = vmatmul.mubr.f32.gmra.mxu0 %v630
  %v2291 = vpop.f32.mrf.mxu0
  %v2292 = vadd.f32 %v542, %v2291
  %v2293 = vpop.f32.mrf.mxu0
  %2294 = vmatprep.mubr.f32.mxu0 0.0
  %2295 = vmatmul.mubr.f32.gmra.mxu0 %v633
  %v2296 = vpop.f32.mrf.mxu0
  %v2297 = vadd.f32 %v542, %v2296
  %v2298 = vpop.f32.mrf.mxu0
  %2299 = vmatprep.mubr.f32.mxu0 0.0
  %2300 = vmatmul.mubr.f32.gmra.mxu0 %v636
  %v2301 = vpop.f32.mrf.mxu0
  %v2302 = vadd.f32 %v542, %v2301
  %v2303 = vpop.f32.mrf.mxu0
  %2304 = vmatprep.mubr.f32.mxu0 0.0
  %2305 = vmatmul.mubr.f32.gmra.mxu0 %v639
  %v2306 = vpop.f32.mrf.mxu0
  %v2307 = vadd.f32 %v542, %v2306
  %v2308 = vpop.f32.mrf.mxu0
  %2309 = vmatprep.mubr.f32.mxu0 0.0
  %2310 = vmatmul.mubr.f32.gmra.mxu0 %v642
  %v2311 = vpop.f32.mrf.mxu0
  %v2312 = vadd.f32 %v542, %v2311
  %v2313 = vpop.f32.mrf.mxu0
  %2314 = vmatprep.mubr.f32.mxu0 0.0
  %2315 = vmatmul.mubr.f32.gmra.mxu0 %v645
  %v2316 = vpop.f32.mrf.mxu0
  %v2317 = vadd.f32 %v542, %v2316
  %v2318 = vpop.f32.mrf.mxu0
  %2319 = vmatprep.mubr.f32.mxu0 0.0
  %2320 = vmatmul.mubr.f32.gmra.mxu0 %v648
  %v2321 = vpop.f32.mrf.mxu0
  %v2322 = vadd.f32 %v542, %v2321
  %v2323 = vpop.f32.mrf.mxu0
  %2324 = vmatprep.mubr.f32.mxu0 0.0
  %2325 = vmatmul.mubr.f32.gmra.mxu0 %v651
  %v2326 = vpop.f32.mrf.mxu0
  %v2327 = vadd.f32 %v542, %v2326
  %v2328 = vpop.f32.mrf.mxu0
  %2329 = vmatprep.mubr.f32.mxu0 0.0
  %2330 = vmatmul.mubr.f32.gmra.mxu0 %v654
  %v2331 = vpop.f32.mrf.mxu0
  %v2332 = vadd.f32 %v542, %v2331
  %v2333 = vpop.f32.mrf.mxu0
  %2334 = vmatprep.mubr.f32.mxu0 0.0
  %2335 = vmatmul.mubr.f32.gmra.mxu0 %v657
  %v2336 = vpop.f32.mrf.mxu0
  %v2337 = vadd.f32 %v542, %v2336
  %v2338 = vpop.f32.mrf.mxu0
  %2339 = vmatprep.mubr.f32.mxu0 0.0
  %2340 = vmatmul.mubr.f32.gmra.mxu0 %v660
  %v2341 = vpop.f32.mrf.mxu0
  %v2342 = vadd.f32 %v542, %v2341
  %v2343 = vpop.f32.mrf.mxu0
  %2344 = vmatprep.mubr.f32.mxu0 0.0
  %2345 = vmatmul.mubr.f32.gmra.mxu0 %v663
  %v2346 = vpop.f32.mrf.mxu0
  %v2347 = vadd.f32 %v542, %v2346
  %v2348 = vpop.f32.mrf.mxu0
  %2349 = vmatprep.mubr.f32.mxu0 0.0
  %2350 = vmatmul.mubr.f32.gmra.mxu0 %v666
  %v2351 = vpop.f32.mrf.mxu0
  %v2352 = vadd.f32 %v542, %v2351
  %v2353 = vpop.f32.mrf.mxu0
  %2354 = vmatprep.mubr.f32.mxu0 0.0
  %2355 = vmatmul.mubr.f32.gmra.mxu0 %v669
  %v2356 = vpop.f32.mrf.mxu0
  %v2357 = vadd.f32 %v542, %v2356
  %v2358 = vpop.f32.mrf.mxu0
  %2359 = vmatprep.mubr.f32.mxu0 0.0
  %2360 = vmatmul.mubr.f32.gmra.mxu0 %v672
  %v2361 = vpop.f32.mrf.mxu0
  %v2362 = vadd.f32 %v542, %v2361
  %v2363 = vpop.f32.mrf.mxu0
  %2364 = vmatprep.mubr.f32.mxu0 0.0
  %2365 = vmatmul.mubr.f32.gmra.mxu0 %v675
  %v2366 = vpop.f32.mrf.mxu0
  %v2367 = vadd.f32 %v542, %v2366
  %v2368 = vpop.f32.mrf.mxu0
  %2369 = vmatprep.mubr.f32.mxu0 0.0
  %2370 = vmatmul.mubr.f32.gmra.mxu0 %v678
  %v2371 = vpop.f32.mrf.mxu0
  %v2372 = vadd.f32 %v542, %v2371
  %v2373 = vpop.f32.mrf.mxu0
  %2374 = vmatprep.mubr.f32.mxu0 0.0
  %2375 = vmatmul.mubr.f32.gmra.mxu0 %v681
  %v2376 = vpop.f32.mrf.mxu0
  %v2377 = vadd.f32 %v542, %v2376
  %v2378 = vpop.f32.mrf.mxu0
  %2379 = vmatprep.mubr.f32.mxu0 0.0
  %2380 = vmatmul.mubr.f32.gmra.mxu0 %v684
  %v2381 = vpop.f32.mrf.mxu0
  %v2382 = vadd.f32 %v542, %v2381
  %v2383 = vpop.f32.mrf.mxu0
  %2384 = vmatprep.mubr.f32.mxu0 0.0
  %2385 = vmatmul.mubr.f32.gmra.mxu0 %v687
  %v2386 = vpop.f32.mrf.mxu0
  %v2387 = vadd.f32 %v542, %v2386
  %v2388 = vpop.f32.mrf.mxu0
  %2389 = vmatprep.mubr.f32.mxu0 0.0
  %2390 = vmatmul.mubr.f32.gmra.mxu0 %v690
  %v2391 = vpop.f32.mrf.mxu0
  %v2392 = vadd.f32 %v542, %v2391
  %v2393 = vpop.f32.mrf.mxu0
  %2394 = vmatprep.mubr.f32.mxu0 0.0
  %2395 = vmatmul.mubr.f32.gmra.mxu0 %v693
  %v2396 = vpop.f32.mrf.mxu0
  %v2397 = vadd.f32 %v542, %v2396
  %v2398 = vpop.f32.mrf.mxu0
  %2399 = vmatprep.mubr.f32.mxu0 0.0
  %2400 = vmatmul.mubr.f32.gmra.mxu0 %v696
  %v2401 = vpop.f32.mrf.mxu0
  %v2402 = vadd.f32 %v542, %v2401
  %v2403 = vpop.f32.mrf.mxu0
  %2404 = vmatprep.mubr.f32.mxu0 0.0
  %2405 = vmatmul.mubr.f32.gmra.mxu0 %v699
  %v2406 = vpop.f32.mrf.mxu0
  %v2407 = vadd.f32 %v542, %v2406
  %v2408 = vpop.f32.mrf.mxu0
  %2409 = vmatprep.mubr.f32.mxu0 0.0
  %2410 = vmatmul.mubr.f32.gmra.mxu0 %v702
  %v2411 = vpop.f32.mrf.mxu0
  %v2412 = vadd.f32 %v542, %v2411
  %v2413 = vpop.f32.mrf.mxu0
  %2414 = vmatprep.mubr.f32.mxu0 0.0
  %2415 = vmatmul.mubr.f32.gmra.mxu0 %v705
  %v2416 = vpop.f32.mrf.mxu0
  %v2417 = vadd.f32 %v542, %v2416
  %v2418 = vpop.f32.mrf.mxu0
  %2419 = vmatprep.mubr.f32.mxu0 0.0
  %2420 = vmatmul.mubr.f32.gmra.mxu0 %v708
  %v2421 = vpop.f32.mrf.mxu0
  %v2422 = vadd.f32 %v542, %v2421
  %v2423 = vpop.f32.mrf.mxu0
  %2424 = vmatprep.mubr.f32.mxu0 0.0
  %2425 = vmatmul.mubr.f32.gmra.mxu0 %v711
  %v2426 = vpop.f32.mrf.mxu0
  %v2427 = vadd.f32 %v542, %v2426
  %v2428 = vpop.f32.mrf.mxu0
  %2429 = vmatprep.mubr.f32.mxu0 0.0
  %2430 = vmatmul.mubr.f32.gmra.mxu0 %v714
  %v2431 = vpop.f32.mrf.mxu0
  %v2432 = vadd.f32 %v542, %v2431
  %v2433 = vpop.f32.mrf.mxu0
  %2434 = vmatprep.mubr.f32.mxu0 0.0
  %2435 = vmatmul.mubr.f32.gmra.mxu0 %v717
  %v2436 = vpop.f32.mrf.mxu0
  %v2437 = vadd.f32 %v542, %v2436
  %v2438 = vpop.f32.mrf.mxu0
  %2439 = vmatprep.mubr.f32.mxu0 0.0
  %2440 = vmatmul.mubr.f32.gmra.mxu0 %v720
  %v2441 = vpop.f32.mrf.mxu0
  %v2442 = vadd.f32 %v542, %v2441
  %v2443 = vpop.f32.mrf.mxu0
  %2444 = vmatprep.mubr.f32.mxu0 0.0
  %2445 = vmatmul.mubr.f32.gmra.mxu0 %v723
  %v2446 = vpop.f32.mrf.mxu0
  %v2447 = vadd.f32 %v542, %v2446
  %v2448 = vpop.f32.mrf.mxu0
  %2449 = vmatprep.mubr.f32.mxu0 0.0
  %2450 = vmatmul.mubr.f32.gmra.mxu0 %v726
  %v2451 = vpop.f32.mrf.mxu0
  %v2452 = vadd.f32 %v542, %v2451
  %v2453 = vpop.f32.mrf.mxu0
  %2454 = vmatprep.mubr.f32.mxu0 0.0
  %2455 = vmatmul.mubr.f32.gmra.mxu0 %v729
  %v2456 = vpop.f32.mrf.mxu0
  %v2457 = vadd.f32 %v542, %v2456
  %v2458 = vpop.f32.mrf.mxu0
  %2459 = vmatprep.mubr.f32.mxu0 0.0
  %2460 = vmatmul.mubr.f32.gmra.mxu0 %v732
  %v2461 = vpop.f32.mrf.mxu0
  %v2462 = vadd.f32 %v542, %v2461
  %v2463 = vpop.f32.mrf.mxu0
  %2464 = vmatprep.mubr.f32.mxu0 0.0
  %2465 = vmatmul.mubr.f32.gmra.mxu0 %v735
  %v2466 = vpop.f32.mrf.mxu0
  %v2467 = vadd.f32 %v542, %v2466
  %v2468 = vpop.f32.mrf.mxu0
  %2469 = vmatprep.mubr.f32.mxu0 0.0
  %2470 = vmatmul.mubr.f32.gmra.mxu0 %v738
  %v2471 = vpop.f32.mrf.mxu0
  %v2472 = vadd.f32 %v542, %v2471
  %v2473 = vpop.f32.mrf.mxu0
  %2474 = vmatprep.mubr.f32.mxu0 0.0
  %2475 = vmatmul.mubr.f32.gmra.mxu0 %v741
  %v2476 = vpop.f32.mrf.mxu0
  %v2477 = vadd.f32 %v542, %v2476
  %v2478 = vpop.f32.mrf.mxu0
  %2479 = vmatprep.mubr.f32.mxu0 0.0
  %2480 = vmatmul.mubr.f32.gmra.mxu0 %v744
  %v2481 = vpop.f32.mrf.mxu0
  %v2482 = vadd.f32 %v542, %v2481
  %v2483 = vpop.f32.mrf.mxu0
  %2484 = vmatprep.mubr.f32.mxu0 0.0
  %2485 = vmatmul.mubr.f32.gmra.mxu0 %v747
  %v2486 = vpop.f32.mrf.mxu0
  %v2487 = vadd.f32 %v542, %v2486
  %v2488 = vpop.f32.mrf.mxu0
  %2489 = vmatprep.mubr.f32.mxu0 0.0
  %2490 = vmatmul.mubr.f32.gmra.mxu0 %v750
  %v2491 = vpop.f32.mrf.mxu0
  %v2492 = vadd.f32 %v542, %v2491
  %v2493 = vpop.f32.mrf.mxu0
  %2494 = vmatprep.mubr.f32.mxu0 0.0
  %2495 = vmatmul.mubr.f32.gmra.mxu0 %v753
  %v2496 = vpop.f32.mrf.mxu0
  %v2497 = vadd.f32 %v542, %v2496
  %v2498 = vpop.f32.mrf.mxu0
  %2499 = vmatprep.mubr.f32.mxu0 0.0
  %2500 = vmatmul.mubr.f32.gmra.mxu0 %v756
  %v2501 = vpop.f32.mrf.mxu0
  %v2502 = vadd.f32 %v542, %v2501
  %v2503 = vpop.f32.mrf.mxu0
  %2504 = vmatprep.mubr.f32.mxu0 0.0
  %2505 = vmatmul.mubr.f32.gmra.mxu0 %v759
  %v2506 = vpop.f32.mrf.mxu0
  %v2507 = vadd.f32 %v542, %v2506
  %v2508 = vpop.f32.mrf.mxu0
  %2509 = vmatprep.mubr.f32.mxu0 0.0
  %2510 = vmatmul.mubr.f32.gmra.mxu0 %v762
  %v2511 = vpop.f32.mrf.mxu0
  %v2512 = vadd.f32 %v542, %v2511
  %v2513 = vpop.f32.mrf.mxu0
  %2514 = vmatprep.mubr.f32.mxu0 0.0
  %2515 = vmatmul.mubr.f32.gmra.mxu0 %v765
  %v2516 = vpop.f32.mrf.mxu0
  %v2517 = vadd.f32 %v542, %v2516
  %v2518 = vpop.f32.mrf.mxu0
  %2519 = vmatprep.mubr.f32.mxu0 0.0
  %2520 = vmatmul.mubr.f32.gmra.mxu0 %v768
  %v2521 = vpop.f32.mrf.mxu0
  %v2522 = vadd.f32 %v542, %v2521
  %v2523 = vpop.f32.mrf.mxu0
  %2524 = vmatprep.mubr.f32.mxu0 0.0
  %2525 = vmatmul.mubr.f32.gmra.mxu0 %v771
  %v2526 = vpop.f32.mrf.mxu0
  %v2527 = vadd.f32 %v542, %v2526
  %v2528 = vpop.f32.mrf.mxu0
  %2529 = vmatprep.mubr.f32.mxu0 0.0
  %2530 = vmatmul.mubr.f32.gmra.mxu0 %v774
  %v2531 = vpop.f32.mrf.mxu0
  %v2532 = vadd.f32 %v542, %v2531
  %v2533 = vpop.f32.mrf.mxu0
  %2534 = vmatprep.mubr.f32.mxu0 0.0
  %2535 = vmatmul.mubr.f32.gmra.mxu0 %v777
  %v2536 = vpop.f32.mrf.mxu0
  %v2537 = vadd.f32 %v542, %v2536
  %v2538 = vpop.f32.mrf.mxu0
  %2539 = vmatprep.mubr.f32.mxu0 0.0
  %2540 = vmatmul.mubr.f32.gmra.mxu0 %v780
  %v2541 = vpop.f32.mrf.mxu0
  %v2542 = vadd.f32 %v542, %v2541
  %v2543 = vpop.f32.mrf.mxu0
  %2544 = vmatprep.mubr.f32.mxu0 0.0
  %2545 = vmatmul.mubr.f32.gmra.mxu0 %v783
  %v2546 = vpop.f32.mrf.mxu0
  %v2547 = vadd.f32 %v542, %v2546
  %v2548 = vpop.f32.mrf.mxu0
  %2549 = vmatprep.mubr.f32.mxu0 0.0
  %2550 = vmatmul.mubr.f32.gmra.mxu0 %v786
  %v2551 = vpop.f32.mrf.mxu0
  %v2552 = vadd.f32 %v542, %v2551
  %v2553 = vpop.f32.mrf.mxu0
  %2554 = vmatprep.mubr.f32.mxu0 0.0
  %2555 = vmatmul.mubr.f32.gmra.mxu0 %v789
  %v2556 = vpop.f32.mrf.mxu0
  %v2557 = vadd.f32 %v542, %v2556
  %v2558 = vpop.f32.mrf.mxu0
  %2559 = vmatprep.mubr.f32.mxu0 0.0
  %2560 = vmatmul.mubr.f32.gmra.mxu0 %v792
  %v2561 = vpop.f32.mrf.mxu0
  %v2562 = vadd.f32 %v542, %v2561
  %v2563 = vpop.f32.mrf.mxu0
  %2564 = vmatprep.mubr.f32.mxu0 0.0
  %2565 = vmatmul.mubr.f32.gmra.mxu0 %v795
  %v2566 = vpop.f32.mrf.mxu0
  %v2567 = vadd.f32 %v542, %v2566
  %v2568 = vpop.f32.mrf.mxu0
  %2569 = vmatprep.mubr.f32.mxu0 0.0
  %2570 = vmatmul.mubr.f32.gmra.mxu0 %v798
  %v2571 = vpop.f32.mrf.mxu0
  %v2572 = vadd.f32 %v542, %v2571
  %v2573 = vpop.f32.mrf.mxu0
  %2574 = vmatprep.mubr.f32.mxu0 0.0
  %2575 = vmatmul.mubr.f32.gmra.mxu0 %v801
  %v2576 = vpop.f32.mrf.mxu0
  %v2577 = vadd.f32 %v542, %v2576
  %v2578 = vpop.f32.mrf.mxu0
  %2579 = vmatprep.mubr.f32.mxu0 0.0
  %2580 = vmatmul.mubr.f32.gmra.mxu0 %v804
  %v2581 = vpop.f32.mrf.mxu0
  %v2582 = vadd.f32 %v542, %v2581
  %v2583 = vpop.f32.mrf.mxu0
  %2584 = vmatprep.mubr.f32.mxu0 0.0
  %2585 = vmatmul.mubr.f32.gmra.mxu0 %v807
  %v2586 = vpop.f32.mrf.mxu0
  %v2587 = vadd.f32 %v542, %v2586
  %v2588 = vpop.f32.mrf.mxu0
  %2589 = vmatprep.mubr.f32.mxu0 0.0
  %2590 = vmatmul.mubr.f32.gmra.mxu0 %v810
  %v2591 = vpop.f32.mrf.mxu0
  %v2592 = vadd.f32 %v542, %v2591
  %v2593 = vpop.f32.mrf.mxu0
  %2594 = vmatprep.mubr.f32.mxu0 0.0
  %2595 = vmatmul.mubr.f32.gmra.mxu0 %v813
  %v2596 = vpop.f32.mrf.mxu0
  %v2597 = vadd.f32 %v542, %v2596
  %v2598 = vpop.f32.mrf.mxu0
  %2599 = vmatprep.mubr.f32.mxu0 0.0
  %2600 = vmatmul.mubr.f32.gmra.mxu0 %v816
  %v2601 = vpop.f32.mrf.mxu0
  %v2602 = vadd.f32 %v542, %v2601
  %v2603 = vpop.f32.mrf.mxu0
  %2604 = vmatprep.mubr.f32.mxu0 0.0
  %2605 = vmatmul.mubr.f32.gmra.mxu0 %v819
  %v2606 = vpop.f32.mrf.mxu0
  %v2607 = vadd.f32 %v542, %v2606
  %v2608 = vpop.f32.mrf.mxu0
  %2609 = vmatprep.mubr.f32.mxu0 0.0
  %2610 = vmatmul.mubr.f32.gmra.mxu0 %v822
  %v2611 = vpop.f32.mrf.mxu0
  %v2612 = vadd.f32 %v542, %v2611
  %v2613 = vpop.f32.mrf.mxu0
  %2614 = vmatprep.mubr.f32.mxu0 0.0
  %2615 = vmatmul.mubr.f32.gmra.mxu0 %v825
  %v2616 = vpop.f32.mrf.mxu0
  %v2617 = vadd.f32 %v542, %v2616
  %v2618 = vpop.f32.mrf.mxu0
  %2619 = vmatprep.mubr.f32.mxu0 0.0
  %2620 = vmatmul.mubr.f32.gmra.mxu0 %v828
  %v2621 = vpop.f32.mrf.mxu0
  %v2622 = vadd.f32 %v542, %v2621
  %v2623 = vpop.f32.mrf.mxu0
  %2624 = vmatprep.mubr.f32.mxu0 0.0
  %2625 = vmatmul.mubr.f32.gmra.mxu0 %v831
  %v2626 = vpop.f32.mrf.mxu0
  %v2627 = vadd.f32 %v542, %v2626
  %v2628 = vpop.f32.mrf.mxu0
  %2629 = vmatprep.mubr.f32.mxu0 0.0
  %2630 = vmatmul.mubr.f32.gmra.mxu0 %v834
  %v2631 = vpop.f32.mrf.mxu0
  %v2632 = vadd.f32 %v542, %v2631
  %v2633 = vpop.f32.mrf.mxu0
  %2634 = vmatprep.mubr.f32.mxu0 0.0
  %2635 = vmatmul.mubr.f32.gmra.mxu0 %v837
  %v2636 = vpop.f32.mrf.mxu0
  %v2637 = vadd.f32 %v542, %v2636
  %v2638 = vpop.f32.mrf.mxu0
  %2639 = vmatprep.mubr.f32.mxu0 0.0
  %2640 = vmatmul.mubr.f32.gmra.mxu0 %v840
  %v2641 = vpop.f32.mrf.mxu0
  %v2642 = vadd.f32 %v542, %v2641
  %v2643 = vpop.f32.mrf.mxu0
  %2644 = vmatprep.mubr.f32.mxu0 0.0
  %2645 = vmatmul.mubr.f32.gmra.mxu0 %v843
  %v2646 = vpop.f32.mrf.mxu0
  %v2647 = vadd.f32 %v542, %v2646
  %v2648 = vpop.f32.mrf.mxu0
  %2649 = vmatprep.mubr.f32.mxu0 0.0
  %2650 = vmatmul.mubr.f32.gmra.mxu0 %v846
  %v2651 = vpop.f32.mrf.mxu0
  %v2652 = vadd.f32 %v542, %v2651
  %v2653 = vpop.f32.mrf.mxu0
  %2654 = vmatprep.mubr.f32.mxu0 0.0
  %2655 = vmatmul.mubr.f32.gmra.mxu0 %v849
  %v2656 = vpop.f32.mrf.mxu0
  %v2657 = vadd.f32 %v542, %v2656
  %v2658 = vpop.f32.mrf.mxu0
  %2659 = vmatprep.mubr.f32.mxu0 0.0
  %2660 = vmatmul.mubr.f32.gmra.mxu0 %v852
  %v2661 = vpop.f32.mrf.mxu0
  %v2662 = vadd.f32 %v542, %v2661
  %v2663 = vpop.f32.mrf.mxu0
  %2664 = vmatprep.mubr.f32.mxu0 0.0
  %2665 = vmatmul.mubr.f32.gmra.mxu0 %v855
  %v2666 = vpop.f32.mrf.mxu0
  %v2667 = vadd.f32 %v542, %v2666
  %v2668 = vpop.f32.mrf.mxu0
  %2669 = vmatprep.mubr.f32.mxu0 0.0
  %2670 = vmatmul.mubr.f32.gmra.mxu0 %v858
  %v2671 = vpop.f32.mrf.mxu0
  %v2672 = vadd.f32 %v542, %v2671
  %v2673 = vpop.f32.mrf.mxu0
  %2674 = vmatprep.mubr.f32.mxu0 0.0
  %2675 = vmatmul.mubr.f32.gmra.mxu0 %v861
  %v2676 = vpop.f32.mrf.mxu0
  %v2677 = vadd.f32 %v542, %v2676
  %v2678 = vpop.f32.mrf.mxu0
  %2679 = vmatprep.mubr.f32.mxu0 0.0
  %2680 = vmatmul.mubr.f32.gmra.mxu0 %v864
  %v2681 = vpop.f32.mrf.mxu0
  %v2682 = vadd.f32 %v542, %v2681
  %v2683 = vpop.f32.mrf.mxu0
  %2684 = vmatprep.mubr.f32.mxu0 0.0
  %2685 = vmatmul.mubr.f32.gmra.mxu0 %v867
  %v2686 = vpop.f32.mrf.mxu0
  %v2687 = vadd.f32 %v542, %v2686
  %v2688 = vpop.f32.mrf.mxu0
  %2689 = vmatprep.mubr.f32.mxu0 0.0
  %2690 = vmatmul.mubr.f32.gmra.mxu0 %v870
  %v2691 = vpop.f32.mrf.mxu0
  %v2692 = vadd.f32 %v542, %v2691
  %v2693 = vpop.f32.mrf.mxu0
  %2694 = vmatprep.mubr.f32.mxu0 0.0
  %2695 = vmatmul.mubr.f32.gmra.mxu0 %v873
  %v2696 = vpop.f32.mrf.mxu0
  %v2697 = vadd.f32 %v542, %v2696
  %v2698 = vpop.f32.mrf.mxu0
  %2699 = vmatprep.mubr.f32.mxu0 0.0
  %2700 = vmatmul.mubr.f32.gmra.mxu0 %v876
  %v2701 = vpop.f32.mrf.mxu0
  %v2702 = vadd.f32 %v542, %v2701
  %v2703 = vpop.f32.mrf.mxu0
  %2704 = vmatprep.mubr.f32.mxu0 0.0
  %2705 = vmatmul.mubr.f32.gmra.mxu0 %v879
  %v2706 = vpop.f32.mrf.mxu0
  %v2707 = vadd.f32 %v542, %v2706
  %v2708 = vpop.f32.mrf.mxu0
  %2709 = vmatprep.mubr.f32.mxu0 0.0
  %2710 = vmatmul.mubr.f32.gmra.mxu0 %v882
  %v2711 = vpop.f32.mrf.mxu0
  %v2712 = vadd.f32 %v542, %v2711
  %v2713 = vpop.f32.mrf.mxu0
  %2714 = vmatprep.mubr.f32.mxu0 0.0
  %2715 = vmatmul.mubr.f32.gmra.mxu0 %v885
  %v2716 = vpop.f32.mrf.mxu0
  %v2717 = vadd.f32 %v542, %v2716
  %v2718 = vpop.f32.mrf.mxu0
  %2719 = vmatprep.mubr.f32.mxu0 0.0
  %2720 = vmatmul.mubr.f32.gmra.mxu0 %v888
  %v2721 = vpop.f32.mrf.mxu0
  %v2722 = vadd.f32 %v542, %v2721
  %v2723 = vpop.f32.mrf.mxu0
  %2724 = vmatprep.mubr.f32.mxu0 0.0
  %2725 = vmatmul.mubr.f32.gmra.mxu0 %v891
  %v2726 = vpop.f32.mrf.mxu0
  %v2727 = vadd.f32 %v542, %v2726
  %v2728 = vpop.f32.mrf.mxu0
  %2729 = vmatprep.mubr.f32.mxu0 0.0
  %2730 = vmatmul.mubr.f32.gmra.mxu0 %v894
  %v2731 = vpop.f32.mrf.mxu0
  %v2732 = vadd.f32 %v542, %v2731
  %v2733 = vpop.f32.mrf.mxu0
  %2734 = vmatprep.mubr.f32.mxu0 0.0
  %2735 = vmatmul.mubr.f32.gmra.mxu0 %v897
  %v2736 = vpop.f32.mrf.mxu0
  %v2737 = vadd.f32 %v542, %v2736
  %v2738 = vpop.f32.mrf.mxu0
  %2739 = vmatprep.mubr.f32.mxu0 0.0
  %2740 = vmatmul.mubr.f32.gmra.mxu0 %v900
  %v2741 = vpop.f32.mrf.mxu0
  %v2742 = vadd.f32 %v542, %v2741
  %v2743 = vpop.f32.mrf.mxu0
  %2744 = vmatprep.mubr.f32.mxu0 0.0
  %2745 = vmatmul.mubr.f32.gmra.mxu0 %v903
  %v2746 = vpop.f32.mrf.mxu0
  %v2747 = vadd.f32 %v542, %v2746
  %v2748 = vpop.f32.mrf.mxu0
  %2749 = vmatprep.mubr.f32.mxu0 0.0
  %2750 = vmatmul.mubr.f32.gmra.mxu0 %v906
  %v2751 = vpop.f32.mrf.mxu0
  %v2752 = vadd.f32 %v542, %v2751
  %v2753 = vpop.f32.mrf.mxu0
  %2754 = vmatprep.mubr.f32.mxu0 0.0
  %2755 = vmatmul.mubr.f32.gmra.mxu0 %v909
  %v2756 = vpop.f32.mrf.mxu0
  %v2757 = vadd.f32 %v542, %v2756
  %v2758 = vpop.f32.mrf.mxu0
  %2759 = vmatprep.mubr.f32.mxu0 0.0
  %2760 = vmatmul.mubr.f32.gmra.mxu0 %v912
  %v2761 = vpop.f32.mrf.mxu0
  %v2762 = vadd.f32 %v542, %v2761
  %v2763 = vpop.f32.mrf.mxu0
  %2764 = vmatprep.mubr.f32.mxu0 0.0
  %2765 = vmatmul.mubr.f32.gmra.mxu0 %v915
  %v2766 = vpop.f32.mrf.mxu0
  %v2767 = vadd.f32 %v542, %v2766
  %v2768 = vpop.f32.mrf.mxu0
  %2769 = vmatprep.mubr.f32.mxu0 0.0
  %2770 = vmatmul.mubr.f32.gmra.mxu0 %v918
  %v2771 = vpop.f32.mrf.mxu0
  %v2772 = vadd.f32 %v542, %v2771
  %v2773 = vpop.f32.mrf.mxu0
  %2774 = vmatprep.mubr.f32.mxu0 0.0
  %2775 = vmatmul.mubr.f32.gmra.mxu0 %v921
  %v2776 = vpop.f32.mrf.mxu0
  %v2777 = vadd.f32 %v542, %v2776
  %v2778 = vpop.f32.mrf.mxu0
  %2779 = vmatprep.mubr.f32.mxu0 0.0
  %2780 = vmatmul.mubr.f32.gmra.mxu0 %v924
  %v2781 = vpop.f32.mrf.mxu0
  %v2782 = vadd.f32 %v542, %v2781
  %v2783 = vpop.f32.mrf.mxu0
  %2784 = vmatprep.mubr.f32.mxu0 0.0
  %2785 = vmatmul.mubr.f32.gmra.mxu0 %v927
  %v2786 = vpop.f32.mrf.mxu0
  %v2787 = vadd.f32 %v542, %v2786
  %v2788 = vpop.f32.mrf.mxu0
  %2789 = vmatprep.mubr.f32.mxu0 0.0
  %2790 = vmatmul.mubr.f32.gmra.mxu0 %v930
  %v2791 = vpop.f32.mrf.mxu0
  %v2792 = vadd.f32 %v542, %v2791
  %v2793 = vpop.f32.mrf.mxu0
  %2794 = vmatprep.mubr.f32.mxu0 0.0
  %2795 = vmatmul.mubr.f32.gmra.mxu0 %v933
  %v2796 = vpop.f32.mrf.mxu0
  %v2797 = vadd.f32 %v542, %v2796
  %v2798 = vpop.f32.mrf.mxu0
  %2799 = vmatprep.mubr.f32.mxu0 0.0
  %2800 = vmatmul.mubr.f32.gmra.mxu0 %v936
  %v2801 = vpop.f32.mrf.mxu0
  %v2802 = vadd.f32 %v542, %v2801
  %v2803 = vpop.f32.mrf.mxu0
  %2804 = vmatprep.mubr.f32.mxu0 0.0
  %2805 = vmatmul.mubr.f32.gmra.mxu0 %v939
  %v2806 = vpop.f32.mrf.mxu0
  %v2807 = vadd.f32 %v542, %v2806
  %v2808 = vpop.f32.mrf.mxu0
  %2809 = vmatprep.mubr.f32.mxu0 0.0
  %2810 = vmatmul.mubr.f32.gmra.mxu0 %v942
  %v2811 = vpop.f32.mrf.mxu0
  %v2812 = vadd.f32 %v542, %v2811
  %v2813 = vpop.f32.mrf.mxu0
  %2814 = vmatprep.mubr.f32.mxu0 0.0
  %2815 = vmatmul.mubr.f32.gmra.mxu0 %v945
  %v2816 = vpop.f32.mrf.mxu0
  %v2817 = vadd.f32 %v542, %v2816
  %v2818 = vpop.f32.mrf.mxu0
  %2819 = vmatprep.mubr.f32.mxu0 0.0
  %2820 = vmatmul.mubr.f32.gmra.mxu0 %v948
  %v2821 = vpop.f32.mrf.mxu0
  %v2822 = vadd.f32 %v542, %v2821
  %v2823 = vpop.f32.mrf.mxu0
  %2824 = vmatprep.mubr.f32.mxu0 0.0
  %2825 = vmatmul.mubr.f32.gmra.mxu0 %v951
  %v2826 = vpop.f32.mrf.mxu0
  %v2827 = vadd.f32 %v542, %v2826
  %v2828 = vpop.f32.mrf.mxu0
  %2829 = vmatprep.mubr.f32.mxu0 0.0
  %2830 = vmatmul.mubr.f32.gmra.mxu0 %v954
  %v2831 = vpop.f32.mrf.mxu0
  %v2832 = vadd.f32 %v542, %v2831
  %v2833 = vpop.f32.mrf.mxu0
  %2834 = vmatprep.mubr.f32.mxu0 0.0
  %2835 = vmatmul.mubr.f32.gmra.mxu0 %v957
  %v2836 = vpop.f32.mrf.mxu0
  %v2837 = vadd.f32 %v542, %v2836
  %v2838 = vpop.f32.mrf.mxu0
  %2839 = vmatprep.mubr.f32.mxu0 0.0
  %2840 = vmatmul.mubr.f32.gmra.mxu0 %v960
  %v2841 = vpop.f32.mrf.mxu0
  %v2842 = vadd.f32 %v542, %v2841
  %v2843 = vpop.f32.mrf.mxu0
  %2844 = vmatprep.mubr.f32.mxu0 0.0
  %2845 = vmatmul.mubr.f32.gmra.mxu0 %v963
  %v2846 = vpop.f32.mrf.mxu0
  %v2847 = vadd.f32 %v542, %v2846
  %v2848 = vpop.f32.mrf.mxu0
  %2849 = vmatprep.mubr.f32.mxu0 0.0
  %2850 = vmatmul.mubr.f32.gmra.mxu0 %v966
  %v2851 = vpop.f32.mrf.mxu0
  %v2852 = vadd.f32 %v542, %v2851
  %v2853 = vpop.f32.mrf.mxu0
  %2854 = vmatprep.mubr.f32.mxu0 0.0
  %2855 = vmatmul.mubr.f32.gmra.mxu0 %v969
  %v2856 = vpop.f32.mrf.mxu0
  %v2857 = vadd.f32 %v542, %v2856
  %v2858 = vpop.f32.mrf.mxu0
  %2859 = vmatprep.mubr.f32.mxu0 0.0
  %2860 = vmatmul.mubr.f32.gmra.mxu0 %v972
  %v2861 = vpop.f32.mrf.mxu0
  %v2862 = vadd.f32 %v542, %v2861
  %v2863 = vpop.f32.mrf.mxu0
  %2864 = vmatprep.mubr.f32.mxu0 0.0
  %2865 = vmatmul.mubr.f32.gmra.mxu0 %v975
  %v2866 = vpop.f32.mrf.mxu0
  %v2867 = vadd.f32 %v542, %v2866
  %v2868 = vpop.f32.mrf.mxu0
  %2869 = vmatprep.mubr.f32.mxu0 0.0
  %2870 = vmatmul.mubr.f32.gmra.mxu0 %v978
  %v2871 = vpop.f32.mrf.mxu0
  %v2872 = vadd.f32 %v542, %v2871
  %v2873 = vpop.f32.mrf.mxu0
  %2874 = vmatprep.mubr.f32.mxu0 0.0
  %2875 = vmatmul.mubr.f32.gmra.mxu0 %v981
  %v2876 = vpop.f32.mrf.mxu0
  %v2877 = vadd.f32 %v542, %v2876
  %v2878 = vpop.f32.mrf.mxu0
  %2879 = vmatprep.mubr.f32.mxu0 0.0
  %2880 = vmatmul.mubr.f32.gmra.mxu0 %v984
  %v2881 = vpop.f32.mrf.mxu0
  %v2882 = vadd.f32 %v542, %v2881
  %v2883 = vpop.f32.mrf.mxu0
  %2884 = vmatprep.mubr.f32.mxu0 0.0
  %2885 = vmatmul.mubr.f32.gmra.mxu0 %v987
  %v2886 = vpop.f32.mrf.mxu0
  %v2887 = vadd.f32 %v542, %v2886
  %v2888 = vpop.f32.mrf.mxu0
  %2889 = vmatprep.mubr.f32.mxu0 0.0
  %2890 = vmatmul.mubr.f32.gmra.mxu0 %v990
  %v2891 = vpop.f32.mrf.mxu0
  %v2892 = vadd.f32 %v542, %v2891
  %v2893 = vpop.f32.mrf.mxu0
  %2894 = vmatprep.mubr.f32.mxu0 0.0
  %2895 = vmatmul.mubr.f32.gmra.mxu0 %v993
  %v2896 = vpop.f32.mrf.mxu0
  %v2897 = vadd.f32 %v542, %v2896
  %v2898 = vpop.f32.mrf.mxu0
  %2899 = vmatprep.mubr.f32.mxu0 0.0
  %2900 = vmatmul.mubr.f32.gmra.mxu0 %v996
  %v2901 = vpop.f32.mrf.mxu0
  %v2902 = vadd.f32 %v542, %v2901
  %v2903 = vpop.f32.mrf.mxu0
  %2904 = vmatprep.mubr.f32.mxu0 0.0
  %2905 = vmatmul.mubr.f32.gmra.mxu0 %v999
  %v2906 = vpop.f32.mrf.mxu0
  %v2907 = vadd.f32 %v542, %v2906
  %v2908 = vpop.f32.mrf.mxu0
  %2909 = vmatprep.mubr.f32.mxu0 0.0
  %2910 = vmatmul.mubr.f32.gmra.mxu0 %v1002
  %v2911 = vpop.f32.mrf.mxu0
  %v2912 = vadd.f32 %v542, %v2911
  %v2913 = vpop.f32.mrf.mxu0
  %2914 = vmatprep.mubr.f32.mxu0 0.0
  %2915 = vmatmul.mubr.f32.gmra.mxu0 %v1005
  %v2916 = vpop.f32.mrf.mxu0
  %v2917 = vadd.f32 %v542, %v2916
  %v2918 = vpop.f32.mrf.mxu0
  %2919 = vmatprep.mubr.f32.mxu0 0.0
  %2920 = vmatmul.mubr.f32.gmra.mxu0 %v1008
  %v2921 = vpop.f32.mrf.mxu0
  %v2922 = vadd.f32 %v542, %v2921
  %v2923 = vpop.f32.mrf.mxu0
  %2924 = vmatprep.mubr.f32.mxu0 0.0
  %2925 = vmatmul.mubr.f32.gmra.mxu0 %v1011
  %v2926 = vpop.f32.mrf.mxu0
  %v2927 = vadd.f32 %v542, %v2926
  %v2928 = vpop.f32.mrf.mxu0
  %2929 = vmatprep.mubr.f32.mxu0 0.0
  %2930 = vmatmul.mubr.f32.gmra.mxu0 %v1014
  %v2931 = vpop.f32.mrf.mxu0
  %v2932 = vadd.f32 %v542, %v2931
  %v2933 = vpop.f32.mrf.mxu0
  %2934 = vmatprep.mubr.f32.mxu0 0.0
  %2935 = vmatmul.mubr.f32.gmra.mxu0 %v1017
  %v2936 = vpop.f32.mrf.mxu0
  %v2937 = vadd.f32 %v542, %v2936
  %v2938 = vpop.f32.mrf.mxu0
  %2939 = vmatprep.mubr.f32.mxu0 0.0
  %2940 = vmatmul.mubr.f32.gmra.mxu0 %v1020
  %v2941 = vpop.f32.mrf.mxu0
  %v2942 = vadd.f32 %v542, %v2941
  %v2943 = vpop.f32.mrf.mxu0
  %2944 = vmatprep.mubr.f32.mxu0 0.0
  %2945 = vmatmul.mubr.f32.gmra.mxu0 %v1023
  %v2946 = vpop.f32.mrf.mxu0
  %v2947 = vadd.f32 %v542, %v2946
  %v2948 = vpop.f32.mrf.mxu0
  %2949 = vmatprep.mubr.f32.mxu0 0.0
  %2950 = vmatmul.mubr.f32.gmra.mxu0 %v1026
  %v2951 = vpop.f32.mrf.mxu0
  %v2952 = vadd.f32 %v542, %v2951
  %v2953 = vpop.f32.mrf.mxu0
  %2954 = vmatprep.mubr.f32.mxu0 0.0
  %2955 = vmatmul.mubr.f32.gmra.mxu0 %v1029
  %v2956 = vpop.f32.mrf.mxu0
  %v2957 = vadd.f32 %v542, %v2956
  %v2958 = vpop.f32.mrf.mxu0
  %2959 = vmatprep.mubr.f32.mxu0 0.0
  %2960 = vmatmul.mubr.f32.gmra.mxu0 %v1032
  %v2961 = vpop.f32.mrf.mxu0
  %v2962 = vadd.f32 %v542, %v2961
  %v2963 = vpop.f32.mrf.mxu0
  %2964 = vmatprep.mubr.f32.mxu0 0.0
  %2965 = vmatmul.mubr.f32.gmra.mxu0 %v1035
  %v2966 = vpop.f32.mrf.mxu0
  %v2967 = vadd.f32 %v542, %v2966
  %v2968 = vpop.f32.mrf.mxu0
  %2969 = vmatprep.mubr.f32.mxu0 0.0
  %2970 = vmatmul.mubr.f32.gmra.mxu0 %v1038
  %v2971 = vpop.f32.mrf.mxu0
  %v2972 = vadd.f32 %v542, %v2971
  %v2973 = vpop.f32.mrf.mxu0
  %2974 = vmatprep.mubr.f32.mxu0 0.0
  %2975 = vmatmul.mubr.f32.gmra.mxu0 %v1041
  %v2976 = vpop.f32.mrf.mxu0
  %v2977 = vadd.f32 %v542, %v2976
  %v2978 = vpop.f32.mrf.mxu0
  %2979 = vmatprep.mubr.f32.mxu0 0.0
  %2980 = vmatmul.mubr.f32.gmra.mxu0 %v1044
  %v2981 = vpop.f32.mrf.mxu0
  %v2982 = vadd.f32 %v542, %v2981
  %v2983 = vpop.f32.mrf.mxu0
  %2984 = vmatprep.mubr.f32.mxu0 0.0
  %2985 = vmatmul.mubr.f32.gmra.mxu0 %v1047
  %v2986 = vpop.f32.mrf.mxu0
  %v2987 = vadd.f32 %v542, %v2986
  %v2988 = vpop.f32.mrf.mxu0
  %2989 = vmatprep.mubr.f32.mxu0 0.0
  %2990 = vmatmul.mubr.f32.gmra.mxu0 %v1050
  %v2991 = vpop.f32.mrf.mxu0
  %v2992 = vadd.f32 %v542, %v2991
  %v2993 = vpop.f32.mrf.mxu0
  %2994 = vmatprep.mubr.f32.mxu0 0.0
  %2995 = vmatmul.mubr.f32.gmra.mxu0 %v1053
  %v2996 = vpop.f32.mrf.mxu0
  %v2997 = vadd.f32 %v542, %v2996
  %v2998 = vpop.f32.mrf.mxu0
  %2999 = vmatprep.mubr.f32.mxu0 0.0
  %3000 = vmatmul.mubr.f32.gmra.mxu0 %v1056
  %v3001 = vpop.f32.mrf.mxu0
  %v3002 = vadd.f32 %v542, %v3001
  %v3003 = vpop.f32.mrf.mxu0
  %3004 = vmatprep.mubr.f32.mxu0 0.0
  %3005 = vmatmul.mubr.f32.gmra.mxu0 %v1059
  %v3006 = vpop.f32.mrf.mxu0
  %v3007 = vadd.f32 %v542, %v3006
  %v3008 = vpop.f32.mrf.mxu0
  %3009 = vmatprep.mubr.f32.mxu0 0.0
  %3010 = vmatmul.mubr.f32.gmra.mxu0 %v1062
  %v3011 = vpop.f32.mrf.mxu0
  %v3012 = vadd.f32 %v542, %v3011
  %v3013 = vpop.f32.mrf.mxu0
  %3014 = vmatprep.mubr.f32.mxu0 0.0
  %3015 = vmatmul.mubr.f32.gmra.mxu0 %v1065
  %v3016 = vpop.f32.mrf.mxu0
  %v3017 = vadd.f32 %v542, %v3016
  %v3018 = vpop.f32.mrf.mxu0
  %3019 = vmatprep.mubr.f32.mxu0 0.0
  %3020 = vmatmul.mubr.f32.gmra.mxu0 %v1068
  %v3021 = vpop.f32.mrf.mxu0
  %v3022 = vadd.f32 %v542, %v3021
  %v3023 = vpop.f32.mrf.mxu0
  %3024 = vmatprep.mubr.f32.mxu0 0.0
  %3025 = vmatmul.mubr.f32.gmra.mxu0 %v1071
  %v3026 = vpop.f32.mrf.mxu0
  %v3027 = vadd.f32 %v542, %v3026
  %v3028 = vpop.f32.mrf.mxu0
  %3029 = vmatprep.mubr.f32.mxu0 0.0
  %3030 = vmatmul.mubr.f32.gmra.mxu0 %v1074
  %v3031 = vpop.f32.mrf.mxu0
  %v3032 = vadd.f32 %v542, %v3031
  %v3033 = vpop.f32.mrf.mxu0
  %3034 = vmatprep.mubr.f32.mxu0 0.0
  %3035 = vmatmul.mubr.f32.gmra.mxu0 %v1077
  %v3036 = vpop.f32.mrf.mxu0
  %v3037 = vadd.f32 %v542, %v3036
  %v3038 = vpop.f32.mrf.mxu0
  %3039 = vmatprep.mubr.f32.mxu0 0.0
  %3040 = vmatmul.mubr.f32.gmra.mxu0 %v1080
  %v3041 = vpop.f32.mrf.mxu0
  %v3042 = vadd.f32 %v542, %v3041
  %v3043 = vpop.f32.mrf.mxu0
  %3044 = vmatprep.mubr.f32.mxu0 0.0
  %3045 = vmatmul.mubr.f32.gmra.mxu0 %v1083
  %v3046 = vpop.f32.mrf.mxu0
  %v3047 = vadd.f32 %v542, %v3046
  %v3048 = vpop.f32.mrf.mxu0
  %3049 = vmatprep.mubr.f32.mxu0 0.0
  %3050 = vmatmul.mubr.f32.gmra.mxu0 %v1086
  %v3051 = vpop.f32.mrf.mxu0
  %v3052 = vadd.f32 %v542, %v3051
  %v3053 = vpop.f32.mrf.mxu0
  %3054 = vmatprep.mubr.f32.mxu0 0.0
  %3055 = vmatmul.mubr.f32.gmra.mxu0 %v1089
  %v3056 = vpop.f32.mrf.mxu0
  %v3057 = vadd.f32 %v542, %v3056
  %v3058 = vpop.f32.mrf.mxu0
  %3059 = vmatprep.mubr.f32.mxu0 0.0
  %3060 = vmatmul.mubr.f32.gmra.mxu0 %v1092
  %v3061 = vpop.f32.mrf.mxu0
  %v3062 = vadd.f32 %v542, %v3061
  %v3063 = vpop.f32.mrf.mxu0
  %3064 = vmatprep.mubr.f32.mxu0 0.0
  %3065 = vmatmul.mubr.f32.gmra.mxu0 %v1095
  %v3066 = vpop.f32.mrf.mxu0
  %v3067 = vadd.f32 %v542, %v3066
  %v3068 = vpop.f32.mrf.mxu0
  %3069 = vmatprep.mubr.f32.mxu0 0.0
  %3070 = vmatmul.mubr.f32.gmra.mxu0 %v1098
  %v3071 = vpop.f32.mrf.mxu0
  %v3072 = vadd.f32 %v542, %v3071
  %v3073 = vpop.f32.mrf.mxu0
  %3074 = vmatprep.mubr.f32.mxu0 0.0
  %3075 = vmatmul.mubr.f32.gmra.mxu0 %v1101
  %v3076 = vpop.f32.mrf.mxu0
  %v3077 = vadd.f32 %v542, %v3076
  %v3078 = vpop.f32.mrf.mxu0
  %3079 = vmatprep.mubr.f32.mxu0 0.0
  %3080 = vmatmul.mubr.f32.gmra.mxu0 %v1104
  %v3081 = vpop.f32.mrf.mxu0
  %v3082 = vadd.f32 %v542, %v3081
  %v3083 = vpop.f32.mrf.mxu0
  %3084 = vmatprep.mubr.f32.mxu0 0.0
  %3085 = vmatmul.mubr.f32.gmra.mxu0 %v1107
  %v3086 = vpop.f32.mrf.mxu0
  %v3087 = vadd.f32 %v542, %v3086
  %v3088 = vpop.f32.mrf.mxu0
  %3089 = vmatprep.mubr.f32.mxu0 0.0
  %3090 = vmatmul.mubr.f32.gmra.mxu0 %v1110
  %v3091 = vpop.f32.mrf.mxu0
  %v3092 = vadd.f32 %v542, %v3091
  %v3093 = vpop.f32.mrf.mxu0
  %3094 = vmatprep.mubr.f32.mxu0 0.0
  %3095 = vmatmul.mubr.f32.gmra.mxu0 %v1113
  %v3096 = vpop.f32.mrf.mxu0
  %v3097 = vadd.f32 %v542, %v3096
  %v3098 = vpop.f32.mrf.mxu0
  %3099 = vmatprep.mubr.f32.mxu0 0.0
  %3100 = vmatmul.mubr.f32.gmra.mxu0 %v1116
  %v3101 = vpop.f32.mrf.mxu0
  %v3102 = vadd.f32 %v542, %v3101
  %v3103 = vpop.f32.mrf.mxu0
  %3104 = vmatprep.mubr.f32.mxu0 0.0
  %3105 = vmatmul.mubr.f32.gmra.mxu0 %v1119
  %v3106 = vpop.f32.mrf.mxu0
  %v3107 = vadd.f32 %v542, %v3106
  %v3108 = vpop.f32.mrf.mxu0
  %3109 = vmatprep.mubr.f32.mxu0 0.0
  %3110 = vmatmul.mubr.f32.gmra.mxu0 %v1122
  %v3111 = vpop.f32.mrf.mxu0
  %v3112 = vadd.f32 %v542, %v3111
  %v3113 = vpop.f32.mrf.mxu0
  %3114 = vmatprep.mubr.f32.mxu0 0.0
  %3115 = vmatmul.mubr.f32.gmra.mxu0 %v1125
  %v3116 = vpop.f32.mrf.mxu0
  %v3117 = vadd.f32 %v542, %v3116
  %v3118 = vpop.f32.mrf.mxu0
  %3119 = vmatprep.mubr.f32.mxu0 0.0
  %3120 = vmatmul.mubr.f32.gmra.mxu0 %v1128
  %v3121 = vpop.f32.mrf.mxu0
  %v3122 = vadd.f32 %v542, %v3121
  %v3123 = vpop.f32.mrf.mxu0
  %3124 = vmatprep.mubr.f32.mxu0 0.0
  %3125 = vmatmul.mubr.f32.gmra.mxu0 %v1131
  %v3126 = vpop.f32.mrf.mxu0
  %v3127 = vadd.f32 %v542, %v3126
  %v3128 = vpop.f32.mrf.mxu0
  %3129 = vmatprep.mubr.f32.mxu0 0.0
  %3130 = vmatmul.mubr.f32.gmra.mxu0 %v1134
  %v3131 = vpop.f32.mrf.mxu0
  %v3132 = vadd.f32 %v542, %v3131
  %v3133 = vpop.f32.mrf.mxu0
  %3134 = vmatprep.mubr.f32.mxu0 0.0
  %3135 = vmatmul.mubr.f32.gmra.mxu0 %v1137
  %v3136 = vpop.f32.mrf.mxu0
  %v3137 = vadd.f32 %v542, %v3136
  %v3138 = vpop.f32.mrf.mxu0
  %3139 = vmatprep.mubr.f32.mxu0 0.0
  %3140 = vmatmul.mubr.f32.gmra.mxu0 %v1140
  %v3141 = vpop.f32.mrf.mxu0
  %v3142 = vadd.f32 %v542, %v3141
  %v3143 = vpop.f32.mrf.mxu0
  %3144 = vmatprep.mubr.f32.mxu0 0.0
  %3145 = vmatmul.mubr.f32.gmra.mxu0 %v1143
  %v3146 = vpop.f32.mrf.mxu0
  %v3147 = vadd.f32 %v542, %v3146
  %v3148 = vpop.f32.mrf.mxu0
  %3149 = vmatprep.mubr.f32.mxu0 0.0
  %3150 = vmatmul.mubr.f32.gmra.mxu0 %v1146
  %v3151 = vpop.f32.mrf.mxu0
  %v3152 = vadd.f32 %v542, %v3151
  %v3153 = vpop.f32.mrf.mxu0
  %3154 = vmatprep.mubr.f32.mxu0 0.0
  %3155 = vmatmul.mubr.f32.gmra.mxu0 %v1149
  %v3156 = vpop.f32.mrf.mxu0
  %v3157 = vadd.f32 %v542, %v3156
  %v3158 = vpop.f32.mrf.mxu0
  %3159 = vmatprep.mubr.f32.mxu0 0.0
  %3160 = vmatmul.mubr.f32.gmra.mxu0 %v1152
  %v3161 = vpop.f32.mrf.mxu0
  %v3162 = vadd.f32 %v542, %v3161
  %v3163 = vpop.f32.mrf.mxu0
  %3164 = vmatprep.mubr.f32.mxu0 0.0
  %3165 = vmatmul.mubr.f32.gmra.mxu0 %v1155
  %v3166 = vpop.f32.mrf.mxu0
  %v3167 = vadd.f32 %v542, %v3166
  %v3168 = vpop.f32.mrf.mxu0
  %3169 = vmatprep.mubr.f32.mxu0 0.0
  %3170 = vmatmul.mubr.f32.gmra.mxu0 %v1158
  %v3171 = vpop.f32.mrf.mxu0
  %v3172 = vadd.f32 %v542, %v3171
  %v3173 = vpop.f32.mrf.mxu0
  %3174 = vmatprep.mubr.f32.mxu0 0.0
  %3175 = vmatmul.mubr.f32.gmra.mxu0 %v1161
  %v3176 = vpop.f32.mrf.mxu0
  %v3177 = vadd.f32 %v542, %v3176
  %v3178 = vpop.f32.mrf.mxu0
  %3179 = vmatprep.mubr.f32.mxu0 0.0
  %3180 = vmatmul.mubr.f32.gmra.mxu0 %v1164
  %v3181 = vpop.f32.mrf.mxu0
  %v3182 = vadd.f32 %v542, %v3181
  %v3183 = vpop.f32.mrf.mxu0
  %3184 = vmatprep.mubr.f32.mxu0 0.0
  %3185 = vmatmul.mubr.f32.gmra.mxu0 %v1167
  %v3186 = vpop.f32.mrf.mxu0
  %v3187 = vadd.f32 %v542, %v3186
  %v3188 = vpop.f32.mrf.mxu0
  %3189 = vmatprep.mubr.f32.mxu0 0.0
  %3190 = vmatmul.mubr.f32.gmra.mxu0 %v1170
  %v3191 = vpop.f32.mrf.mxu0
  %v3192 = vadd.f32 %v542, %v3191
  %v3193 = vpop.f32.mrf.mxu0
  %3194 = vmatprep.mubr.f32.mxu0 0.0
  %3195 = vmatmul.mubr.f32.gmra.mxu0 %v1173
  %v3196 = vpop.f32.mrf.mxu0
  %v3197 = vadd.f32 %v542, %v3196
  %v3198 = vpop.f32.mrf.mxu0
  %3199 = vmatprep.mubr.f32.mxu0 0.0
  %3200 = vmatmul.mubr.f32.gmra.mxu0 %v1176
  %v3201 = vpop.f32.mrf.mxu0
  %v3202 = vadd.f32 %v542, %v3201
  %v3203 = vpop.f32.mrf.mxu0
  %3204 = vmatprep.mubr.f32.mxu0 0.0
  %3205 = vmatmul.mubr.f32.gmra.mxu0 %v1179
  %v3206 = vpop.f32.mrf.mxu0
  %v3207 = vadd.f32 %v542, %v3206
  %v3208 = vpop.f32.mrf.mxu0
  %3209 = vmatprep.mubr.f32.mxu0 0.0
  %3210 = vmatmul.mubr.f32.gmra.mxu0 %v1182
  %v3211 = vpop.f32.mrf.mxu0
  %v3212 = vadd.f32 %v542, %v3211
  %v3213 = vpop.f32.mrf.mxu0
  %3214 = vmatprep.mubr.f32.mxu0 0.0
  %3215 = vmatmul.mubr.f32.gmra.mxu0 %v1185
  %v3216 = vpop.f32.mrf.mxu0
  %v3217 = vadd.f32 %v542, %v3216
  %v3218 = vpop.f32.mrf.mxu0
  %3219 = vmatprep.mubr.f32.mxu0 0.0
  %3220 = vmatmul.mubr.f32.gmra.mxu0 %v1188
  %v3221 = vpop.f32.mrf.mxu0
  %v3222 = vadd.f32 %v542, %v3221
  %v3223 = vpop.f32.mrf.mxu0
  %3224 = vmatprep.mubr.f32.mxu0 0.0
  %3225 = vmatmul.mubr.f32.gmra.mxu0 %v1191
  %v3226 = vpop.f32.mrf.mxu0
  %v3227 = vadd.f32 %v542, %v3226
  %v3228 = vpop.f32.mrf.mxu0
  %3229 = vmatprep.mubr.f32.mxu0 0.0
  %3230 = vmatmul.mubr.f32.gmra.mxu0 %v1194
  %v3231 = vpop.f32.mrf.mxu0
  %v3232 = vadd.f32 %v542, %v3231
  %v3233 = vpop.f32.mrf.mxu0
  %3234 = vmatprep.mubr.f32.mxu0 0.0
  %3235 = vmatmul.mubr.f32.gmra.mxu0 %v1197
  %v3236 = vpop.f32.mrf.mxu0
  %v3237 = vadd.f32 %v542, %v3236
  %v3238 = vpop.f32.mrf.mxu0
  %3239 = vmatprep.mubr.f32.mxu0 0.0
  %3240 = vmatmul.mubr.f32.gmra.mxu0 %v1200
  %v3241 = vpop.f32.mrf.mxu0
  %v3242 = vadd.f32 %v542, %v3241
  %v3243 = vpop.f32.mrf.mxu0
  %3244 = vmatprep.mubr.f32.mxu0 0.0
  %3245 = vmatmul.mubr.f32.gmra.mxu0 %v1203
  %v3246 = vpop.f32.mrf.mxu0
  %v3247 = vadd.f32 %v542, %v3246
  %v3248 = vpop.f32.mrf.mxu0
  %3249 = vmatprep.mubr.f32.mxu0 0.0
  %3250 = vmatmul.mubr.f32.gmra.mxu0 %v1206
  %v3251 = vpop.f32.mrf.mxu0
  %v3252 = vadd.f32 %v542, %v3251
  %v3253 = vpop.f32.mrf.mxu0
  %3254 = vmatprep.mubr.f32.mxu0 0.0
  %3255 = vmatmul.mubr.f32.gmra.mxu0 %v1209
  %v3256 = vpop.f32.mrf.mxu0
  %v3257 = vadd.f32 %v542, %v3256
  %v3258 = vpop.f32.mrf.mxu0
  %3259 = vmatprep.mubr.f32.mxu0 0.0
  %3260 = vmatmul.mubr.f32.gmra.mxu0 %v1212
  %v3261 = vpop.f32.mrf.mxu0
  %v3262 = vadd.f32 %v542, %v3261
  %v3263 = vpop.f32.mrf.mxu0
  %3264 = vmatprep.mubr.f32.mxu0 0.0
  %3265 = vmatmul.mubr.f32.gmra.mxu0 %v1215
  %v3266 = vpop.f32.mrf.mxu0
  %v3267 = vadd.f32 %v542, %v3266
  %v3268 = vpop.f32.mrf.mxu0
  %3269 = vmatprep.mubr.f32.mxu0 0.0
  %3270 = vmatmul.mubr.f32.gmra.mxu0 %v1218
  %v3271 = vpop.f32.mrf.mxu0
  %v3272 = vadd.f32 %v542, %v3271
  %v3273 = vpop.f32.mrf.mxu0
  %3274 = vmatprep.mubr.f32.mxu0 0.0
  %3275 = vmatmul.mubr.f32.gmra.mxu0 %v1221
  %v3276 = vpop.f32.mrf.mxu0
  %v3277 = vadd.f32 %v542, %v3276
  %v3278 = vpop.f32.mrf.mxu0
  %3279 = vmatprep.mubr.f32.mxu0 0.0
  %3280 = vmatmul.mubr.f32.gmra.mxu0 %v1224
  %v3281 = vpop.f32.mrf.mxu0
  %v3282 = vadd.f32 %v542, %v3281
  %v3283 = vpop.f32.mrf.mxu0
  %3284 = vmatprep.mubr.f32.mxu0 0.0
  %3285 = vmatmul.mubr.f32.gmra.mxu0 %v1227
  %v3286 = vpop.f32.mrf.mxu0
  %v3287 = vadd.f32 %v542, %v3286
  %v3288 = vpop.f32.mrf.mxu0
  %3289 = vmatprep.mubr.f32.mxu0 0.0
  %3290 = vmatmul.mubr.f32.gmra.mxu0 %v1230
  %v3291 = vpop.f32.mrf.mxu0
  %v3292 = vadd.f32 %v542, %v3291
  %v3293 = vpop.f32.mrf.mxu0
  %3294 = vmatprep.mubr.f32.mxu0 0.0
  %3295 = vmatmul.mubr.f32.gmra.mxu0 %v1233
  %v3296 = vpop.f32.mrf.mxu0
  %v3297 = vadd.f32 %v542, %v3296
  %v3298 = vpop.f32.mrf.mxu0
  %3299 = vmatprep.mubr.f32.mxu0 0.0
  %3300 = vmatmul.mubr.f32.gmra.mxu0 %v1236
  %v3301 = vpop.f32.mrf.mxu0
  %v3302 = vadd.f32 %v542, %v3301
  %v3303 = vpop.f32.mrf.mxu0
  %3304 = vmatprep.mubr.f32.mxu0 0.0
  %3305 = vmatmul.mubr.f32.gmra.mxu0 %v1239
  %v3306 = vpop.f32.mrf.mxu0
  %v3307 = vadd.f32 %v542, %v3306
  %v3308 = vpop.f32.mrf.mxu0
  %3309 = vmatprep.mubr.f32.mxu0 0.0
  %3310 = vmatmul.mubr.f32.gmra.mxu0 %v1242
  %v3311 = vpop.f32.mrf.mxu0
  %v3312 = vadd.f32 %v542, %v3311
  %v3313 = vpop.f32.mrf.mxu0
  %3314 = vmatprep.mubr.f32.mxu0 0.0
  %3315 = vmatmul.mubr.f32.gmra.mxu0 %v1245
  %v3316 = vpop.f32.mrf.mxu0
  %v3317 = vadd.f32 %v542, %v3316
  %v3318 = vpop.f32.mrf.mxu0
  %3319 = vmatprep.mubr.f32.mxu0 0.0
  %3320 = vmatmul.mubr.f32.gmra.mxu0 %v1248
  %v3321 = vpop.f32.mrf.mxu0
  %v3322 = vadd.f32 %v542, %v3321
  %v3323 = vpop.f32.mrf.mxu0
  %3324 = vmatprep.mubr.f32.mxu0 0.0
  %3325 = vmatmul.mubr.f32.gmra.mxu0 %v1251
  %v3326 = vpop.f32.mrf.mxu0
  %v3327 = vadd.f32 %v542, %v3326
  %v3328 = vpop.f32.mrf.mxu0
  %3329 = vmatprep.mubr.f32.mxu0 0.0
  %3330 = vmatmul.mubr.f32.gmra.mxu0 %v1254
  %v3331 = vpop.f32.mrf.mxu0
  %v3332 = vadd.f32 %v542, %v3331
  %v3333 = vpop.f32.mrf.mxu0
  %3334 = vmatprep.mubr.f32.mxu0 0.0
  %3335 = vmatmul.mubr.f32.gmra.mxu0 %v1257
  %v3336 = vpop.f32.mrf.mxu0
  %v3337 = vadd.f32 %v542, %v3336
  %v3338 = vpop.f32.mrf.mxu0
  %3339 = vmatprep.mubr.f32.mxu0 0.0
  %3340 = vmatmul.mubr.f32.gmra.mxu0 %v1260
  %v3341 = vpop.f32.mrf.mxu0
  %v3342 = vadd.f32 %v542, %v3341
  %v3343 = vpop.f32.mrf.mxu0
  %3344 = vmatprep.mubr.f32.mxu0 0.0
  %3345 = vmatmul.mubr.f32.gmra.mxu0 %v1263
  %v3346 = vpop.f32.mrf.mxu0
  %v3347 = vadd.f32 %v542, %v3346
  %v3348 = vpop.f32.mrf.mxu0
  %3349 = vmatprep.mubr.f32.mxu0 0.0
  %3350 = vmatmul.mubr.f32.gmra.mxu0 %v1266
  %v3351 = vpop.f32.mrf.mxu0
  %v3352 = vadd.f32 %v542, %v3351
  %v3353 = vpop.f32.mrf.mxu0
  %3354 = vmatprep.mubr.f32.mxu0 0.0
  %3355 = vmatmul.mubr.f32.gmra.mxu0 %v1269
  %v3356 = vpop.f32.mrf.mxu0
  %v3357 = vadd.f32 %v542, %v3356
  %v3358 = vpop.f32.mrf.mxu0
  %3359 = vmatprep.mubr.f32.mxu0 0.0
  %3360 = vmatmul.mubr.f32.gmra.mxu0 %v1272
  %v3361 = vpop.f32.mrf.mxu0
  %v3362 = vadd.f32 %v542, %v3361
  %v3363 = vpop.f32.mrf.mxu0
  %3364 = vmatprep.mubr.f32.mxu0 0.0
  %3365 = vmatmul.mubr.f32.gmra.mxu0 %v1275
  %v3366 = vpop.f32.mrf.mxu0
  %v3367 = vadd.f32 %v542, %v3366
  %v3368 = vpop.f32.mrf.mxu0
  %3369 = vmatprep.mubr.f32.mxu0 0.0
  %3370 = vmatmul.mubr.f32.gmra.mxu0 %v1278
  %v3371 = vpop.f32.mrf.mxu0
  %v3372 = vadd.f32 %v542, %v3371
  %v3373 = vpop.f32.mrf.mxu0
  %3374 = vmatprep.mubr.f32.mxu0 0.0
  %3375 = vmatmul.mubr.f32.gmra.mxu0 %v1281
  %v3376 = vpop.f32.mrf.mxu0
  %v3377 = vadd.f32 %v542, %v3376
  %v3378 = vpop.f32.mrf.mxu0
  %3379 = vmatprep.mubr.f32.mxu0 0.0
  %3380 = vmatmul.mubr.f32.gmra.mxu0 %v1284
  %v3381 = vpop.f32.mrf.mxu0
  %v3382 = vadd.f32 %v542, %v3381
  %v3383 = vpop.f32.mrf.mxu0
  %3384 = vmatprep.mubr.f32.mxu0 0.0
  %3385 = vmatmul.mubr.f32.gmra.mxu0 %v1287
  %v3386 = vpop.f32.mrf.mxu0
  %v3387 = vadd.f32 %v542, %v3386
  %v3388 = vpop.f32.mrf.mxu0
  %3389 = vmatprep.mubr.f32.mxu0 0.0
  %3390 = vmatmul.mubr.f32.gmra.mxu0 %v1290
  %v3391 = vpop.f32.mrf.mxu0
  %v3392 = vadd.f32 %v542, %v3391
  %v3393 = vpop.f32.mrf.mxu0
  %3394 = vmatprep.mubr.f32.mxu0 0.0
  %3395 = vmatmul.mubr.f32.gmra.mxu0 %v1293
  %v3396 = vpop.f32.mrf.mxu0
  %v3397 = vadd.f32 %v542, %v3396
  %v3398 = vpop.f32.mrf.mxu0
  %3399 = vmatprep.mubr.f32.mxu0 0.0
  %3400 = vmatmul.mubr.f32.gmra.mxu0 %v1296
  %v3401 = vpop.f32.mrf.mxu0
  %v3402 = vadd.f32 %v542, %v3401
  %v3403 = vpop.f32.mrf.mxu0
  %3404 = vmatprep.mubr.f32.mxu0 0.0
  %3405 = vmatmul.mubr.f32.gmra.mxu0 %v1299
  %v3406 = vpop.f32.mrf.mxu0
  %v3407 = vadd.f32 %v542, %v3406
  %v3408 = vpop.f32.mrf.mxu0
  %3409 = vmatprep.mubr.f32.mxu0 0.0
  %3410 = vmatmul.mubr.f32.gmra.mxu0 %v1302
  %v3411 = vpop.f32.mrf.mxu0
  %v3412 = vadd.f32 %v542, %v3411
  %v3413 = vpop.f32.mrf.mxu0
  %3414 = vmatprep.mubr.f32.mxu0 0.0
  %3415 = vmatmul.mubr.f32.gmra.mxu0 %v1305
  %v3416 = vpop.f32.mrf.mxu0
  %v3417 = vadd.f32 %v542, %v3416
  %v3418 = vpop.f32.mrf.mxu0
  %3419 = vmatprep.mubr.f32.mxu0 0.0
  %3420 = vmatmul.mubr.f32.gmra.mxu0 %v1308
  %v3421 = vpop.f32.mrf.mxu0
  %v3422 = vadd.f32 %v542, %v3421
  %v3423 = vpop.f32.mrf.mxu0
  %3424 = vmatprep.mubr.f32.mxu0 0.0
  %3425 = vmatmul.mubr.f32.gmra.mxu0 %v1311
  %v3426 = vpop.f32.mrf.mxu0
  %v3427 = vadd.f32 %v542, %v3426
  %v3428 = vpop.f32.mrf.mxu0
  %3429 = vmatprep.mubr.f32.mxu0 0.0
  %3430 = vmatmul.mubr.f32.gmra.mxu0 %v1314
  %v3431 = vpop.f32.mrf.mxu0
  %v3432 = vadd.f32 %v542, %v3431
  %v3433 = vpop.f32.mrf.mxu0
  %3434 = vmatprep.mubr.f32.mxu0 0.0
  %3435 = vmatmul.mubr.f32.gmra.mxu0 %v1317
  %v3436 = vpop.f32.mrf.mxu0
  %v3437 = vadd.f32 %v542, %v3436
  %v3438 = vpop.f32.mrf.mxu0
  %3439 = vmatprep.mubr.f32.mxu0 0.0
  %3440 = vmatmul.mubr.f32.gmra.mxu0 %v1320
  %v3441 = vpop.f32.mrf.mxu0
  %v3442 = vadd.f32 %v542, %v3441
  %v3443 = vpop.f32.mrf.mxu0
  %3444 = vmatprep.mubr.f32.mxu0 0.0
  %3445 = vmatmul.mubr.f32.gmra.mxu0 %v1323
  %v3446 = vpop.f32.mrf.mxu0
  %v3447 = vadd.f32 %v542, %v3446
  %v3448 = vpop.f32.mrf.mxu0
  %3449 = vmatprep.mubr.f32.mxu0 0.0
  %3450 = vmatmul.mubr.f32.gmra.mxu0 %v1326
  %v3451 = vpop.f32.mrf.mxu0
  %v3452 = vadd.f32 %v542, %v3451
  %v3453 = vpop.f32.mrf.mxu0
  %3454 = vmatprep.mubr.f32.mxu0 0.0
  %3455 = vmatmul.mubr.f32.gmra.mxu0 %v1329
  %v3456 = vpop.f32.mrf.mxu0
  %v3457 = vadd.f32 %v542, %v3456
  %v3458 = vpop.f32.mrf.mxu0
  %3459 = vmatprep.mubr.f32.mxu0 0.0
  %3460 = vmatmul.mubr.f32.gmra.mxu0 %v1332
  %v3461 = vpop.f32.mrf.mxu0
  %v3462 = vadd.f32 %v542, %v3461
  %v3463 = vpop.f32.mrf.mxu0
  %3464 = vmatprep.mubr.f32.mxu0 0.0
  %3465 = vmatmul.mubr.f32.gmra.mxu0 %v1335
  %v3466 = vpop.f32.mrf.mxu0
  %v3467 = vadd.f32 %v542, %v3466
  %v3468 = vpop.f32.mrf.mxu0
  %3469 = vmatprep.mubr.f32.mxu0 0.0
  %3470 = vmatmul.mubr.f32.gmra.mxu0 %v1338
  %v3471 = vpop.f32.mrf.mxu0
  %v3472 = vadd.f32 %v542, %v3471
  %v3473 = vpop.f32.mrf.mxu0
  %3474 = vmatprep.mubr.f32.mxu0 0.0
  %3475 = vmatmul.mubr.f32.gmra.mxu0 %v1341
  %v3476 = vpop.f32.mrf.mxu0
  %v3477 = vadd.f32 %v542, %v3476
  %v3478 = vpop.f32.mrf.mxu0
  %3479 = vmatprep.mubr.f32.mxu0 0.0
  %3480 = vmatmul.mubr.f32.gmra.mxu0 %v1344
  %v3481 = vpop.f32.mrf.mxu0
  %v3482 = vadd.f32 %v542, %v3481
  %v3483 = vpop.f32.mrf.mxu0
  %3484 = vmatprep.mubr.f32.mxu0 0.0
  %3485 = vmatmul.mubr.f32.gmra.mxu0 %v1347
  %v3486 = vpop.f32.mrf.mxu0
  %v3487 = vadd.f32 %v542, %v3486
  %v3488 = vpop.f32.mrf.mxu0
  %3489 = vmatprep.mubr.f32.mxu0 0.0
  %3490 = vmatmul.mubr.f32.gmra.mxu0 %v1350
  %v3491 = vpop.f32.mrf.mxu0
  %v3492 = vadd.f32 %v542, %v3491
  %v3493 = vpop.f32.mrf.mxu0
  %3494 = vmatprep.mubr.f32.mxu0 0.0
  %3495 = vmatmul.mubr.f32.gmra.mxu0 %v1353
  %v3496 = vpop.f32.mrf.mxu0
  %v3497 = vadd.f32 %v542, %v3496
  %v3498 = vpop.f32.mrf.mxu0
  %3499 = vmatprep.mubr.f32.mxu0 0.0
  %3500 = vmatmul.mubr.f32.gmra.mxu0 %v1356
  %v3501 = vpop.f32.mrf.mxu0
  %v3502 = vadd.f32 %v542, %v3501
  %v3503 = vpop.f32.mrf.mxu0
  %3504 = vmatprep.mubr.f32.mxu0 0.0
  %3505 = vmatmul.mubr.f32.gmra.mxu0 %v1359
  %v3506 = vpop.f32.mrf.mxu0
  %v3507 = vadd.f32 %v542, %v3506
  %v3508 = vpop.f32.mrf.mxu0
  %3509 = vmatprep.mubr.f32.mxu0 0.0
  %3510 = vmatmul.mubr.f32.gmra.mxu0 %v1362
  %v3511 = vpop.f32.mrf.mxu0
  %v3512 = vadd.f32 %v542, %v3511
  %v3513 = vpop.f32.mrf.mxu0
  %3514 = vmatprep.mubr.f32.mxu0 0.0
  %3515 = vmatmul.mubr.f32.gmra.mxu0 %v1365
  %v3516 = vpop.f32.mrf.mxu0
  %v3517 = vadd.f32 %v542, %v3516
  %v3518 = vpop.f32.mrf.mxu0
  %3519 = vmatprep.mubr.f32.mxu0 0.0
  %3520 = vmatmul.mubr.f32.gmra.mxu0 %v1368
  %v3521 = vpop.f32.mrf.mxu0
  %v3522 = vadd.f32 %v542, %v3521
  %v3523 = vpop.f32.mrf.mxu0
  %3524 = vmatprep.mubr.f32.mxu0 0.0
  %3525 = vmatmul.mubr.f32.gmra.mxu0 %v1371
  %v3526 = vpop.f32.mrf.mxu0
  %v3527 = vadd.f32 %v542, %v3526
  %v3528 = vpop.f32.mrf.mxu0
  %3529 = vmatprep.mubr.f32.mxu0 0.0
  %3530 = vmatmul.mubr.f32.gmra.mxu0 %v1374
  %v3531 = vpop.f32.mrf.mxu0
  %v3532 = vadd.f32 %v542, %v3531
  %v3533 = vpop.f32.mrf.mxu0
  %3534 = vmatprep.mubr.f32.mxu0 0.0
  %3535 = vmatmul.mubr.f32.gmra.mxu0 %v1377
  %v3536 = vpop.f32.mrf.mxu0
  %v3537 = vadd.f32 %v542, %v3536
  %v3538 = vpop.f32.mrf.mxu0
  %3539 = vmatprep.mubr.f32.mxu0 0.0
  %3540 = vmatmul.mubr.f32.gmra.mxu0 %v1380
  %v3541 = vpop.f32.mrf.mxu0
  %v3542 = vadd.f32 %v542, %v3541
  %v3543 = vpop.f32.mrf.mxu0
  %3544 = vmatprep.mubr.f32.mxu0 0.0
  %3545 = vmatmul.mubr.f32.gmra.mxu0 %v1383
  %v3546 = vpop.f32.mrf.mxu0
  %v3547 = vadd.f32 %v542, %v3546
  %v3548 = vpop.f32.mrf.mxu0
  %3549 = vmatprep.mubr.f32.mxu0 0.0
  %3550 = vmatmul.mubr.f32.gmra.mxu0 %v1386
  %v3551 = vpop.f32.mrf.mxu0
  %v3552 = vadd.f32 %v542, %v3551
  %v3553 = vpop.f32.mrf.mxu0
  %3554 = vmatprep.mubr.f32.mxu0 0.0
  %3555 = vmatmul.mubr.f32.gmra.mxu0 %v1389
  %v3556 = vpop.f32.mrf.mxu0
  %v3557 = vadd.f32 %v542, %v3556
  %v3558 = vpop.f32.mrf.mxu0
  %3559 = vmatprep.mubr.f32.mxu0 0.0
  %3560 = vmatmul.mubr.f32.gmra.mxu0 %v1392
  %v3561 = vpop.f32.mrf.mxu0
  %v3562 = vadd.f32 %v542, %v3561
  %v3563 = vpop.f32.mrf.mxu0
  %3564 = vmatprep.mubr.f32.mxu0 0.0
  %3565 = vmatmul.mubr.f32.gmra.mxu0 %v1395
  %v3566 = vpop.f32.mrf.mxu0
  %v3567 = vadd.f32 %v542, %v3566
  %v3568 = vpop.f32.mrf.mxu0
  %3569 = vmatprep.mubr.f32.mxu0 0.0
  %3570 = vmatmul.mubr.f32.gmra.mxu0 %v1398
  %v3571 = vpop.f32.mrf.mxu0
  %v3572 = vadd.f32 %v542, %v3571
  %v3573 = vpop.f32.mrf.mxu0
  %3574 = vmatprep.mubr.f32.mxu0 0.0
  %3575 = vmatmul.mubr.f32.gmra.mxu0 %v1401
  %v3576 = vpop.f32.mrf.mxu0
  %v3577 = vadd.f32 %v542, %v3576
  %v3578 = vpop.f32.mrf.mxu0
  %3579 = vmatprep.mubr.f32.mxu0 0.0
  %3580 = vmatmul.mubr.f32.gmra.mxu0 %v1404
  %v3581 = vpop.f32.mrf.mxu0
  %v3582 = vadd.f32 %v542, %v3581
  %v3583 = vpop.f32.mrf.mxu0
  %3584 = vmatprep.mubr.f32.mxu0 0.0
  %3585 = vmatmul.mubr.f32.gmra.mxu0 %v1407
  %v3586 = vpop.f32.mrf.mxu0
  %v3587 = vadd.f32 %v542, %v3586
  %v3588 = vpop.f32.mrf.mxu0
  %3589 = vmatprep.mubr.f32.mxu0 0.0
  %3590 = vmatmul.mubr.f32.gmra.mxu0 %v1410
  %v3591 = vpop.f32.mrf.mxu0
  %v3592 = vadd.f32 %v542, %v3591
  %v3593 = vpop.f32.mrf.mxu0
  %3594 = vmatprep.mubr.f32.mxu0 0.0
  %3595 = vmatmul.mubr.f32.gmra.mxu0 %v1413
  %v3596 = vpop.f32.mrf.mxu0
  %v3597 = vadd.f32 %v542, %v3596
  %v3598 = vpop.f32.mrf.mxu0
  %3599 = vmatprep.mubr.f32.mxu0 0.0
  %3600 = vmatmul.mubr.f32.gmra.mxu0 %v1416
  %v3601 = vpop.f32.mrf.mxu0
  %v3602 = vadd.f32 %v542, %v3601
  %v3603 = vpop.f32.mrf.mxu0
  %3604 = vmatprep.mubr.f32.mxu0 0.0
  %3605 = vmatmul.mubr.f32.gmra.mxu0 %v1419
  %v3606 = vpop.f32.mrf.mxu0
  %v3607 = vadd.f32 %v542, %v3606
  %v3608 = vpop.f32.mrf.mxu0
  %3609 = vmatprep.mubr.f32.mxu0 0.0
  %3610 = vmatmul.mubr.f32.gmra.mxu0 %v1422
  %v3611 = vpop.f32.mrf.mxu0
  %v3612 = vadd.f32 %v542, %v3611
  %v3613 = vpop.f32.mrf.mxu0
  %3614 = vmatprep.mubr.f32.mxu0 0.0
  %3615 = vmatmul.mubr.f32.gmra.mxu0 %v1425
  %v3616 = vpop.f32.mrf.mxu0
  %v3617 = vadd.f32 %v542, %v3616
  %v3618 = vpop.f32.mrf.mxu0
  %3619 = vmatprep.mubr.f32.mxu0 0.0
  %3620 = vmatmul.mubr.f32.gmra.mxu0 %v1428
  %v3621 = vpop.f32.mrf.mxu0
  %v3622 = vadd.f32 %v542, %v3621
  %v3623 = vpop.f32.mrf.mxu0
  %3624 = vmatprep.mubr.f32.mxu0 0.0
  %3625 = vmatmul.mubr.f32.gmra.mxu0 %v1431
  %v3626 = vpop.f32.mrf.mxu0
  %v3627 = vadd.f32 %v542, %v3626
  %v3628 = vpop.f32.mrf.mxu0
  %3629 = vmatprep.mubr.f32.mxu0 0.0
  %3630 = vmatmul.mubr.f32.gmra.mxu0 %v1434
  %v3631 = vpop.f32.mrf.mxu0
  %v3632 = vadd.f32 %v542, %v3631
  %v3633 = vpop.f32.mrf.mxu0
  %3634 = vmatprep.mubr.f32.mxu0 0.0
  %3635 = vmatmul.mubr.f32.gmra.mxu0 %v1437
  %v3636 = vpop.f32.mrf.mxu0
  %v3637 = vadd.f32 %v542, %v3636
  %v3638 = vpop.f32.mrf.mxu0
  %3639 = vmatprep.mubr.f32.mxu0 0.0
  %3640 = vmatmul.mubr.f32.gmra.mxu0 %v1440
  %v3641 = vpop.f32.mrf.mxu0
  %v3642 = vadd.f32 %v542, %v3641
  %v3643 = vpop.f32.mrf.mxu0
  %3644 = vmatprep.mubr.f32.mxu0 0.0
  %3645 = vmatmul.mubr.f32.gmra.mxu0 %v1443
  %v3646 = vpop.f32.mrf.mxu0
  %v3647 = vadd.f32 %v542, %v3646
  %v3648 = vpop.f32.mrf.mxu0
  %3649 = vmatprep.mubr.f32.mxu0 0.0
  %3650 = vmatmul.mubr.f32.gmra.mxu0 %v1446
  %v3651 = vpop.f32.mrf.mxu0
  %v3652 = vadd.f32 %v542, %v3651
  %v3653 = vpop.f32.mrf.mxu0
  %3654 = vmatprep.mubr.f32.mxu0 0.0
  %3655 = vmatmul.mubr.f32.gmra.mxu0 %v1449
  %v3656 = vpop.f32.mrf.mxu0
  %v3657 = vadd.f32 %v542, %v3656
  %v3658 = vpop.f32.mrf.mxu0
  %3659 = vmatprep.mubr.f32.mxu0 0.0
  %3660 = vmatmul.mubr.f32.gmra.mxu0 %v1452
  %v3661 = vpop.f32.mrf.mxu0
  %v3662 = vadd.f32 %v542, %v3661
  %v3663 = vpop.f32.mrf.mxu0
  %3664 = vmatprep.mubr.f32.mxu0 0.0
  %3665 = vmatmul.mubr.f32.gmra.mxu0 %v1455
  %v3666 = vpop.f32.mrf.mxu0
  %v3667 = vadd.f32 %v542, %v3666
  %v3668 = vpop.f32.mrf.mxu0
  %3669 = vmatprep.mubr.f32.mxu0 0.0
  %3670 = vmatmul.mubr.f32.gmra.mxu0 %v1458
  %v3671 = vpop.f32.mrf.mxu0
  %v3672 = vadd.f32 %v542, %v3671
  %v3673 = vpop.f32.mrf.mxu0
  %3674 = vmatprep.mubr.f32.mxu0 0.0
  %3675 = vmatmul.mubr.f32.gmra.mxu0 %v1461
  %v3676 = vpop.f32.mrf.mxu0
  %v3677 = vadd.f32 %v542, %v3676
  %v3678 = vpop.f32.mrf.mxu0
  %3679 = vmatprep.mubr.f32.mxu0 0.0
  %3680 = vmatmul.mubr.f32.gmra.mxu0 %v1464
  %v3681 = vpop.f32.mrf.mxu0
  %v3682 = vadd.f32 %v542, %v3681
  %v3683 = vpop.f32.mrf.mxu0
  %3684 = vmatprep.mubr.f32.mxu0 0.0
  %3685 = vmatmul.mubr.f32.gmra.mxu0 %v1467
  %v3686 = vpop.f32.mrf.mxu0
  %v3687 = vadd.f32 %v542, %v3686
  %v3688 = vpop.f32.mrf.mxu0
  %3689 = vmatprep.mubr.f32.mxu0 0.0
  %3690 = vmatmul.mubr.f32.gmra.mxu0 %v1470
  %v3691 = vpop.f32.mrf.mxu0
  %v3692 = vadd.f32 %v542, %v3691
  %v3693 = vpop.f32.mrf.mxu0
  %3694 = vmatprep.mubr.f32.mxu0 0.0
  %3695 = vmatmul.mubr.f32.gmra.mxu0 %v1473
  %v3696 = vpop.f32.mrf.mxu0
  %v3697 = vadd.f32 %v542, %v3696
  %v3698 = vpop.f32.mrf.mxu0
  %3699 = vmatprep.mubr.f32.mxu0 0.0
  %3700 = vmatmul.mubr.f32.gmra.mxu0 %v1476
  %v3701 = vpop.f32.mrf.mxu0
  %v3702 = vadd.f32 %v542, %v3701
  %v3703 = vpop.f32.mrf.mxu0
  %3704 = vmatprep.mubr.f32.mxu0 0.0
  %3705 = vmatmul.mubr.f32.gmra.mxu0 %v1479
  %v3706 = vpop.f32.mrf.mxu0
  %v3707 = vadd.f32 %v542, %v3706
  %v3708 = vpop.f32.mrf.mxu0
  %3709 = vmatprep.mubr.f32.mxu0 0.0
  %3710 = vmatmul.mubr.f32.gmra.mxu0 %v1482
  %v3711 = vpop.f32.mrf.mxu0
  %v3712 = vadd.f32 %v542, %v3711
  %v3713 = vpop.f32.mrf.mxu0
  %3714 = vmatprep.mubr.f32.mxu0 0.0
  %3715 = vmatmul.mubr.f32.gmra.mxu0 %v1485
  %v3716 = vpop.f32.mrf.mxu0
  %v3717 = vadd.f32 %v542, %v3716
  %v3718 = vpop.f32.mrf.mxu0
  %3719 = vmatprep.mubr.f32.mxu0 0.0
  %3720 = vmatmul.mubr.f32.gmra.mxu0 %v1488
  %v3721 = vpop.f32.mrf.mxu0
  %v3722 = vadd.f32 %v542, %v3721
  %v3723 = vpop.f32.mrf.mxu0
  %3724 = vmatprep.mubr.f32.mxu0 0.0
  %3725 = vmatmul.mubr.f32.gmra.mxu0 %v1491
  %v3726 = vpop.f32.mrf.mxu0
  %v3727 = vadd.f32 %v542, %v3726
  %v3728 = vpop.f32.mrf.mxu0
  %3729 = vmatprep.mubr.f32.mxu0 0.0
  %3730 = vmatmul.mubr.f32.gmra.mxu0 %v1494
  %v3731 = vpop.f32.mrf.mxu0
  %v3732 = vadd.f32 %v542, %v3731
  %v3733 = vpop.f32.mrf.mxu0
  %3734 = vmatprep.mubr.f32.mxu0 0.0
  %3735 = vmatmul.mubr.f32.gmra.mxu0 %v1497
  %v3736 = vpop.f32.mrf.mxu0
  %v3737 = vadd.f32 %v542, %v3736
  %v3738 = vpop.f32.mrf.mxu0
  %3739 = vmatprep.mubr.f32.mxu0 0.0
  %3740 = vmatmul.mubr.f32.gmra.mxu0 %v1500
  %v3741 = vpop.f32.mrf.mxu0
  %v3742 = vadd.f32 %v542, %v3741
  %v3743 = vpop.f32.mrf.mxu0
  %3744 = vmatprep.mubr.f32.mxu0 0.0
  %3745 = vmatmul.mubr.f32.gmra.mxu0 %v1503
  %v3746 = vpop.f32.mrf.mxu0
  %v3747 = vadd.f32 %v542, %v3746
  %v3748 = vpop.f32.mrf.mxu0
  %3749 = vmatprep.mubr.f32.mxu0 0.0
  %3750 = vmatmul.mubr.f32.gmra.mxu0 %v1506
  %v3751 = vpop.f32.mrf.mxu0
  %v3752 = vadd.f32 %v542, %v3751
  %v3753 = vpop.f32.mrf.mxu0
  %3754 = vmatprep.mubr.f32.mxu0 0.0
  %3755 = vmatmul.mubr.f32.gmra.mxu0 %v1509
  %v3756 = vpop.f32.mrf.mxu0
  %v3757 = vadd.f32 %v542, %v3756
  %v3758 = vpop.f32.mrf.mxu0
  %3759 = vmatprep.mubr.f32.mxu0 0.0
  %3760 = vmatmul.mubr.f32.gmra.mxu0 %v1512
  %v3761 = vpop.f32.mrf.mxu0
  %v3762 = vadd.f32 %v542, %v3761
  %v3763 = vpop.f32.mrf.mxu0
  %3764 = vmatprep.mubr.f32.mxu0 0.0
  %3765 = vmatmul.mubr.f32.gmra.mxu0 %v1515
  %v3766 = vpop.f32.mrf.mxu0
  %v3767 = vadd.f32 %v542, %v3766
  %v3768 = vpop.f32.mrf.mxu0
  %3769 = vmatprep.mubr.f32.mxu0 0.0
  %3770 = vmatmul.mubr.f32.gmra.mxu0 %v1518
  %v3771 = vpop.f32.mrf.mxu0
  %v3772 = vadd.f32 %v542, %v3771
  %v3773 = vpop.f32.mrf.mxu0
  %3774 = vmatprep.mubr.f32.mxu0 0.0
  %3775 = vmatmul.mubr.f32.gmra.mxu0 %v1521
  %v3776 = vpop.f32.mrf.mxu0
  %v3777 = vadd.f32 %v542, %v3776
  %v3778 = vpop.f32.mrf.mxu0
  %3779 = vmatprep.mubr.f32.mxu0 0.0
  %3780 = vmatmul.mubr.f32.gmra.mxu0 %v1524
  %v3781 = vpop.f32.mrf.mxu0
  %v3782 = vadd.f32 %v542, %v3781
  %v3783 = vpop.f32.mrf.mxu0
  %3784 = vmatprep.mubr.f32.mxu0 0.0
  %3785 = vmatmul.mubr.f32.gmra.mxu0 %v1527
  %v3786 = vpop.f32.mrf.mxu0
  %v3787 = vadd.f32 %v542, %v3786
  %v3788 = vpop.f32.mrf.mxu0
  %3789 = vmatprep.mubr.f32.mxu0 0.0
  %3790 = vmatmul.mubr.f32.gmra.mxu0 %v1530
  %v3791 = vpop.f32.mrf.mxu0
  %v3792 = vadd.f32 %v542, %v3791
  %v3793 = vpop.f32.mrf.mxu0
  %3794 = vmatprep.mubr.f32.mxu0 0.0
  %3795 = vmatmul.mubr.f32.gmra.mxu0 %v1533
  %v3796 = vpop.f32.mrf.mxu0
  %v3797 = vadd.f32 %v542, %v3796
  %v3798 = vpop.f32.mrf.mxu0
  %3799 = vmatprep.mubr.f32.mxu0 0.0
  %3800 = vmatmul.mubr.f32.gmra.mxu0 %v1536
  %v3801 = vpop.f32.mrf.mxu0
  %v3802 = vadd.f32 %v542, %v3801
  %v3803 = vpop.f32.mrf.mxu0
  %3804 = vmatprep.mubr.f32.mxu0 0.0
  %3805 = vmatmul.mubr.f32.gmra.mxu0 %v1539
  %v3806 = vpop.f32.mrf.mxu0
  %v3807 = vadd.f32 %v542, %v3806
  %v3808 = vpop.f32.mrf.mxu0
  %3809 = vmatprep.mubr.f32.mxu0 0.0
  %3810 = vmatmul.mubr.f32.gmra.mxu0 %v1542
  %v3811 = vpop.f32.mrf.mxu0
  %v3812 = vadd.f32 %v542, %v3811
  %v3813 = vpop.f32.mrf.mxu0
  %3814 = vmatprep.mubr.f32.mxu0 0.0
  %3815 = vmatmul.mubr.f32.gmra.mxu0 %v1545
  %v3816 = vpop.f32.mrf.mxu0
  %v3817 = vadd.f32 %v542, %v3816
  %v3818 = vpop.f32.mrf.mxu0
  %3819 = vmatprep.mubr.f32.mxu0 0.0
  %3820 = vmatmul.mubr.f32.gmra.mxu0 %v1548
  %v3821 = vpop.f32.mrf.mxu0
  %v3822 = vadd.f32 %v542, %v3821
  %v3823 = vpop.f32.mrf.mxu0
  %3824 = vmatprep.mubr.f32.mxu0 0.0
  %3825 = vmatmul.mubr.f32.gmra.mxu0 %v1551
  %v3826 = vpop.f32.mrf.mxu0
  %v3827 = vadd.f32 %v542, %v3826
  %v3828 = vpop.f32.mrf.mxu0
  %3829 = vmatprep.mubr.f32.mxu0 0.0
  %3830 = vmatmul.mubr.f32.gmra.mxu0 %v1554
  %v3831 = vpop.f32.mrf.mxu0
  %v3832 = vadd.f32 %v542, %v3831
  %v3833 = vpop.f32.mrf.mxu0
  %3834 = vmatprep.mubr.f32.mxu0 0.0
  %3835 = vmatmul.mubr.f32.gmra.mxu0 %v1557
  %v3836 = vpop.f32.mrf.mxu0
  %v3837 = vadd.f32 %v542, %v3836
  %v3838 = vpop.f32.mrf.mxu0
  %3839 = vmatprep.mubr.f32.mxu0 0.0
  %3840 = vmatmul.mubr.f32.gmra.mxu0 %v1560
  %v3841 = vpop.f32.mrf.mxu0
  %v3842 = vadd.f32 %v542, %v3841
  %v3843 = vpop.f32.mrf.mxu0
  %3844 = vmatprep.mubr.f32.mxu0 0.0
  %3845 = vmatmul.mubr.f32.gmra.mxu0 %v1563
  %v3846 = vpop.f32.mrf.mxu0
  %v3847 = vadd.f32 %v542, %v3846
  %v3848 = vpop.f32.mrf.mxu0
  %3849 = vmatprep.mubr.f32.mxu0 0.0
  %3850 = vmatmul.mubr.f32.gmra.mxu0 %v1566
  %v3851 = vpop.f32.mrf.mxu0
  %v3852 = vadd.f32 %v542, %v3851
  %v3853 = vpop.f32.mrf.mxu0
  %3854 = vmatprep.mubr.f32.mxu0 0.0
  %3855 = vmatmul.mubr.f32.gmra.mxu0 %v1569
  %v3856 = vpop.f32.mrf.mxu0
  %v3857 = vadd.f32 %v542, %v3856
  %v3858 = vpop.f32.mrf.mxu0
  %3859 = vmatprep.mubr.f32.mxu0 0.0
  %3860 = vmatmul.mubr.f32.gmra.mxu0 %v1572
  %v3861 = vpop.f32.mrf.mxu0
  %v3862 = vadd.f32 %v542, %v3861
  %v3863 = vpop.f32.mrf.mxu0
  %3864 = vmatprep.mubr.f32.mxu0 0.0
  %3865 = vmatmul.mubr.f32.gmra.mxu0 %v1575
  %v3866 = vpop.f32.mrf.mxu0
  %v3867 = vadd.f32 %v542, %v3866
  %v3868 = vpop.f32.mrf.mxu0
  %3869 = vmatprep.mubr.f32.mxu0 0.0
  %3870 = vmatmul.mubr.f32.gmra.mxu0 %v1578
  %v3871 = vpop.f32.mrf.mxu0
  %v3872 = vadd.f32 %v542, %v3871
  %v3873 = vpop.f32.mrf.mxu0
  %3874 = vmatprep.mubr.f32.mxu0 0.0
  %3875 = vmatmul.mubr.f32.gmra.mxu0 %v1581
  %v3876 = vpop.f32.mrf.mxu0
  %v3877 = vadd.f32 %v542, %v3876
  %v3878 = vpop.f32.mrf.mxu0
  %3879 = vmatprep.mubr.f32.mxu0 0.0
  %3880 = vmatmul.mubr.f32.gmra.mxu0 %v1584
  %v3881 = vpop.f32.mrf.mxu0
  %v3882 = vadd.f32 %v542, %v3881
  %v3883 = vpop.f32.mrf.mxu0
  %3884 = vmatprep.mubr.f32.mxu0 0.0
  %3885 = vmatmul.mubr.f32.gmra.mxu0 %v1587
  %v3886 = vpop.f32.mrf.mxu0
  %v3887 = vadd.f32 %v542, %v3886
  %v3888 = vpop.f32.mrf.mxu0
  %3889 = vmatprep.mubr.f32.mxu0 0.0
  %3890 = vmatmul.mubr.f32.gmra.mxu0 %v1590
  %v3891 = vpop.f32.mrf.mxu0
  %v3892 = vadd.f32 %v542, %v3891
  %v3893 = vpop.f32.mrf.mxu0
  %3894 = vmatprep.mubr.f32.mxu0 0.0
  %3895 = vmatmul.mubr.f32.gmra.mxu0 %v1593
  %v3896 = vpop.f32.mrf.mxu0
  %v3897 = vadd.f32 %v542, %v3896
  %v3898 = vpop.f32.mrf.mxu0
  %3899 = vmatprep.mubr.f32.mxu0 0.0
  %3900 = vmatmul.mubr.f32.gmra.mxu0 %v1596
  %v3901 = vpop.f32.mrf.mxu0
  %v3902 = vadd.f32 %v542, %v3901
  %v3903 = vpop.f32.mrf.mxu0
  %3904 = vmatprep.mubr.f32.mxu0 0.0
  %3905 = vmatmul.mubr.f32.gmra.mxu0 %v1599
  %v3906 = vpop.f32.mrf.mxu0
  %v3907 = vadd.f32 %v542, %v3906
  %v3908 = vpop.f32.mrf.mxu0
  %3909 = vmatprep.mubr.f32.mxu0 0.0
  %3910 = vmatmul.mubr.f32.gmra.mxu0 %v1602
  %v3911 = vpop.f32.mrf.mxu0
  %v3912 = vadd.f32 %v542, %v3911
  %v3913 = vpop.f32.mrf.mxu0
  %3914 = vmatprep.mubr.f32.mxu0 0.0
  %3915 = vmatmul.mubr.f32.gmra.mxu0 %v1605
  %v3916 = vpop.f32.mrf.mxu0
  %v3917 = vadd.f32 %v542, %v3916
  %v3918 = vpop.f32.mrf.mxu0
  %3919 = vmatprep.mubr.f32.mxu0 0.0
  %3920 = vmatmul.mubr.f32.gmra.mxu0 %v1608
  %v3921 = vpop.f32.mrf.mxu0
  %v3922 = vadd.f32 %v542, %v3921
  %v3923 = vpop.f32.mrf.mxu0
  %3924 = vmatprep.mubr.f32.mxu0 0.0
  %3925 = vmatmul.mubr.f32.gmra.mxu0 %v1611
  %v3926 = vpop.f32.mrf.mxu0
  %v3927 = vadd.f32 %v542, %v3926
  %v3928 = vpop.f32.mrf.mxu0
  %3929 = vmatprep.mubr.f32.mxu0 0.0
  %3930 = vmatmul.mubr.f32.gmra.mxu0 %v1614
  %v3931 = vpop.f32.mrf.mxu0
  %v3932 = vadd.f32 %v542, %v3931
  %v3933 = vpop.f32.mrf.mxu0
  %3934 = vmatprep.mubr.f32.mxu0 0.0
  %3935 = vmatmul.mubr.f32.gmra.mxu0 %v1617
  %v3936 = vpop.f32.mrf.mxu0
  %v3937 = vadd.f32 %v542, %v3936
  %v3938 = vpop.f32.mrf.mxu0
  %3939 = vmatprep.mubr.f32.mxu0 0.0
  %3940 = vmatmul.mubr.f32.gmra.mxu0 %v1620
  %v3941 = vpop.f32.mrf.mxu0
  %v3942 = vadd.f32 %v542, %v3941
  %v3943 = vpop.f32.mrf.mxu0
  %3944 = vmatprep.mubr.f32.mxu0 0.0
  %3945 = vmatmul.mubr.f32.gmra.mxu0 %v1623
  %v3946 = vpop.f32.mrf.mxu0
  %v3947 = vadd.f32 %v542, %v3946
  %v3948 = vpop.f32.mrf.mxu0
  %3949 = vmatprep.mubr.f32.mxu0 0.0
  %3950 = vmatmul.mubr.f32.gmra.mxu0 %v1626
  %v3951 = vpop.f32.mrf.mxu0
  %v3952 = vadd.f32 %v542, %v3951
  %v3953 = vpop.f32.mrf.mxu0
  %3954 = vmatprep.mubr.f32.mxu0 0.0
  %3955 = vmatmul.mubr.f32.gmra.mxu0 %v1629
  %v3956 = vpop.f32.mrf.mxu0
  %v3957 = vadd.f32 %v542, %v3956
  %v3958 = vpop.f32.mrf.mxu0
  %3959 = vmatprep.mubr.f32.mxu0 0.0
  %3960 = vmatmul.mubr.f32.gmra.mxu0 %v1632
  %v3961 = vpop.f32.mrf.mxu0
  %v3962 = vadd.f32 %v542, %v3961
  %v3963 = vpop.f32.mrf.mxu0
  %3964 = vmatprep.mubr.f32.mxu0 0.0
  %3965 = vmatmul.mubr.f32.gmra.mxu0 %v1635
  %v3966 = vpop.f32.mrf.mxu0
  %v3967 = vadd.f32 %v542, %v3966
  %v3968 = vpop.f32.mrf.mxu0
  %3969 = vmatprep.mubr.f32.mxu0 0.0
  %3970 = vmatmul.mubr.f32.gmra.mxu0 %v1638
  %v3971 = vpop.f32.mrf.mxu0
  %v3972 = vadd.f32 %v542, %v3971
  %v3973 = vpop.f32.mrf.mxu0
  %3974 = vmatprep.mubr.f32.mxu0 0.0
  %3975 = vmatmul.mubr.f32.gmra.mxu0 %v1641
  %v3976 = vpop.f32.mrf.mxu0
  %v3977 = vadd.f32 %v542, %v3976
  %v3978 = vpop.f32.mrf.mxu0
  %3979 = vmatprep.mubr.f32.mxu0 0.0
  %3980 = vmatmul.mubr.f32.gmra.mxu0 %v1644
  %v3981 = vpop.f32.mrf.mxu0
  %v3982 = vadd.f32 %v542, %v3981
  %v3983 = vpop.f32.mrf.mxu0
  %3984 = vmatprep.mubr.f32.mxu0 0.0
  %3985 = vmatmul.mubr.f32.gmra.mxu0 %v1647
  %v3986 = vpop.f32.mrf.mxu0
  %v3987 = vadd.f32 %v542, %v3986
  %v3988 = vpop.f32.mrf.mxu0
  %3989 = vmatprep.mubr.f32.mxu0 0.0
  %3990 = vmatmul.mubr.f32.gmra.mxu0 %v1650
  %v3991 = vpop.f32.mrf.mxu0
  %v3992 = vadd.f32 %v542, %v3991
  %v3993 = vpop.f32.mrf.mxu0
  %3994 = vmatprep.mubr.f32.mxu0 0.0
  %3995 = vmatmul.mubr.f32.gmra.mxu0 %v1653
  %v3996 = vpop.f32.mrf.mxu0
  %v3997 = vadd.f32 %v542, %v3996
  %v3998 = vpop.f32.mrf.mxu0
  %3999 = vmatprep.mubr.f32.mxu0 0.0
  %4000 = vmatmul.mubr.f32.gmra.mxu0 %v1656
  %v4001 = vpop.f32.mrf.mxu0
  %v4002 = vadd.f32 %v542, %v4001
  %v4003 = vpop.f32.mrf.mxu0
  %4004 = vmatprep.mubr.f32.mxu0 0.0
  %4005 = vmatmul.mubr.f32.gmra.mxu0 %v1659
  %v4006 = vpop.f32.mrf.mxu0
  %v4007 = vadd.f32 %v542, %v4006
  %v4008 = vpop.f32.mrf.mxu0
  %4009 = vmatprep.mubr.f32.mxu0 0.0
  %4010 = vmatmul.mubr.f32.gmra.mxu0 %v1662
  %v4011 = vpop.f32.mrf.mxu0
  %v4012 = vadd.f32 %v542, %v4011
  %v4013 = vpop.f32.mrf.mxu0
  %4014 = vmatprep.mubr.f32.mxu0 0.0
  %4015 = vmatmul.mubr.f32.gmra.mxu0 %v1665
  %v4016 = vpop.f32.mrf.mxu0
  %v4017 = vadd.f32 %v542, %v4016
  %v4018 = vpop.f32.mrf.mxu0
  %4019 = vmatprep.mubr.f32.mxu0 0.0
  %4020 = vmatmul.mubr.f32.gmra.mxu0 %v1668
  %v4021 = vpop.f32.mrf.mxu0
  %v4022 = vadd.f32 %v542, %v4021
  %v4023 = vpop.f32.mrf.mxu0
  %4024 = vmatprep.mubr.f32.mxu0 0.0
  %4025 = vmatmul.mubr.f32.gmra.mxu0 %v1671
  %v4026 = vpop.f32.mrf.mxu0
  %v4027 = vadd.f32 %v542, %v4026
  %v4028 = vpop.f32.mrf.mxu0
  %4029 = vmatprep.mubr.f32.mxu0 0.0
  %4030 = vmatmul.mubr.f32.gmra.mxu0 %v1674
  %v4031 = vpop.f32.mrf.mxu0
  %v4032 = vadd.f32 %v542, %v4031
  %v4033 = vpop.f32.mrf.mxu0
  %4034 = vmatprep.mubr.f32.mxu0 0.0
  %4035 = vmatmul.mubr.f32.gmra.mxu0 %v1677
  %v4036 = vpop.f32.mrf.mxu0
  %v4037 = vadd.f32 %v542, %v4036
  %v4038 = vpop.f32.mrf.mxu0
  %4039 = vmatprep.mubr.f32.mxu0 0.0
  %4040 = vmatmul.mubr.f32.gmra.mxu0 %v1680
  %v4041 = vpop.f32.mrf.mxu0
  %v4042 = vadd.f32 %v542, %v4041
  %v4043 = vpop.f32.mrf.mxu0
  %4044 = vmatprep.mubr.f32.mxu0 0.0
  %4045 = vmatmul.mubr.f32.gmra.mxu0 %v1683
  %v4046 = vpop.f32.mrf.mxu0
  %v4047 = vadd.f32 %v542, %v4046
  %v4048 = vpop.f32.mrf.mxu0
  %4049 = vmatprep.mubr.f32.mxu0 0.0
  %4050 = vmatmul.mubr.f32.gmra.mxu0 %v1686
  %v4051 = vpop.f32.mrf.mxu0
  %v4052 = vadd.f32 %v542, %v4051
  %v4053 = vpop.f32.mrf.mxu0
  %4054 = vmatprep.mubr.f32.mxu0 0.0
  %4055 = vmatmul.mubr.f32.gmra.mxu0 %v1689
  %v4056 = vpop.f32.mrf.mxu0
  %v4057 = vadd.f32 %v542, %v4056
  %v4058 = vpop.f32.mrf.mxu0
  %4059 = vmatprep.mubr.f32.mxu0 0.0
  %4060 = vmatmul.mubr.f32.gmra.mxu0 %v1692
  %v4061 = vpop.f32.mrf.mxu0
  %v4062 = vadd.f32 %v542, %v4061
  %v4063 = vpop.f32.mrf.mxu0
  %4064 = vmatprep.mubr.f32.mxu0 0.0
  %4065 = vmatmul.mubr.f32.gmra.mxu0 %v1695
  %v4066 = vpop.f32.mrf.mxu0
  %v4067 = vadd.f32 %v542, %v4066
  %v4068 = vpop.f32.mrf.mxu0
  %4069 = vmatprep.mubr.f32.mxu0 0.0
  %4070 = vmatmul.mubr.f32.gmra.mxu0 %v1698
  %v4071 = vpop.f32.mrf.mxu0
  %v4072 = vadd.f32 %v542, %v4071
  %v4073 = vpop.f32.mrf.mxu0
  %4074 = vmatprep.mubr.f32.mxu0 0.0
  %4075 = vmatmul.mubr.f32.gmra.mxu0 %v1701
  %v4076 = vpop.f32.mrf.mxu0
  %v4077 = vadd.f32 %v542, %v4076
  %v4078 = vpop.f32.mrf.mxu0
  %4079 = vmatprep.mubr.f32.mxu0 0.0
  %4080 = vmatmul.mubr.f32.gmra.mxu0 %v1704
  %v4081 = vpop.f32.mrf.mxu0
  %v4082 = vadd.f32 %v542, %v4081
  %v4083 = vpop.f32.mrf.mxu0
  %4084 = vmatprep.mubr.f32.mxu0 0.0
  %4085 = vmatmul.mubr.f32.gmra.mxu0 %v1707
  %v4086 = vpop.f32.mrf.mxu0
  %v4087 = vadd.f32 %v542, %v4086
  %v4088 = vpop.f32.mrf.mxu0
  %4089 = vmatprep.mubr.f32.mxu0 0.0
  %4090 = vmatmul.mubr.f32.gmra.mxu0 %v1710
  %v4091 = vpop.f32.mrf.mxu0
  %v4092 = vadd.f32 %v542, %v4091
  %v4093 = vpop.f32.mrf.mxu0
  %4094 = vmatprep.mubr.f32.mxu0 0.0
  %4095 = vmatmul.mubr.f32.gmra.mxu0 %v1713
  %v4096 = vpop.f32.mrf.mxu0
  %v4097 = vadd.f32 %v542, %v4096
  %v4098 = vpop.f32.mrf.mxu0
  %4099 = vmatprep.mubr.f32.mxu0 0.0
  %4100 = vmatmul.mubr.f32.gmra.mxu0 %v1716
  %v4101 = vpop.f32.mrf.mxu0
  %v4102 = vadd.f32 %v542, %v4101
  %v4103 = vpop.f32.mrf.mxu0
  %4104 = vmatprep.mubr.f32.mxu0 0.0
  %4105 = vmatmul.mubr.f32.gmra.mxu0 %v1719
  %v4106 = vpop.f32.mrf.mxu0
  %v4107 = vadd.f32 %v542, %v4106
  %v4108 = vpop.f32.mrf.mxu0
  %4109 = vmatprep.mubr.f32.mxu0 0.0
  %4110 = vmatmul.mubr.f32.gmra.mxu0 %v1722
  %v4111 = vpop.f32.mrf.mxu0
  %v4112 = vadd.f32 %v542, %v4111
  %v4113 = vpop.f32.mrf.mxu0
  %4114 = vmatprep.mubr.f32.mxu0 0.0
  %4115 = vmatmul.mubr.f32.gmra.mxu0 %v1725
  %v4116 = vpop.f32.mrf.mxu0
  %v4117 = vadd.f32 %v542, %v4116
  %v4118 = vpop.f32.mrf.mxu0
  %4119 = vmatprep.mubr.f32.mxu0 0.0
  %4120 = vmatmul.mubr.f32.gmra.mxu0 %v1728
  %v4121 = vpop.f32.mrf.mxu0
  %v4122 = vadd.f32 %v542, %v4121
  %v4123 = vpop.f32.mrf.mxu0
  %4124 = vmatprep.mubr.f32.mxu0 0.0
  %4125 = vmatmul.mubr.f32.gmra.mxu0 %v1731
  %v4126 = vpop.f32.mrf.mxu0
  %v4127 = vadd.f32 %v542, %v4126
  %v4128 = vpop.f32.mrf.mxu0
  %4129 = vmatprep.mubr.f32.mxu0 0.0
  %4130 = vmatmul.mubr.f32.gmra.mxu0 %v1734
  %v4131 = vpop.f32.mrf.mxu0
  %v4132 = vadd.f32 %v542, %v4131
  %v4133 = vpop.f32.mrf.mxu0
  %4134 = vmatprep.mubr.f32.mxu0 0.0
  %4135 = vmatmul.mubr.f32.gmra.mxu0 %v1737
  %v4136 = vpop.f32.mrf.mxu0
  %v4137 = vadd.f32 %v542, %v4136
  %v4138 = vpop.f32.mrf.mxu0
  %4139 = vmatprep.mubr.f32.mxu0 0.0
  %4140 = vmatmul.mubr.f32.gmra.mxu0 %v1740
  %v4141 = vpop.f32.mrf.mxu0
  %v4142 = vadd.f32 %v542, %v4141
  %v4143 = vpop.f32.mrf.mxu0
  %4144 = vmatprep.mubr.f32.mxu0 0.0
  %4145 = vmatmul.mubr.f32.gmra.mxu0 %v1743
  %v4146 = vpop.f32.mrf.mxu0
  %v4147 = vadd.f32 %v542, %v4146
  %v4148 = vpop.f32.mrf.mxu0
  %4149 = vmatprep.mubr.f32.mxu0 0.0
  %4150 = vmatmul.mubr.f32.gmra.mxu0 %v1746
  %v4151 = vpop.f32.mrf.mxu0
  %v4152 = vadd.f32 %v542, %v4151
  %v4153 = vpop.f32.mrf.mxu0
  %4154 = vmatprep.mubr.f32.mxu0 0.0
  %4155 = vmatmul.mubr.f32.gmra.mxu0 %v1749
  %v4156 = vpop.f32.mrf.mxu0
  %v4157 = vadd.f32 %v542, %v4156
  %v4158 = vpop.f32.mrf.mxu0
  %4159 = vmatprep.mubr.f32.mxu0 0.0
  %4160 = vmatmul.mubr.f32.gmra.mxu0 %v1752
  %v4161 = vpop.f32.mrf.mxu0
  %v4162 = vadd.f32 %v542, %v4161
  %v4163 = vpop.f32.mrf.mxu0
  %4164 = vmatprep.mubr.f32.mxu0 0.0
  %4165 = vmatmul.mubr.f32.gmra.mxu0 %v1755
  %v4166 = vpop.f32.mrf.mxu0
  %v4167 = vadd.f32 %v542, %v4166
  %v4168 = vpop.f32.mrf.mxu0
  %4169 = vmatprep.mubr.f32.mxu0 0.0
  %4170 = vmatmul.mubr.f32.gmra.mxu0 %v1758
  %v4171 = vpop.f32.mrf.mxu0
  %v4172 = vadd.f32 %v542, %v4171
  %v4173 = vpop.f32.mrf.mxu0
  %4174 = vmatprep.mubr.f32.mxu0 0.0
  %4175 = vmatmul.mubr.f32.gmra.mxu0 %v1761
  %v4176 = vpop.f32.mrf.mxu0
  %v4177 = vadd.f32 %v542, %v4176
  %v4178 = vpop.f32.mrf.mxu0
  %4179 = vmatprep.mubr.f32.mxu0 0.0
  %4180 = vmatmul.mubr.f32.gmra.mxu0 %v1764
  %v4181 = vpop.f32.mrf.mxu0
  %v4182 = vadd.f32 %v542, %v4181
  %v4183 = vpop.f32.mrf.mxu0
  %4184 = vmatprep.mubr.f32.mxu0 0.0
  %4185 = vmatmul.mubr.f32.gmra.mxu0 %v1767
  %v4186 = vpop.f32.mrf.mxu0
  %v4187 = vadd.f32 %v542, %v4186
  %v4188 = vpop.f32.mrf.mxu0
  %4189 = vmatprep.mubr.f32.mxu0 0.0
  %4190 = vmatmul.mubr.f32.gmra.mxu0 %v1770
  %v4191 = vpop.f32.mrf.mxu0
  %v4192 = vadd.f32 %v542, %v4191
  %v4193 = vpop.f32.mrf.mxu0
  %4194 = vmatprep.mubr.f32.mxu0 0.0
  %4195 = vmatmul.mubr.f32.gmra.mxu0 %v1773
  %v4196 = vpop.f32.mrf.mxu0
  %v4197 = vadd.f32 %v542, %v4196
  %v4198 = vpop.f32.mrf.mxu0
  %4199 = vmatprep.mubr.f32.mxu0 0.0
  %4200 = vmatmul.mubr.f32.gmra.mxu0 %v1776
  %v4201 = vpop.f32.mrf.mxu0
  %v4202 = vadd.f32 %v542, %v4201
  %v4203 = vpop.f32.mrf.mxu0
  %4204 = vmatprep.mubr.f32.mxu0 0.0
  %4205 = vmatmul.mubr.f32.gmra.mxu0 %v1779
  %v4206 = vpop.f32.mrf.mxu0
  %v4207 = vadd.f32 %v542, %v4206
  %v4208 = vpop.f32.mrf.mxu0
  %4209 = vmatprep.mubr.f32.mxu0 0.0
  %4210 = vmatmul.mubr.f32.gmra.mxu0 %v1782
  %v4211 = vpop.f32.mrf.mxu0
  %v4212 = vadd.f32 %v542, %v4211
  %v4213 = vpop.f32.mrf.mxu0
  %4214 = vmatprep.mubr.f32.mxu0 0.0
  %4215 = vmatmul.mubr.f32.gmra.mxu0 %v1785
  %v4216 = vpop.f32.mrf.mxu0
  %v4217 = vadd.f32 %v542, %v4216
  %v4218 = vpop.f32.mrf.mxu0
  %4219 = vmatprep.mubr.f32.mxu0 0.0
  %4220 = vmatmul.mubr.f32.gmra.mxu0 %v1788
  %v4221 = vpop.f32.mrf.mxu0
  %v4222 = vadd.f32 %v542, %v4221
  %v4223 = vpop.f32.mrf.mxu0
  %4224 = vmatprep.mubr.f32.mxu0 0.0
  %4225 = vmatmul.mubr.f32.gmra.mxu0 %v1791
  %v4226 = vpop.f32.mrf.mxu0
  %v4227 = vadd.f32 %v542, %v4226
  %v4228 = vpop.f32.mrf.mxu0
  %4229 = vmatprep.mubr.f32.mxu0 0.0
  %4230 = vmatmul.mubr.f32.gmra.mxu0 %v1794
  %v4231 = vpop.f32.mrf.mxu0
  %v4232 = vadd.f32 %v542, %v4231
  %v4233 = vpop.f32.mrf.mxu0
  %4234 = vmatprep.mubr.f32.mxu0 0.0
  %4235 = vmatmul.mubr.f32.gmra.mxu0 %v1797
  %v4236 = vpop.f32.mrf.mxu0
  %v4237 = vadd.f32 %v542, %v4236
  %v4238 = vpop.f32.mrf.mxu0
  %4239 = vmatprep.mubr.f32.mxu0 0.0
  %4240 = vmatmul.mubr.f32.gmra.mxu0 %v1800
  %v4241 = vpop.f32.mrf.mxu0
  %v4242 = vadd.f32 %v542, %v4241
  %v4243 = vpop.f32.mrf.mxu0
  %4244 = vmatprep.mubr.f32.mxu0 0.0
  %4245 = vmatmul.mubr.f32.gmra.mxu0 %v1803
  %v4246 = vpop.f32.mrf.mxu0
  %v4247 = vadd.f32 %v542, %v4246
  %v4248 = vpop.f32.mrf.mxu0
  %4249 = vmatprep.mubr.f32.mxu0 0.0
  %4250 = vmatmul.mubr.f32.gmra.mxu0 %v1806
  %v4251 = vpop.f32.mrf.mxu0
  %v4252 = vadd.f32 %v542, %v4251
  %v4253 = vpop.f32.mrf.mxu0
  %4254 = vmatprep.mubr.f32.mxu0 0.0
  %4255 = vmatmul.mubr.f32.gmra.mxu0 %v1809
  %v4256 = vpop.f32.mrf.mxu0
  %v4257 = vadd.f32 %v542, %v4256
  %v4258 = vpop.f32.mrf.mxu0
  %4259 = vmatprep.mubr.f32.mxu0 0.0
  %4260 = vmatmul.mubr.f32.gmra.mxu0 %v1812
  %v4261 = vpop.f32.mrf.mxu0
  %v4262 = vadd.f32 %v542, %v4261
  %v4263 = vpop.f32.mrf.mxu0
  %4264 = vmatprep.mubr.f32.mxu0 0.0
  %4265 = vmatmul.mubr.f32.gmra.mxu0 %v1815
  %v4266 = vpop.f32.mrf.mxu0
  %v4267 = vadd.f32 %v542, %v4266
  %v4268 = vpop.f32.mrf.mxu0
  %4269 = vmatprep.mubr.f32.mxu0 0.0
  %4270 = vmatmul.mubr.f32.gmra.mxu0 %v1818
  %v4271 = vpop.f32.mrf.mxu0
  %v4272 = vadd.f32 %v542, %v4271
  %v4273 = vpop.f32.mrf.mxu0
  %4274 = vmatprep.mubr.f32.mxu0 0.0
  %4275 = vmatmul.mubr.f32.gmra.mxu0 %v1821
  %v4276 = vpop.f32.mrf.mxu0
  %v4277 = vadd.f32 %v542, %v4276
  %v4278 = vpop.f32.mrf.mxu0
  %4279 = vmatprep.mubr.f32.mxu0 0.0
  %4280 = vmatmul.mubr.f32.gmra.mxu0 %v1824
  %v4281 = vpop.f32.mrf.mxu0
  %v4282 = vadd.f32 %v542, %v4281
  %v4283 = vpop.f32.mrf.mxu0
  %4284 = vmatprep.mubr.f32.mxu0 0.0
  %4285 = vmatmul.mubr.f32.gmra.mxu0 %v1827
  %v4286 = vpop.f32.mrf.mxu0
  %v4287 = vadd.f32 %v542, %v4286
  %v4288 = vpop.f32.mrf.mxu0
  %4289 = vmatprep.mubr.f32.mxu0 0.0
  %4290 = vmatmul.mubr.f32.gmra.mxu0 %v1830
  %v4291 = vpop.f32.mrf.mxu0
  %v4292 = vadd.f32 %v542, %v4291
  %v4293 = vpop.f32.mrf.mxu0
  %4294 = vmatprep.mubr.f32.mxu0 0.0
  %4295 = vmatmul.mubr.f32.gmra.mxu0 %v1833
  %v4296 = vpop.f32.mrf.mxu0
  %v4297 = vadd.f32 %v542, %v4296
  %v4298 = vpop.f32.mrf.mxu0
  %4299 = vmatprep.mubr.f32.mxu0 0.0
  %4300 = vmatmul.mubr.f32.gmra.mxu0 %v1836
  %v4301 = vpop.f32.mrf.mxu0
  %v4302 = vadd.f32 %v542, %v4301
  %v4303 = vpop.f32.mrf.mxu0
  %4304 = vmatprep.mubr.f32.mxu0 0.0
  %4305 = vmatmul.mubr.f32.gmra.mxu0 %v1839
  %v4306 = vpop.f32.mrf.mxu0
  %v4307 = vadd.f32 %v542, %v4306
  %v4308 = vpop.f32.mrf.mxu0
  %4309 = vmatprep.mubr.f32.mxu0 0.0
  %4310 = vmatmul.mubr.f32.gmra.mxu0 %v1842
  %v4311 = vpop.f32.mrf.mxu0
  %v4312 = vadd.f32 %v542, %v4311
  %v4313 = vpop.f32.mrf.mxu0
  %4314 = vmatprep.mubr.f32.mxu0 0.0
  %4315 = vmatmul.mubr.f32.gmra.mxu0 %v1845
  %v4316 = vpop.f32.mrf.mxu0
  %v4317 = vadd.f32 %v542, %v4316
  %v4318 = vpop.f32.mrf.mxu0
  %4319 = vmatprep.mubr.f32.mxu0 0.0
  %4320 = vmatmul.mubr.f32.gmra.mxu0 %v1848
  %v4321 = vpop.f32.mrf.mxu0
  %v4322 = vadd.f32 %v542, %v4321
  %v4323 = vpop.f32.mrf.mxu0
  %4324 = vmatprep.mubr.f32.mxu0 0.0
  %4325 = vmatmul.mubr.f32.gmra.mxu0 %v1851
  %v4326 = vpop.f32.mrf.mxu0
  %v4327 = vadd.f32 %v542, %v4326
  %v4328 = vpop.f32.mrf.mxu0
  %4329 = vmatprep.mubr.f32.mxu0 0.0
  %4330 = vmatmul.mubr.f32.gmra.mxu0 %v1854
  %v4331 = vpop.f32.mrf.mxu0
  %v4332 = vadd.f32 %v542, %v4331
  %v4333 = vpop.f32.mrf.mxu0
  %4334 = vmatprep.mubr.f32.mxu0 0.0
  %4335 = vmatmul.mubr.f32.gmra.mxu0 %v1857
  %v4336 = vpop.f32.mrf.mxu0
  %v4337 = vadd.f32 %v542, %v4336
  %v4338 = vpop.f32.mrf.mxu0
  %4339 = vmatprep.mubr.f32.mxu0 0.0
  %4340 = vmatmul.mubr.f32.gmra.mxu0 %v1860
  %v4341 = vpop.f32.mrf.mxu0
  %v4342 = vadd.f32 %v542, %v4341
  %v4343 = vpop.f32.mrf.mxu0
  %4344 = vmatprep.mubr.f32.mxu0 0.0
  %4345 = vmatmul.mubr.f32.gmra.mxu0 %v1863
  %v4346 = vpop.f32.mrf.mxu0
  %v4347 = vadd.f32 %v542, %v4346
  %v4348 = vpop.f32.mrf.mxu0
  %4349 = vmatprep.mubr.f32.mxu0 0.0
  %4350 = vmatmul.mubr.f32.gmra.mxu0 %v1866
  %v4351 = vpop.f32.mrf.mxu0
  %v4352 = vadd.f32 %v542, %v4351
  %v4353 = vpop.f32.mrf.mxu0
  %4354 = vmatprep.mubr.f32.mxu0 0.0
  %4355 = vmatmul.mubr.f32.gmra.mxu0 %v1869
  %v4356 = vpop.f32.mrf.mxu0
  %v4357 = vadd.f32 %v542, %v4356
  %v4358 = vpop.f32.mrf.mxu0
  %4359 = vmatprep.mubr.f32.mxu0 0.0
  %4360 = vmatmul.mubr.f32.gmra.mxu0 %v1872
  %v4361 = vpop.f32.mrf.mxu0
  %v4362 = vadd.f32 %v542, %v4361
  %v4363 = vpop.f32.mrf.mxu0
  %4364 = vmatprep.mubr.f32.mxu0 0.0
  %4365 = vmatmul.mubr.f32.gmra.mxu0 %v1875
  %v4366 = vpop.f32.mrf.mxu0
  %v4367 = vadd.f32 %v542, %v4366
  %v4368 = vpop.f32.mrf.mxu0
  %4369 = vmatprep.mubr.f32.mxu0 0.0
  %4370 = vmatmul.mubr.f32.gmra.mxu0 %v1878
  %v4371 = vpop.f32.mrf.mxu0
  %v4372 = vadd.f32 %v542, %v4371
  %v4373 = vpop.f32.mrf.mxu0
  %4374 = vmatprep.mubr.f32.mxu0 0.0
  %4375 = vmatmul.mubr.f32.gmra.mxu0 %v1881
  %v4376 = vpop.f32.mrf.mxu0
  %v4377 = vadd.f32 %v542, %v4376
  %v4378 = vpop.f32.mrf.mxu0
  %4379 = vmatprep.mubr.f32.mxu0 0.0
  %4380 = vmatmul.mubr.f32.gmra.mxu0 %v1884
  %v4381 = vpop.f32.mrf.mxu0
  %v4382 = vadd.f32 %v542, %v4381
  %v4383 = vpop.f32.mrf.mxu0
  %4384 = vmatprep.mubr.f32.mxu0 0.0
  %4385 = vmatmul.mubr.f32.gmra.mxu0 %v1887
  %v4386 = vpop.f32.mrf.mxu0
  %v4387 = vadd.f32 %v542, %v4386
  %v4388 = vpop.f32.mrf.mxu0
  %4389 = vmatprep.mubr.f32.mxu0 0.0
  %4390 = vmatmul.mubr.f32.gmra.mxu0 %v1890
  %v4391 = vpop.f32.mrf.mxu0
  %v4392 = vadd.f32 %v542, %v4391
  %v4393 = vpop.f32.mrf.mxu0
  %4394 = vmatprep.mubr.f32.mxu0 0.0
  %4395 = vmatmul.mubr.f32.gmra.mxu0 %v1893
  %v4396 = vpop.f32.mrf.mxu0
  %v4397 = vadd.f32 %v542, %v4396
  %v4398 = vpop.f32.mrf.mxu0
  %4399 = vmatprep.mubr.f32.mxu0 0.0
  %4400 = vmatmul.mubr.f32.gmra.mxu0 %v1896
  %v4401 = vpop.f32.mrf.mxu0
  %v4402 = vadd.f32 %v542, %v4401
  %v4403 = vpop.f32.mrf.mxu0
  %4404 = vmatprep.mubr.f32.mxu0 0.0
  %4405 = vmatmul.mubr.f32.gmra.mxu0 %v1899
  %v4406 = vpop.f32.mrf.mxu0
  %v4407 = vadd.f32 %v542, %v4406
  %v4408 = vpop.f32.mrf.mxu0
  %4409 = vmatprep.mubr.f32.mxu0 0.0
  %4410 = vmatmul.mubr.f32.gmra.mxu0 %v1902
  %v4411 = vpop.f32.mrf.mxu0
  %v4412 = vadd.f32 %v542, %v4411
  %v4413 = vpop.f32.mrf.mxu0
  %4414 = vmatprep.mubr.f32.mxu0 0.0
  %4415 = vmatmul.mubr.f32.gmra.mxu0 %v1905
  %v4416 = vpop.f32.mrf.mxu0
  %v4417 = vadd.f32 %v542, %v4416
  %v4418 = vpop.f32.mrf.mxu0
  %4419 = vmatprep.mubr.f32.mxu0 0.0
  %4420 = vmatmul.mubr.f32.gmra.mxu0 %v1908
  %v4421 = vpop.f32.mrf.mxu0
  %v4422 = vadd.f32 %v542, %v4421
  %v4423 = vpop.f32.mrf.mxu0
  %4424 = vmatprep.mubr.f32.mxu0 0.0
  %4425 = vmatmul.mubr.f32.gmra.mxu0 %v1911
  %v4426 = vpop.f32.mrf.mxu0
  %v4427 = vadd.f32 %v542, %v4426
  %v4428 = vpop.f32.mrf.mxu0
  %4429 = vmatprep.mubr.f32.mxu0 0.0
  %4430 = vmatmul.mubr.f32.gmra.mxu0 %v1914
  %v4431 = vpop.f32.mrf.mxu0
  %v4432 = vadd.f32 %v542, %v4431
  %v4433 = vpop.f32.mrf.mxu0
  %4434 = vmatprep.mubr.f32.mxu0 0.0
  %4435 = vmatmul.mubr.f32.gmra.mxu0 %v1917
  %v4436 = vpop.f32.mrf.mxu0
  %v4437 = vadd.f32 %v542, %v4436
  %v4438 = vpop.f32.mrf.mxu0
  %4439 = vmatprep.mubr.f32.mxu0 0.0
  %4440 = vmatmul.mubr.f32.gmra.mxu0 %v1920
  %v4441 = vpop.f32.mrf.mxu0
  %v4442 = vadd.f32 %v542, %v4441
  %v4443 = vpop.f32.mrf.mxu0
  %4444 = vmatprep.mubr.f32.mxu0 0.0
  %4445 = vmatmul.mubr.f32.gmra.mxu0 %v1923
  %v4446 = vpop.f32.mrf.mxu0
  %v4447 = vadd.f32 %v542, %v4446
  %v4448 = vpop.f32.mrf.mxu0
  %4449 = vmatprep.mubr.f32.mxu0 0.0
  %4450 = vmatmul.mubr.f32.gmra.mxu0 %v1926
  %v4451 = vpop.f32.mrf.mxu0
  %v4452 = vadd.f32 %v542, %v4451
  %v4453 = vpop.f32.mrf.mxu0
  %4454 = vmatprep.mubr.f32.mxu0 0.0
  %4455 = vmatmul.mubr.f32.gmra.mxu0 %v1929
  %v4456 = vpop.f32.mrf.mxu0
  %v4457 = vadd.f32 %v542, %v4456
  %v4458 = vpop.f32.mrf.mxu0
  %4459 = vmatprep.mubr.f32.mxu0 0.0
  %4460 = vmatmul.mubr.f32.gmra.mxu0 %v1932
  %v4461 = vpop.f32.mrf.mxu0
  %v4462 = vadd.f32 %v542, %v4461
  %v4463 = vpop.f32.mrf.mxu0
  %4464 = vmatprep.mubr.f32.mxu0 0.0
  %4465 = vmatmul.mubr.f32.gmra.mxu0 %v1935
  %v4466 = vpop.f32.mrf.mxu0
  %v4467 = vadd.f32 %v542, %v4466
  %v4468 = vpop.f32.mrf.mxu0
  %4469 = vmatprep.mubr.f32.mxu0 0.0
  %4470 = vmatmul.mubr.f32.gmra.mxu0 %v1938
  %v4471 = vpop.f32.mrf.mxu0
  %v4472 = vadd.f32 %v542, %v4471
  %v4473 = vpop.f32.mrf.mxu0
  %4474 = vmatprep.mubr.f32.mxu0 0.0
  %4475 = vmatmul.mubr.f32.gmra.mxu0 %v1941
  %v4476 = vpop.f32.mrf.mxu0
  %v4477 = vadd.f32 %v542, %v4476
  %v4478 = vpop.f32.mrf.mxu0
  %4479 = vmatprep.mubr.f32.mxu0 0.0
  %4480 = vmatmul.mubr.f32.gmra.mxu0 %v1944
  %v4481 = vpop.f32.mrf.mxu0
  %v4482 = vadd.f32 %v542, %v4481
  %v4483 = vpop.f32.mrf.mxu0
  %4484 = vmatprep.mubr.f32.mxu0 0.0
  %4485 = vmatmul.mubr.f32.gmra.mxu0 %v1947
  %v4486 = vpop.f32.mrf.mxu0
  %v4487 = vadd.f32 %v542, %v4486
  %v4488 = vpop.f32.mrf.mxu0
  %4489 = vmatprep.mubr.f32.mxu0 0.0
  %4490 = vmatmul.mubr.f32.gmra.mxu0 %v1950
  %v4491 = vpop.f32.mrf.mxu0
  %v4492 = vadd.f32 %v542, %v4491
  %v4493 = vpop.f32.mrf.mxu0
  %4494 = vmatprep.mubr.f32.mxu0 0.0
  %4495 = vmatmul.mubr.f32.gmra.mxu0 %v1953
  %v4496 = vpop.f32.mrf.mxu0
  %v4497 = vadd.f32 %v542, %v4496
  %v4498 = vpop.f32.mrf.mxu0
  %4499 = vmatprep.mubr.f32.mxu0 0.0
  %4500 = vmatmul.mubr.f32.gmra.mxu0 %v1956
  %v4501 = vpop.f32.mrf.mxu0
  %v4502 = vadd.f32 %v542, %v4501
  %v4503 = vpop.f32.mrf.mxu0
  %4504 = vmatprep.mubr.f32.mxu0 0.0
  %4505 = vmatmul.mubr.f32.gmra.mxu0 %v1959
  %v4506 = vpop.f32.mrf.mxu0
  %v4507 = vadd.f32 %v542, %v4506
  %v4508 = vpop.f32.mrf.mxu0
  %4509 = vmatprep.mubr.f32.mxu0 0.0
  %4510 = vmatmul.mubr.f32.gmra.mxu0 %v1962
  %v4511 = vpop.f32.mrf.mxu0
  %v4512 = vadd.f32 %v542, %v4511
  %v4513 = vpop.f32.mrf.mxu0
  %4514 = vmatprep.mubr.f32.mxu0 0.0
  %4515 = vmatmul.mubr.f32.gmra.mxu0 %v1965
  %v4516 = vpop.f32.mrf.mxu0
  %v4517 = vadd.f32 %v542, %v4516
  %v4518 = vpop.f32.mrf.mxu0
  %4519 = vmatprep.mubr.f32.mxu0 0.0
  %4520 = vmatmul.mubr.f32.gmra.mxu0 %v1968
  %v4521 = vpop.f32.mrf.mxu0
  %v4522 = vadd.f32 %v542, %v4521
  %v4523 = vpop.f32.mrf.mxu0
  %4524 = vmatprep.mubr.f32.mxu0 0.0
  %4525 = vmatmul.mubr.f32.gmra.mxu0 %v1971
  %v4526 = vpop.f32.mrf.mxu0
  %v4527 = vadd.f32 %v542, %v4526
  %v4528 = vpop.f32.mrf.mxu0
  %4529 = vmatprep.mubr.f32.mxu0 0.0
  %4530 = vmatmul.mubr.f32.gmra.mxu0 %v1974
  %v4531 = vpop.f32.mrf.mxu0
  %v4532 = vadd.f32 %v542, %v4531
  %v4533 = vpop.f32.mrf.mxu0
  %4534 = vmatprep.mubr.f32.mxu0 0.0
  %4535 = vmatmul.mubr.f32.gmra.mxu0 %v1977
  %v4536 = vpop.f32.mrf.mxu0
  %v4537 = vadd.f32 %v542, %v4536
  %v4538 = vpop.f32.mrf.mxu0
  %4539 = vmatprep.mubr.f32.mxu0 0.0
  %4540 = vmatmul.mubr.f32.gmra.mxu0 %v1980
  %v4541 = vpop.f32.mrf.mxu0
  %v4542 = vadd.f32 %v542, %v4541
  %v4543 = vpop.f32.mrf.mxu0
  %4544 = vmatprep.mubr.f32.mxu0 0.0
  %4545 = vmatmul.mubr.f32.gmra.mxu0 %v1983
  %v4546 = vpop.f32.mrf.mxu0
  %v4547 = vadd.f32 %v542, %v4546
  %v4548 = vpop.f32.mrf.mxu0
  %4549 = vmatprep.mubr.f32.mxu0 0.0
  %4550 = vmatmul.mubr.f32.gmra.mxu0 %v1986
  %v4551 = vpop.f32.mrf.mxu0
  %v4552 = vadd.f32 %v542, %v4551
  %v4553 = vpop.f32.mrf.mxu0
  %4554 = vmatprep.mubr.f32.mxu0 0.0
  %4555 = vmatmul.mubr.f32.gmra.mxu0 %v1989
  %v4556 = vpop.f32.mrf.mxu0
  %v4557 = vadd.f32 %v542, %v4556
  %v4558 = vpop.f32.mrf.mxu0
  %4559 = vmatprep.mubr.f32.mxu0 0.0
  %4560 = vmatmul.mubr.f32.gmra.mxu0 %v1992
  %v4561 = vpop.f32.mrf.mxu0
  %v4562 = vadd.f32 %v542, %v4561
  %v4563 = vpop.f32.mrf.mxu0
  %4564 = vmatprep.mubr.f32.mxu0 0.0
  %4565 = vmatmul.mubr.f32.gmra.mxu0 %v1995
  %v4566 = vpop.f32.mrf.mxu0
  %v4567 = vadd.f32 %v542, %v4566
  %v4568 = vpop.f32.mrf.mxu0
  %4569 = vmatprep.mubr.f32.mxu0 0.0
  %4570 = vmatmul.mubr.f32.gmra.mxu0 %v1998
  %v4571 = vpop.f32.mrf.mxu0
  %v4572 = vadd.f32 %v542, %v4571
  %v4573 = vpop.f32.mrf.mxu0
  %4574 = vmatprep.mubr.f32.mxu0 0.0
  %4575 = vmatmul.mubr.f32.gmra.mxu0 %v2001
  %v4576 = vpop.f32.mrf.mxu0
  %v4577 = vadd.f32 %v542, %v4576
  %v4578 = vpop.f32.mrf.mxu0
  %4579 = vmatprep.mubr.f32.mxu0 0.0
  %4580 = vmatmul.mubr.f32.gmra.mxu0 %v2004
  %v4581 = vpop.f32.mrf.mxu0
  %v4582 = vadd.f32 %v542, %v4581
  %v4583 = vpop.f32.mrf.mxu0
  %4584 = vmatprep.mubr.f32.mxu0 0.0
  %4585 = vmatmul.mubr.f32.gmra.mxu0 %v2007
  %v4586 = vpop.f32.mrf.mxu0
  %v4587 = vadd.f32 %v542, %v4586
  %v4588 = vpop.f32.mrf.mxu0
  %4589 = vmatprep.mubr.f32.mxu0 0.0
  %4590 = vmatmul.mubr.f32.gmra.mxu0 %v2010
  %v4591 = vpop.f32.mrf.mxu0
  %v4592 = vadd.f32 %v542, %v4591
  %v4593 = vpop.f32.mrf.mxu0
  %4594 = vmatprep.mubr.f32.mxu0 0.0
  %4595 = vmatmul.mubr.f32.gmra.mxu0 %v2013
  %v4596 = vpop.f32.mrf.mxu0
  %v4597 = vadd.f32 %v542, %v4596
  %v4598 = vpop.f32.mrf.mxu0
  %4599 = vmatprep.mubr.f32.mxu0 0.0
  %4600 = vmatmul.mubr.f32.gmra.mxu0 %v2016
  %v4601 = vpop.f32.mrf.mxu0
  %v4602 = vadd.f32 %v542, %v4601
  %v4603 = vpop.f32.mrf.mxu0
  %4604 = vmatprep.mubr.f32.mxu0 0.0
  %4605 = vmatmul.mubr.f32.gmra.mxu0 %v2019
  %v4606 = vpop.f32.mrf.mxu0
  %v4607 = vadd.f32 %v542, %v4606
  %v4608 = vpop.f32.mrf.mxu0
  %4609 = vmatprep.mubr.f32.mxu0 0.0
  %4610 = vmatmul.mubr.f32.gmra.mxu0 %v2022
  %v4611 = vpop.f32.mrf.mxu0
  %v4612 = vadd.f32 %v542, %v4611
  %v4613 = vpop.f32.mrf.mxu0
  %4614 = vmatprep.mubr.f32.mxu0 0.0
  %4615 = vmatmul.mubr.f32.gmra.mxu0 %v2025
  %v4616 = vpop.f32.mrf.mxu0
  %v4617 = vadd.f32 %v542, %v4616
  %v4618 = vpop.f32.mrf.mxu0
  %4619 = vmatprep.mubr.f32.mxu0 0.0
  %4620 = vmatmul.mubr.f32.gmra.mxu0 %v2028
  %v4621 = vpop.f32.mrf.mxu0
  %v4622 = vadd.f32 %v542, %v4621
  %v4623 = vpop.f32.mrf.mxu0
  %4624 = vmatprep.mubr.f32.mxu0 0.0
  %4625 = vmatmul.mubr.f32.gmra.mxu0 %v2031
  %v4626 = vpop.f32.mrf.mxu0
  %v4627 = vadd.f32 %v542, %v4626
  %v4628 = vpop.f32.mrf.mxu0
  %4629 = vmatprep.mubr.f32.mxu0 0.0
  %4630 = vmatmul.mubr.f32.gmra.mxu0 %v2034
  %v4631 = vpop.f32.mrf.mxu0
  %v4632 = vadd.f32 %v542, %v4631
  %v4633 = vpop.f32.mrf.mxu0
  %4634 = vmatprep.mubr.f32.mxu0 0.0
  %4635 = vmatmul.mubr.f32.gmra.mxu0 %v2037
  %v4636 = vpop.f32.mrf.mxu0
  %v4637 = vadd.f32 %v542, %v4636
  %v4638 = vpop.f32.mrf.mxu0
  %4639 = vmatprep.mubr.f32.mxu0 0.0
  %4640 = vmatmul.mubr.f32.gmra.mxu0 %v2040
  %v4641 = vpop.f32.mrf.mxu0
  %v4642 = vadd.f32 %v542, %v4641
  %v4643 = vpop.f32.mrf.mxu0
  %4644 = vmatprep.mubr.f32.mxu0 0.0
  %4645 = vmatmul.mubr.f32.gmra.mxu0 %v2043
  %v4646 = vpop.f32.mrf.mxu0
  %v4647 = vadd.f32 %v542, %v4646
  %v4648 = vpop.f32.mrf.mxu0
  %4649 = vmatprep.mubr.f32.mxu0 0.0
  %4650 = vmatmul.mubr.f32.gmra.mxu0 %v2046
  %v4651 = vpop.f32.mrf.mxu0
  %v4652 = vadd.f32 %v542, %v4651
  %v4653 = vpop.f32.mrf.mxu0
  %4654 = vmatprep.mubr.f32.mxu0 0.0
  %4655 = vmatmul.mubr.f32.gmra.mxu0 %v2049
  %v4656 = vpop.f32.mrf.mxu0
  %v4657 = vadd.f32 %v542, %v4656
  %v4658 = vpop.f32.mrf.mxu0
  %4659 = vmatprep.mubr.f32.mxu0 0.0
  %4660 = vmatmul.mubr.f32.gmra.mxu0 %v2052
  %v4661 = vpop.f32.mrf.mxu0
  %v4662 = vadd.f32 %v542, %v4661
  %v4663 = vpop.f32.mrf.mxu0
  %4664 = vmatprep.mubr.f32.mxu0 0.0
  %4665 = vmatmul.mubr.f32.gmra.mxu0 %v2055
  %v4666 = vpop.f32.mrf.mxu0
  %v4667 = vadd.f32 %v542, %v4666
  %v4668 = vpop.f32.mrf.mxu0
  %4669 = vmatprep.mubr.f32.mxu0 0.0
  %4670 = vmatmul.mubr.f32.gmra.mxu0 %v2058
  %v4671 = vpop.f32.mrf.mxu0
  %v4672 = vadd.f32 %v542, %v4671
  %v4673 = vpop.f32.mrf.mxu0
  %4674 = vmatprep.mubr.f32.mxu0 0.0
  %4675 = vmatmul.mubr.f32.gmra.mxu0 %v2061
  %v4676 = vpop.f32.mrf.mxu0
  %v4677 = vadd.f32 %v542, %v4676
  %v4678 = vpop.f32.mrf.mxu0
  %4679 = vmatprep.mubr.f32.mxu0 0.0
  %4680 = vmatmul.mubr.f32.gmra.mxu0 %v2064
  %v4681 = vpop.f32.mrf.mxu0
  %v4682 = vadd.f32 %v542, %v4681
  %v4683 = vpop.f32.mrf.mxu0
  %4684 = vmatprep.mubr.f32.mxu0 0.0
  %4685 = vmatmul.mubr.f32.gmra.mxu0 %v2067
  %v4686 = vpop.f32.mrf.mxu0
  %v4687 = vadd.f32 %v542, %v4686
  %v4688 = vpop.f32.mrf.mxu0
  %4689 = vmatprep.mubr.f32.mxu0 0.0
  %4690 = vmatmul.mubr.f32.gmra.mxu0 %v2070
  %v4691 = vpop.f32.mrf.mxu0
  %v4692 = vadd.f32 %v542, %v4691
  %v4693 = vpop.f32.mrf.mxu0
  %4694 = vmatprep.mubr.f32.mxu0 0.0
  %4695 = vmatmul.mubr.f32.gmra.mxu0 %v2073
  %v4696 = vpop.f32.mrf.mxu0
  %v4697 = vadd.f32 %v542, %v4696
  %v4698 = vpop.f32.mrf.mxu0
  %4699 = vmatprep.mubr.f32.mxu0 0.0
  %4700 = vmatmul.mubr.f32.gmra.mxu0 %v2076
  %v4701 = vpop.f32.mrf.mxu0
  %v4702 = vadd.f32 %v542, %v4701
  %v4703 = vpop.f32.mrf.mxu0
  %4704 = vmatprep.mubr.f32.mxu0 0.0
  %4705 = vmatmul.mubr.f32.gmra.mxu0 %v2079
  %v4706 = vpop.f32.mrf.mxu0
  %v4707 = vadd.f32 %v542, %v4706
  %v4708 = vpop.f32.mrf.mxu0
  %4709 = vdwg.mxu0
  %v4710 = vmax.f32 %v2152, 0.0
  %v4711 = vmax.f32 %v2157, 0.0
  %v4712 = vmax.f32 %v2162, 0.0
  %v4713 = vmax.f32 %v2167, 0.0
  %v4714 = vmax.f32 %v2172, 0.0
  %v4715 = vmax.f32 %v2177, 0.0
  %v4716 = vmax.f32 %v2182, 0.0
  %v4717 = vmax.f32 %v2187, 0.0
  %v4718 = vmax.f32 %v2192, 0.0
  %v4719 = vmax.f32 %v2197, 0.0
  %v4720 = vmax.f32 %v2202, 0.0
  %v4721 = vmax.f32 %v2207, 0.0
  %v4722 = vmax.f32 %v2212, 0.0
  %v4723 = vmax.f32 %v2217, 0.0
  %v4724 = vmax.f32 %v2222, 0.0
  %v4725 = vmax.f32 %v2227, 0.0
  %v4726 = vmax.f32 %v2232, 0.0
  %v4727 = vmax.f32 %v2237, 0.0
  %v4728 = vmax.f32 %v2242, 0.0
  %v4729 = vmax.f32 %v2247, 0.0
  %v4730 = vmax.f32 %v2252, 0.0
  %v4731 = vmax.f32 %v2257, 0.0
  %v4732 = vmax.f32 %v2262, 0.0
  %v4733 = vmax.f32 %v2267, 0.0
  %v4734 = vmax.f32 %v2272, 0.0
  %v4735 = vmax.f32 %v2277, 0.0
  %v4736 = vmax.f32 %v2282, 0.0
  %v4737 = vmax.f32 %v2287, 0.0
  %v4738 = vmax.f32 %v2292, 0.0
  %v4739 = vmax.f32 %v2297, 0.0
  %v4740 = vmax.f32 %v2302, 0.0
  %v4741 = vmax.f32 %v2307, 0.0
  %v4742 = vmax.f32 %v2312, 0.0
  %v4743 = vmax.f32 %v2317, 0.0
  %v4744 = vmax.f32 %v2322, 0.0
  %v4745 = vmax.f32 %v2327, 0.0
  %v4746 = vmax.f32 %v2332, 0.0
  %v4747 = vmax.f32 %v2337, 0.0
  %v4748 = vmax.f32 %v2342, 0.0
  %v4749 = vmax.f32 %v2347, 0.0
  %v4750 = vmax.f32 %v2352, 0.0
  %v4751 = vmax.f32 %v2357, 0.0
  %v4752 = vmax.f32 %v2362, 0.0
  %v4753 = vmax.f32 %v2367, 0.0
  %v4754 = vmax.f32 %v2372, 0.0
  %v4755 = vmax.f32 %v2377, 0.0
  %v4756 = vmax.f32 %v2382, 0.0
  %v4757 = vmax.f32 %v2387, 0.0
  %v4758 = vmax.f32 %v2392, 0.0
  %v4759 = vmax.f32 %v2397, 0.0
  %v4760 = vmax.f32 %v2402, 0.0
  %v4761 = vmax.f32 %v2407, 0.0
  %v4762 = vmax.f32 %v2412, 0.0
  %v4763 = vmax.f32 %v2417, 0.0
  %v4764 = vmax.f32 %v2422, 0.0
  %v4765 = vmax.f32 %v2427, 0.0
  %v4766 = vmax.f32 %v2432, 0.0
  %v4767 = vmax.f32 %v2437, 0.0
  %v4768 = vmax.f32 %v2442, 0.0
  %v4769 = vmax.f32 %v2447, 0.0
  %v4770 = vmax.f32 %v2452, 0.0
  %v4771 = vmax.f32 %v2457, 0.0
  %v4772 = vmax.f32 %v2462, 0.0
  %v4773 = vmax.f32 %v2467, 0.0
  %v4774 = vmax.f32 %v2472, 0.0
  %v4775 = vmax.f32 %v2477, 0.0
  %v4776 = vmax.f32 %v2482, 0.0
  %v4777 = vmax.f32 %v2487, 0.0
  %v4778 = vmax.f32 %v2492, 0.0
  %v4779 = vmax.f32 %v2497, 0.0
  %v4780 = vmax.f32 %v2502, 0.0
  %v4781 = vmax.f32 %v2507, 0.0
  %v4782 = vmax.f32 %v2512, 0.0
  %v4783 = vmax.f32 %v2517, 0.0
  %v4784 = vmax.f32 %v2522, 0.0
  %v4785 = vmax.f32 %v2527, 0.0
  %v4786 = vmax.f32 %v2532, 0.0
  %v4787 = vmax.f32 %v2537, 0.0
  %v4788 = vmax.f32 %v2542, 0.0
  %v4789 = vmax.f32 %v2547, 0.0
  %v4790 = vmax.f32 %v2552, 0.0
  %v4791 = vmax.f32 %v2557, 0.0
  %v4792 = vmax.f32 %v2562, 0.0
  %v4793 = vmax.f32 %v2567, 0.0
  %v4794 = vmax.f32 %v2572, 0.0
  %v4795 = vmax.f32 %v2577, 0.0
  %v4796 = vmax.f32 %v2582, 0.0
  %v4797 = vmax.f32 %v2587, 0.0
  %v4798 = vmax.f32 %v2592, 0.0
  %v4799 = vmax.f32 %v2597, 0.0
  %v4800 = vmax.f32 %v2602, 0.0
  %v4801 = vmax.f32 %v2607, 0.0
  %v4802 = vmax.f32 %v2612, 0.0
  %v4803 = vmax.f32 %v2617, 0.0
  %v4804 = vmax.f32 %v2622, 0.0
  %v4805 = vmax.f32 %v2627, 0.0
  %v4806 = vmax.f32 %v2632, 0.0
  %v4807 = vmax.f32 %v2637, 0.0
  %v4808 = vmax.f32 %v2642, 0.0
  %v4809 = vmax.f32 %v2647, 0.0
  %v4810 = vmax.f32 %v2652, 0.0
  %v4811 = vmax.f32 %v2657, 0.0
  %v4812 = vmax.f32 %v2662, 0.0
  %v4813 = vmax.f32 %v2667, 0.0
  %v4814 = vmax.f32 %v2672, 0.0
  %v4815 = vmax.f32 %v2677, 0.0
  %v4816 = vmax.f32 %v2682, 0.0
  %v4817 = vmax.f32 %v2687, 0.0
  %v4818 = vmax.f32 %v2692, 0.0
  %v4819 = vmax.f32 %v2697, 0.0
  %v4820 = vmax.f32 %v2702, 0.0
  %v4821 = vmax.f32 %v2707, 0.0
  %v4822 = vmax.f32 %v2712, 0.0
  %v4823 = vmax.f32 %v2717, 0.0
  %v4824 = vmax.f32 %v2722, 0.0
  %v4825 = vmax.f32 %v2727, 0.0
  %v4826 = vmax.f32 %v2732, 0.0
  %v4827 = vmax.f32 %v2737, 0.0
  %v4828 = vmax.f32 %v2742, 0.0
  %v4829 = vmax.f32 %v2747, 0.0
  %v4830 = vmax.f32 %v2752, 0.0
  %v4831 = vmax.f32 %v2757, 0.0
  %v4832 = vmax.f32 %v2762, 0.0
  %v4833 = vmax.f32 %v2767, 0.0
  %v4834 = vmax.f32 %v2772, 0.0
  %v4835 = vmax.f32 %v2777, 0.0
  %v4836 = vmax.f32 %v2782, 0.0
  %v4837 = vmax.f32 %v2787, 0.0
  %v4838 = vmax.f32 %v2792, 0.0
  %v4839 = vmax.f32 %v2797, 0.0
  %v4840 = vmax.f32 %v2802, 0.0
  %v4841 = vmax.f32 %v2807, 0.0
  %v4842 = vmax.f32 %v2812, 0.0
  %v4843 = vmax.f32 %v2817, 0.0
  %v4844 = vmax.f32 %v2822, 0.0
  %v4845 = vmax.f32 %v2827, 0.0
  %v4846 = vmax.f32 %v2832, 0.0
  %v4847 = vmax.f32 %v2837, 0.0
  %v4848 = vmax.f32 %v2842, 0.0
  %v4849 = vmax.f32 %v2847, 0.0
  %v4850 = vmax.f32 %v2852, 0.0
  %v4851 = vmax.f32 %v2857, 0.0
  %v4852 = vmax.f32 %v2862, 0.0
  %v4853 = vmax.f32 %v2867, 0.0
  %v4854 = vmax.f32 %v2872, 0.0
  %v4855 = vmax.f32 %v2877, 0.0
  %v4856 = vmax.f32 %v2882, 0.0
  %v4857 = vmax.f32 %v2887, 0.0
  %v4858 = vmax.f32 %v2892, 0.0
  %v4859 = vmax.f32 %v2897, 0.0
  %v4860 = vmax.f32 %v2902, 0.0
  %v4861 = vmax.f32 %v2907, 0.0
  %v4862 = vmax.f32 %v2912, 0.0
  %v4863 = vmax.f32 %v2917, 0.0
  %v4864 = vmax.f32 %v2922, 0.0
  %v4865 = vmax.f32 %v2927, 0.0
  %v4866 = vmax.f32 %v2932, 0.0
  %v4867 = vmax.f32 %v2937, 0.0
  %v4868 = vmax.f32 %v2942, 0.0
  %v4869 = vmax.f32 %v2947, 0.0
  %v4870 = vmax.f32 %v2952, 0.0
  %v4871 = vmax.f32 %v2957, 0.0
  %v4872 = vmax.f32 %v2962, 0.0
  %v4873 = vmax.f32 %v2967, 0.0
  %v4874 = vmax.f32 %v2972, 0.0
  %v4875 = vmax.f32 %v2977, 0.0
  %v4876 = vmax.f32 %v2982, 0.0
  %v4877 = vmax.f32 %v2987, 0.0
  %v4878 = vmax.f32 %v2992, 0.0
  %v4879 = vmax.f32 %v2997, 0.0
  %v4880 = vmax.f32 %v3002, 0.0
  %v4881 = vmax.f32 %v3007, 0.0
  %v4882 = vmax.f32 %v3012, 0.0
  %v4883 = vmax.f32 %v3017, 0.0
  %v4884 = vmax.f32 %v3022, 0.0
  %v4885 = vmax.f32 %v3027, 0.0
  %v4886 = vmax.f32 %v3032, 0.0
  %v4887 = vmax.f32 %v3037, 0.0
  %v4888 = vmax.f32 %v3042, 0.0
  %v4889 = vmax.f32 %v3047, 0.0
  %v4890 = vmax.f32 %v3052, 0.0
  %v4891 = vmax.f32 %v3057, 0.0
  %v4892 = vmax.f32 %v3062, 0.0
  %v4893 = vmax.f32 %v3067, 0.0
  %v4894 = vmax.f32 %v3072, 0.0
  %v4895 = vmax.f32 %v3077, 0.0
  %v4896 = vmax.f32 %v3082, 0.0
  %v4897 = vmax.f32 %v3087, 0.0
  %v4898 = vmax.f32 %v3092, 0.0
  %v4899 = vmax.f32 %v3097, 0.0
  %v4900 = vmax.f32 %v3102, 0.0
  %v4901 = vmax.f32 %v3107, 0.0
  %v4902 = vmax.f32 %v3112, 0.0
  %v4903 = vmax.f32 %v3117, 0.0
  %v4904 = vmax.f32 %v3122, 0.0
  %v4905 = vmax.f32 %v3127, 0.0
  %v4906 = vmax.f32 %v3132, 0.0
  %v4907 = vmax.f32 %v3137, 0.0
  %v4908 = vmax.f32 %v3142, 0.0
  %v4909 = vmax.f32 %v3147, 0.0
  %v4910 = vmax.f32 %v3152, 0.0
  %v4911 = vmax.f32 %v3157, 0.0
  %v4912 = vmax.f32 %v3162, 0.0
  %v4913 = vmax.f32 %v3167, 0.0
  %v4914 = vmax.f32 %v3172, 0.0
  %v4915 = vmax.f32 %v3177, 0.0
  %v4916 = vmax.f32 %v3182, 0.0
  %v4917 = vmax.f32 %v3187, 0.0
  %v4918 = vmax.f32 %v3192, 0.0
  %v4919 = vmax.f32 %v3197, 0.0
  %v4920 = vmax.f32 %v3202, 0.0
  %v4921 = vmax.f32 %v3207, 0.0
  %v4922 = vmax.f32 %v3212, 0.0
  %v4923 = vmax.f32 %v3217, 0.0
  %v4924 = vmax.f32 %v3222, 0.0
  %v4925 = vmax.f32 %v3227, 0.0
  %v4926 = vmax.f32 %v3232, 0.0
  %v4927 = vmax.f32 %v3237, 0.0
  %v4928 = vmax.f32 %v3242, 0.0
  %v4929 = vmax.f32 %v3247, 0.0
  %v4930 = vmax.f32 %v3252, 0.0
  %v4931 = vmax.f32 %v3257, 0.0
  %v4932 = vmax.f32 %v3262, 0.0
  %v4933 = vmax.f32 %v3267, 0.0
  %v4934 = vmax.f32 %v3272, 0.0
  %v4935 = vmax.f32 %v3277, 0.0
  %v4936 = vmax.f32 %v3282, 0.0
  %v4937 = vmax.f32 %v3287, 0.0
  %v4938 = vmax.f32 %v3292, 0.0
  %v4939 = vmax.f32 %v3297, 0.0
  %v4940 = vmax.f32 %v3302, 0.0
  %v4941 = vmax.f32 %v3307, 0.0
  %v4942 = vmax.f32 %v3312, 0.0
  %v4943 = vmax.f32 %v3317, 0.0
  %v4944 = vmax.f32 %v3322, 0.0
  %v4945 = vmax.f32 %v3327, 0.0
  %v4946 = vmax.f32 %v3332, 0.0
  %v4947 = vmax.f32 %v3337, 0.0
  %v4948 = vmax.f32 %v3342, 0.0
  %v4949 = vmax.f32 %v3347, 0.0
  %v4950 = vmax.f32 %v3352, 0.0
  %v4951 = vmax.f32 %v3357, 0.0
  %v4952 = vmax.f32 %v3362, 0.0
  %v4953 = vmax.f32 %v3367, 0.0
  %v4954 = vmax.f32 %v3372, 0.0
  %v4955 = vmax.f32 %v3377, 0.0
  %v4956 = vmax.f32 %v3382, 0.0
  %v4957 = vmax.f32 %v3387, 0.0
  %v4958 = vmax.f32 %v3392, 0.0
  %v4959 = vmax.f32 %v3397, 0.0
  %v4960 = vmax.f32 %v3402, 0.0
  %v4961 = vmax.f32 %v3407, 0.0
  %v4962 = vmax.f32 %v3412, 0.0
  %v4963 = vmax.f32 %v3417, 0.0
  %v4964 = vmax.f32 %v3422, 0.0
  %v4965 = vmax.f32 %v3427, 0.0
  %v4966 = vmax.f32 %v3432, 0.0
  %v4967 = vmax.f32 %v3437, 0.0
  %v4968 = vmax.f32 %v3442, 0.0
  %v4969 = vmax.f32 %v3447, 0.0
  %v4970 = vmax.f32 %v3452, 0.0
  %v4971 = vmax.f32 %v3457, 0.0
  %v4972 = vmax.f32 %v3462, 0.0
  %v4973 = vmax.f32 %v3467, 0.0
  %v4974 = vmax.f32 %v3472, 0.0
  %v4975 = vmax.f32 %v3477, 0.0
  %v4976 = vmax.f32 %v3482, 0.0
  %v4977 = vmax.f32 %v3487, 0.0
  %v4978 = vmax.f32 %v3492, 0.0
  %v4979 = vmax.f32 %v3497, 0.0
  %v4980 = vmax.f32 %v3502, 0.0
  %v4981 = vmax.f32 %v3507, 0.0
  %v4982 = vmax.f32 %v3512, 0.0
  %v4983 = vmax.f32 %v3517, 0.0
  %v4984 = vmax.f32 %v3522, 0.0
  %v4985 = vmax.f32 %v3527, 0.0
  %v4986 = vmax.f32 %v3532, 0.0
  %v4987 = vmax.f32 %v3537, 0.0
  %v4988 = vmax.f32 %v3542, 0.0
  %v4989 = vmax.f32 %v3547, 0.0
  %v4990 = vmax.f32 %v3552, 0.0
  %v4991 = vmax.f32 %v3557, 0.0
  %v4992 = vmax.f32 %v3562, 0.0
  %v4993 = vmax.f32 %v3567, 0.0
  %v4994 = vmax.f32 %v3572, 0.0
  %v4995 = vmax.f32 %v3577, 0.0
  %v4996 = vmax.f32 %v3582, 0.0
  %v4997 = vmax.f32 %v3587, 0.0
  %v4998 = vmax.f32 %v3592, 0.0
  %v4999 = vmax.f32 %v3597, 0.0
  %v5000 = vmax.f32 %v3602, 0.0
  %v5001 = vmax.f32 %v3607, 0.0
  %v5002 = vmax.f32 %v3612, 0.0
  %v5003 = vmax.f32 %v3617, 0.0
  %v5004 = vmax.f32 %v3622, 0.0
  %v5005 = vmax.f32 %v3627, 0.0
  %v5006 = vmax.f32 %v3632, 0.0
  %v5007 = vmax.f32 %v3637, 0.0
  %v5008 = vmax.f32 %v3642, 0.0
  %v5009 = vmax.f32 %v3647, 0.0
  %v5010 = vmax.f32 %v3652, 0.0
  %v5011 = vmax.f32 %v3657, 0.0
  %v5012 = vmax.f32 %v3662, 0.0
  %v5013 = vmax.f32 %v3667, 0.0
  %v5014 = vmax.f32 %v3672, 0.0
  %v5015 = vmax.f32 %v3677, 0.0
  %v5016 = vmax.f32 %v3682, 0.0
  %v5017 = vmax.f32 %v3687, 0.0
  %v5018 = vmax.f32 %v3692, 0.0
  %v5019 = vmax.f32 %v3697, 0.0
  %v5020 = vmax.f32 %v3702, 0.0
  %v5021 = vmax.f32 %v3707, 0.0
  %v5022 = vmax.f32 %v3712, 0.0
  %v5023 = vmax.f32 %v3717, 0.0
  %v5024 = vmax.f32 %v3722, 0.0
  %v5025 = vmax.f32 %v3727, 0.0
  %v5026 = vmax.f32 %v3732, 0.0
  %v5027 = vmax.f32 %v3737, 0.0
  %v5028 = vmax.f32 %v3742, 0.0
  %v5029 = vmax.f32 %v3747, 0.0
  %v5030 = vmax.f32 %v3752, 0.0
  %v5031 = vmax.f32 %v3757, 0.0
  %v5032 = vmax.f32 %v3762, 0.0
  %v5033 = vmax.f32 %v3767, 0.0
  %v5034 = vmax.f32 %v3772, 0.0
  %v5035 = vmax.f32 %v3777, 0.0
  %v5036 = vmax.f32 %v3782, 0.0
  %v5037 = vmax.f32 %v3787, 0.0
  %v5038 = vmax.f32 %v3792, 0.0
  %v5039 = vmax.f32 %v3797, 0.0
  %v5040 = vmax.f32 %v3802, 0.0
  %v5041 = vmax.f32 %v3807, 0.0
  %v5042 = vmax.f32 %v3812, 0.0
  %v5043 = vmax.f32 %v3817, 0.0
  %v5044 = vmax.f32 %v3822, 0.0
  %v5045 = vmax.f32 %v3827, 0.0
  %v5046 = vmax.f32 %v3832, 0.0
  %v5047 = vmax.f32 %v3837, 0.0
  %v5048 = vmax.f32 %v3842, 0.0
  %v5049 = vmax.f32 %v3847, 0.0
  %v5050 = vmax.f32 %v3852, 0.0
  %v5051 = vmax.f32 %v3857, 0.0
  %v5052 = vmax.f32 %v3862, 0.0
  %v5053 = vmax.f32 %v3867, 0.0
  %v5054 = vmax.f32 %v3872, 0.0
  %v5055 = vmax.f32 %v3877, 0.0
  %v5056 = vmax.f32 %v3882, 0.0
  %v5057 = vmax.f32 %v3887, 0.0
  %v5058 = vmax.f32 %v3892, 0.0
  %v5059 = vmax.f32 %v3897, 0.0
  %v5060 = vmax.f32 %v3902, 0.0
  %v5061 = vmax.f32 %v3907, 0.0
  %v5062 = vmax.f32 %v3912, 0.0
  %v5063 = vmax.f32 %v3917, 0.0
  %v5064 = vmax.f32 %v3922, 0.0
  %v5065 = vmax.f32 %v3927, 0.0
  %v5066 = vmax.f32 %v3932, 0.0
  %v5067 = vmax.f32 %v3937, 0.0
  %v5068 = vmax.f32 %v3942, 0.0
  %v5069 = vmax.f32 %v3947, 0.0
  %v5070 = vmax.f32 %v3952, 0.0
  %v5071 = vmax.f32 %v3957, 0.0
  %v5072 = vmax.f32 %v3962, 0.0
  %v5073 = vmax.f32 %v3967, 0.0
  %v5074 = vmax.f32 %v3972, 0.0
  %v5075 = vmax.f32 %v3977, 0.0
  %v5076 = vmax.f32 %v3982, 0.0
  %v5077 = vmax.f32 %v3987, 0.0
  %v5078 = vmax.f32 %v3992, 0.0
  %v5079 = vmax.f32 %v3997, 0.0
  %v5080 = vmax.f32 %v4002, 0.0
  %v5081 = vmax.f32 %v4007, 0.0
  %v5082 = vmax.f32 %v4012, 0.0
  %v5083 = vmax.f32 %v4017, 0.0
  %v5084 = vmax.f32 %v4022, 0.0
  %v5085 = vmax.f32 %v4027, 0.0
  %v5086 = vmax.f32 %v4032, 0.0
  %v5087 = vmax.f32 %v4037, 0.0
  %v5088 = vmax.f32 %v4042, 0.0
  %v5089 = vmax.f32 %v4047, 0.0
  %v5090 = vmax.f32 %v4052, 0.0
  %v5091 = vmax.f32 %v4057, 0.0
  %v5092 = vmax.f32 %v4062, 0.0
  %v5093 = vmax.f32 %v4067, 0.0
  %v5094 = vmax.f32 %v4072, 0.0
  %v5095 = vmax.f32 %v4077, 0.0
  %v5096 = vmax.f32 %v4082, 0.0
  %v5097 = vmax.f32 %v4087, 0.0
  %v5098 = vmax.f32 %v4092, 0.0
  %v5099 = vmax.f32 %v4097, 0.0
  %v5100 = vmax.f32 %v4102, 0.0
  %v5101 = vmax.f32 %v4107, 0.0
  %v5102 = vmax.f32 %v4112, 0.0
  %v5103 = vmax.f32 %v4117, 0.0
  %v5104 = vmax.f32 %v4122, 0.0
  %v5105 = vmax.f32 %v4127, 0.0
  %v5106 = vmax.f32 %v4132, 0.0
  %v5107 = vmax.f32 %v4137, 0.0
  %v5108 = vmax.f32 %v4142, 0.0
  %v5109 = vmax.f32 %v4147, 0.0
  %v5110 = vmax.f32 %v4152, 0.0
  %v5111 = vmax.f32 %v4157, 0.0
  %v5112 = vmax.f32 %v4162, 0.0
  %v5113 = vmax.f32 %v4167, 0.0
  %v5114 = vmax.f32 %v4172, 0.0
  %v5115 = vmax.f32 %v4177, 0.0
  %v5116 = vmax.f32 %v4182, 0.0
  %v5117 = vmax.f32 %v4187, 0.0
  %v5118 = vmax.f32 %v4192, 0.0
  %v5119 = vmax.f32 %v4197, 0.0
  %v5120 = vmax.f32 %v4202, 0.0
  %v5121 = vmax.f32 %v4207, 0.0
  %v5122 = vmax.f32 %v4212, 0.0
  %v5123 = vmax.f32 %v4217, 0.0
  %v5124 = vmax.f32 %v4222, 0.0
  %v5125 = vmax.f32 %v4227, 0.0
  %v5126 = vmax.f32 %v4232, 0.0
  %v5127 = vmax.f32 %v4237, 0.0
  %v5128 = vmax.f32 %v4242, 0.0
  %v5129 = vmax.f32 %v4247, 0.0
  %v5130 = vmax.f32 %v4252, 0.0
  %v5131 = vmax.f32 %v4257, 0.0
  %v5132 = vmax.f32 %v4262, 0.0
  %v5133 = vmax.f32 %v4267, 0.0
  %v5134 = vmax.f32 %v4272, 0.0
  %v5135 = vmax.f32 %v4277, 0.0
  %v5136 = vmax.f32 %v4282, 0.0
  %v5137 = vmax.f32 %v4287, 0.0
  %v5138 = vmax.f32 %v4292, 0.0
  %v5139 = vmax.f32 %v4297, 0.0
  %v5140 = vmax.f32 %v4302, 0.0
  %v5141 = vmax.f32 %v4307, 0.0
  %v5142 = vmax.f32 %v4312, 0.0
  %v5143 = vmax.f32 %v4317, 0.0
  %v5144 = vmax.f32 %v4322, 0.0
  %v5145 = vmax.f32 %v4327, 0.0
  %v5146 = vmax.f32 %v4332, 0.0
  %v5147 = vmax.f32 %v4337, 0.0
  %v5148 = vmax.f32 %v4342, 0.0
  %v5149 = vmax.f32 %v4347, 0.0
  %v5150 = vmax.f32 %v4352, 0.0
  %v5151 = vmax.f32 %v4357, 0.0
  %v5152 = vmax.f32 %v4362, 0.0
  %v5153 = vmax.f32 %v4367, 0.0
  %v5154 = vmax.f32 %v4372, 0.0
  %v5155 = vmax.f32 %v4377, 0.0
  %v5156 = vmax.f32 %v4382, 0.0
  %v5157 = vmax.f32 %v4387, 0.0
  %v5158 = vmax.f32 %v4392, 0.0
  %v5159 = vmax.f32 %v4397, 0.0
  %v5160 = vmax.f32 %v4402, 0.0
  %v5161 = vmax.f32 %v4407, 0.0
  %v5162 = vmax.f32 %v4412, 0.0
  %v5163 = vmax.f32 %v4417, 0.0
  %v5164 = vmax.f32 %v4422, 0.0
  %v5165 = vmax.f32 %v4427, 0.0
  %v5166 = vmax.f32 %v4432, 0.0
  %v5167 = vmax.f32 %v4437, 0.0
  %v5168 = vmax.f32 %v4442, 0.0
  %v5169 = vmax.f32 %v4447, 0.0
  %v5170 = vmax.f32 %v4452, 0.0
  %v5171 = vmax.f32 %v4457, 0.0
  %v5172 = vmax.f32 %v4462, 0.0
  %v5173 = vmax.f32 %v4467, 0.0
  %v5174 = vmax.f32 %v4472, 0.0
  %v5175 = vmax.f32 %v4477, 0.0
  %v5176 = vmax.f32 %v4482, 0.0
  %v5177 = vmax.f32 %v4487, 0.0
  %v5178 = vmax.f32 %v4492, 0.0
  %v5179 = vmax.f32 %v4497, 0.0
  %v5180 = vmax.f32 %v4502, 0.0
  %v5181 = vmax.f32 %v4507, 0.0
  %v5182 = vmax.f32 %v4512, 0.0
  %v5183 = vmax.f32 %v4517, 0.0
  %v5184 = vmax.f32 %v4522, 0.0
  %v5185 = vmax.f32 %v4527, 0.0
  %v5186 = vmax.f32 %v4532, 0.0
  %v5187 = vmax.f32 %v4537, 0.0
  %v5188 = vmax.f32 %v4542, 0.0
  %v5189 = vmax.f32 %v4547, 0.0
  %v5190 = vmax.f32 %v4552, 0.0
  %v5191 = vmax.f32 %v4557, 0.0
  %v5192 = vmax.f32 %v4562, 0.0
  %v5193 = vmax.f32 %v4567, 0.0
  %v5194 = vmax.f32 %v4572, 0.0
  %v5195 = vmax.f32 %v4577, 0.0
  %v5196 = vmax.f32 %v4582, 0.0
  %v5197 = vmax.f32 %v4587, 0.0
  %v5198 = vmax.f32 %v4592, 0.0
  %v5199 = vmax.f32 %v4597, 0.0
  %v5200 = vmax.f32 %v4602, 0.0
  %v5201 = vmax.f32 %v4607, 0.0
  %v5202 = vmax.f32 %v4612, 0.0
  %v5203 = vmax.f32 %v4617, 0.0
  %v5204 = vmax.f32 %v4622, 0.0
  %v5205 = vmax.f32 %v4627, 0.0
  %v5206 = vmax.f32 %v4632, 0.0
  %v5207 = vmax.f32 %v4637, 0.0
  %v5208 = vmax.f32 %v4642, 0.0
  %v5209 = vmax.f32 %v4647, 0.0
  %v5210 = vmax.f32 %v4652, 0.0
  %v5211 = vmax.f32 %v4657, 0.0
  %v5212 = vmax.f32 %v4662, 0.0
  %v5213 = vmax.f32 %v4667, 0.0
  %v5214 = vmax.f32 %v4672, 0.0
  %v5215 = vmax.f32 %v4677, 0.0
  %v5216 = vmax.f32 %v4682, 0.0
  %v5217 = vmax.f32 %v4687, 0.0
  %v5218 = vmax.f32 %v4692, 0.0
  %v5219 = vmax.f32 %v4697, 0.0
  %v5220 = vmax.f32 %v4702, 0.0
  %v5221 = vmax.f32 %v4707, 0.0
  %vm5222 = vcmask 261120
  %v5223 = vsel %vm5222, %v4710, 0.0
  %v5224 = vsel %vm5222, %v4711, 0.0
  %v5225 = vadd.f32 %v5223, %v5224
  %v5226 = vsel %vm5222, %v4712, 0.0
  %v5227 = vadd.f32 %v5225, %v5226
  %v5228 = vsel %vm5222, %v4713, 0.0
  %v5229 = vadd.f32 %v5227, %v5228
  %v5230 = vsel %vm5222, %v4714, 0.0
  %v5231 = vadd.f32 %v5229, %v5230
  %v5232 = vsel %vm5222, %v4715, 0.0
  %v5233 = vadd.f32 %v5231, %v5232
  %v5234 = vsel %vm5222, %v4716, 0.0
  %v5235 = vadd.f32 %v5233, %v5234
  %v5236 = vsel %vm5222, %v4717, 0.0
  %v5237 = vadd.f32 %v5235, %v5236
  %v5238 = vsel %vm5222, %v4718, 0.0
  %v5239 = vadd.f32 %v5237, %v5238
  %v5240 = vsel %vm5222, %v4719, 0.0
  %v5241 = vadd.f32 %v5239, %v5240
  %v5242 = vsel %vm5222, %v4720, 0.0
  %v5243 = vadd.f32 %v5241, %v5242
  %v5244 = vsel %vm5222, %v4721, 0.0
  %v5245 = vadd.f32 %v5243, %v5244
  %v5246 = vsel %vm5222, %v4722, 0.0
  %v5247 = vadd.f32 %v5245, %v5246
  %v5248 = vsel %vm5222, %v4723, 0.0
  %v5249 = vadd.f32 %v5247, %v5248
  %v5250 = vsel %vm5222, %v4724, 0.0
  %v5251 = vadd.f32 %v5249, %v5250
  %v5252 = vsel %vm5222, %v4725, 0.0
  %v5253 = vadd.f32 %v5251, %v5252
  %v5254 = vsel %vm5222, %v4726, 0.0
  %v5255 = vadd.f32 %v5253, %v5254
  %v5256 = vsel %vm5222, %v4727, 0.0
  %v5257 = vadd.f32 %v5255, %v5256
  %v5258 = vsel %vm5222, %v4728, 0.0
  %v5259 = vadd.f32 %v5257, %v5258
  %v5260 = vsel %vm5222, %v4729, 0.0
  %v5261 = vadd.f32 %v5259, %v5260
  %v5262 = vsel %vm5222, %v4730, 0.0
  %v5263 = vadd.f32 %v5261, %v5262
  %v5264 = vsel %vm5222, %v4731, 0.0
  %v5265 = vadd.f32 %v5263, %v5264
  %v5266 = vsel %vm5222, %v4732, 0.0
  %v5267 = vadd.f32 %v5265, %v5266
  %v5268 = vsel %vm5222, %v4733, 0.0
  %v5269 = vadd.f32 %v5267, %v5268
  %v5270 = vsel %vm5222, %v4734, 0.0
  %v5271 = vadd.f32 %v5269, %v5270
  %v5272 = vsel %vm5222, %v4735, 0.0
  %v5273 = vadd.f32 %v5271, %v5272
  %v5274 = vsel %vm5222, %v4736, 0.0
  %v5275 = vadd.f32 %v5273, %v5274
  %v5276 = vsel %vm5222, %v4737, 0.0
  %v5277 = vadd.f32 %v5275, %v5276
  %v5278 = vsel %vm5222, %v4738, 0.0
  %v5279 = vadd.f32 %v5277, %v5278
  %v5280 = vsel %vm5222, %v4739, 0.0
  %v5281 = vadd.f32 %v5279, %v5280
  %v5282 = vsel %vm5222, %v4740, 0.0
  %v5283 = vadd.f32 %v5281, %v5282
  %v5284 = vsel %vm5222, %v4741, 0.0
  %v5285 = vadd.f32 %v5283, %v5284
  %v5286 = vrot.slane %v5285, 4
  %v5287 = vadd.f32 %v5285, %v5286
  %v5288 = vrot.slane %v5287, 2
  %v5289 = vadd.f32 %v5287, %v5288
  %v5290 = vrot.slane %v5289, 1
  %v5291 = vadd.f32 %v5289, %v5290
  %v5292 = vsel %vm5222, %v4742, 0.0
  %v5293 = vsel %vm5222, %v4743, 0.0
  %v5294 = vadd.f32 %v5292, %v5293
  %v5295 = vsel %vm5222, %v4744, 0.0
  %v5296 = vadd.f32 %v5294, %v5295
  %v5297 = vsel %vm5222, %v4745, 0.0
  %v5298 = vadd.f32 %v5296, %v5297
  %v5299 = vsel %vm5222, %v4746, 0.0
  %v5300 = vadd.f32 %v5298, %v5299
  %v5301 = vsel %vm5222, %v4747, 0.0
  %v5302 = vadd.f32 %v5300, %v5301
  %v5303 = vsel %vm5222, %v4748, 0.0
  %v5304 = vadd.f32 %v5302, %v5303
  %v5305 = vsel %vm5222, %v4749, 0.0
  %v5306 = vadd.f32 %v5304, %v5305
  %v5307 = vsel %vm5222, %v4750, 0.0
  %v5308 = vadd.f32 %v5306, %v5307
  %v5309 = vsel %vm5222, %v4751, 0.0
  %v5310 = vadd.f32 %v5308, %v5309
  %v5311 = vsel %vm5222, %v4752, 0.0
  %v5312 = vadd.f32 %v5310, %v5311
  %v5313 = vsel %vm5222, %v4753, 0.0
  %v5314 = vadd.f32 %v5312, %v5313
  %v5315 = vsel %vm5222, %v4754, 0.0
  %v5316 = vadd.f32 %v5314, %v5315
  %v5317 = vsel %vm5222, %v4755, 0.0
  %v5318 = vadd.f32 %v5316, %v5317
  %v5319 = vsel %vm5222, %v4756, 0.0
  %v5320 = vadd.f32 %v5318, %v5319
  %v5321 = vsel %vm5222, %v4757, 0.0
  %v5322 = vadd.f32 %v5320, %v5321
  %v5323 = vsel %vm5222, %v4758, 0.0
  %v5324 = vadd.f32 %v5322, %v5323
  %v5325 = vsel %vm5222, %v4759, 0.0
  %v5326 = vadd.f32 %v5324, %v5325
  %v5327 = vsel %vm5222, %v4760, 0.0
  %v5328 = vadd.f32 %v5326, %v5327
  %v5329 = vsel %vm5222, %v4761, 0.0
  %v5330 = vadd.f32 %v5328, %v5329
  %v5331 = vsel %vm5222, %v4762, 0.0
  %v5332 = vadd.f32 %v5330, %v5331
  %v5333 = vsel %vm5222, %v4763, 0.0
  %v5334 = vadd.f32 %v5332, %v5333
  %v5335 = vsel %vm5222, %v4764, 0.0
  %v5336 = vadd.f32 %v5334, %v5335
  %v5337 = vsel %vm5222, %v4765, 0.0
  %v5338 = vadd.f32 %v5336, %v5337
  %v5339 = vsel %vm5222, %v4766, 0.0
  %v5340 = vadd.f32 %v5338, %v5339
  %v5341 = vsel %vm5222, %v4767, 0.0
  %v5342 = vadd.f32 %v5340, %v5341
  %v5343 = vsel %vm5222, %v4768, 0.0
  %v5344 = vadd.f32 %v5342, %v5343
  %v5345 = vsel %vm5222, %v4769, 0.0
  %v5346 = vadd.f32 %v5344, %v5345
  %v5347 = vsel %vm5222, %v4770, 0.0
  %v5348 = vadd.f32 %v5346, %v5347
  %v5349 = vsel %vm5222, %v4771, 0.0
  %v5350 = vadd.f32 %v5348, %v5349
  %v5351 = vsel %vm5222, %v4772, 0.0
  %v5352 = vadd.f32 %v5350, %v5351
  %v5353 = vsel %vm5222, %v4773, 0.0
  %v5354 = vadd.f32 %v5352, %v5353
  %v5355 = vrot.slane %v5354, 4
  %v5356 = vadd.f32 %v5354, %v5355
  %v5357 = vrot.slane %v5356, 2
  %v5358 = vadd.f32 %v5356, %v5357
  %v5359 = vrot.slane %v5358, 1
  %v5360 = vadd.f32 %v5358, %v5359
  %v5361 = vsel %vm5222, %v4774, 0.0
  %v5362 = vsel %vm5222, %v4775, 0.0
  %v5363 = vadd.f32 %v5361, %v5362
  %v5364 = vsel %vm5222, %v4776, 0.0
  %v5365 = vadd.f32 %v5363, %v5364
  %v5366 = vsel %vm5222, %v4777, 0.0
  %v5367 = vadd.f32 %v5365, %v5366
  %v5368 = vsel %vm5222, %v4778, 0.0
  %v5369 = vadd.f32 %v5367, %v5368
  %v5370 = vsel %vm5222, %v4779, 0.0
  %v5371 = vadd.f32 %v5369, %v5370
  %v5372 = vsel %vm5222, %v4780, 0.0
  %v5373 = vadd.f32 %v5371, %v5372
  %v5374 = vsel %vm5222, %v4781, 0.0
  %v5375 = vadd.f32 %v5373, %v5374
  %v5376 = vsel %vm5222, %v4782, 0.0
  %v5377 = vadd.f32 %v5375, %v5376
  %v5378 = vsel %vm5222, %v4783, 0.0
  %v5379 = vadd.f32 %v5377, %v5378
  %v5380 = vsel %vm5222, %v4784, 0.0
  %v5381 = vadd.f32 %v5379, %v5380
  %v5382 = vsel %vm5222, %v4785, 0.0
  %v5383 = vadd.f32 %v5381, %v5382
  %v5384 = vsel %vm5222, %v4786, 0.0
  %v5385 = vadd.f32 %v5383, %v5384
  %v5386 = vsel %vm5222, %v4787, 0.0
  %v5387 = vadd.f32 %v5385, %v5386
  %v5388 = vsel %vm5222, %v4788, 0.0
  %v5389 = vadd.f32 %v5387, %v5388
  %v5390 = vsel %vm5222, %v4789, 0.0
  %v5391 = vadd.f32 %v5389, %v5390
  %v5392 = vsel %vm5222, %v4790, 0.0
  %v5393 = vadd.f32 %v5391, %v5392
  %v5394 = vsel %vm5222, %v4791, 0.0
  %v5395 = vadd.f32 %v5393, %v5394
  %v5396 = vsel %vm5222, %v4792, 0.0
  %v5397 = vadd.f32 %v5395, %v5396
  %v5398 = vsel %vm5222, %v4793, 0.0
  %v5399 = vadd.f32 %v5397, %v5398
  %v5400 = vsel %vm5222, %v4794, 0.0
  %v5401 = vadd.f32 %v5399, %v5400
  %v5402 = vsel %vm5222, %v4795, 0.0
  %v5403 = vadd.f32 %v5401, %v5402
  %v5404 = vsel %vm5222, %v4796, 0.0
  %v5405 = vadd.f32 %v5403, %v5404
  %v5406 = vsel %vm5222, %v4797, 0.0
  %v5407 = vadd.f32 %v5405, %v5406
  %v5408 = vsel %vm5222, %v4798, 0.0
  %v5409 = vadd.f32 %v5407, %v5408
  %v5410 = vsel %vm5222, %v4799, 0.0
  %v5411 = vadd.f32 %v5409, %v5410
  %v5412 = vsel %vm5222, %v4800, 0.0
  %v5413 = vadd.f32 %v5411, %v5412
  %v5414 = vsel %vm5222, %v4801, 0.0
  %v5415 = vadd.f32 %v5413, %v5414
  %v5416 = vsel %vm5222, %v4802, 0.0
  %v5417 = vadd.f32 %v5415, %v5416
  %v5418 = vsel %vm5222, %v4803, 0.0
  %v5419 = vadd.f32 %v5417, %v5418
  %v5420 = vsel %vm5222, %v4804, 0.0
  %v5421 = vadd.f32 %v5419, %v5420
  %v5422 = vsel %vm5222, %v4805, 0.0
  %v5423 = vadd.f32 %v5421, %v5422
  %v5424 = vrot.slane %v5423, 4
  %v5425 = vadd.f32 %v5423, %v5424
  %v5426 = vrot.slane %v5425, 2
  %v5427 = vadd.f32 %v5425, %v5426
  %v5428 = vrot.slane %v5427, 1
  %v5429 = vadd.f32 %v5427, %v5428
  %v5430 = vsel %vm5222, %v4806, 0.0
  %v5431 = vsel %vm5222, %v4807, 0.0
  %v5432 = vadd.f32 %v5430, %v5431
  %v5433 = vsel %vm5222, %v4808, 0.0
  %v5434 = vadd.f32 %v5432, %v5433
  %v5435 = vsel %vm5222, %v4809, 0.0
  %v5436 = vadd.f32 %v5434, %v5435
  %v5437 = vsel %vm5222, %v4810, 0.0
  %v5438 = vadd.f32 %v5436, %v5437
  %v5439 = vsel %vm5222, %v4811, 0.0
  %v5440 = vadd.f32 %v5438, %v5439
  %v5441 = vsel %vm5222, %v4812, 0.0
  %v5442 = vadd.f32 %v5440, %v5441
  %v5443 = vsel %vm5222, %v4813, 0.0
  %v5444 = vadd.f32 %v5442, %v5443
  %v5445 = vsel %vm5222, %v4814, 0.0
  %v5446 = vadd.f32 %v5444, %v5445
  %v5447 = vsel %vm5222, %v4815, 0.0
  %v5448 = vadd.f32 %v5446, %v5447
  %v5449 = vsel %vm5222, %v4816, 0.0
  %v5450 = vadd.f32 %v5448, %v5449
  %v5451 = vsel %vm5222, %v4817, 0.0
  %v5452 = vadd.f32 %v5450, %v5451
  %v5453 = vsel %vm5222, %v4818, 0.0
  %v5454 = vadd.f32 %v5452, %v5453
  %v5455 = vsel %vm5222, %v4819, 0.0
  %v5456 = vadd.f32 %v5454, %v5455
  %v5457 = vsel %vm5222, %v4820, 0.0
  %v5458 = vadd.f32 %v5456, %v5457
  %v5459 = vsel %vm5222, %v4821, 0.0
  %v5460 = vadd.f32 %v5458, %v5459
  %v5461 = vsel %vm5222, %v4822, 0.0
  %v5462 = vadd.f32 %v5460, %v5461
  %v5463 = vsel %vm5222, %v4823, 0.0
  %v5464 = vadd.f32 %v5462, %v5463
  %v5465 = vsel %vm5222, %v4824, 0.0
  %v5466 = vadd.f32 %v5464, %v5465
  %v5467 = vsel %vm5222, %v4825, 0.0
  %v5468 = vadd.f32 %v5466, %v5467
  %v5469 = vsel %vm5222, %v4826, 0.0
  %v5470 = vadd.f32 %v5468, %v5469
  %v5471 = vsel %vm5222, %v4827, 0.0
  %v5472 = vadd.f32 %v5470, %v5471
  %v5473 = vsel %vm5222, %v4828, 0.0
  %v5474 = vadd.f32 %v5472, %v5473
  %v5475 = vsel %vm5222, %v4829, 0.0
  %v5476 = vadd.f32 %v5474, %v5475
  %v5477 = vsel %vm5222, %v4830, 0.0
  %v5478 = vadd.f32 %v5476, %v5477
  %v5479 = vsel %vm5222, %v4831, 0.0
  %v5480 = vadd.f32 %v5478, %v5479
  %v5481 = vsel %vm5222, %v4832, 0.0
  %v5482 = vadd.f32 %v5480, %v5481
  %v5483 = vsel %vm5222, %v4833, 0.0
  %v5484 = vadd.f32 %v5482, %v5483
  %v5485 = vsel %vm5222, %v4834, 0.0
  %v5486 = vadd.f32 %v5484, %v5485
  %v5487 = vsel %vm5222, %v4835, 0.0
  %v5488 = vadd.f32 %v5486, %v5487
  %v5489 = vsel %vm5222, %v4836, 0.0
  %v5490 = vadd.f32 %v5488, %v5489
  %v5491 = vsel %vm5222, %v4837, 0.0
  %v5492 = vadd.f32 %v5490, %v5491
  %v5493 = vrot.slane %v5492, 4
  %v5494 = vadd.f32 %v5492, %v5493
  %v5495 = vrot.slane %v5494, 2
  %v5496 = vadd.f32 %v5494, %v5495
  %v5497 = vrot.slane %v5496, 1
  %v5498 = vadd.f32 %v5496, %v5497
  %v5499 = vsel %vm5222, %v4838, 0.0
  %v5500 = vsel %vm5222, %v4839, 0.0
  %v5501 = vadd.f32 %v5499, %v5500
  %v5502 = vsel %vm5222, %v4840, 0.0
  %v5503 = vadd.f32 %v5501, %v5502
  %v5504 = vsel %vm5222, %v4841, 0.0
  %v5505 = vadd.f32 %v5503, %v5504
  %v5506 = vsel %vm5222, %v4842, 0.0
  %v5507 = vadd.f32 %v5505, %v5506
  %v5508 = vsel %vm5222, %v4843, 0.0
  %v5509 = vadd.f32 %v5507, %v5508
  %v5510 = vsel %vm5222, %v4844, 0.0
  %v5511 = vadd.f32 %v5509, %v5510
  %v5512 = vsel %vm5222, %v4845, 0.0
  %v5513 = vadd.f32 %v5511, %v5512
  %v5514 = vsel %vm5222, %v4846, 0.0
  %v5515 = vadd.f32 %v5513, %v5514
  %v5516 = vsel %vm5222, %v4847, 0.0
  %v5517 = vadd.f32 %v5515, %v5516
  %v5518 = vsel %vm5222, %v4848, 0.0
  %v5519 = vadd.f32 %v5517, %v5518
  %v5520 = vsel %vm5222, %v4849, 0.0
  %v5521 = vadd.f32 %v5519, %v5520
  %v5522 = vsel %vm5222, %v4850, 0.0
  %v5523 = vadd.f32 %v5521, %v5522
  %v5524 = vsel %vm5222, %v4851, 0.0
  %v5525 = vadd.f32 %v5523, %v5524
  %v5526 = vsel %vm5222, %v4852, 0.0
  %v5527 = vadd.f32 %v5525, %v5526
  %v5528 = vsel %vm5222, %v4853, 0.0
  %v5529 = vadd.f32 %v5527, %v5528
  %v5530 = vsel %vm5222, %v4854, 0.0
  %v5531 = vadd.f32 %v5529, %v5530
  %v5532 = vsel %vm5222, %v4855, 0.0
  %v5533 = vadd.f32 %v5531, %v5532
  %v5534 = vsel %vm5222, %v4856, 0.0
  %v5535 = vadd.f32 %v5533, %v5534
  %v5536 = vsel %vm5222, %v4857, 0.0
  %v5537 = vadd.f32 %v5535, %v5536
  %v5538 = vsel %vm5222, %v4858, 0.0
  %v5539 = vadd.f32 %v5537, %v5538
  %v5540 = vsel %vm5222, %v4859, 0.0
  %v5541 = vadd.f32 %v5539, %v5540
  %v5542 = vsel %vm5222, %v4860, 0.0
  %v5543 = vadd.f32 %v5541, %v5542
  %v5544 = vsel %vm5222, %v4861, 0.0
  %v5545 = vadd.f32 %v5543, %v5544
  %v5546 = vsel %vm5222, %v4862, 0.0
  %v5547 = vadd.f32 %v5545, %v5546
  %v5548 = vsel %vm5222, %v4863, 0.0
  %v5549 = vadd.f32 %v5547, %v5548
  %v5550 = vsel %vm5222, %v4864, 0.0
  %v5551 = vadd.f32 %v5549, %v5550
  %v5552 = vsel %vm5222, %v4865, 0.0
  %v5553 = vadd.f32 %v5551, %v5552
  %v5554 = vsel %vm5222, %v4866, 0.0
  %v5555 = vadd.f32 %v5553, %v5554
  %v5556 = vsel %vm5222, %v4867, 0.0
  %v5557 = vadd.f32 %v5555, %v5556
  %v5558 = vsel %vm5222, %v4868, 0.0
  %v5559 = vadd.f32 %v5557, %v5558
  %v5560 = vsel %vm5222, %v4869, 0.0
  %v5561 = vadd.f32 %v5559, %v5560
  %v5562 = vrot.slane %v5561, 4
  %v5563 = vadd.f32 %v5561, %v5562
  %v5564 = vrot.slane %v5563, 2
  %v5565 = vadd.f32 %v5563, %v5564
  %v5566 = vrot.slane %v5565, 1
  %v5567 = vadd.f32 %v5565, %v5566
  %v5568 = vsel %vm5222, %v4870, 0.0
  %v5569 = vsel %vm5222, %v4871, 0.0
  %v5570 = vadd.f32 %v5568, %v5569
  %v5571 = vsel %vm5222, %v4872, 0.0
  %v5572 = vadd.f32 %v5570, %v5571
  %v5573 = vsel %vm5222, %v4873, 0.0
  %v5574 = vadd.f32 %v5572, %v5573
  %v5575 = vsel %vm5222, %v4874, 0.0
  %v5576 = vadd.f32 %v5574, %v5575
  %v5577 = vsel %vm5222, %v4875, 0.0
  %v5578 = vadd.f32 %v5576, %v5577
  %v5579 = vsel %vm5222, %v4876, 0.0
  %v5580 = vadd.f32 %v5578, %v5579
  %v5581 = vsel %vm5222, %v4877, 0.0
  %v5582 = vadd.f32 %v5580, %v5581
  %v5583 = vsel %vm5222, %v4878, 0.0
  %v5584 = vadd.f32 %v5582, %v5583
  %v5585 = vsel %vm5222, %v4879, 0.0
  %v5586 = vadd.f32 %v5584, %v5585
  %v5587 = vsel %vm5222, %v4880, 0.0
  %v5588 = vadd.f32 %v5586, %v5587
  %v5589 = vsel %vm5222, %v4881, 0.0
  %v5590 = vadd.f32 %v5588, %v5589
  %v5591 = vsel %vm5222, %v4882, 0.0
  %v5592 = vadd.f32 %v5590, %v5591
  %v5593 = vsel %vm5222, %v4883, 0.0
  %v5594 = vadd.f32 %v5592, %v5593
  %v5595 = vsel %vm5222, %v4884, 0.0
  %v5596 = vadd.f32 %v5594, %v5595
  %v5597 = vsel %vm5222, %v4885, 0.0
  %v5598 = vadd.f32 %v5596, %v5597
  %v5599 = vsel %vm5222, %v4886, 0.0
  %v5600 = vadd.f32 %v5598, %v5599
  %v5601 = vsel %vm5222, %v4887, 0.0
  %v5602 = vadd.f32 %v5600, %v5601
  %v5603 = vsel %vm5222, %v4888, 0.0
  %v5604 = vadd.f32 %v5602, %v5603
  %v5605 = vsel %vm5222, %v4889, 0.0
  %v5606 = vadd.f32 %v5604, %v5605
  %v5607 = vsel %vm5222, %v4890, 0.0
  %v5608 = vadd.f32 %v5606, %v5607
  %v5609 = vsel %vm5222, %v4891, 0.0
  %v5610 = vadd.f32 %v5608, %v5609
  %v5611 = vsel %vm5222, %v4892, 0.0
  %v5612 = vadd.f32 %v5610, %v5611
  %v5613 = vsel %vm5222, %v4893, 0.0
  %v5614 = vadd.f32 %v5612, %v5613
  %v5615 = vsel %vm5222, %v4894, 0.0
  %v5616 = vadd.f32 %v5614, %v5615
  %v5617 = vsel %vm5222, %v4895, 0.0
  %v5618 = vadd.f32 %v5616, %v5617
  %v5619 = vsel %vm5222, %v4896, 0.0
  %v5620 = vadd.f32 %v5618, %v5619
  %v5621 = vsel %vm5222, %v4897, 0.0
  %v5622 = vadd.f32 %v5620, %v5621
  %v5623 = vsel %vm5222, %v4898, 0.0
  %v5624 = vadd.f32 %v5622, %v5623
  %v5625 = vsel %vm5222, %v4899, 0.0
  %v5626 = vadd.f32 %v5624, %v5625
  %v5627 = vsel %vm5222, %v4900, 0.0
  %v5628 = vadd.f32 %v5626, %v5627
  %v5629 = vsel %vm5222, %v4901, 0.0
  %v5630 = vadd.f32 %v5628, %v5629
  %v5631 = vrot.slane %v5630, 4
  %v5632 = vadd.f32 %v5630, %v5631
  %v5633 = vrot.slane %v5632, 2
  %v5634 = vadd.f32 %v5632, %v5633
  %v5635 = vrot.slane %v5634, 1
  %v5636 = vadd.f32 %v5634, %v5635
  %v5637 = vsel %vm5222, %v4902, 0.0
  %v5638 = vsel %vm5222, %v4903, 0.0
  %v5639 = vadd.f32 %v5637, %v5638
  %v5640 = vsel %vm5222, %v4904, 0.0
  %v5641 = vadd.f32 %v5639, %v5640
  %v5642 = vsel %vm5222, %v4905, 0.0
  %v5643 = vadd.f32 %v5641, %v5642
  %v5644 = vsel %vm5222, %v4906, 0.0
  %v5645 = vadd.f32 %v5643, %v5644
  %v5646 = vsel %vm5222, %v4907, 0.0
  %v5647 = vadd.f32 %v5645, %v5646
  %v5648 = vsel %vm5222, %v4908, 0.0
  %v5649 = vadd.f32 %v5647, %v5648
  %v5650 = vsel %vm5222, %v4909, 0.0
  %v5651 = vadd.f32 %v5649, %v5650
  %v5652 = vsel %vm5222, %v4910, 0.0
  %v5653 = vadd.f32 %v5651, %v5652
  %v5654 = vsel %vm5222, %v4911, 0.0
  %v5655 = vadd.f32 %v5653, %v5654
  %v5656 = vsel %vm5222, %v4912, 0.0
  %v5657 = vadd.f32 %v5655, %v5656
  %v5658 = vsel %vm5222, %v4913, 0.0
  %v5659 = vadd.f32 %v5657, %v5658
  %v5660 = vsel %vm5222, %v4914, 0.0
  %v5661 = vadd.f32 %v5659, %v5660
  %v5662 = vsel %vm5222, %v4915, 0.0
  %v5663 = vadd.f32 %v5661, %v5662
  %v5664 = vsel %vm5222, %v4916, 0.0
  %v5665 = vadd.f32 %v5663, %v5664
  %v5666 = vsel %vm5222, %v4917, 0.0
  %v5667 = vadd.f32 %v5665, %v5666
  %v5668 = vsel %vm5222, %v4918, 0.0
  %v5669 = vadd.f32 %v5667, %v5668
  %v5670 = vsel %vm5222, %v4919, 0.0
  %v5671 = vadd.f32 %v5669, %v5670
  %v5672 = vsel %vm5222, %v4920, 0.0
  %v5673 = vadd.f32 %v5671, %v5672
  %v5674 = vsel %vm5222, %v4921, 0.0
  %v5675 = vadd.f32 %v5673, %v5674
  %v5676 = vsel %vm5222, %v4922, 0.0
  %v5677 = vadd.f32 %v5675, %v5676
  %v5678 = vsel %vm5222, %v4923, 0.0
  %v5679 = vadd.f32 %v5677, %v5678
  %v5680 = vsel %vm5222, %v4924, 0.0
  %v5681 = vadd.f32 %v5679, %v5680
  %v5682 = vsel %vm5222, %v4925, 0.0
  %v5683 = vadd.f32 %v5681, %v5682
  %v5684 = vsel %vm5222, %v4926, 0.0
  %v5685 = vadd.f32 %v5683, %v5684
  %v5686 = vsel %vm5222, %v4927, 0.0
  %v5687 = vadd.f32 %v5685, %v5686
  %v5688 = vsel %vm5222, %v4928, 0.0
  %v5689 = vadd.f32 %v5687, %v5688
  %v5690 = vsel %vm5222, %v4929, 0.0
  %v5691 = vadd.f32 %v5689, %v5690
  %v5692 = vsel %vm5222, %v4930, 0.0
  %v5693 = vadd.f32 %v5691, %v5692
  %v5694 = vsel %vm5222, %v4931, 0.0
  %v5695 = vadd.f32 %v5693, %v5694
  %v5696 = vsel %vm5222, %v4932, 0.0
  %v5697 = vadd.f32 %v5695, %v5696
  %v5698 = vsel %vm5222, %v4933, 0.0
  %v5699 = vadd.f32 %v5697, %v5698
  %v5700 = vrot.slane %v5699, 4
  %v5701 = vadd.f32 %v5699, %v5700
  %v5702 = vrot.slane %v5701, 2
  %v5703 = vadd.f32 %v5701, %v5702
  %v5704 = vrot.slane %v5703, 1
  %v5705 = vadd.f32 %v5703, %v5704
  %v5706 = vsel %vm5222, %v4934, 0.0
  %v5707 = vsel %vm5222, %v4935, 0.0
  %v5708 = vadd.f32 %v5706, %v5707
  %v5709 = vsel %vm5222, %v4936, 0.0
  %v5710 = vadd.f32 %v5708, %v5709
  %v5711 = vsel %vm5222, %v4937, 0.0
  %v5712 = vadd.f32 %v5710, %v5711
  %v5713 = vsel %vm5222, %v4938, 0.0
  %v5714 = vadd.f32 %v5712, %v5713
  %v5715 = vsel %vm5222, %v4939, 0.0
  %v5716 = vadd.f32 %v5714, %v5715
  %v5717 = vsel %vm5222, %v4940, 0.0
  %v5718 = vadd.f32 %v5716, %v5717
  %v5719 = vsel %vm5222, %v4941, 0.0
  %v5720 = vadd.f32 %v5718, %v5719
  %v5721 = vsel %vm5222, %v4942, 0.0
  %v5722 = vadd.f32 %v5720, %v5721
  %v5723 = vsel %vm5222, %v4943, 0.0
  %v5724 = vadd.f32 %v5722, %v5723
  %v5725 = vsel %vm5222, %v4944, 0.0
  %v5726 = vadd.f32 %v5724, %v5725
  %v5727 = vsel %vm5222, %v4945, 0.0
  %v5728 = vadd.f32 %v5726, %v5727
  %v5729 = vsel %vm5222, %v4946, 0.0
  %v5730 = vadd.f32 %v5728, %v5729
  %v5731 = vsel %vm5222, %v4947, 0.0
  %v5732 = vadd.f32 %v5730, %v5731
  %v5733 = vsel %vm5222, %v4948, 0.0
  %v5734 = vadd.f32 %v5732, %v5733
  %v5735 = vsel %vm5222, %v4949, 0.0
  %v5736 = vadd.f32 %v5734, %v5735
  %v5737 = vsel %vm5222, %v4950, 0.0
  %v5738 = vadd.f32 %v5736, %v5737
  %v5739 = vsel %vm5222, %v4951, 0.0
  %v5740 = vadd.f32 %v5738, %v5739
  %v5741 = vsel %vm5222, %v4952, 0.0
  %v5742 = vadd.f32 %v5740, %v5741
  %v5743 = vsel %vm5222, %v4953, 0.0
  %v5744 = vadd.f32 %v5742, %v5743
  %v5745 = vsel %vm5222, %v4954, 0.0
  %v5746 = vadd.f32 %v5744, %v5745
  %v5747 = vsel %vm5222, %v4955, 0.0
  %v5748 = vadd.f32 %v5746, %v5747
  %v5749 = vsel %vm5222, %v4956, 0.0
  %v5750 = vadd.f32 %v5748, %v5749
  %v5751 = vsel %vm5222, %v4957, 0.0
  %v5752 = vadd.f32 %v5750, %v5751
  %v5753 = vsel %vm5222, %v4958, 0.0
  %v5754 = vadd.f32 %v5752, %v5753
  %v5755 = vsel %vm5222, %v4959, 0.0
  %v5756 = vadd.f32 %v5754, %v5755
  %v5757 = vsel %vm5222, %v4960, 0.0
  %v5758 = vadd.f32 %v5756, %v5757
  %v5759 = vsel %vm5222, %v4961, 0.0
  %v5760 = vadd.f32 %v5758, %v5759
  %v5761 = vsel %vm5222, %v4962, 0.0
  %v5762 = vadd.f32 %v5760, %v5761
  %v5763 = vsel %vm5222, %v4963, 0.0
  %v5764 = vadd.f32 %v5762, %v5763
  %v5765 = vsel %vm5222, %v4964, 0.0
  %v5766 = vadd.f32 %v5764, %v5765
  %v5767 = vsel %vm5222, %v4965, 0.0
  %v5768 = vadd.f32 %v5766, %v5767
  %v5769 = vrot.slane %v5768, 4
  %v5770 = vadd.f32 %v5768, %v5769
  %v5771 = vrot.slane %v5770, 2
  %v5772 = vadd.f32 %v5770, %v5771
  %v5773 = vrot.slane %v5772, 1
  %v5774 = vadd.f32 %v5772, %v5773
  %v5775 = vsel %vm5222, %v4966, 0.0
  %v5776 = vsel %vm5222, %v4967, 0.0
  %v5777 = vadd.f32 %v5775, %v5776
  %v5778 = vsel %vm5222, %v4968, 0.0
  %v5779 = vadd.f32 %v5777, %v5778
  %v5780 = vsel %vm5222, %v4969, 0.0
  %v5781 = vadd.f32 %v5779, %v5780
  %v5782 = vsel %vm5222, %v4970, 0.0
  %v5783 = vadd.f32 %v5781, %v5782
  %v5784 = vsel %vm5222, %v4971, 0.0
  %v5785 = vadd.f32 %v5783, %v5784
  %v5786 = vsel %vm5222, %v4972, 0.0
  %v5787 = vadd.f32 %v5785, %v5786
  %v5788 = vsel %vm5222, %v4973, 0.0
  %v5789 = vadd.f32 %v5787, %v5788
  %v5790 = vsel %vm5222, %v4974, 0.0
  %v5791 = vadd.f32 %v5789, %v5790
  %v5792 = vsel %vm5222, %v4975, 0.0
  %v5793 = vadd.f32 %v5791, %v5792
  %v5794 = vsel %vm5222, %v4976, 0.0
  %v5795 = vadd.f32 %v5793, %v5794
  %v5796 = vsel %vm5222, %v4977, 0.0
  %v5797 = vadd.f32 %v5795, %v5796
  %v5798 = vsel %vm5222, %v4978, 0.0
  %v5799 = vadd.f32 %v5797, %v5798
  %v5800 = vsel %vm5222, %v4979, 0.0
  %v5801 = vadd.f32 %v5799, %v5800
  %v5802 = vsel %vm5222, %v4980, 0.0
  %v5803 = vadd.f32 %v5801, %v5802
  %v5804 = vsel %vm5222, %v4981, 0.0
  %v5805 = vadd.f32 %v5803, %v5804
  %v5806 = vsel %vm5222, %v4982, 0.0
  %v5807 = vadd.f32 %v5805, %v5806
  %v5808 = vsel %vm5222, %v4983, 0.0
  %v5809 = vadd.f32 %v5807, %v5808
  %v5810 = vsel %vm5222, %v4984, 0.0
  %v5811 = vadd.f32 %v5809, %v5810
  %v5812 = vsel %vm5222, %v4985, 0.0
  %v5813 = vadd.f32 %v5811, %v5812
  %v5814 = vsel %vm5222, %v4986, 0.0
  %v5815 = vadd.f32 %v5813, %v5814
  %v5816 = vsel %vm5222, %v4987, 0.0
  %v5817 = vadd.f32 %v5815, %v5816
  %v5818 = vsel %vm5222, %v4988, 0.0
  %v5819 = vadd.f32 %v5817, %v5818
  %v5820 = vsel %vm5222, %v4989, 0.0
  %v5821 = vadd.f32 %v5819, %v5820
  %v5822 = vsel %vm5222, %v4990, 0.0
  %v5823 = vadd.f32 %v5821, %v5822
  %v5824 = vsel %vm5222, %v4991, 0.0
  %v5825 = vadd.f32 %v5823, %v5824
  %v5826 = vsel %vm5222, %v4992, 0.0
  %v5827 = vadd.f32 %v5825, %v5826
  %v5828 = vsel %vm5222, %v4993, 0.0
  %v5829 = vadd.f32 %v5827, %v5828
  %v5830 = vsel %vm5222, %v4994, 0.0
  %v5831 = vadd.f32 %v5829, %v5830
  %v5832 = vsel %vm5222, %v4995, 0.0
  %v5833 = vadd.f32 %v5831, %v5832
  %v5834 = vsel %vm5222, %v4996, 0.0
  %v5835 = vadd.f32 %v5833, %v5834
  %v5836 = vsel %vm5222, %v4997, 0.0
  %v5837 = vadd.f32 %v5835, %v5836
  %v5838 = vrot.slane %v5837, 4
  %v5839 = vadd.f32 %v5837, %v5838
  %v5840 = vrot.slane %v5839, 2
  %v5841 = vadd.f32 %v5839, %v5840
  %v5842 = vrot.slane %v5841, 1
  %v5843 = vadd.f32 %v5841, %v5842
  %v5844 = vsel %vm5222, %v4998, 0.0
  %v5845 = vsel %vm5222, %v4999, 0.0
  %v5846 = vadd.f32 %v5844, %v5845
  %v5847 = vsel %vm5222, %v5000, 0.0
  %v5848 = vadd.f32 %v5846, %v5847
  %v5849 = vsel %vm5222, %v5001, 0.0
  %v5850 = vadd.f32 %v5848, %v5849
  %v5851 = vsel %vm5222, %v5002, 0.0
  %v5852 = vadd.f32 %v5850, %v5851
  %v5853 = vsel %vm5222, %v5003, 0.0
  %v5854 = vadd.f32 %v5852, %v5853
  %v5855 = vsel %vm5222, %v5004, 0.0
  %v5856 = vadd.f32 %v5854, %v5855
  %v5857 = vsel %vm5222, %v5005, 0.0
  %v5858 = vadd.f32 %v5856, %v5857
  %v5859 = vsel %vm5222, %v5006, 0.0
  %v5860 = vadd.f32 %v5858, %v5859
  %v5861 = vsel %vm5222, %v5007, 0.0
  %v5862 = vadd.f32 %v5860, %v5861
  %v5863 = vsel %vm5222, %v5008, 0.0
  %v5864 = vadd.f32 %v5862, %v5863
  %v5865 = vsel %vm5222, %v5009, 0.0
  %v5866 = vadd.f32 %v5864, %v5865
  %v5867 = vsel %vm5222, %v5010, 0.0
  %v5868 = vadd.f32 %v5866, %v5867
  %v5869 = vsel %vm5222, %v5011, 0.0
  %v5870 = vadd.f32 %v5868, %v5869
  %v5871 = vsel %vm5222, %v5012, 0.0
  %v5872 = vadd.f32 %v5870, %v5871
  %v5873 = vsel %vm5222, %v5013, 0.0
  %v5874 = vadd.f32 %v5872, %v5873
  %v5875 = vsel %vm5222, %v5014, 0.0
  %v5876 = vadd.f32 %v5874, %v5875
  %v5877 = vsel %vm5222, %v5015, 0.0
  %v5878 = vadd.f32 %v5876, %v5877
  %v5879 = vsel %vm5222, %v5016, 0.0
  %v5880 = vadd.f32 %v5878, %v5879
  %v5881 = vsel %vm5222, %v5017, 0.0
  %v5882 = vadd.f32 %v5880, %v5881
  %v5883 = vsel %vm5222, %v5018, 0.0
  %v5884 = vadd.f32 %v5882, %v5883
  %v5885 = vsel %vm5222, %v5019, 0.0
  %v5886 = vadd.f32 %v5884, %v5885
  %v5887 = vsel %vm5222, %v5020, 0.0
  %v5888 = vadd.f32 %v5886, %v5887
  %v5889 = vsel %vm5222, %v5021, 0.0
  %v5890 = vadd.f32 %v5888, %v5889
  %v5891 = vsel %vm5222, %v5022, 0.0
  %v5892 = vadd.f32 %v5890, %v5891
  %v5893 = vsel %vm5222, %v5023, 0.0
  %v5894 = vadd.f32 %v5892, %v5893
  %v5895 = vsel %vm5222, %v5024, 0.0
  %v5896 = vadd.f32 %v5894, %v5895
  %v5897 = vsel %vm5222, %v5025, 0.0
  %v5898 = vadd.f32 %v5896, %v5897
  %v5899 = vsel %vm5222, %v5026, 0.0
  %v5900 = vadd.f32 %v5898, %v5899
  %v5901 = vsel %vm5222, %v5027, 0.0
  %v5902 = vadd.f32 %v5900, %v5901
  %v5903 = vsel %vm5222, %v5028, 0.0
  %v5904 = vadd.f32 %v5902, %v5903
  %v5905 = vsel %vm5222, %v5029, 0.0
  %v5906 = vadd.f32 %v5904, %v5905
  %v5907 = vrot.slane %v5906, 4
  %v5908 = vadd.f32 %v5906, %v5907
  %v5909 = vrot.slane %v5908, 2
  %v5910 = vadd.f32 %v5908, %v5909
  %v5911 = vrot.slane %v5910, 1
  %v5912 = vadd.f32 %v5910, %v5911
  %v5913 = vsel %vm5222, %v5030, 0.0
  %v5914 = vsel %vm5222, %v5031, 0.0
  %v5915 = vadd.f32 %v5913, %v5914
  %v5916 = vsel %vm5222, %v5032, 0.0
  %v5917 = vadd.f32 %v5915, %v5916
  %v5918 = vsel %vm5222, %v5033, 0.0
  %v5919 = vadd.f32 %v5917, %v5918
  %v5920 = vsel %vm5222, %v5034, 0.0
  %v5921 = vadd.f32 %v5919, %v5920
  %v5922 = vsel %vm5222, %v5035, 0.0
  %v5923 = vadd.f32 %v5921, %v5922
  %v5924 = vsel %vm5222, %v5036, 0.0
  %v5925 = vadd.f32 %v5923, %v5924
  %v5926 = vsel %vm5222, %v5037, 0.0
  %v5927 = vadd.f32 %v5925, %v5926
  %v5928 = vsel %vm5222, %v5038, 0.0
  %v5929 = vadd.f32 %v5927, %v5928
  %v5930 = vsel %vm5222, %v5039, 0.0
  %v5931 = vadd.f32 %v5929, %v5930
  %v5932 = vsel %vm5222, %v5040, 0.0
  %v5933 = vadd.f32 %v5931, %v5932
  %v5934 = vsel %vm5222, %v5041, 0.0
  %v5935 = vadd.f32 %v5933, %v5934
  %v5936 = vsel %vm5222, %v5042, 0.0
  %v5937 = vadd.f32 %v5935, %v5936
  %v5938 = vsel %vm5222, %v5043, 0.0
  %v5939 = vadd.f32 %v5937, %v5938
  %v5940 = vsel %vm5222, %v5044, 0.0
  %v5941 = vadd.f32 %v5939, %v5940
  %v5942 = vsel %vm5222, %v5045, 0.0
  %v5943 = vadd.f32 %v5941, %v5942
  %v5944 = vsel %vm5222, %v5046, 0.0
  %v5945 = vadd.f32 %v5943, %v5944
  %v5946 = vsel %vm5222, %v5047, 0.0
  %v5947 = vadd.f32 %v5945, %v5946
  %v5948 = vsel %vm5222, %v5048, 0.0
  %v5949 = vadd.f32 %v5947, %v5948
  %v5950 = vsel %vm5222, %v5049, 0.0
  %v5951 = vadd.f32 %v5949, %v5950
  %v5952 = vsel %vm5222, %v5050, 0.0
  %v5953 = vadd.f32 %v5951, %v5952
  %v5954 = vsel %vm5222, %v5051, 0.0
  %v5955 = vadd.f32 %v5953, %v5954
  %v5956 = vsel %vm5222, %v5052, 0.0
  %v5957 = vadd.f32 %v5955, %v5956
  %v5958 = vsel %vm5222, %v5053, 0.0
  %v5959 = vadd.f32 %v5957, %v5958
  %v5960 = vsel %vm5222, %v5054, 0.0
  %v5961 = vadd.f32 %v5959, %v5960
  %v5962 = vsel %vm5222, %v5055, 0.0
  %v5963 = vadd.f32 %v5961, %v5962
  %v5964 = vsel %vm5222, %v5056, 0.0
  %v5965 = vadd.f32 %v5963, %v5964
  %v5966 = vsel %vm5222, %v5057, 0.0
  %v5967 = vadd.f32 %v5965, %v5966
  %v5968 = vsel %vm5222, %v5058, 0.0
  %v5969 = vadd.f32 %v5967, %v5968
  %v5970 = vsel %vm5222, %v5059, 0.0
  %v5971 = vadd.f32 %v5969, %v5970
  %v5972 = vsel %vm5222, %v5060, 0.0
  %v5973 = vadd.f32 %v5971, %v5972
  %v5974 = vsel %vm5222, %v5061, 0.0
  %v5975 = vadd.f32 %v5973, %v5974
  %v5976 = vrot.slane %v5975, 4
  %v5977 = vadd.f32 %v5975, %v5976
  %v5978 = vrot.slane %v5977, 2
  %v5979 = vadd.f32 %v5977, %v5978
  %v5980 = vrot.slane %v5979, 1
  %v5981 = vadd.f32 %v5979, %v5980
  %v5982 = vsel %vm5222, %v5062, 0.0
  %v5983 = vsel %vm5222, %v5063, 0.0
  %v5984 = vadd.f32 %v5982, %v5983
  %v5985 = vsel %vm5222, %v5064, 0.0
  %v5986 = vadd.f32 %v5984, %v5985
  %v5987 = vsel %vm5222, %v5065, 0.0
  %v5988 = vadd.f32 %v5986, %v5987
  %v5989 = vsel %vm5222, %v5066, 0.0
  %v5990 = vadd.f32 %v5988, %v5989
  %v5991 = vsel %vm5222, %v5067, 0.0
  %v5992 = vadd.f32 %v5990, %v5991
  %v5993 = vsel %vm5222, %v5068, 0.0
  %v5994 = vadd.f32 %v5992, %v5993
  %v5995 = vsel %vm5222, %v5069, 0.0
  %v5996 = vadd.f32 %v5994, %v5995
  %v5997 = vsel %vm5222, %v5070, 0.0
  %v5998 = vadd.f32 %v5996, %v5997
  %v5999 = vsel %vm5222, %v5071, 0.0
  %v6000 = vadd.f32 %v5998, %v5999
  %v6001 = vsel %vm5222, %v5072, 0.0
  %v6002 = vadd.f32 %v6000, %v6001
  %v6003 = vsel %vm5222, %v5073, 0.0
  %v6004 = vadd.f32 %v6002, %v6003
  %v6005 = vsel %vm5222, %v5074, 0.0
  %v6006 = vadd.f32 %v6004, %v6005
  %v6007 = vsel %vm5222, %v5075, 0.0
  %v6008 = vadd.f32 %v6006, %v6007
  %v6009 = vsel %vm5222, %v5076, 0.0
  %v6010 = vadd.f32 %v6008, %v6009
  %v6011 = vsel %vm5222, %v5077, 0.0
  %v6012 = vadd.f32 %v6010, %v6011
  %v6013 = vsel %vm5222, %v5078, 0.0
  %v6014 = vadd.f32 %v6012, %v6013
  %v6015 = vsel %vm5222, %v5079, 0.0
  %v6016 = vadd.f32 %v6014, %v6015
  %v6017 = vsel %vm5222, %v5080, 0.0
  %v6018 = vadd.f32 %v6016, %v6017
  %v6019 = vsel %vm5222, %v5081, 0.0
  %v6020 = vadd.f32 %v6018, %v6019
  %v6021 = vsel %vm5222, %v5082, 0.0
  %v6022 = vadd.f32 %v6020, %v6021
  %v6023 = vsel %vm5222, %v5083, 0.0
  %v6024 = vadd.f32 %v6022, %v6023
  %v6025 = vsel %vm5222, %v5084, 0.0
  %v6026 = vadd.f32 %v6024, %v6025
  %v6027 = vsel %vm5222, %v5085, 0.0
  %v6028 = vadd.f32 %v6026, %v6027
  %v6029 = vsel %vm5222, %v5086, 0.0
  %v6030 = vadd.f32 %v6028, %v6029
  %v6031 = vsel %vm5222, %v5087, 0.0
  %v6032 = vadd.f32 %v6030, %v6031
  %v6033 = vsel %vm5222, %v5088, 0.0
  %v6034 = vadd.f32 %v6032, %v6033
  %v6035 = vsel %vm5222, %v5089, 0.0
  %v6036 = vadd.f32 %v6034, %v6035
  %v6037 = vsel %vm5222, %v5090, 0.0
  %v6038 = vadd.f32 %v6036, %v6037
  %v6039 = vsel %vm5222, %v5091, 0.0
  %v6040 = vadd.f32 %v6038, %v6039
  %v6041 = vsel %vm5222, %v5092, 0.0
  %v6042 = vadd.f32 %v6040, %v6041
  %v6043 = vsel %vm5222, %v5093, 0.0
  %v6044 = vadd.f32 %v6042, %v6043
  %v6045 = vrot.slane %v6044, 4
  %v6046 = vadd.f32 %v6044, %v6045
  %v6047 = vrot.slane %v6046, 2
  %v6048 = vadd.f32 %v6046, %v6047
  %v6049 = vrot.slane %v6048, 1
  %v6050 = vadd.f32 %v6048, %v6049
  %v6051 = vsel %vm5222, %v5094, 0.0
  %v6052 = vsel %vm5222, %v5095, 0.0
  %v6053 = vadd.f32 %v6051, %v6052
  %v6054 = vsel %vm5222, %v5096, 0.0
  %v6055 = vadd.f32 %v6053, %v6054
  %v6056 = vsel %vm5222, %v5097, 0.0
  %v6057 = vadd.f32 %v6055, %v6056
  %v6058 = vsel %vm5222, %v5098, 0.0
  %v6059 = vadd.f32 %v6057, %v6058
  %v6060 = vsel %vm5222, %v5099, 0.0
  %v6061 = vadd.f32 %v6059, %v6060
  %v6062 = vsel %vm5222, %v5100, 0.0
  %v6063 = vadd.f32 %v6061, %v6062
  %v6064 = vsel %vm5222, %v5101, 0.0
  %v6065 = vadd.f32 %v6063, %v6064
  %v6066 = vsel %vm5222, %v5102, 0.0
  %v6067 = vadd.f32 %v6065, %v6066
  %v6068 = vsel %vm5222, %v5103, 0.0
  %v6069 = vadd.f32 %v6067, %v6068
  %v6070 = vsel %vm5222, %v5104, 0.0
  %v6071 = vadd.f32 %v6069, %v6070
  %v6072 = vsel %vm5222, %v5105, 0.0
  %v6073 = vadd.f32 %v6071, %v6072
  %v6074 = vsel %vm5222, %v5106, 0.0
  %v6075 = vadd.f32 %v6073, %v6074
  %v6076 = vsel %vm5222, %v5107, 0.0
  %v6077 = vadd.f32 %v6075, %v6076
  %v6078 = vsel %vm5222, %v5108, 0.0
  %v6079 = vadd.f32 %v6077, %v6078
  %v6080 = vsel %vm5222, %v5109, 0.0
  %v6081 = vadd.f32 %v6079, %v6080
  %v6082 = vsel %vm5222, %v5110, 0.0
  %v6083 = vadd.f32 %v6081, %v6082
  %v6084 = vsel %vm5222, %v5111, 0.0
  %v6085 = vadd.f32 %v6083, %v6084
  %v6086 = vsel %vm5222, %v5112, 0.0
  %v6087 = vadd.f32 %v6085, %v6086
  %v6088 = vsel %vm5222, %v5113, 0.0
  %v6089 = vadd.f32 %v6087, %v6088
  %v6090 = vsel %vm5222, %v5114, 0.0
  %v6091 = vadd.f32 %v6089, %v6090
  %v6092 = vsel %vm5222, %v5115, 0.0
  %v6093 = vadd.f32 %v6091, %v6092
  %v6094 = vsel %vm5222, %v5116, 0.0
  %v6095 = vadd.f32 %v6093, %v6094
  %v6096 = vsel %vm5222, %v5117, 0.0
  %v6097 = vadd.f32 %v6095, %v6096
  %v6098 = vsel %vm5222, %v5118, 0.0
  %v6099 = vadd.f32 %v6097, %v6098
  %v6100 = vsel %vm5222, %v5119, 0.0
  %v6101 = vadd.f32 %v6099, %v6100
  %v6102 = vsel %vm5222, %v5120, 0.0
  %v6103 = vadd.f32 %v6101, %v6102
  %v6104 = vsel %vm5222, %v5121, 0.0
  %v6105 = vadd.f32 %v6103, %v6104
  %v6106 = vsel %vm5222, %v5122, 0.0
  %v6107 = vadd.f32 %v6105, %v6106
  %v6108 = vsel %vm5222, %v5123, 0.0
  %v6109 = vadd.f32 %v6107, %v6108
  %v6110 = vsel %vm5222, %v5124, 0.0
  %v6111 = vadd.f32 %v6109, %v6110
  %v6112 = vsel %vm5222, %v5125, 0.0
  %v6113 = vadd.f32 %v6111, %v6112
  %v6114 = vrot.slane %v6113, 4
  %v6115 = vadd.f32 %v6113, %v6114
  %v6116 = vrot.slane %v6115, 2
  %v6117 = vadd.f32 %v6115, %v6116
  %v6118 = vrot.slane %v6117, 1
  %v6119 = vadd.f32 %v6117, %v6118
  %v6120 = vsel %vm5222, %v5126, 0.0
  %v6121 = vsel %vm5222, %v5127, 0.0
  %v6122 = vadd.f32 %v6120, %v6121
  %v6123 = vsel %vm5222, %v5128, 0.0
  %v6124 = vadd.f32 %v6122, %v6123
  %v6125 = vsel %vm5222, %v5129, 0.0
  %v6126 = vadd.f32 %v6124, %v6125
  %v6127 = vsel %vm5222, %v5130, 0.0
  %v6128 = vadd.f32 %v6126, %v6127
  %v6129 = vsel %vm5222, %v5131, 0.0
  %v6130 = vadd.f32 %v6128, %v6129
  %v6131 = vsel %vm5222, %v5132, 0.0
  %v6132 = vadd.f32 %v6130, %v6131
  %v6133 = vsel %vm5222, %v5133, 0.0
  %v6134 = vadd.f32 %v6132, %v6133
  %v6135 = vsel %vm5222, %v5134, 0.0
  %v6136 = vadd.f32 %v6134, %v6135
  %v6137 = vsel %vm5222, %v5135, 0.0
  %v6138 = vadd.f32 %v6136, %v6137
  %v6139 = vsel %vm5222, %v5136, 0.0
  %v6140 = vadd.f32 %v6138, %v6139
  %v6141 = vsel %vm5222, %v5137, 0.0
  %v6142 = vadd.f32 %v6140, %v6141
  %v6143 = vsel %vm5222, %v5138, 0.0
  %v6144 = vadd.f32 %v6142, %v6143
  %v6145 = vsel %vm5222, %v5139, 0.0
  %v6146 = vadd.f32 %v6144, %v6145
  %v6147 = vsel %vm5222, %v5140, 0.0
  %v6148 = vadd.f32 %v6146, %v6147
  %v6149 = vsel %vm5222, %v5141, 0.0
  %v6150 = vadd.f32 %v6148, %v6149
  %v6151 = vsel %vm5222, %v5142, 0.0
  %v6152 = vadd.f32 %v6150, %v6151
  %v6153 = vsel %vm5222, %v5143, 0.0
  %v6154 = vadd.f32 %v6152, %v6153
  %v6155 = vsel %vm5222, %v5144, 0.0
  %v6156 = vadd.f32 %v6154, %v6155
  %v6157 = vsel %vm5222, %v5145, 0.0
  %v6158 = vadd.f32 %v6156, %v6157
  %v6159 = vsel %vm5222, %v5146, 0.0
  %v6160 = vadd.f32 %v6158, %v6159
  %v6161 = vsel %vm5222, %v5147, 0.0
  %v6162 = vadd.f32 %v6160, %v6161
  %v6163 = vsel %vm5222, %v5148, 0.0
  %v6164 = vadd.f32 %v6162, %v6163
  %v6165 = vsel %vm5222, %v5149, 0.0
  %v6166 = vadd.f32 %v6164, %v6165
  %v6167 = vsel %vm5222, %v5150, 0.0
  %v6168 = vadd.f32 %v6166, %v6167
  %v6169 = vsel %vm5222, %v5151, 0.0
  %v6170 = vadd.f32 %v6168, %v6169
  %v6171 = vsel %vm5222, %v5152, 0.0
  %v6172 = vadd.f32 %v6170, %v6171
  %v6173 = vsel %vm5222, %v5153, 0.0
  %v6174 = vadd.f32 %v6172, %v6173
  %v6175 = vsel %vm5222, %v5154, 0.0
  %v6176 = vadd.f32 %v6174, %v6175
  %v6177 = vsel %vm5222, %v5155, 0.0
  %v6178 = vadd.f32 %v6176, %v6177
  %v6179 = vsel %vm5222, %v5156, 0.0
  %v6180 = vadd.f32 %v6178, %v6179
  %v6181 = vsel %vm5222, %v5157, 0.0
  %v6182 = vadd.f32 %v6180, %v6181
  %v6183 = vrot.slane %v6182, 4
  %v6184 = vadd.f32 %v6182, %v6183
  %v6185 = vrot.slane %v6184, 2
  %v6186 = vadd.f32 %v6184, %v6185
  %v6187 = vrot.slane %v6186, 1
  %v6188 = vadd.f32 %v6186, %v6187
  %v6189 = vsel %vm5222, %v5158, 0.0
  %v6190 = vsel %vm5222, %v5159, 0.0
  %v6191 = vadd.f32 %v6189, %v6190
  %v6192 = vsel %vm5222, %v5160, 0.0
  %v6193 = vadd.f32 %v6191, %v6192
  %v6194 = vsel %vm5222, %v5161, 0.0
  %v6195 = vadd.f32 %v6193, %v6194
  %v6196 = vsel %vm5222, %v5162, 0.0
  %v6197 = vadd.f32 %v6195, %v6196
  %v6198 = vsel %vm5222, %v5163, 0.0
  %v6199 = vadd.f32 %v6197, %v6198
  %v6200 = vsel %vm5222, %v5164, 0.0
  %v6201 = vadd.f32 %v6199, %v6200
  %v6202 = vsel %vm5222, %v5165, 0.0
  %v6203 = vadd.f32 %v6201, %v6202
  %v6204 = vsel %vm5222, %v5166, 0.0
  %v6205 = vadd.f32 %v6203, %v6204
  %v6206 = vsel %vm5222, %v5167, 0.0
  %v6207 = vadd.f32 %v6205, %v6206
  %v6208 = vsel %vm5222, %v5168, 0.0
  %v6209 = vadd.f32 %v6207, %v6208
  %v6210 = vsel %vm5222, %v5169, 0.0
  %v6211 = vadd.f32 %v6209, %v6210
  %v6212 = vsel %vm5222, %v5170, 0.0
  %v6213 = vadd.f32 %v6211, %v6212
  %v6214 = vsel %vm5222, %v5171, 0.0
  %v6215 = vadd.f32 %v6213, %v6214
  %v6216 = vsel %vm5222, %v5172, 0.0
  %v6217 = vadd.f32 %v6215, %v6216
  %v6218 = vsel %vm5222, %v5173, 0.0
  %v6219 = vadd.f32 %v6217, %v6218
  %v6220 = vsel %vm5222, %v5174, 0.0
  %v6221 = vadd.f32 %v6219, %v6220
  %v6222 = vsel %vm5222, %v5175, 0.0
  %v6223 = vadd.f32 %v6221, %v6222
  %v6224 = vsel %vm5222, %v5176, 0.0
  %v6225 = vadd.f32 %v6223, %v6224
  %v6226 = vsel %vm5222, %v5177, 0.0
  %v6227 = vadd.f32 %v6225, %v6226
  %v6228 = vsel %vm5222, %v5178, 0.0
  %v6229 = vadd.f32 %v6227, %v6228
  %v6230 = vsel %vm5222, %v5179, 0.0
  %v6231 = vadd.f32 %v6229, %v6230
  %v6232 = vsel %vm5222, %v5180, 0.0
  %v6233 = vadd.f32 %v6231, %v6232
  %v6234 = vsel %vm5222, %v5181, 0.0
  %v6235 = vadd.f32 %v6233, %v6234
  %v6236 = vsel %vm5222, %v5182, 0.0
  %v6237 = vadd.f32 %v6235, %v6236
  %v6238 = vsel %vm5222, %v5183, 0.0
  %v6239 = vadd.f32 %v6237, %v6238
  %v6240 = vsel %vm5222, %v5184, 0.0
  %v6241 = vadd.f32 %v6239, %v6240
  %v6242 = vsel %vm5222, %v5185, 0.0
  %v6243 = vadd.f32 %v6241, %v6242
  %v6244 = vsel %vm5222, %v5186, 0.0
  %v6245 = vadd.f32 %v6243, %v6244
  %v6246 = vsel %vm5222, %v5187, 0.0
  %v6247 = vadd.f32 %v6245, %v6246
  %v6248 = vsel %vm5222, %v5188, 0.0
  %v6249 = vadd.f32 %v6247, %v6248
  %v6250 = vsel %vm5222, %v5189, 0.0
  %v6251 = vadd.f32 %v6249, %v6250
  %v6252 = vrot.slane %v6251, 4
  %v6253 = vadd.f32 %v6251, %v6252
  %v6254 = vrot.slane %v6253, 2
  %v6255 = vadd.f32 %v6253, %v6254
  %v6256 = vrot.slane %v6255, 1
  %v6257 = vadd.f32 %v6255, %v6256
  %v6258 = vsel %vm5222, %v5190, 0.0
  %v6259 = vsel %vm5222, %v5191, 0.0
  %v6260 = vadd.f32 %v6258, %v6259
  %v6261 = vsel %vm5222, %v5192, 0.0
  %v6262 = vadd.f32 %v6260, %v6261
  %v6263 = vsel %vm5222, %v5193, 0.0
  %v6264 = vadd.f32 %v6262, %v6263
  %v6265 = vsel %vm5222, %v5194, 0.0
  %v6266 = vadd.f32 %v6264, %v6265
  %v6267 = vsel %vm5222, %v5195, 0.0
  %v6268 = vadd.f32 %v6266, %v6267
  %v6269 = vsel %vm5222, %v5196, 0.0
  %v6270 = vadd.f32 %v6268, %v6269
  %v6271 = vsel %vm5222, %v5197, 0.0
  %v6272 = vadd.f32 %v6270, %v6271
  %v6273 = vsel %vm5222, %v5198, 0.0
  %v6274 = vadd.f32 %v6272, %v6273
  %v6275 = vsel %vm5222, %v5199, 0.0
  %v6276 = vadd.f32 %v6274, %v6275
  %v6277 = vsel %vm5222, %v5200, 0.0
  %v6278 = vadd.f32 %v6276, %v6277
  %v6279 = vsel %vm5222, %v5201, 0.0
  %v6280 = vadd.f32 %v6278, %v6279
  %v6281 = vsel %vm5222, %v5202, 0.0
  %v6282 = vadd.f32 %v6280, %v6281
  %v6283 = vsel %vm5222, %v5203, 0.0
  %v6284 = vadd.f32 %v6282, %v6283
  %v6285 = vsel %vm5222, %v5204, 0.0
  %v6286 = vadd.f32 %v6284, %v6285
  %v6287 = vsel %vm5222, %v5205, 0.0
  %v6288 = vadd.f32 %v6286, %v6287
  %v6289 = vsel %vm5222, %v5206, 0.0
  %v6290 = vadd.f32 %v6288, %v6289
  %v6291 = vsel %vm5222, %v5207, 0.0
  %v6292 = vadd.f32 %v6290, %v6291
  %v6293 = vsel %vm5222, %v5208, 0.0
  %v6294 = vadd.f32 %v6292, %v6293
  %v6295 = vsel %vm5222, %v5209, 0.0
  %v6296 = vadd.f32 %v6294, %v6295
  %v6297 = vsel %vm5222, %v5210, 0.0
  %v6298 = vadd.f32 %v6296, %v6297
  %v6299 = vsel %vm5222, %v5211, 0.0
  %v6300 = vadd.f32 %v6298, %v6299
  %v6301 = vsel %vm5222, %v5212, 0.0
  %v6302 = vadd.f32 %v6300, %v6301
  %v6303 = vsel %vm5222, %v5213, 0.0
  %v6304 = vadd.f32 %v6302, %v6303
  %v6305 = vsel %vm5222, %v5214, 0.0
  %v6306 = vadd.f32 %v6304, %v6305
  %v6307 = vsel %vm5222, %v5215, 0.0
  %v6308 = vadd.f32 %v6306, %v6307
  %v6309 = vsel %vm5222, %v5216, 0.0
  %v6310 = vadd.f32 %v6308, %v6309
  %v6311 = vsel %vm5222, %v5217, 0.0
  %v6312 = vadd.f32 %v6310, %v6311
  %v6313 = vsel %vm5222, %v5218, 0.0
  %v6314 = vadd.f32 %v6312, %v6313
  %v6315 = vsel %vm5222, %v5219, 0.0
  %v6316 = vadd.f32 %v6314, %v6315
  %v6317 = vsel %vm5222, %v5220, 0.0
  %v6318 = vadd.f32 %v6316, %v6317
  %v6319 = vsel %vm5222, %v5221, 0.0
  %v6320 = vadd.f32 %v6318, %v6319
  %v6321 = vrot.slane %v6320, 4
  %v6322 = vadd.f32 %v6320, %v6321
  %v6323 = vrot.slane %v6322, 2
  %v6324 = vadd.f32 %v6322, %v6323
  %v6325 = vrot.slane %v6324, 1
  %v6326 = vadd.f32 %v6324, %v6325
  %v6327 = vrcp.pop 256.0
  %v6328 = vmul.f32 %v5291, %v6327
  %v6329 = vmul.f32 %v5360, %v6327
  %v6330 = vmul.f32 %v5429, %v6327
  %v6331 = vmul.f32 %v5498, %v6327
  %v6332 = vmul.f32 %v5567, %v6327
  %v6333 = vmul.f32 %v5636, %v6327
  %v6334 = vmul.f32 %v5705, %v6327
  %v6335 = vmul.f32 %v5774, %v6327
  %v6336 = vmul.f32 %v5843, %v6327
  %v6337 = vmul.f32 %v5912, %v6327
  %v6338 = vmul.f32 %v5981, %v6327
  %v6339 = vmul.f32 %v6050, %v6327
  %v6340 = vmul.f32 %v6119, %v6327
  %v6341 = vmul.f32 %v6188, %v6327
  %v6342 = vmul.f32 %v6257, %v6327
  %v6343 = vmul.f32 %v6326, %v6327
  %v6344 = vld [vmem:[%s3] sm:$0xff]
  %v6345 = vld [vmem:[%s3 + $0x8] sm:$0xff]
  %v6346 = vld [vmem:[%s3 + $0x10] sm:$0xff]
  %v6347 = vld [vmem:[%s3 + $0x18] sm:$0xff]
  %v6348 = vld [vmem:[%s4] sm:$0x1]
  %v6350 = vlaneseq
  %v6351 = vshrl.u32 %v6350, 7
  %v6352 = vsub.s32 0, %v6351
  %v6353 = vrot.slane %v6348, %v6352
  %vm6371 = vcmask 1041409
  %v6372 = vsel %vm6371, %v6329, %v6328
  %vm6373 = vcmask 1042434
  %v6374 = vsel %vm6373, %v6330, %v6372
  %vm6375 = vcmask 1043459
  %v6376 = vsel %vm6375, %v6331, %v6374
  %vm6377 = vcmask 1044484
  %v6378 = vsel %vm6377, %v6332, %v6376
  %vm6379 = vcmask 1045509
  %v6380 = vsel %vm6379, %v6333, %v6378
  %vm6381 = vcmask 1046534
  %v6382 = vsel %vm6381, %v6334, %v6380
  %vm6383 = vcmask 1047559
  %v6384 = vsel %vm6383, %v6335, %v6382
  %v6385 = vsel %vm6371, %v6337, %v6336
  %v6386 = vsel %vm6373, %v6338, %v6385
  %v6387 = vsel %vm6375, %v6339, %v6386
  %v6388 = vsel %vm6377, %v6340, %v6387
  %v6389 = vsel %vm6379, %v6341, %v6388
  %v6390 = vsel %vm6381, %v6342, %v6389
  %v6391 = vsel %vm6383, %v6343, %v6390
  %v6392 = vsel %vm5222, %v6384, 0
  %v6394 = vsel %vm5222, %v6391, 0
  %6396 = vmatprep.subr.mxu0 0.0
  %6397 = vmatpush1.msra.mxu0 0.0
  %6398 = vmatprep.subr.mxu0 0.0
  %6399 = vmatpush1.msra.mxu0 0.0
  %6400 = vmatprep.subr.mxu0 0.0
  %6401 = vmatpush1.msra.mxu0 0.0
  %6402 = vmatprep.subr.mxu0 0.0
  %6403 = vmatpush1.msra.mxu0 0.0
  %6404 = vmatprep.subr.mxu0 0.0
  %6405 = vmatpush1.msra.mxu0 0.0
  %6406 = vmatprep.subr.mxu0 0.0
  %6407 = vmatpush1.msra.mxu0 0.0
  %6408 = vmatprep.subr.mxu0 0.0
  %6409 = vmatpush1.msra.mxu0 0.0
  %6410 = vmatprep.subr.mxu0 0.0
  %6411 = vmatpush1.msra.mxu0 0.0
  %6412 = vmatprep.subr.mxu0 0.0
  %6413 = vmatpush1.msra.mxu0 0.0
  %6414 = vmatprep.subr.mxu0 0.0
  %6415 = vmatpush1.msra.mxu0 0.0
  %6416 = vmatprep.subr.mxu0 0.0
  %6417 = vmatpush1.msra.mxu0 0.0
  %6418 = vmatprep.subr.mxu0 0.0
  %6419 = vmatpush1.msra.mxu0 0.0
  %6420 = vmatprep.subr.mxu0 0.0
  %6421 = vmatpush1.msra.mxu0 %v6347
  %6422 = vmatprep.subr.mxu0 0.0
  %6423 = vmatpush1.msra.mxu0 %v6346
  %6424 = vmatprep.subr.mxu0 0.0
  %6425 = vmatpush1.msra.mxu0 %v6345
  %6426 = vmatprep.subr.mxu0 0.0
  %6427 = vmatpush1.msra.mxu0 %v6344
  %6428 = vmatprep.subr.mxu0 0.0
  %6429 = vmatpush2.msra.mxu0 0.0
  %6430 = vmatprep.subr.mxu0 0.0
  %6431 = vmatpush2.msra.mxu0 0.0
  %6432 = vmatprep.subr.mxu0 0.0
  %6433 = vmatpush2.msra.mxu0 0.0
  %6434 = vmatprep.subr.mxu0 0.0
  %6435 = vmatpush2.msra.mxu0 0.0
  %6436 = vmatprep.subr.mxu0 0.0
  %6437 = vmatpush2.msra.mxu0 0.0
  %6438 = vmatprep.subr.mxu0 0.0
  %6439 = vmatpush2.msra.mxu0 0.0
  %6440 = vmatprep.subr.mxu0 0.0
  %6441 = vmatpush2.msra.mxu0 0.0
  %6442 = vmatprep.subr.mxu0 0.0
  %6443 = vmatpush2.msra.mxu0 0.0
  %6444 = vmatprep.subr.mxu0 0.0
  %6445 = vmatpush2.msra.mxu0 0.0
  %6446 = vmatprep.subr.mxu0 0.0
  %6447 = vmatpush2.msra.mxu0 0.0
  %6448 = vmatprep.subr.mxu0 0.0
  %6449 = vmatpush2.msra.mxu0 0.0
  %6450 = vmatprep.subr.mxu0 0.0
  %6451 = vmatpush2.msra.mxu0 0.0
  %6452 = vmatprep.subr.mxu0 0.0
  %6453 = vmatpush2.msra.mxu0 0.0
  %6454 = vmatprep.subr.mxu0 0.0
  %6455 = vmatpush2.msra.mxu0 0.0
  %6456 = vmatprep.subr.mxu0 0.0
  %6457 = vmatpush2.msra.mxu0 0.0
  %6458 = vmatprep.subr.mxu0 0.0
  %6459 = vmatpush2.msra.mxu0 0.0
  %6460 = vmatprep.mubr.f32.mxu0 0.0
  %6461 = vmatmul.mubr.f32.gmra.mxu0 %v6392
  %v6462 = vpop.f32.mrf.mxu0
  %v6463 = vadd.f32 %v6353, %v6462
  %v6464 = vpop.f32.mrf.mxu0
  %6465 = vmatprep.mubr.f32.mxu0 0.0
  %6466 = vmatmul.mubr.f32.gmra.mxu0 %v6394
  %v6467 = vpop.f32.mrf.mxu0
  %v6468 = vadd.f32 %v6353, %v6467
  %v6469 = vpop.f32.mrf.mxu0
  %6470 = vdwg.mxu0
  %6471 = vst [vmem:[%s5] sm:$0xff] %v6463
  %6472 = vst [vmem:[%s5 + $0x8] sm:$0xff] %v6468
  // Predicated region
  $region22: #{cnn_rnn_forward.2} parent=0 // pred_check
    _
  $region23: #{cnn_rnn_forward.2} parent=0 // pred_check_branch
    %6474 = sbr.rel (0) target = $region25
  $region24: #{cnn_rnn_forward.2} parent=0 // pred_region
    _
  $region25: #{cnn_rnn_forward.2} parent=0 // pred_fallthru
    _
  // Predicated region
  $region26: #{cnn_rnn_forward.2} parent=0 // pred_check
    _
  $region27: #{cnn_rnn_forward.2} parent=0 // pred_check_branch
    %6476 = sbr.rel (0) target = $region29
  $region28: #{cnn_rnn_forward.2} parent=0 // pred_region
    _
  $region29: #{cnn_rnn_forward.2} parent=0 // pred_fallthru
    _

</llo_original>
